<compile_context>
chip_gen: v5e
topology: v5e:2x2
jax: 0.10.0
libtpu: 0.0.40
codegen_flags: <defaults>
</compile_context>

<pallas_src>
import jax
import jax.numpy as jnp
from jax.experimental import pallas as pl
from jax.experimental.pallas import tpu as pltpu

IN_DIM = 32 * 32 * 3   # 3072
HID = 400
LATENT = 20
LATENT_PAD = 128       # lane-dense padding of the latent dimension


def _round_up(n, m):
    return ((n + m - 1) // m) * m


def vae_kernel(x_ref, eps_ref,
               w1_ref, b1_ref,
               w21_ref, b21_ref,
               w22_ref, b22_ref,
               w3_ref, b3_ref,
               w4_ref, b4_ref,
               recon_ref, mu_ref, logvar_ref):
    # ---- encode ------------------------------------------------------------
    x = x_ref[...].astype(jnp.bfloat16)
    h1 = jnp.dot(x, w1_ref[...], preferred_element_type=jnp.float32) + b1_ref[...]
    h1 = jnp.maximum(h1, 0.0).astype(jnp.bfloat16)                 # F.relu

    # mu / logvar occupy lanes [0, LATENT); lanes [LATENT, 128) are exactly
    # zero by construction (zero-padded weights and biases), so these tiles
    # are whole (8,128) vregs and the stores below are unmasked lane-dense.
    mu_pad = (jnp.dot(h1, w21_ref[...], preferred_element_type=jnp.float32)
              + b21_ref[...])
    logvar_pad = (jnp.dot(h1, w22_ref[...], preferred_element_type=jnp.float32)
                  + b22_ref[...])

    # ---- reparametrize: z = eps * exp(0.5 * logvar) + mu ---------------------
    # eps is zero in the padded lanes => z is zero there too.
    std = jnp.exp(0.5 * logvar_pad)
    z = (eps_ref[...] * std + mu_pad).astype(jnp.bfloat16)

    # ---- decode --------------------------------------------------------------
    h3 = jnp.dot(z, w3_ref[...], preferred_element_type=jnp.float32) + b3_ref[...]
    h3 = jnp.maximum(h3, 0.0).astype(jnp.bfloat16)                 # F.relu
    recon = jnp.tanh(
        jnp.dot(h3, w4_ref[...], preferred_element_type=jnp.float32) + b4_ref[...])

    recon_ref[...] = recon
    mu_ref[...] = mu_pad
    logvar_ref[...] = logvar_pad


def vae_forward(x, eps, kparams, *, tm=128):
    """x: (B, 3072) f32, eps: (B, 20) f32, kparams: kernel-layout params."""
    B = x.shape[0]
    TM = min(tm, _round_up(B, 8))          # batch tile (rows per grid step)
    B_pad = _round_up(B, TM)
    if B_pad != B:
        x = jnp.pad(x, ((0, B_pad - B), (0, 0)))
        eps = jnp.pad(eps, ((0, B_pad - B), (0, 0)))
    eps_pad = jnp.pad(eps, ((0, 0), (0, LATENT_PAD - LATENT)))

    grid = (B_pad // TM,)

    def batch_spec(cols):
        return pl.BlockSpec((TM, cols), lambda i: (i, 0))

    def resident_spec(shape):
        # Constant index map -> weight/bias tile stays resident in VMEM.
        return pl.BlockSpec(shape, lambda i: (0, 0))

    args = (x, eps_pad,
            kparams["w1"], kparams["b1"],
            kparams["w21p"], kparams["b21p"],
            kparams["w22p"], kparams["b22p"],
            kparams["w3p"], kparams["b3"],
            kparams["w4"], kparams["b4"])

    in_specs = ([batch_spec(IN_DIM), batch_spec(LATENT_PAD)]
                + [resident_spec(a.shape) for a in args[2:]])
    out_specs = (batch_spec(IN_DIM), batch_spec(LATENT_PAD), batch_spec(LATENT_PAD))

    # Advisory cost estimate so XLA schedules/overlaps the call sensibly.
    flops = 2 * B_pad * (IN_DIM * HID + 2 * HID * LATENT_PAD
                         + LATENT_PAD * HID + HID * IN_DIM)
    weight_bytes = sum(int(a.size) * a.dtype.itemsize for a in args[2:])
    bytes_accessed = weight_bytes + B_pad * (IN_DIM * 4 * 2 + LATENT_PAD * 4 * 3)
    transcendentals = B_pad * (LATENT_PAD + IN_DIM)

    recon, mu_pad, logvar_pad = pl.pallas_call(
        vae_kernel,
        grid=grid,
        out_shape=(
            jax.ShapeDtypeStruct((B_pad, IN_DIM), jnp.float32),      # reconstruction
            jax.ShapeDtypeStruct((B_pad, LATENT_PAD), jnp.float32),  # mu   (padded)
            jax.ShapeDtypeStruct((B_pad, LATENT_PAD), jnp.float32),  # logvar (padded)
        ),
        in_specs=in_specs,
        out_specs=out_specs,
        compiler_params=pltpu.CompilerParams(
            dimension_semantics=("parallel",),
            vmem_limit_bytes=32 << 20),
        cost_estimate=pl.CostEstimate(
            flops=flops,
            transcendentals=transcendentals,
            bytes_accessed=bytes_accessed),
    )(*args)

    return recon[:B], mu_pad[:B, :LATENT], logvar_pad[:B, :LATENT]


def init_params(key):
    """Deterministic init mimicking nn.Linear's U(-1/sqrt(fan_in), 1/sqrt(fan_in))."""
    def linear(key, fan_in, fan_out):
        kw, kb = jax.random.split(key)
        bound = 1.0 / jnp.sqrt(float(fan_in))
        w = jax.random.uniform(kw, (fan_in, fan_out), jnp.float32, -bound, bound)
        b = jax.random.uniform(kb, (1, fan_out), jnp.float32, -bound, bound)
        return w, b

    k1, k21, k22, k3, k4 = jax.random.split(key, 5)
    w1, b1 = linear(k1, IN_DIM, HID)
    w21, b21 = linear(k21, HID, LATENT)
    w22, b22 = linear(k22, HID, LATENT)
    w3, b3 = linear(k3, LATENT, HID)
    w4, b4 = linear(k4, HID, IN_DIM)
    return dict(w1=w1, b1=b1, w21=w21, b21=b21, w22=w22, b22=b22,
                w3=w3, b3=b3, w4=w4, b4=b4)


def prepare_kernel_params(p):
    """Kernel-layout params: bf16 weights, latent dims zero-padded to 128 lanes."""
    pad = LATENT_PAD - LATENT
    return dict(
        w1=p["w1"].astype(jnp.bfloat16), b1=p["b1"],
        w21p=jnp.pad(p["w21"], ((0, 0), (0, pad))).astype(jnp.bfloat16),
        b21p=jnp.pad(p["b21"], ((0, 0), (0, pad))),
        w22p=jnp.pad(p["w22"], ((0, 0), (0, pad))).astype(jnp.bfloat16),
        b22p=jnp.pad(p["b22"], ((0, 0), (0, pad))),
        w3p=jnp.pad(p["w3"], ((0, pad), (0, 0))).astype(jnp.bfloat16),
        b3=p["b3"],
        w4=p["w4"].astype(jnp.bfloat16), b4=p["b4"])


def vae_forward_ref(x, eps, p):
    """Pure-JAX f32 reference for correctness checking."""
    h1 = jnp.maximum(x @ p["w1"] + p["b1"], 0.0)
    mu = h1 @ p["w21"] + p["b21"]
    logvar = h1 @ p["w22"] + p["b22"]
    z = eps * jnp.exp(0.5 * logvar) + mu
    h3 = jnp.maximum(z @ p["w3"] + p["b3"], 0.0)
    recon = jnp.tanh(h3 @ p["w4"] + p["b4"])
    return recon, mu, logvar


if __name__ == "__main__":
    key = jax.random.PRNGKey(0)
    k_params, k_x, k_eps = jax.random.split(key, 3)

    B = 8  # small smoke-test batch (multiple of 8 so the sublane dim is full)
    params = init_params(k_params)
    kparams = prepare_kernel_params(params)
    x = jax.random.normal(k_x, (B, IN_DIM), dtype=jnp.float32)
    eps = jax.random.normal(k_eps, (B, LATENT), dtype=jnp.float32)

    recon, mu, logvar = vae_forward(x, eps, kparams)
    jax.block_until_ready((recon, mu, logvar))

    r_ref, mu_ref_, lv_ref = vae_forward_ref(x, eps, params)
    # bf16 weights/activations in the kernel -> loose tolerance vs the f32 ref.
    assert float(jnp.max(jnp.abs(recon - r_ref))) < 5e-2, "recon mismatch"
    assert float(jnp.max(jnp.abs(mu - mu_ref_))) < 5e-2, "mu mismatch"
    assert float(jnp.max(jnp.abs(logvar - lv_ref))) < 5e-2, "logvar mismatch"

    print("KERNEL_OK")
</pallas_src>

<mosaic_0001>
module attributes {stable_mosaic.version = 11 : i64} {
  func.func @vae_kernel(%arg0: i32, %arg1: memref<8x3072xf32, #tpu.memory_space<vmem>>, %arg2: memref<8x128xf32, #tpu.memory_space<vmem>>, %arg3: memref<3072x400xbf16, #tpu.memory_space<vmem>>, %arg4: memref<1x400xf32, #tpu.memory_space<vmem>>, %arg5: memref<400x128xbf16, #tpu.memory_space<vmem>>, %arg6: memref<1x128xf32, #tpu.memory_space<vmem>>, %arg7: memref<400x128xbf16, #tpu.memory_space<vmem>>, %arg8: memref<1x128xf32, #tpu.memory_space<vmem>>, %arg9: memref<128x400xbf16, #tpu.memory_space<vmem>>, %arg10: memref<1x400xf32, #tpu.memory_space<vmem>>, %arg11: memref<400x3072xbf16, #tpu.memory_space<vmem>>, %arg12: memref<1x3072xf32, #tpu.memory_space<vmem>>, %arg13: memref<8x3072xf32, #tpu.memory_space<vmem>>, %arg14: memref<8x128xf32, #tpu.memory_space<vmem>>, %arg15: memref<8x128xf32, #tpu.memory_space<vmem>>) attributes {dimension_semantics = [#tpu.dimension_semantics<parallel>], iteration_bounds = array<i64: 1>, scalar_prefetch = 0 : i64, scratch_operands = 0 : i64, tpu.core_type = #tpu.core_type<tc>, window_params = [{transform_indices = @transform_0, window_bounds = array<i64: 8, 3072>}, {transform_indices = @transform_1, window_bounds = array<i64: 8, 128>}, {pipeline_mode = #tpu.pipeline_mode<synchronous>, transform_indices = @transform_2, window_bounds = array<i64: 3072, 400>}, {pipeline_mode = #tpu.pipeline_mode<synchronous>, transform_indices = @transform_3, window_bounds = array<i64: 1, 400>}, {pipeline_mode = #tpu.pipeline_mode<synchronous>, transform_indices = @transform_4, window_bounds = array<i64: 400, 128>}, {pipeline_mode = #tpu.pipeline_mode<synchronous>, transform_indices = @transform_5, window_bounds = array<i64: 1, 128>}, {pipeline_mode = #tpu.pipeline_mode<synchronous>, transform_indices = @transform_6, window_bounds = array<i64: 400, 128>}, {pipeline_mode = #tpu.pipeline_mode<synchronous>, transform_indices = @transform_7, window_bounds = array<i64: 1, 128>}, {pipeline_mode = #tpu.pipeline_mode<synchronous>, transform_indices = @transform_8, window_bounds = array<i64: 128, 400>}, {pipeline_mode = #tpu.pipeline_mode<synchronous>, transform_indices = @transform_9, window_bounds = array<i64: 1, 400>}, {pipeline_mode = #tpu.pipeline_mode<synchronous>, transform_indices = @transform_10, window_bounds = array<i64: 400, 3072>}, {pipeline_mode = #tpu.pipeline_mode<synchronous>, transform_indices = @transform_11, window_bounds = array<i64: 1, 3072>}, {transform_indices = @transform_12, window_bounds = array<i64: 8, 3072>}, {transform_indices = @transform_13, window_bounds = array<i64: 8, 128>}, {transform_indices = @transform_14, window_bounds = array<i64: 8, 128>}]} {
    %c0 = arith.constant 0 : index
    %c0_0 = arith.constant 0 : index
    %0 = vector.load %arg1[%c0, %c0_0] : memref<8x3072xf32, #tpu.memory_space<vmem>>, vector<8x3072xf32>
    %1 = arith.truncf %0 : vector<8x3072xf32> to vector<8x3072xbf16>
    %c0_1 = arith.constant 0 : index
    %c0_2 = arith.constant 0 : index
    %2 = vector.load %arg3[%c0_1, %c0_2] : memref<3072x400xbf16, #tpu.memory_space<vmem>>, vector<3072x400xbf16>
    %cst = arith.constant dense<0.000000e+00> : vector<8x400xf32>
    %3 = tpu.matmul %1, %2, %cst {dimension_numbers = #tpu.dot_dimension_numbers<[1], [0], [0], [1], [0, 0, 1, 1], [], []>} : vector<8x3072xbf16>, vector<3072x400xbf16>, vector<8x400xf32> -> vector<8x400xf32>
    %c0_3 = arith.constant 0 : index
    %c0_4 = arith.constant 0 : index
    %4 = vector.load %arg4[%c0_3, %c0_4] : memref<1x400xf32, #tpu.memory_space<vmem>>, vector<1x400xf32>
    %5 = vector.broadcast %4 : vector<1x400xf32> to vector<8x400xf32>
    %6 = arith.addf %3, %5 : vector<8x400xf32>
    %cst_5 = arith.constant 0.000000e+00 : f32
    %7 = vector.broadcast %cst_5 : f32 to vector<8x400xf32>
    %8 = arith.maximumf %6, %7 : vector<8x400xf32>
    %9 = arith.truncf %8 : vector<8x400xf32> to vector<8x400xbf16>
    %c0_6 = arith.constant 0 : index
    %c0_7 = arith.constant 0 : index
    %10 = vector.load %arg5[%c0_6, %c0_7] : memref<400x128xbf16, #tpu.memory_space<vmem>>, vector<400x128xbf16>
    %cst_8 = arith.constant dense<0.000000e+00> : vector<8x128xf32>
    %11 = tpu.matmul %9, %10, %cst_8 {dimension_numbers = #tpu.dot_dimension_numbers<[1], [0], [0], [1], [0, 0, 1, 1], [], []>} : vector<8x400xbf16>, vector<400x128xbf16>, vector<8x128xf32> -> vector<8x128xf32>
    %c0_9 = arith.constant 0 : index
    %c0_10 = arith.constant 0 : index
    %12 = vector.load %arg6[%c0_9, %c0_10] : memref<1x128xf32, #tpu.memory_space<vmem>>, vector<1x128xf32>
    %13 = vector.broadcast %12 : vector<1x128xf32> to vector<8x128xf32>
    %14 = arith.addf %11, %13 : vector<8x128xf32>
    %c0_11 = arith.constant 0 : index
    %c0_12 = arith.constant 0 : index
    %15 = vector.load %arg7[%c0_11, %c0_12] : memref<400x128xbf16, #tpu.memory_space<vmem>>, vector<400x128xbf16>
    %cst_13 = arith.constant dense<0.000000e+00> : vector<8x128xf32>
    %16 = tpu.matmul %9, %15, %cst_13 {dimension_numbers = #tpu.dot_dimension_numbers<[1], [0], [0], [1], [0, 0, 1, 1], [], []>} : vector<8x400xbf16>, vector<400x128xbf16>, vector<8x128xf32> -> vector<8x128xf32>
    %c0_14 = arith.constant 0 : index
    %c0_15 = arith.constant 0 : index
    %17 = vector.load %arg8[%c0_14, %c0_15] : memref<1x128xf32, #tpu.memory_space<vmem>>, vector<1x128xf32>
    %18 = vector.broadcast %17 : vector<1x128xf32> to vector<8x128xf32>
    %19 = arith.addf %16, %18 : vector<8x128xf32>
    %cst_16 = arith.constant 5.000000e-01 : f32
    %20 = vector.broadcast %cst_16 : f32 to vector<8x128xf32>
    %21 = arith.mulf %20, %19 : vector<8x128xf32>
    %22 = math.exp %21 : vector<8x128xf32>
    %c0_17 = arith.constant 0 : index
    %c0_18 = arith.constant 0 : index
    %23 = vector.load %arg2[%c0_17, %c0_18] : memref<8x128xf32, #tpu.memory_space<vmem>>, vector<8x128xf32>
    %24 = arith.mulf %23, %22 : vector<8x128xf32>
    %25 = arith.addf %24, %14 : vector<8x128xf32>
    %26 = arith.truncf %25 : vector<8x128xf32> to vector<8x128xbf16>
    %c0_19 = arith.constant 0 : index
    %c0_20 = arith.constant 0 : index
    %27 = vector.load %arg9[%c0_19, %c0_20] : memref<128x400xbf16, #tpu.memory_space<vmem>>, vector<128x400xbf16>
    %cst_21 = arith.constant dense<0.000000e+00> : vector<8x400xf32>
    %28 = tpu.matmul %26, %27, %cst_21 {dimension_numbers = #tpu.dot_dimension_numbers<[1], [0], [0], [1], [0, 0, 1, 1], [], []>} : vector<8x128xbf16>, vector<128x400xbf16>, vector<8x400xf32> -> vector<8x400xf32>
    %c0_22 = arith.constant 0 : index
    %c0_23 = arith.constant 0 : index
    %29 = vector.load %arg10[%c0_22, %c0_23] : memref<1x400xf32, #tpu.memory_space<vmem>>, vector<1x400xf32>
    %30 = vector.broadcast %29 : vector<1x400xf32> to vector<8x400xf32>
    %31 = arith.addf %28, %30 : vector<8x400xf32>
    %cst_24 = arith.constant 0.000000e+00 : f32
    %32 = vector.broadcast %cst_24 : f32 to vector<8x400xf32>
    %33 = arith.maximumf %31, %32 : vector<8x400xf32>
    %34 = arith.truncf %33 : vector<8x400xf32> to vector<8x400xbf16>
    %c0_25 = arith.constant 0 : index
    %c0_26 = arith.constant 0 : index
    %35 = vector.load %arg11[%c0_25, %c0_26] : memref<400x3072xbf16, #tpu.memory_space<vmem>>, vector<400x3072xbf16>
    %cst_27 = arith.constant dense<0.000000e+00> : vector<8x3072xf32>
    %36 = tpu.matmul %34, %35, %cst_27 {dimension_numbers = #tpu.dot_dimension_numbers<[1], [0], [0], [1], [0, 0, 1, 1], [], []>} : vector<8x400xbf16>, vector<400x3072xbf16>, vector<8x3072xf32> -> vector<8x3072xf32>
    %c0_28 = arith.constant 0 : index
    %c0_29 = arith.constant 0 : index
    %37 = vector.load %arg12[%c0_28, %c0_29] : memref<1x3072xf32, #tpu.memory_space<vmem>>, vector<1x3072xf32>
    %38 = vector.broadcast %37 : vector<1x3072xf32> to vector<8x3072xf32>
    %39 = arith.addf %36, %38 : vector<8x3072xf32>
    %40 = math.tanh %39 : vector<8x3072xf32>
    %c0_30 = arith.constant 0 : index
    %c0_31 = arith.constant 0 : index
    %41 = vector.load %arg13[%c0_30, %c0_31] : memref<8x3072xf32, #tpu.memory_space<vmem>>, vector<8x3072xf32>
    tpu.vector_store %arg13[%c0_30, %c0_31], %40 {strides = array<i32>} : memref<8x3072xf32, #tpu.memory_space<vmem>>, vector<8x3072xf32>,
    %c0_32 = arith.constant 0 : index
    %c0_33 = arith.constant 0 : index
    %42 = vector.load %arg14[%c0_32, %c0_33] : memref<8x128xf32, #tpu.memory_space<vmem>>, vector<8x128xf32>
    tpu.vector_store %arg14[%c0_32, %c0_33], %14 {strides = array<i32>} : memref<8x128xf32, #tpu.memory_space<vmem>>, vector<8x128xf32>,
    %c0_34 = arith.constant 0 : index
    %c0_35 = arith.constant 0 : index
    %43 = vector.load %arg15[%c0_34, %c0_35] : memref<8x128xf32, #tpu.memory_space<vmem>>, vector<8x128xf32>
    tpu.vector_store %arg15[%c0_34, %c0_35], %19 {strides = array<i32>} : memref<8x128xf32, #tpu.memory_space<vmem>>, vector<8x128xf32>,
    return
  }
  func.func @transform_0(%arg0: i32) -> (i32, i32) {
    %c0_i32 = arith.constant 0 : i32
    %c0_i32_0 = arith.constant 0 : i32
    return %arg0, %c0_i32 : i32, i32
  }
  func.func @transform_1(%arg0: i32) -> (i32, i32) {
    %c0_i32 = arith.constant 0 : i32
    %c0_i32_0 = arith.constant 0 : i32
    return %arg0, %c0_i32 : i32, i32
  }
  func.func @transform_2(%arg0: i32) -> (i32, i32) {
    %c0_i32 = arith.constant 0 : i32
    %c0_i32_0 = arith.constant 0 : i32
    %c0_i32_1 = arith.constant 0 : i32
    return %c0_i32, %c0_i32_0 : i32, i32
  }
  func.func @transform_3(%arg0: i32) -> (i32, i32) {
    %c0_i32 = arith.constant 0 : i32
    %c0_i32_0 = arith.constant 0 : i32
    %c0_i32_1 = arith.constant 0 : i32
    return %c0_i32, %c0_i32_0 : i32, i32
  }
  func.func @transform_4(%arg0: i32) -> (i32, i32) {
    %c0_i32 = arith.constant 0 : i32
    %c0_i32_0 = arith.constant 0 : i32
    %c0_i32_1 = arith.constant 0 : i32
    return %c0_i32, %c0_i32_0 : i32, i32
  }
  func.func @transform_5(%arg0: i32) -> (i32, i32) {
    %c0_i32 = arith.constant 0 : i32
    %c0_i32_0 = arith.constant 0 : i32
    %c0_i32_1 = arith.constant 0 : i32
    return %c0_i32, %c0_i32_0 : i32, i32
  }
  func.func @transform_6(%arg0: i32) -> (i32, i32) {
    %c0_i32 = arith.constant 0 : i32
    %c0_i32_0 = arith.constant 0 : i32
    %c0_i32_1 = arith.constant 0 : i32
    return %c0_i32, %c0_i32_0 : i32, i32
  }
  func.func @transform_7(%arg0: i32) -> (i32, i32) {
    %c0_i32 = arith.constant 0 : i32
    %c0_i32_0 = arith.constant 0 : i32
    %c0_i32_1 = arith.constant 0 : i32
    return %c0_i32, %c0_i32_0 : i32, i32
  }
  func.func @transform_8(%arg0: i32) -> (i32, i32) {
    %c0_i32 = arith.constant 0 : i32
    %c0_i32_0 = arith.constant 0 : i32
    %c0_i32_1 = arith.constant 0 : i32
    return %c0_i32, %c0_i32_0 : i32, i32
  }
  func.func @transform_9(%arg0: i32) -> (i32, i32) {
    %c0_i32 = arith.constant 0 : i32
    %c0_i32_0 = arith.constant 0 : i32
    %c0_i32_1 = arith.constant 0 : i32
    return %c0_i32, %c0_i32_0 : i32, i32
  }
  func.func @transform_10(%arg0: i32) -> (i32, i32) {
    %c0_i32 = arith.constant 0 : i32
    %c0_i32_0 = arith.constant 0 : i32
    %c0_i32_1 = arith.constant 0 : i32
    return %c0_i32, %c0_i32_0 : i32, i32
  }
  func.func @transform_11(%arg0: i32) -> (i32, i32) {
    %c0_i32 = arith.constant 0 : i32
    %c0_i32_0 = arith.constant 0 : i32
    %c0_i32_1 = arith.constant 0 : i32
    return %c0_i32, %c0_i32_0 : i32, i32
  }
  func.func @transform_12(%arg0: i32) -> (i32, i32) {
    %c0_i32 = arith.constant 0 : i32
    %c0_i32_0 = arith.constant 0 : i32
    return %arg0, %c0_i32 : i32, i32
  }
  func.func @transform_13(%arg0: i32) -> (i32, i32) {
    %c0_i32 = arith.constant 0 : i32
    %c0_i32_0 = arith.constant 0 : i32
    return %arg0, %c0_i32 : i32, i32
  }
  func.func @transform_14(%arg0: i32) -> (i32, i32) {
    %c0_i32 = arith.constant 0 : i32
    %c0_i32_0 = arith.constant 0 : i32
    return %arg0, %c0_i32 : i32, i32
  }
}

</mosaic_0001>

<llo_original>
// kernel: tpu_custom_call.1
$region0: #{tpu_custom_call.1}
  #allocation0 [shape = 'u32[]', space=smem, size = 0x4, offset = 0x4, fixed_abs, tag = 'smem constant byte address 0x4 - core index']
  #allocation1 [shape = 'u32[72,128]{1,0:T(1,128)}', space=vmem, size = 0x9000, scoped, tag = 'internal scratch']
  %s0 = inlined_call_operand.vmem [shape: f32[8,3072], index: 0, kind: input, shape index: {}]
  %s1 = inlined_call_operand.vmem [shape: f32[8,128], index: 1, kind: input, shape index: {}]
  %s2 = inlined_call_operand.vmem [shape: bf16[3072,400], index: 2, kind: input, shape index: {}]
  %s3 = inlined_call_operand.vmem [shape: f32[1,400], index: 3, kind: input, shape index: {}]
  %s4 = inlined_call_operand.vmem [shape: bf16[400,128], index: 4, kind: input, shape index: {}]
  %s5 = inlined_call_operand.vmem [shape: f32[1,128], index: 5, kind: input, shape index: {}]
  %s6 = inlined_call_operand.vmem [shape: bf16[400,128], index: 6, kind: input, shape index: {}]
  %s7 = inlined_call_operand.vmem [shape: f32[1,128], index: 7, kind: input, shape index: {}]
  %s8 = inlined_call_operand.vmem [shape: bf16[128,400], index: 8, kind: input, shape index: {}]
  %s9 = inlined_call_operand.vmem [shape: f32[1,400], index: 9, kind: input, shape index: {}]
  %s10 = inlined_call_operand.vmem [shape: bf16[400,3072], index: 10, kind: input, shape index: {}]
  %s11 = inlined_call_operand.vmem [shape: f32[1,3072], index: 11, kind: input, shape index: {}]
  %s12 = inlined_call_operand.hbm [shape: f32[8,3072], index: 12, kind: output, shape index: {0}]
  %s13 = inlined_call_operand.hbm [shape: f32[8,128], index: 13, kind: output, shape index: {1}]
  %s14 = inlined_call_operand.hbm [shape: f32[8,128], index: 14, kind: output, shape index: {2}]
  %15 = xla_tuple %s12, %s13, %s14
  %s16 = sld [smem:[#allocation0]]
  $region74: #{tpu_custom_call.1} parent=0
    _
  %s18 = ssub.s32 1, %s16
  %s19 = scalar_select 0, %s18, %s16
  $region1: #{tpu_custom_call.1} parent=0
    #allocation2 [shape = 'u8[98304]{0}', space=vmem, size = 0x18000, scoped, tag = 'output window, operand 0, single buffered']
    #allocation3 [shape = 's32[1]{0}', space=sflag, size = 0x4, scoped, tag = 'scoped memory for tpu_custom_call.1']
    #allocation4 [shape = 'u8[4096]{0}', space=vmem, size = 0x1000, scoped, tag = 'output window, operand 1, single buffered']
    #allocation5 [shape = 's32[1]{0}', space=sflag, size = 0x4, scoped, tag = 'scoped memory for tpu_custom_call.1']
    #allocation6 [shape = 'u8[4096]{0}', space=vmem, size = 0x1000, scoped, tag = 'output window, operand 2, single buffered']
    %20 = vsyncpa [#allocation3], 0
    %21 = vsyncpa [#allocation5], 0
    // Predicated region
    $region2: #{tpu_custom_call.1} parent=1 // pred_check
      _
    $region3: #{tpu_custom_call.1} parent=1 // pred_check_branch
      %23 = sbr.rel (0) target = $region5
    $region4: #{tpu_custom_call.1} parent=1 // pred_region
      _
    $region5: #{tpu_custom_call.1} parent=1 // pred_fallthru
      _
    // Predicated region
    $region6: #{tpu_custom_call.1} parent=1 // pred_check
      _
    $region7: #{tpu_custom_call.1} parent=1 // pred_check_branch
      %25 = sbr.rel (0) target = $region9
    $region8: #{tpu_custom_call.1} parent=1 // pred_region
      _
    $region9: #{tpu_custom_call.1} parent=1 // pred_fallthru
      _
    // Predicated region
    $region10: #{tpu_custom_call.1} parent=1 // pred_check
      _
    $region11: #{tpu_custom_call.1} parent=1 // pred_check_branch
      %27 = sbr.rel (0) target = $region13
    $region12: #{tpu_custom_call.1} parent=1 // pred_region
      _
    $region13: #{tpu_custom_call.1} parent=1 // pred_fallthru
      _
    // Predicated region
    $region14: #{tpu_custom_call.1} parent=1 // pred_check
      _
    $region15: #{tpu_custom_call.1} parent=1 // pred_check_branch
      %29 = sbr.rel (0) target = $region17
    $region16: #{tpu_custom_call.1} parent=1 // pred_region
      _
    $region17: #{tpu_custom_call.1} parent=1 // pred_fallthru
      _
    // Predicated region
    $region18: #{tpu_custom_call.1} parent=1 // pred_check
      _
    $region19: #{tpu_custom_call.1} parent=1 // pred_check_branch
      %31 = sbr.rel (0) target = $region21
    $region20: #{tpu_custom_call.1} parent=1 // pred_region
      _
    $region21: #{tpu_custom_call.1} parent=1 // pred_fallthru
      _
    // Predicated region
    $region22: #{tpu_custom_call.1} parent=1 // pred_check
      _
    $region23: #{tpu_custom_call.1} parent=1 // pred_check_branch
      %33 = sbr.rel (0) target = $region25
    $region24: #{tpu_custom_call.1} parent=1 // pred_region
      _
    $region25: #{tpu_custom_call.1} parent=1 // pred_fallthru
      _
    // Predicated region
    $region26: #{tpu_custom_call.1} parent=1 // pred_check
      _
    $region27: #{tpu_custom_call.1} parent=1 // pred_check_branch
      %35 = sbr.rel (0) target = $region29
    $region28: #{tpu_custom_call.1} parent=1 // pred_region
      _
    $region29: #{tpu_custom_call.1} parent=1 // pred_fallthru
      _
    // Predicated region
    $region30: #{tpu_custom_call.1} parent=1 // pred_check
      _
    $region31: #{tpu_custom_call.1} parent=1 // pred_check_branch
      %37 = sbr.rel (0) target = $region33
    $region32: #{tpu_custom_call.1} parent=1 // pred_region
      _
    $region33: #{tpu_custom_call.1} parent=1 // pred_fallthru
      _
    // Predicated region
    $region34: #{tpu_custom_call.1} parent=1 // pred_check
      _
    $region35: #{tpu_custom_call.1} parent=1 // pred_check_branch
      %39 = sbr.rel (0) target = $region37
    $region36: #{tpu_custom_call.1} parent=1 // pred_region
      _
    $region37: #{tpu_custom_call.1} parent=1 // pred_fallthru
      _
    // Predicated region
    $region38: #{tpu_custom_call.1} parent=1 // pred_check
      _
    $region39: #{tpu_custom_call.1} parent=1 // pred_check_branch
      %41 = sbr.rel (0) target = $region41
    $region40: #{tpu_custom_call.1} parent=1 // pred_region
      _
    $region41: #{tpu_custom_call.1} parent=1 // pred_fallthru
      _
    // Predicated region
    $region42: #{tpu_custom_call.1} parent=1 // pred_check
      _
    $region43: #{tpu_custom_call.1} parent=1 // pred_check_branch
      %43 = sbr.rel (0) target = $region45
    $region44: #{tpu_custom_call.1} parent=1 // pred_region
      _
    $region45: #{tpu_custom_call.1} parent=1 // pred_fallthru
      _
    // Predicated region
    $region46: #{tpu_custom_call.1} parent=1 // pred_check
      _
    $region47: #{tpu_custom_call.1} parent=1 // pred_check_branch
      %45 = sbr.rel (0) target = $region49
    $region48: #{tpu_custom_call.1} parent=1 // pred_region
      _
    $region49: #{tpu_custom_call.1} parent=1 // pred_fallthru
      _
    %v47 = vld [vmem:[%s0] sm:$0xff]
    %v48 = vld [vmem:[%s0 + $0x8] sm:$0xff]
    %v49 = vld [vmem:[%s0 + $0x10] sm:$0xff]
    %v50 = vld [vmem:[%s0 + $0x18] sm:$0xff]
    %v51 = vld [vmem:[%s0 + $0x20] sm:$0xff]
    %v52 = vld [vmem:[%s0 + $0x28] sm:$0xff]
    %v53 = vld [vmem:[%s0 + $0x30] sm:$0xff]
    %v54 = vld [vmem:[%s0 + $0x38] sm:$0xff]
    %v55 = vld [vmem:[%s0 + $0x40] sm:$0xff]
    %v56 = vld [vmem:[%s0 + $0x48] sm:$0xff]
    %v57 = vld [vmem:[%s0 + $0x50] sm:$0xff]
    %v58 = vld [vmem:[%s0 + $0x58] sm:$0xff]
    %v59 = vld [vmem:[%s0 + $0x60] sm:$0xff]
    %v60 = vld [vmem:[%s0 + $0x68] sm:$0xff]
    %v61 = vld [vmem:[%s0 + $0x70] sm:$0xff]
    %v62 = vld [vmem:[%s0 + $0x78] sm:$0xff]
    %v63 = vld [vmem:[%s0 + $0x80] sm:$0xff]
    %v64 = vld [vmem:[%s0 + $0x88] sm:$0xff]
    %v65 = vld [vmem:[%s0 + $0x90] sm:$0xff]
    %v66 = vld [vmem:[%s0 + $0x98] sm:$0xff]
    %v67 = vld [vmem:[%s0 + $0xa0] sm:$0xff]
    %v68 = vld [vmem:[%s0 + $0xa8] sm:$0xff]
    %v69 = vld [vmem:[%s0 + $0xb0] sm:$0xff]
    %v70 = vld [vmem:[%s0 + $0xb8] sm:$0xff]
    %v71 = vpack.c.bf16 %v47, %v47
    %v72 = vpack.c.bf16 %v48, %v48
    %v73 = vpack.c.bf16 %v49, %v49
    %v74 = vpack.c.bf16 %v50, %v50
    %v75 = vpack.c.bf16 %v51, %v51
    %v76 = vpack.c.bf16 %v52, %v52
    %v77 = vpack.c.bf16 %v53, %v53
    %v78 = vpack.c.bf16 %v54, %v54
    %v79 = vpack.c.bf16 %v55, %v55
    %v80 = vpack.c.bf16 %v56, %v56
    %v81 = vpack.c.bf16 %v57, %v57
    %v82 = vpack.c.bf16 %v58, %v58
    %v83 = vpack.c.bf16 %v59, %v59
    %v84 = vpack.c.bf16 %v60, %v60
    %v85 = vpack.c.bf16 %v61, %v61
    %v86 = vpack.c.bf16 %v62, %v62
    %v87 = vpack.c.bf16 %v63, %v63
    %v88 = vpack.c.bf16 %v64, %v64
    %v89 = vpack.c.bf16 %v65, %v65
    %v90 = vpack.c.bf16 %v66, %v66
    %v91 = vpack.c.bf16 %v67, %v67
    %v92 = vpack.c.bf16 %v68, %v68
    %v93 = vpack.c.bf16 %v69, %v69
    %v94 = vpack.c.bf16 %v70, %v70
    %v95 = vld [vmem:[%s2] sm:$0xff]
    %v96 = vld [vmem:[%s2 + $0x8] sm:$0xff]
    %v97 = vld [vmem:[%s2 + $0x10] sm:$0xff]
    %v98 = vld [vmem:[%s2 + $0x18] sm:$0xff]
    %v99 = vld [vmem:[%s2 + $0x20] sm:$0xff]
    %v100 = vld [vmem:[%s2 + $0x28] sm:$0xff]
    %v101 = vld [vmem:[%s2 + $0x30] sm:$0xff]
    %v102 = vld [vmem:[%s2 + $0x38] sm:$0xff]
    %v103 = vld [vmem:[%s2 + $0x40] sm:$0xff]
    %v104 = vld [vmem:[%s2 + $0x48] sm:$0xff]
    %v105 = vld [vmem:[%s2 + $0x50] sm:$0xff]
    %v106 = vld [vmem:[%s2 + $0x58] sm:$0xff]
    %v107 = vld [vmem:[%s2 + $0x60] sm:$0xff]
    %v108 = vld [vmem:[%s2 + $0x68] sm:$0xff]
    %v109 = vld [vmem:[%s2 + $0x70] sm:$0xff]
    %v110 = vld [vmem:[%s2 + $0x78] sm:$0xff]
    %v111 = vld [vmem:[%s2 + $0x80] sm:$0xff]
    %v112 = vld [vmem:[%s2 + $0x88] sm:$0xff]
    %v113 = vld [vmem:[%s2 + $0x90] sm:$0xff]
    %v114 = vld [vmem:[%s2 + $0x98] sm:$0xff]
    %v115 = vld [vmem:[%s2 + $0xa0] sm:$0xff]
    %v116 = vld [vmem:[%s2 + $0xa8] sm:$0xff]
    %v117 = vld [vmem:[%s2 + $0xb0] sm:$0xff]
    %v118 = vld [vmem:[%s2 + $0xb8] sm:$0xff]
    %v119 = vld [vmem:[%s2 + $0xc0] sm:$0xff]
    %v120 = vld [vmem:[%s2 + $0xc8] sm:$0xff]
    %v121 = vld [vmem:[%s2 + $0xd0] sm:$0xff]
    %v122 = vld [vmem:[%s2 + $0xd8] sm:$0xff]
    %v123 = vld [vmem:[%s2 + $0xe0] sm:$0xff]
    %v124 = vld [vmem:[%s2 + $0xe8] sm:$0xff]
    %v125 = vld [vmem:[%s2 + $0xf0] sm:$0xff]
    %v126 = vld [vmem:[%s2 + $0xf8] sm:$0xff]
    %v127 = vld [vmem:[%s2 + $0x100] sm:$0xff]
    %v128 = vld [vmem:[%s2 + $0x108] sm:$0xff]
    %v129 = vld [vmem:[%s2 + $0x110] sm:$0xff]
    %v130 = vld [vmem:[%s2 + $0x118] sm:$0xff]
    %v131 = vld [vmem:[%s2 + $0x120] sm:$0xff]
    %v132 = vld [vmem:[%s2 + $0x128] sm:$0xff]
    %v133 = vld [vmem:[%s2 + $0x130] sm:$0xff]
    %v134 = vld [vmem:[%s2 + $0x138] sm:$0xff]
    %v135 = vld [vmem:[%s2 + $0x140] sm:$0xff]
    %v136 = vld [vmem:[%s2 + $0x148] sm:$0xff]
    %v137 = vld [vmem:[%s2 + $0x150] sm:$0xff]
    %v138 = vld [vmem:[%s2 + $0x158] sm:$0xff]
    %v139 = vld [vmem:[%s2 + $0x160] sm:$0xff]
    %v140 = vld [vmem:[%s2 + $0x168] sm:$0xff]
    %v141 = vld [vmem:[%s2 + $0x170] sm:$0xff]
    %v142 = vld [vmem:[%s2 + $0x178] sm:$0xff]
    %v143 = vld [vmem:[%s2 + $0x180] sm:$0xff]
    %v144 = vld [vmem:[%s2 + $0x188] sm:$0xff]
    %v145 = vld [vmem:[%s2 + $0x190] sm:$0xff]
    %v146 = vld [vmem:[%s2 + $0x198] sm:$0xff]
    %v147 = vld [vmem:[%s2 + $0x1a0] sm:$0xff]
    %v148 = vld [vmem:[%s2 + $0x1a8] sm:$0xff]
    %v149 = vld [vmem:[%s2 + $0x1b0] sm:$0xff]
    %v150 = vld [vmem:[%s2 + $0x1b8] sm:$0xff]
    %v151 = vld [vmem:[%s2 + $0x1c0] sm:$0xff]
    %v152 = vld [vmem:[%s2 + $0x1c8] sm:$0xff]
    %v153 = vld [vmem:[%s2 + $0x1d0] sm:$0xff]
    %v154 = vld [vmem:[%s2 + $0x1d8] sm:$0xff]
    %v155 = vld [vmem:[%s2 + $0x1e0] sm:$0xff]
    %v156 = vld [vmem:[%s2 + $0x1e8] sm:$0xff]
    %v157 = vld [vmem:[%s2 + $0x1f0] sm:$0xff]
    %v158 = vld [vmem:[%s2 + $0x1f8] sm:$0xff]
    %v159 = vld [vmem:[%s2 + $0x200] sm:$0xff]
    %v160 = vld [vmem:[%s2 + $0x208] sm:$0xff]
    %v161 = vld [vmem:[%s2 + $0x210] sm:$0xff]
    %v162 = vld [vmem:[%s2 + $0x218] sm:$0xff]
    %v163 = vld [vmem:[%s2 + $0x220] sm:$0xff]
    %v164 = vld [vmem:[%s2 + $0x228] sm:$0xff]
    %v165 = vld [vmem:[%s2 + $0x230] sm:$0xff]
    %v166 = vld [vmem:[%s2 + $0x238] sm:$0xff]
    %v167 = vld [vmem:[%s2 + $0x240] sm:$0xff]
    %v168 = vld [vmem:[%s2 + $0x248] sm:$0xff]
    %v169 = vld [vmem:[%s2 + $0x250] sm:$0xff]
    %v170 = vld [vmem:[%s2 + $0x258] sm:$0xff]
    %v171 = vld [vmem:[%s2 + $0x260] sm:$0xff]
    %v172 = vld [vmem:[%s2 + $0x268] sm:$0xff]
    %v173 = vld [vmem:[%s2 + $0x270] sm:$0xff]
    %v174 = vld [vmem:[%s2 + $0x278] sm:$0xff]
    %v175 = vld [vmem:[%s2 + $0x280] sm:$0xff]
    %v176 = vld [vmem:[%s2 + $0x288] sm:$0xff]
    %v177 = vld [vmem:[%s2 + $0x290] sm:$0xff]
    %v178 = vld [vmem:[%s2 + $0x298] sm:$0xff]
    %v179 = vld [vmem:[%s2 + $0x2a0] sm:$0xff]
    %v180 = vld [vmem:[%s2 + $0x2a8] sm:$0xff]
    %v181 = vld [vmem:[%s2 + $0x2b0] sm:$0xff]
    %v182 = vld [vmem:[%s2 + $0x2b8] sm:$0xff]
    %v183 = vld [vmem:[%s2 + $0x2c0] sm:$0xff]
    %v184 = vld [vmem:[%s2 + $0x2c8] sm:$0xff]
    %v185 = vld [vmem:[%s2 + $0x2d0] sm:$0xff]
    %v186 = vld [vmem:[%s2 + $0x2d8] sm:$0xff]
    %v187 = vld [vmem:[%s2 + $0x2e0] sm:$0xff]
    %v188 = vld [vmem:[%s2 + $0x2e8] sm:$0xff]
    %v189 = vld [vmem:[%s2 + $0x2f0] sm:$0xff]
    %v190 = vld [vmem:[%s2 + $0x2f8] sm:$0xff]
    %v191 = vld [vmem:[%s2 + $0x300] sm:$0xff]
    %v192 = vld [vmem:[%s2 + $0x308] sm:$0xff]
    %v193 = vld [vmem:[%s2 + $0x310] sm:$0xff]
    %v194 = vld [vmem:[%s2 + $0x318] sm:$0xff]
    %v195 = vld [vmem:[%s2 + $0x320] sm:$0xff]
    %v196 = vld [vmem:[%s2 + $0x328] sm:$0xff]
    %v197 = vld [vmem:[%s2 + $0x330] sm:$0xff]
    %v198 = vld [vmem:[%s2 + $0x338] sm:$0xff]
    %v199 = vld [vmem:[%s2 + $0x340] sm:$0xff]
    %v200 = vld [vmem:[%s2 + $0x348] sm:$0xff]
    %v201 = vld [vmem:[%s2 + $0x350] sm:$0xff]
    %v202 = vld [vmem:[%s2 + $0x358] sm:$0xff]
    %v203 = vld [vmem:[%s2 + $0x360] sm:$0xff]
    %v204 = vld [vmem:[%s2 + $0x368] sm:$0xff]
    %v205 = vld [vmem:[%s2 + $0x370] sm:$0xff]
    %v206 = vld [vmem:[%s2 + $0x378] sm:$0xff]
    %v207 = vld [vmem:[%s2 + $0x380] sm:$0xff]
    %v208 = vld [vmem:[%s2 + $0x388] sm:$0xff]
    %v209 = vld [vmem:[%s2 + $0x390] sm:$0xff]
    %v210 = vld [vmem:[%s2 + $0x398] sm:$0xff]
    %v211 = vld [vmem:[%s2 + $0x3a0] sm:$0xff]
    %v212 = vld [vmem:[%s2 + $0x3a8] sm:$0xff]
    %v213 = vld [vmem:[%s2 + $0x3b0] sm:$0xff]
    %v214 = vld [vmem:[%s2 + $0x3b8] sm:$0xff]
    %v215 = vld [vmem:[%s2 + $0x3c0] sm:$0xff]
    %v216 = vld [vmem:[%s2 + $0x3c8] sm:$0xff]
    %v217 = vld [vmem:[%s2 + $0x3d0] sm:$0xff]
    %v218 = vld [vmem:[%s2 + $0x3d8] sm:$0xff]
    %v219 = vld [vmem:[%s2 + $0x3e0] sm:$0xff]
    %v220 = vld [vmem:[%s2 + $0x3e8] sm:$0xff]
    %v221 = vld [vmem:[%s2 + $0x3f0] sm:$0xff]
    %v222 = vld [vmem:[%s2 + $0x3f8] sm:$0xff]
    %v223 = vld [vmem:[%s2 + $0x400] sm:$0xff]
    %v224 = vld [vmem:[%s2 + $0x408] sm:$0xff]
    %v225 = vld [vmem:[%s2 + $0x410] sm:$0xff]
    %v226 = vld [vmem:[%s2 + $0x418] sm:$0xff]
    %v227 = vld [vmem:[%s2 + $0x420] sm:$0xff]
    %v228 = vld [vmem:[%s2 + $0x428] sm:$0xff]
    %v229 = vld [vmem:[%s2 + $0x430] sm:$0xff]
    %v230 = vld [vmem:[%s2 + $0x438] sm:$0xff]
    %v231 = vld [vmem:[%s2 + $0x440] sm:$0xff]
    %v232 = vld [vmem:[%s2 + $0x448] sm:$0xff]
    %v233 = vld [vmem:[%s2 + $0x450] sm:$0xff]
    %v234 = vld [vmem:[%s2 + $0x458] sm:$0xff]
    %v235 = vld [vmem:[%s2 + $0x460] sm:$0xff]
    %v236 = vld [vmem:[%s2 + $0x468] sm:$0xff]
    %v237 = vld [vmem:[%s2 + $0x470] sm:$0xff]
    %v238 = vld [vmem:[%s2 + $0x478] sm:$0xff]
    %v239 = vld [vmem:[%s2 + $0x480] sm:$0xff]
    %v240 = vld [vmem:[%s2 + $0x488] sm:$0xff]
    %v241 = vld [vmem:[%s2 + $0x490] sm:$0xff]
    %v242 = vld [vmem:[%s2 + $0x498] sm:$0xff]
    %v243 = vld [vmem:[%s2 + $0x4a0] sm:$0xff]
    %v244 = vld [vmem:[%s2 + $0x4a8] sm:$0xff]
    %v245 = vld [vmem:[%s2 + $0x4b0] sm:$0xff]
    %v246 = vld [vmem:[%s2 + $0x4b8] sm:$0xff]
    %v247 = vld [vmem:[%s2 + $0x4c0] sm:$0xff]
    %v248 = vld [vmem:[%s2 + $0x4c8] sm:$0xff]
    %v249 = vld [vmem:[%s2 + $0x4d0] sm:$0xff]
    %v250 = vld [vmem:[%s2 + $0x4d8] sm:$0xff]
    %v251 = vld [vmem:[%s2 + $0x4e0] sm:$0xff]
    %v252 = vld [vmem:[%s2 + $0x4e8] sm:$0xff]
    %v253 = vld [vmem:[%s2 + $0x4f0] sm:$0xff]
    %v254 = vld [vmem:[%s2 + $0x4f8] sm:$0xff]
    %v255 = vld [vmem:[%s2 + $0x500] sm:$0xff]
    %v256 = vld [vmem:[%s2 + $0x508] sm:$0xff]
    %v257 = vld [vmem:[%s2 + $0x510] sm:$0xff]
    %v258 = vld [vmem:[%s2 + $0x518] sm:$0xff]
    %v259 = vld [vmem:[%s2 + $0x520] sm:$0xff]
    %v260 = vld [vmem:[%s2 + $0x528] sm:$0xff]
    %v261 = vld [vmem:[%s2 + $0x530] sm:$0xff]
    %v262 = vld [vmem:[%s2 + $0x538] sm:$0xff]
    %v263 = vld [vmem:[%s2 + $0x540] sm:$0xff]
    %v264 = vld [vmem:[%s2 + $0x548] sm:$0xff]
    %v265 = vld [vmem:[%s2 + $0x550] sm:$0xff]
    %v266 = vld [vmem:[%s2 + $0x558] sm:$0xff]
    %v267 = vld [vmem:[%s2 + $0x560] sm:$0xff]
    %v268 = vld [vmem:[%s2 + $0x568] sm:$0xff]
    %v269 = vld [vmem:[%s2 + $0x570] sm:$0xff]
    %v270 = vld [vmem:[%s2 + $0x578] sm:$0xff]
    %v271 = vld [vmem:[%s2 + $0x580] sm:$0xff]
    %v272 = vld [vmem:[%s2 + $0x588] sm:$0xff]
    %v273 = vld [vmem:[%s2 + $0x590] sm:$0xff]
    %v274 = vld [vmem:[%s2 + $0x598] sm:$0xff]
    %v275 = vld [vmem:[%s2 + $0x5a0] sm:$0xff]
    %v276 = vld [vmem:[%s2 + $0x5a8] sm:$0xff]
    %v277 = vld [vmem:[%s2 + $0x5b0] sm:$0xff]
    %v278 = vld [vmem:[%s2 + $0x5b8] sm:$0xff]
    %v279 = vld [vmem:[%s2 + $0x5c0] sm:$0xff]
    %v280 = vld [vmem:[%s2 + $0x5c8] sm:$0xff]
    %v281 = vld [vmem:[%s2 + $0x5d0] sm:$0xff]
    %v282 = vld [vmem:[%s2 + $0x5d8] sm:$0xff]
    %v283 = vld [vmem:[%s2 + $0x5e0] sm:$0xff]
    %v284 = vld [vmem:[%s2 + $0x5e8] sm:$0xff]
    %v285 = vld [vmem:[%s2 + $0x5f0] sm:$0xff]
    %v286 = vld [vmem:[%s2 + $0x5f8] sm:$0xff]
    %v287 = vld [vmem:[%s2 + $0x600] sm:$0xff]
    %v288 = vld [vmem:[%s2 + $0x608] sm:$0xff]
    %v289 = vld [vmem:[%s2 + $0x610] sm:$0xff]
    %v290 = vld [vmem:[%s2 + $0x618] sm:$0xff]
    %v291 = vld [vmem:[%s2 + $0x620] sm:$0xff]
    %v292 = vld [vmem:[%s2 + $0x628] sm:$0xff]
    %v293 = vld [vmem:[%s2 + $0x630] sm:$0xff]
    %v294 = vld [vmem:[%s2 + $0x638] sm:$0xff]
    %v295 = vld [vmem:[%s2 + $0x640] sm:$0xff]
    %v296 = vld [vmem:[%s2 + $0x648] sm:$0xff]
    %v297 = vld [vmem:[%s2 + $0x650] sm:$0xff]
    %v298 = vld [vmem:[%s2 + $0x658] sm:$0xff]
    %v299 = vld [vmem:[%s2 + $0x660] sm:$0xff]
    %v300 = vld [vmem:[%s2 + $0x668] sm:$0xff]
    %v301 = vld [vmem:[%s2 + $0x670] sm:$0xff]
    %v302 = vld [vmem:[%s2 + $0x678] sm:$0xff]
    %v303 = vld [vmem:[%s2 + $0x680] sm:$0xff]
    %v304 = vld [vmem:[%s2 + $0x688] sm:$0xff]
    %v305 = vld [vmem:[%s2 + $0x690] sm:$0xff]
    %v306 = vld [vmem:[%s2 + $0x698] sm:$0xff]
    %v307 = vld [vmem:[%s2 + $0x6a0] sm:$0xff]
    %v308 = vld [vmem:[%s2 + $0x6a8] sm:$0xff]
    %v309 = vld [vmem:[%s2 + $0x6b0] sm:$0xff]
    %v310 = vld [vmem:[%s2 + $0x6b8] sm:$0xff]
    %v311 = vld [vmem:[%s2 + $0x6c0] sm:$0xff]
    %v312 = vld [vmem:[%s2 + $0x6c8] sm:$0xff]
    %v313 = vld [vmem:[%s2 + $0x6d0] sm:$0xff]
    %v314 = vld [vmem:[%s2 + $0x6d8] sm:$0xff]
    %v315 = vld [vmem:[%s2 + $0x6e0] sm:$0xff]
    %v316 = vld [vmem:[%s2 + $0x6e8] sm:$0xff]
    %v317 = vld [vmem:[%s2 + $0x6f0] sm:$0xff]
    %v318 = vld [vmem:[%s2 + $0x6f8] sm:$0xff]
    %v319 = vld [vmem:[%s2 + $0x700] sm:$0xff]
    %v320 = vld [vmem:[%s2 + $0x708] sm:$0xff]
    %v321 = vld [vmem:[%s2 + $0x710] sm:$0xff]
    %v322 = vld [vmem:[%s2 + $0x718] sm:$0xff]
    %v323 = vld [vmem:[%s2 + $0x720] sm:$0xff]
    %v324 = vld [vmem:[%s2 + $0x728] sm:$0xff]
    %v325 = vld [vmem:[%s2 + $0x730] sm:$0xff]
    %v326 = vld [vmem:[%s2 + $0x738] sm:$0xff]
    %v327 = vld [vmem:[%s2 + $0x740] sm:$0xff]
    %v328 = vld [vmem:[%s2 + $0x748] sm:$0xff]
    %v329 = vld [vmem:[%s2 + $0x750] sm:$0xff]
    %v330 = vld [vmem:[%s2 + $0x758] sm:$0xff]
    %v331 = vld [vmem:[%s2 + $0x760] sm:$0xff]
    %v332 = vld [vmem:[%s2 + $0x768] sm:$0xff]
    %v333 = vld [vmem:[%s2 + $0x770] sm:$0xff]
    %v334 = vld [vmem:[%s2 + $0x778] sm:$0xff]
    %v335 = vld [vmem:[%s2 + $0x780] sm:$0xff]
    %v336 = vld [vmem:[%s2 + $0x788] sm:$0xff]
    %v337 = vld [vmem:[%s2 + $0x790] sm:$0xff]
    %v338 = vld [vmem:[%s2 + $0x798] sm:$0xff]
    %v339 = vld [vmem:[%s2 + $0x7a0] sm:$0xff]
    %v340 = vld [vmem:[%s2 + $0x7a8] sm:$0xff]
    %v341 = vld [vmem:[%s2 + $0x7b0] sm:$0xff]
    %v342 = vld [vmem:[%s2 + $0x7b8] sm:$0xff]
    %v343 = vld [vmem:[%s2 + $0x7c0] sm:$0xff]
    %v344 = vld [vmem:[%s2 + $0x7c8] sm:$0xff]
    %v345 = vld [vmem:[%s2 + $0x7d0] sm:$0xff]
    %v346 = vld [vmem:[%s2 + $0x7d8] sm:$0xff]
    %v347 = vld [vmem:[%s2 + $0x7e0] sm:$0xff]
    %v348 = vld [vmem:[%s2 + $0x7e8] sm:$0xff]
    %v349 = vld [vmem:[%s2 + $0x7f0] sm:$0xff]
    %v350 = vld [vmem:[%s2 + $0x7f8] sm:$0xff]
    %v351 = vld [vmem:[%s2 + $0x800] sm:$0xff]
    %v352 = vld [vmem:[%s2 + $0x808] sm:$0xff]
    %v353 = vld [vmem:[%s2 + $0x810] sm:$0xff]
    %v354 = vld [vmem:[%s2 + $0x818] sm:$0xff]
    %v355 = vld [vmem:[%s2 + $0x820] sm:$0xff]
    %v356 = vld [vmem:[%s2 + $0x828] sm:$0xff]
    %v357 = vld [vmem:[%s2 + $0x830] sm:$0xff]
    %v358 = vld [vmem:[%s2 + $0x838] sm:$0xff]
    %v359 = vld [vmem:[%s2 + $0x840] sm:$0xff]
    %v360 = vld [vmem:[%s2 + $0x848] sm:$0xff]
    %v361 = vld [vmem:[%s2 + $0x850] sm:$0xff]
    %v362 = vld [vmem:[%s2 + $0x858] sm:$0xff]
    %v363 = vld [vmem:[%s2 + $0x860] sm:$0xff]
    %v364 = vld [vmem:[%s2 + $0x868] sm:$0xff]
    %v365 = vld [vmem:[%s2 + $0x870] sm:$0xff]
    %v366 = vld [vmem:[%s2 + $0x878] sm:$0xff]
    %v367 = vld [vmem:[%s2 + $0x880] sm:$0xff]
    %v368 = vld [vmem:[%s2 + $0x888] sm:$0xff]
    %v369 = vld [vmem:[%s2 + $0x890] sm:$0xff]
    %v370 = vld [vmem:[%s2 + $0x898] sm:$0xff]
    %v371 = vld [vmem:[%s2 + $0x8a0] sm:$0xff]
    %v372 = vld [vmem:[%s2 + $0x8a8] sm:$0xff]
    %v373 = vld [vmem:[%s2 + $0x8b0] sm:$0xff]
    %v374 = vld [vmem:[%s2 + $0x8b8] sm:$0xff]
    %v375 = vld [vmem:[%s2 + $0x8c0] sm:$0xff]
    %v376 = vld [vmem:[%s2 + $0x8c8] sm:$0xff]
    %v377 = vld [vmem:[%s2 + $0x8d0] sm:$0xff]
    %v378 = vld [vmem:[%s2 + $0x8d8] sm:$0xff]
    %v379 = vld [vmem:[%s2 + $0x8e0] sm:$0xff]
    %v380 = vld [vmem:[%s2 + $0x8e8] sm:$0xff]
    %v381 = vld [vmem:[%s2 + $0x8f0] sm:$0xff]
    %v382 = vld [vmem:[%s2 + $0x8f8] sm:$0xff]
    %v383 = vld [vmem:[%s2 + $0x900] sm:$0xff]
    %v384 = vld [vmem:[%s2 + $0x908] sm:$0xff]
    %v385 = vld [vmem:[%s2 + $0x910] sm:$0xff]
    %v386 = vld [vmem:[%s2 + $0x918] sm:$0xff]
    %v387 = vld [vmem:[%s2 + $0x920] sm:$0xff]
    %v388 = vld [vmem:[%s2 + $0x928] sm:$0xff]
    %v389 = vld [vmem:[%s2 + $0x930] sm:$0xff]
    %v390 = vld [vmem:[%s2 + $0x938] sm:$0xff]
    %v391 = vld [vmem:[%s2 + $0x940] sm:$0xff]
    %v392 = vld [vmem:[%s2 + $0x948] sm:$0xff]
    %v393 = vld [vmem:[%s2 + $0x950] sm:$0xff]
    %v394 = vld [vmem:[%s2 + $0x958] sm:$0xff]
    %v395 = vld [vmem:[%s2 + $0x960] sm:$0xff]
    %v396 = vld [vmem:[%s2 + $0x968] sm:$0xff]
    %v397 = vld [vmem:[%s2 + $0x970] sm:$0xff]
    %v398 = vld [vmem:[%s2 + $0x978] sm:$0xff]
    %v399 = vld [vmem:[%s2 + $0x980] sm:$0xff]
    %v400 = vld [vmem:[%s2 + $0x988] sm:$0xff]
    %v401 = vld [vmem:[%s2 + $0x990] sm:$0xff]
    %v402 = vld [vmem:[%s2 + $0x998] sm:$0xff]
    %v403 = vld [vmem:[%s2 + $0x9a0] sm:$0xff]
    %v404 = vld [vmem:[%s2 + $0x9a8] sm:$0xff]
    %v405 = vld [vmem:[%s2 + $0x9b0] sm:$0xff]
    %v406 = vld [vmem:[%s2 + $0x9b8] sm:$0xff]
    %v407 = vld [vmem:[%s2 + $0x9c0] sm:$0xff]
    %v408 = vld [vmem:[%s2 + $0x9c8] sm:$0xff]
    %v409 = vld [vmem:[%s2 + $0x9d0] sm:$0xff]
    %v410 = vld [vmem:[%s2 + $0x9d8] sm:$0xff]
    %v411 = vld [vmem:[%s2 + $0x9e0] sm:$0xff]
    %v412 = vld [vmem:[%s2 + $0x9e8] sm:$0xff]
    %v413 = vld [vmem:[%s2 + $0x9f0] sm:$0xff]
    %v414 = vld [vmem:[%s2 + $0x9f8] sm:$0xff]
    %v415 = vld [vmem:[%s2 + $0xa00] sm:$0xff]
    %v416 = vld [vmem:[%s2 + $0xa08] sm:$0xff]
    %v417 = vld [vmem:[%s2 + $0xa10] sm:$0xff]
    %v418 = vld [vmem:[%s2 + $0xa18] sm:$0xff]
    %v419 = vld [vmem:[%s2 + $0xa20] sm:$0xff]
    %v420 = vld [vmem:[%s2 + $0xa28] sm:$0xff]
    %v421 = vld [vmem:[%s2 + $0xa30] sm:$0xff]
    %v422 = vld [vmem:[%s2 + $0xa38] sm:$0xff]
    %v423 = vld [vmem:[%s2 + $0xa40] sm:$0xff]
    %v424 = vld [vmem:[%s2 + $0xa48] sm:$0xff]
    %v425 = vld [vmem:[%s2 + $0xa50] sm:$0xff]
    %v426 = vld [vmem:[%s2 + $0xa58] sm:$0xff]
    %v427 = vld [vmem:[%s2 + $0xa60] sm:$0xff]
    %v428 = vld [vmem:[%s2 + $0xa68] sm:$0xff]
    %v429 = vld [vmem:[%s2 + $0xa70] sm:$0xff]
    %v430 = vld [vmem:[%s2 + $0xa78] sm:$0xff]
    %v431 = vld [vmem:[%s2 + $0xa80] sm:$0xff]
    %v432 = vld [vmem:[%s2 + $0xa88] sm:$0xff]
    %v433 = vld [vmem:[%s2 + $0xa90] sm:$0xff]
    %v434 = vld [vmem:[%s2 + $0xa98] sm:$0xff]
    %v435 = vld [vmem:[%s2 + $0xaa0] sm:$0xff]
    %v436 = vld [vmem:[%s2 + $0xaa8] sm:$0xff]
    %v437 = vld [vmem:[%s2 + $0xab0] sm:$0xff]
    %v438 = vld [vmem:[%s2 + $0xab8] sm:$0xff]
    %v439 = vld [vmem:[%s2 + $0xac0] sm:$0xff]
    %v440 = vld [vmem:[%s2 + $0xac8] sm:$0xff]
    %v441 = vld [vmem:[%s2 + $0xad0] sm:$0xff]
    %v442 = vld [vmem:[%s2 + $0xad8] sm:$0xff]
    %v443 = vld [vmem:[%s2 + $0xae0] sm:$0xff]
    %v444 = vld [vmem:[%s2 + $0xae8] sm:$0xff]
    %v445 = vld [vmem:[%s2 + $0xaf0] sm:$0xff]
    %v446 = vld [vmem:[%s2 + $0xaf8] sm:$0xff]
    %v447 = vld [vmem:[%s2 + $0xb00] sm:$0xff]
    %v448 = vld [vmem:[%s2 + $0xb08] sm:$0xff]
    %v449 = vld [vmem:[%s2 + $0xb10] sm:$0xff]
    %v450 = vld [vmem:[%s2 + $0xb18] sm:$0xff]
    %v451 = vld [vmem:[%s2 + $0xb20] sm:$0xff]
    %v452 = vld [vmem:[%s2 + $0xb28] sm:$0xff]
    %v453 = vld [vmem:[%s2 + $0xb30] sm:$0xff]
    %v454 = vld [vmem:[%s2 + $0xb38] sm:$0xff]
    %v455 = vld [vmem:[%s2 + $0xb40] sm:$0xff]
    %v456 = vld [vmem:[%s2 + $0xb48] sm:$0xff]
    %v457 = vld [vmem:[%s2 + $0xb50] sm:$0xff]
    %v458 = vld [vmem:[%s2 + $0xb58] sm:$0xff]
    %v459 = vld [vmem:[%s2 + $0xb60] sm:$0xff]
    %v460 = vld [vmem:[%s2 + $0xb68] sm:$0xff]
    %v461 = vld [vmem:[%s2 + $0xb70] sm:$0xff]
    %v462 = vld [vmem:[%s2 + $0xb78] sm:$0xff]
    %v463 = vld [vmem:[%s2 + $0xb80] sm:$0xff]
    %v464 = vld [vmem:[%s2 + $0xb88] sm:$0xff]
    %v465 = vld [vmem:[%s2 + $0xb90] sm:$0xff]
    %v466 = vld [vmem:[%s2 + $0xb98] sm:$0xff]
    %v467 = vld [vmem:[%s2 + $0xba0] sm:$0xff]
    %v468 = vld [vmem:[%s2 + $0xba8] sm:$0xff]
    %v469 = vld [vmem:[%s2 + $0xbb0] sm:$0xff]
    %v470 = vld [vmem:[%s2 + $0xbb8] sm:$0xff]
    %v471 = vld [vmem:[%s2 + $0xbc0] sm:$0xff]
    %v472 = vld [vmem:[%s2 + $0xbc8] sm:$0xff]
    %v473 = vld [vmem:[%s2 + $0xbd0] sm:$0xff]
    %v474 = vld [vmem:[%s2 + $0xbd8] sm:$0xff]
    %v475 = vld [vmem:[%s2 + $0xbe0] sm:$0xff]
    %v476 = vld [vmem:[%s2 + $0xbe8] sm:$0xff]
    %v477 = vld [vmem:[%s2 + $0xbf0] sm:$0xff]
    %v478 = vld [vmem:[%s2 + $0xbf8] sm:$0xff]
    %v479 = vld [vmem:[%s2 + $0xc00] sm:$0xff]
    %v480 = vld [vmem:[%s2 + $0xc08] sm:$0xff]
    %v481 = vld [vmem:[%s2 + $0xc10] sm:$0xff]
    %v482 = vld [vmem:[%s2 + $0xc18] sm:$0xff]
    %v483 = vld [vmem:[%s2 + $0xc20] sm:$0xff]
    %v484 = vld [vmem:[%s2 + $0xc28] sm:$0xff]
    %v485 = vld [vmem:[%s2 + $0xc30] sm:$0xff]
    %v486 = vld [vmem:[%s2 + $0xc38] sm:$0xff]
    %v487 = vld [vmem:[%s2 + $0xc40] sm:$0xff]
    %v488 = vld [vmem:[%s2 + $0xc48] sm:$0xff]
    %v489 = vld [vmem:[%s2 + $0xc50] sm:$0xff]
    %v490 = vld [vmem:[%s2 + $0xc58] sm:$0xff]
    %v491 = vld [vmem:[%s2 + $0xc60] sm:$0xff]
    %v492 = vld [vmem:[%s2 + $0xc68] sm:$0xff]
    %v493 = vld [vmem:[%s2 + $0xc70] sm:$0xff]
    %v494 = vld [vmem:[%s2 + $0xc78] sm:$0xff]
    %v495 = vld [vmem:[%s2 + $0xc80] sm:$0xff]
    %v496 = vld [vmem:[%s2 + $0xc88] sm:$0xff]
    %v497 = vld [vmem:[%s2 + $0xc90] sm:$0xff]
    %v498 = vld [vmem:[%s2 + $0xc98] sm:$0xff]
    %v499 = vld [vmem:[%s2 + $0xca0] sm:$0xff]
    %v500 = vld [vmem:[%s2 + $0xca8] sm:$0xff]
    %v501 = vld [vmem:[%s2 + $0xcb0] sm:$0xff]
    %v502 = vld [vmem:[%s2 + $0xcb8] sm:$0xff]
    %v503 = vld [vmem:[%s2 + $0xcc0] sm:$0xff]
    %v504 = vld [vmem:[%s2 + $0xcc8] sm:$0xff]
    %v505 = vld [vmem:[%s2 + $0xcd0] sm:$0xff]
    %v506 = vld [vmem:[%s2 + $0xcd8] sm:$0xff]
    %v507 = vld [vmem:[%s2 + $0xce0] sm:$0xff]
    %v508 = vld [vmem:[%s2 + $0xce8] sm:$0xff]
    %v509 = vld [vmem:[%s2 + $0xcf0] sm:$0xff]
    %v510 = vld [vmem:[%s2 + $0xcf8] sm:$0xff]
    %v511 = vld [vmem:[%s2 + $0xd00] sm:$0xff]
    %v512 = vld [vmem:[%s2 + $0xd08] sm:$0xff]
    %v513 = vld [vmem:[%s2 + $0xd10] sm:$0xff]
    %v514 = vld [vmem:[%s2 + $0xd18] sm:$0xff]
    %v515 = vld [vmem:[%s2 + $0xd20] sm:$0xff]
    %v516 = vld [vmem:[%s2 + $0xd28] sm:$0xff]
    %v517 = vld [vmem:[%s2 + $0xd30] sm:$0xff]
    %v518 = vld [vmem:[%s2 + $0xd38] sm:$0xff]
    %v519 = vld [vmem:[%s2 + $0xd40] sm:$0xff]
    %v520 = vld [vmem:[%s2 + $0xd48] sm:$0xff]
    %v521 = vld [vmem:[%s2 + $0xd50] sm:$0xff]
    %v522 = vld [vmem:[%s2 + $0xd58] sm:$0xff]
    %v523 = vld [vmem:[%s2 + $0xd60] sm:$0xff]
    %v524 = vld [vmem:[%s2 + $0xd68] sm:$0xff]
    %v525 = vld [vmem:[%s2 + $0xd70] sm:$0xff]
    %v526 = vld [vmem:[%s2 + $0xd78] sm:$0xff]
    %v527 = vld [vmem:[%s2 + $0xd80] sm:$0xff]
    %v528 = vld [vmem:[%s2 + $0xd88] sm:$0xff]
    %v529 = vld [vmem:[%s2 + $0xd90] sm:$0xff]
    %v530 = vld [vmem:[%s2 + $0xd98] sm:$0xff]
    %v531 = vld [vmem:[%s2 + $0xda0] sm:$0xff]
    %v532 = vld [vmem:[%s2 + $0xda8] sm:$0xff]
    %v533 = vld [vmem:[%s2 + $0xdb0] sm:$0xff]
    %v534 = vld [vmem:[%s2 + $0xdb8] sm:$0xff]
    %v535 = vld [vmem:[%s2 + $0xdc0] sm:$0xff]
    %v536 = vld [vmem:[%s2 + $0xdc8] sm:$0xff]
    %v537 = vld [vmem:[%s2 + $0xdd0] sm:$0xff]
    %v538 = vld [vmem:[%s2 + $0xdd8] sm:$0xff]
    %v539 = vld [vmem:[%s2 + $0xde0] sm:$0xff]
    %v540 = vld [vmem:[%s2 + $0xde8] sm:$0xff]
    %v541 = vld [vmem:[%s2 + $0xdf0] sm:$0xff]
    %v542 = vld [vmem:[%s2 + $0xdf8] sm:$0xff]
    %v543 = vld [vmem:[%s2 + $0xe00] sm:$0xff]
    %v544 = vld [vmem:[%s2 + $0xe08] sm:$0xff]
    %v545 = vld [vmem:[%s2 + $0xe10] sm:$0xff]
    %v546 = vld [vmem:[%s2 + $0xe18] sm:$0xff]
    %v547 = vld [vmem:[%s2 + $0xe20] sm:$0xff]
    %v548 = vld [vmem:[%s2 + $0xe28] sm:$0xff]
    %v549 = vld [vmem:[%s2 + $0xe30] sm:$0xff]
    %v550 = vld [vmem:[%s2 + $0xe38] sm:$0xff]
    %v551 = vld [vmem:[%s2 + $0xe40] sm:$0xff]
    %v552 = vld [vmem:[%s2 + $0xe48] sm:$0xff]
    %v553 = vld [vmem:[%s2 + $0xe50] sm:$0xff]
    %v554 = vld [vmem:[%s2 + $0xe58] sm:$0xff]
    %v555 = vld [vmem:[%s2 + $0xe60] sm:$0xff]
    %v556 = vld [vmem:[%s2 + $0xe68] sm:$0xff]
    %v557 = vld [vmem:[%s2 + $0xe70] sm:$0xff]
    %v558 = vld [vmem:[%s2 + $0xe78] sm:$0xff]
    %v559 = vld [vmem:[%s2 + $0xe80] sm:$0xff]
    %v560 = vld [vmem:[%s2 + $0xe88] sm:$0xff]
    %v561 = vld [vmem:[%s2 + $0xe90] sm:$0xff]
    %v562 = vld [vmem:[%s2 + $0xe98] sm:$0xff]
    %v563 = vld [vmem:[%s2 + $0xea0] sm:$0xff]
    %v564 = vld [vmem:[%s2 + $0xea8] sm:$0xff]
    %v565 = vld [vmem:[%s2 + $0xeb0] sm:$0xff]
    %v566 = vld [vmem:[%s2 + $0xeb8] sm:$0xff]
    %v567 = vld [vmem:[%s2 + $0xec0] sm:$0xff]
    %v568 = vld [vmem:[%s2 + $0xec8] sm:$0xff]
    %v569 = vld [vmem:[%s2 + $0xed0] sm:$0xff]
    %v570 = vld [vmem:[%s2 + $0xed8] sm:$0xff]
    %v571 = vld [vmem:[%s2 + $0xee0] sm:$0xff]
    %v572 = vld [vmem:[%s2 + $0xee8] sm:$0xff]
    %v573 = vld [vmem:[%s2 + $0xef0] sm:$0xff]
    %v574 = vld [vmem:[%s2 + $0xef8] sm:$0xff]
    %v575 = vld [vmem:[%s2 + $0xf00] sm:$0xff]
    %v576 = vld [vmem:[%s2 + $0xf08] sm:$0xff]
    %v577 = vld [vmem:[%s2 + $0xf10] sm:$0xff]
    %v578 = vld [vmem:[%s2 + $0xf18] sm:$0xff]
    %v579 = vld [vmem:[%s2 + $0xf20] sm:$0xff]
    %v580 = vld [vmem:[%s2 + $0xf28] sm:$0xff]
    %v581 = vld [vmem:[%s2 + $0xf30] sm:$0xff]
    %v582 = vld [vmem:[%s2 + $0xf38] sm:$0xff]
    %v583 = vld [vmem:[%s2 + $0xf40] sm:$0xff]
    %v584 = vld [vmem:[%s2 + $0xf48] sm:$0xff]
    %v585 = vld [vmem:[%s2 + $0xf50] sm:$0xff]
    %v586 = vld [vmem:[%s2 + $0xf58] sm:$0xff]
    %v587 = vld [vmem:[%s2 + $0xf60] sm:$0xff]
    %v588 = vld [vmem:[%s2 + $0xf68] sm:$0xff]
    %v589 = vld [vmem:[%s2 + $0xf70] sm:$0xff]
    %v590 = vld [vmem:[%s2 + $0xf78] sm:$0xff]
    %v591 = vld [vmem:[%s2 + $0xf80] sm:$0xff]
    %v592 = vld [vmem:[%s2 + $0xf88] sm:$0xff]
    %v593 = vld [vmem:[%s2 + $0xf90] sm:$0xff]
    %v594 = vld [vmem:[%s2 + $0xf98] sm:$0xff]
    %v595 = vld [vmem:[%s2 + $0xfa0] sm:$0xff]
    %v596 = vld [vmem:[%s2 + $0xfa8] sm:$0xff]
    %v597 = vld [vmem:[%s2 + $0xfb0] sm:$0xff]
    %v598 = vld [vmem:[%s2 + $0xfb8] sm:$0xff]
    %v599 = vld [vmem:[%s2 + $0xfc0] sm:$0xff]
    %v600 = vld [vmem:[%s2 + $0xfc8] sm:$0xff]
    %v601 = vld [vmem:[%s2 + $0xfd0] sm:$0xff]
    %v602 = vld [vmem:[%s2 + $0xfd8] sm:$0xff]
    %v603 = vld [vmem:[%s2 + $0xfe0] sm:$0xff]
    %v604 = vld [vmem:[%s2 + $0xfe8] sm:$0xff]
    %v605 = vld [vmem:[%s2 + $0xff0] sm:$0xff]
    %v606 = vld [vmem:[%s2 + $0xff8] sm:$0xff]
    %v607 = vld [vmem:[%s2 + $0x1000] sm:$0xff]
    %v608 = vld [vmem:[%s2 + $0x1008] sm:$0xff]
    %v609 = vld [vmem:[%s2 + $0x1010] sm:$0xff]
    %v610 = vld [vmem:[%s2 + $0x1018] sm:$0xff]
    %v611 = vld [vmem:[%s2 + $0x1020] sm:$0xff]
    %v612 = vld [vmem:[%s2 + $0x1028] sm:$0xff]
    %v613 = vld [vmem:[%s2 + $0x1030] sm:$0xff]
    %v614 = vld [vmem:[%s2 + $0x1038] sm:$0xff]
    %v615 = vld [vmem:[%s2 + $0x1040] sm:$0xff]
    %v616 = vld [vmem:[%s2 + $0x1048] sm:$0xff]
    %v617 = vld [vmem:[%s2 + $0x1050] sm:$0xff]
    %v618 = vld [vmem:[%s2 + $0x1058] sm:$0xff]
    %v619 = vld [vmem:[%s2 + $0x1060] sm:$0xff]
    %v620 = vld [vmem:[%s2 + $0x1068] sm:$0xff]
    %v621 = vld [vmem:[%s2 + $0x1070] sm:$0xff]
    %v622 = vld [vmem:[%s2 + $0x1078] sm:$0xff]
    %v623 = vld [vmem:[%s2 + $0x1080] sm:$0xff]
    %v624 = vld [vmem:[%s2 + $0x1088] sm:$0xff]
    %v625 = vld [vmem:[%s2 + $0x1090] sm:$0xff]
    %v626 = vld [vmem:[%s2 + $0x1098] sm:$0xff]
    %v627 = vld [vmem:[%s2 + $0x10a0] sm:$0xff]
    %v628 = vld [vmem:[%s2 + $0x10a8] sm:$0xff]
    %v629 = vld [vmem:[%s2 + $0x10b0] sm:$0xff]
    %v630 = vld [vmem:[%s2 + $0x10b8] sm:$0xff]
    %v631 = vld [vmem:[%s2 + $0x10c0] sm:$0xff]
    %v632 = vld [vmem:[%s2 + $0x10c8] sm:$0xff]
    %v633 = vld [vmem:[%s2 + $0x10d0] sm:$0xff]
    %v634 = vld [vmem:[%s2 + $0x10d8] sm:$0xff]
    %v635 = vld [vmem:[%s2 + $0x10e0] sm:$0xff]
    %v636 = vld [vmem:[%s2 + $0x10e8] sm:$0xff]
    %v637 = vld [vmem:[%s2 + $0x10f0] sm:$0xff]
    %v638 = vld [vmem:[%s2 + $0x10f8] sm:$0xff]
    %v639 = vld [vmem:[%s2 + $0x1100] sm:$0xff]
    %v640 = vld [vmem:[%s2 + $0x1108] sm:$0xff]
    %v641 = vld [vmem:[%s2 + $0x1110] sm:$0xff]
    %v642 = vld [vmem:[%s2 + $0x1118] sm:$0xff]
    %v643 = vld [vmem:[%s2 + $0x1120] sm:$0xff]
    %v644 = vld [vmem:[%s2 + $0x1128] sm:$0xff]
    %v645 = vld [vmem:[%s2 + $0x1130] sm:$0xff]
    %v646 = vld [vmem:[%s2 + $0x1138] sm:$0xff]
    %v647 = vld [vmem:[%s2 + $0x1140] sm:$0xff]
    %v648 = vld [vmem:[%s2 + $0x1148] sm:$0xff]
    %v649 = vld [vmem:[%s2 + $0x1150] sm:$0xff]
    %v650 = vld [vmem:[%s2 + $0x1158] sm:$0xff]
    %v651 = vld [vmem:[%s2 + $0x1160] sm:$0xff]
    %v652 = vld [vmem:[%s2 + $0x1168] sm:$0xff]
    %v653 = vld [vmem:[%s2 + $0x1170] sm:$0xff]
    %v654 = vld [vmem:[%s2 + $0x1178] sm:$0xff]
    %v655 = vld [vmem:[%s2 + $0x1180] sm:$0xff]
    %v656 = vld [vmem:[%s2 + $0x1188] sm:$0xff]
    %v657 = vld [vmem:[%s2 + $0x1190] sm:$0xff]
    %v658 = vld [vmem:[%s2 + $0x1198] sm:$0xff]
    %v659 = vld [vmem:[%s2 + $0x11a0] sm:$0xff]
    %v660 = vld [vmem:[%s2 + $0x11a8] sm:$0xff]
    %v661 = vld [vmem:[%s2 + $0x11b0] sm:$0xff]
    %v662 = vld [vmem:[%s2 + $0x11b8] sm:$0xff]
    %v663 = vld [vmem:[%s2 + $0x11c0] sm:$0xff]
    %v664 = vld [vmem:[%s2 + $0x11c8] sm:$0xff]
    %v665 = vld [vmem:[%s2 + $0x11d0] sm:$0xff]
    %v666 = vld [vmem:[%s2 + $0x11d8] sm:$0xff]
    %v667 = vld [vmem:[%s2 + $0x11e0] sm:$0xff]
    %v668 = vld [vmem:[%s2 + $0x11e8] sm:$0xff]
    %v669 = vld [vmem:[%s2 + $0x11f0] sm:$0xff]
    %v670 = vld [vmem:[%s2 + $0x11f8] sm:$0xff]
    %v671 = vld [vmem:[%s2 + $0x1200] sm:$0xff]
    %v672 = vld [vmem:[%s2 + $0x1208] sm:$0xff]
    %v673 = vld [vmem:[%s2 + $0x1210] sm:$0xff]
    %v674 = vld [vmem:[%s2 + $0x1218] sm:$0xff]
    %v675 = vld [vmem:[%s2 + $0x1220] sm:$0xff]
    %v676 = vld [vmem:[%s2 + $0x1228] sm:$0xff]
    %v677 = vld [vmem:[%s2 + $0x1230] sm:$0xff]
    %v678 = vld [vmem:[%s2 + $0x1238] sm:$0xff]
    %v679 = vld [vmem:[%s2 + $0x1240] sm:$0xff]
    %v680 = vld [vmem:[%s2 + $0x1248] sm:$0xff]
    %v681 = vld [vmem:[%s2 + $0x1250] sm:$0xff]
    %v682 = vld [vmem:[%s2 + $0x1258] sm:$0xff]
    %v683 = vld [vmem:[%s2 + $0x1260] sm:$0xff]
    %v684 = vld [vmem:[%s2 + $0x1268] sm:$0xff]
    %v685 = vld [vmem:[%s2 + $0x1270] sm:$0xff]
    %v686 = vld [vmem:[%s2 + $0x1278] sm:$0xff]
    %v687 = vld [vmem:[%s2 + $0x1280] sm:$0xff]
    %v688 = vld [vmem:[%s2 + $0x1288] sm:$0xff]
    %v689 = vld [vmem:[%s2 + $0x1290] sm:$0xff]
    %v690 = vld [vmem:[%s2 + $0x1298] sm:$0xff]
    %v691 = vld [vmem:[%s2 + $0x12a0] sm:$0xff]
    %v692 = vld [vmem:[%s2 + $0x12a8] sm:$0xff]
    %v693 = vld [vmem:[%s2 + $0x12b0] sm:$0xff]
    %v694 = vld [vmem:[%s2 + $0x12b8] sm:$0xff]
    %v695 = vld [vmem:[%s2 + $0x12c0] sm:$0xff]
    %v696 = vld [vmem:[%s2 + $0x12c8] sm:$0xff]
    %v697 = vld [vmem:[%s2 + $0x12d0] sm:$0xff]
    %v698 = vld [vmem:[%s2 + $0x12d8] sm:$0xff]
    %v699 = vld [vmem:[%s2 + $0x12e0] sm:$0xff]
    %v700 = vld [vmem:[%s2 + $0x12e8] sm:$0xff]
    %v701 = vld [vmem:[%s2 + $0x12f0] sm:$0xff]
    %v702 = vld [vmem:[%s2 + $0x12f8] sm:$0xff]
    %v703 = vld [vmem:[%s2 + $0x1300] sm:$0xff]
    %v704 = vld [vmem:[%s2 + $0x1308] sm:$0xff]
    %v705 = vld [vmem:[%s2 + $0x1310] sm:$0xff]
    %v706 = vld [vmem:[%s2 + $0x1318] sm:$0xff]
    %v707 = vld [vmem:[%s2 + $0x1320] sm:$0xff]
    %v708 = vld [vmem:[%s2 + $0x1328] sm:$0xff]
    %v709 = vld [vmem:[%s2 + $0x1330] sm:$0xff]
    %v710 = vld [vmem:[%s2 + $0x1338] sm:$0xff]
    %v711 = vld [vmem:[%s2 + $0x1340] sm:$0xff]
    %v712 = vld [vmem:[%s2 + $0x1348] sm:$0xff]
    %v713 = vld [vmem:[%s2 + $0x1350] sm:$0xff]
    %v714 = vld [vmem:[%s2 + $0x1358] sm:$0xff]
    %v715 = vld [vmem:[%s2 + $0x1360] sm:$0xff]
    %v716 = vld [vmem:[%s2 + $0x1368] sm:$0xff]
    %v717 = vld [vmem:[%s2 + $0x1370] sm:$0xff]
    %v718 = vld [vmem:[%s2 + $0x1378] sm:$0xff]
    %v719 = vld [vmem:[%s2 + $0x1380] sm:$0xff]
    %v720 = vld [vmem:[%s2 + $0x1388] sm:$0xff]
    %v721 = vld [vmem:[%s2 + $0x1390] sm:$0xff]
    %v722 = vld [vmem:[%s2 + $0x1398] sm:$0xff]
    %v723 = vld [vmem:[%s2 + $0x13a0] sm:$0xff]
    %v724 = vld [vmem:[%s2 + $0x13a8] sm:$0xff]
    %v725 = vld [vmem:[%s2 + $0x13b0] sm:$0xff]
    %v726 = vld [vmem:[%s2 + $0x13b8] sm:$0xff]
    %v727 = vld [vmem:[%s2 + $0x13c0] sm:$0xff]
    %v728 = vld [vmem:[%s2 + $0x13c8] sm:$0xff]
    %v729 = vld [vmem:[%s2 + $0x13d0] sm:$0xff]
    %v730 = vld [vmem:[%s2 + $0x13d8] sm:$0xff]
    %v731 = vld [vmem:[%s2 + $0x13e0] sm:$0xff]
    %v732 = vld [vmem:[%s2 + $0x13e8] sm:$0xff]
    %v733 = vld [vmem:[%s2 + $0x13f0] sm:$0xff]
    %v734 = vld [vmem:[%s2 + $0x13f8] sm:$0xff]
    %v735 = vld [vmem:[%s2 + $0x1400] sm:$0xff]
    %v736 = vld [vmem:[%s2 + $0x1408] sm:$0xff]
    %v737 = vld [vmem:[%s2 + $0x1410] sm:$0xff]
    %v738 = vld [vmem:[%s2 + $0x1418] sm:$0xff]
    %v739 = vld [vmem:[%s2 + $0x1420] sm:$0xff]
    %v740 = vld [vmem:[%s2 + $0x1428] sm:$0xff]
    %v741 = vld [vmem:[%s2 + $0x1430] sm:$0xff]
    %v742 = vld [vmem:[%s2 + $0x1438] sm:$0xff]
    %v743 = vld [vmem:[%s2 + $0x1440] sm:$0xff]
    %v744 = vld [vmem:[%s2 + $0x1448] sm:$0xff]
    %v745 = vld [vmem:[%s2 + $0x1450] sm:$0xff]
    %v746 = vld [vmem:[%s2 + $0x1458] sm:$0xff]
    %v747 = vld [vmem:[%s2 + $0x1460] sm:$0xff]
    %v748 = vld [vmem:[%s2 + $0x1468] sm:$0xff]
    %v749 = vld [vmem:[%s2 + $0x1470] sm:$0xff]
    %v750 = vld [vmem:[%s2 + $0x1478] sm:$0xff]
    %v751 = vld [vmem:[%s2 + $0x1480] sm:$0xff]
    %v752 = vld [vmem:[%s2 + $0x1488] sm:$0xff]
    %v753 = vld [vmem:[%s2 + $0x1490] sm:$0xff]
    %v754 = vld [vmem:[%s2 + $0x1498] sm:$0xff]
    %v755 = vld [vmem:[%s2 + $0x14a0] sm:$0xff]
    %v756 = vld [vmem:[%s2 + $0x14a8] sm:$0xff]
    %v757 = vld [vmem:[%s2 + $0x14b0] sm:$0xff]
    %v758 = vld [vmem:[%s2 + $0x14b8] sm:$0xff]
    %v759 = vld [vmem:[%s2 + $0x14c0] sm:$0xff]
    %v760 = vld [vmem:[%s2 + $0x14c8] sm:$0xff]
    %v761 = vld [vmem:[%s2 + $0x14d0] sm:$0xff]
    %v762 = vld [vmem:[%s2 + $0x14d8] sm:$0xff]
    %v763 = vld [vmem:[%s2 + $0x14e0] sm:$0xff]
    %v764 = vld [vmem:[%s2 + $0x14e8] sm:$0xff]
    %v765 = vld [vmem:[%s2 + $0x14f0] sm:$0xff]
    %v766 = vld [vmem:[%s2 + $0x14f8] sm:$0xff]
    %v767 = vld [vmem:[%s2 + $0x1500] sm:$0xff]
    %v768 = vld [vmem:[%s2 + $0x1508] sm:$0xff]
    %v769 = vld [vmem:[%s2 + $0x1510] sm:$0xff]
    %v770 = vld [vmem:[%s2 + $0x1518] sm:$0xff]
    %v771 = vld [vmem:[%s2 + $0x1520] sm:$0xff]
    %v772 = vld [vmem:[%s2 + $0x1528] sm:$0xff]
    %v773 = vld [vmem:[%s2 + $0x1530] sm:$0xff]
    %v774 = vld [vmem:[%s2 + $0x1538] sm:$0xff]
    %v775 = vld [vmem:[%s2 + $0x1540] sm:$0xff]
    %v776 = vld [vmem:[%s2 + $0x1548] sm:$0xff]
    %v777 = vld [vmem:[%s2 + $0x1550] sm:$0xff]
    %v778 = vld [vmem:[%s2 + $0x1558] sm:$0xff]
    %v779 = vld [vmem:[%s2 + $0x1560] sm:$0xff]
    %v780 = vld [vmem:[%s2 + $0x1568] sm:$0xff]
    %v781 = vld [vmem:[%s2 + $0x1570] sm:$0xff]
    %v782 = vld [vmem:[%s2 + $0x1578] sm:$0xff]
    %v783 = vld [vmem:[%s2 + $0x1580] sm:$0xff]
    %v784 = vld [vmem:[%s2 + $0x1588] sm:$0xff]
    %v785 = vld [vmem:[%s2 + $0x1590] sm:$0xff]
    %v786 = vld [vmem:[%s2 + $0x1598] sm:$0xff]
    %v787 = vld [vmem:[%s2 + $0x15a0] sm:$0xff]
    %v788 = vld [vmem:[%s2 + $0x15a8] sm:$0xff]
    %v789 = vld [vmem:[%s2 + $0x15b0] sm:$0xff]
    %v790 = vld [vmem:[%s2 + $0x15b8] sm:$0xff]
    %v791 = vld [vmem:[%s2 + $0x15c0] sm:$0xff]
    %v792 = vld [vmem:[%s2 + $0x15c8] sm:$0xff]
    %v793 = vld [vmem:[%s2 + $0x15d0] sm:$0xff]
    %v794 = vld [vmem:[%s2 + $0x15d8] sm:$0xff]
    %v795 = vld [vmem:[%s2 + $0x15e0] sm:$0xff]
    %v796 = vld [vmem:[%s2 + $0x15e8] sm:$0xff]
    %v797 = vld [vmem:[%s2 + $0x15f0] sm:$0xff]
    %v798 = vld [vmem:[%s2 + $0x15f8] sm:$0xff]
    %v799 = vld [vmem:[%s2 + $0x1600] sm:$0xff]
    %v800 = vld [vmem:[%s2 + $0x1608] sm:$0xff]
    %v801 = vld [vmem:[%s2 + $0x1610] sm:$0xff]
    %v802 = vld [vmem:[%s2 + $0x1618] sm:$0xff]
    %v803 = vld [vmem:[%s2 + $0x1620] sm:$0xff]
    %v804 = vld [vmem:[%s2 + $0x1628] sm:$0xff]
    %v805 = vld [vmem:[%s2 + $0x1630] sm:$0xff]
    %v806 = vld [vmem:[%s2 + $0x1638] sm:$0xff]
    %v807 = vld [vmem:[%s2 + $0x1640] sm:$0xff]
    %v808 = vld [vmem:[%s2 + $0x1648] sm:$0xff]
    %v809 = vld [vmem:[%s2 + $0x1650] sm:$0xff]
    %v810 = vld [vmem:[%s2 + $0x1658] sm:$0xff]
    %v811 = vld [vmem:[%s2 + $0x1660] sm:$0xff]
    %v812 = vld [vmem:[%s2 + $0x1668] sm:$0xff]
    %v813 = vld [vmem:[%s2 + $0x1670] sm:$0xff]
    %v814 = vld [vmem:[%s2 + $0x1678] sm:$0xff]
    %v815 = vld [vmem:[%s2 + $0x1680] sm:$0xff]
    %v816 = vld [vmem:[%s2 + $0x1688] sm:$0xff]
    %v817 = vld [vmem:[%s2 + $0x1690] sm:$0xff]
    %v818 = vld [vmem:[%s2 + $0x1698] sm:$0xff]
    %v819 = vld [vmem:[%s2 + $0x16a0] sm:$0xff]
    %v820 = vld [vmem:[%s2 + $0x16a8] sm:$0xff]
    %v821 = vld [vmem:[%s2 + $0x16b0] sm:$0xff]
    %v822 = vld [vmem:[%s2 + $0x16b8] sm:$0xff]
    %v823 = vld [vmem:[%s2 + $0x16c0] sm:$0xff]
    %v824 = vld [vmem:[%s2 + $0x16c8] sm:$0xff]
    %v825 = vld [vmem:[%s2 + $0x16d0] sm:$0xff]
    %v826 = vld [vmem:[%s2 + $0x16d8] sm:$0xff]
    %v827 = vld [vmem:[%s2 + $0x16e0] sm:$0xff]
    %v828 = vld [vmem:[%s2 + $0x16e8] sm:$0xff]
    %v829 = vld [vmem:[%s2 + $0x16f0] sm:$0xff]
    %v830 = vld [vmem:[%s2 + $0x16f8] sm:$0xff]
    %v831 = vld [vmem:[%s2 + $0x1700] sm:$0xff]
    %v832 = vld [vmem:[%s2 + $0x1708] sm:$0xff]
    %v833 = vld [vmem:[%s2 + $0x1710] sm:$0xff]
    %v834 = vld [vmem:[%s2 + $0x1718] sm:$0xff]
    %v835 = vld [vmem:[%s2 + $0x1720] sm:$0xff]
    %v836 = vld [vmem:[%s2 + $0x1728] sm:$0xff]
    %v837 = vld [vmem:[%s2 + $0x1730] sm:$0xff]
    %v838 = vld [vmem:[%s2 + $0x1738] sm:$0xff]
    %v839 = vld [vmem:[%s2 + $0x1740] sm:$0xff]
    %v840 = vld [vmem:[%s2 + $0x1748] sm:$0xff]
    %v841 = vld [vmem:[%s2 + $0x1750] sm:$0xff]
    %v842 = vld [vmem:[%s2 + $0x1758] sm:$0xff]
    %v843 = vld [vmem:[%s2 + $0x1760] sm:$0xff]
    %v844 = vld [vmem:[%s2 + $0x1768] sm:$0xff]
    %v845 = vld [vmem:[%s2 + $0x1770] sm:$0xff]
    %v846 = vld [vmem:[%s2 + $0x1778] sm:$0xff]
    %v847 = vld [vmem:[%s2 + $0x1780] sm:$0xff]
    %v848 = vld [vmem:[%s2 + $0x1788] sm:$0xff]
    %v849 = vld [vmem:[%s2 + $0x1790] sm:$0xff]
    %v850 = vld [vmem:[%s2 + $0x1798] sm:$0xff]
    %v851 = vld [vmem:[%s2 + $0x17a0] sm:$0xff]
    %v852 = vld [vmem:[%s2 + $0x17a8] sm:$0xff]
    %v853 = vld [vmem:[%s2 + $0x17b0] sm:$0xff]
    %v854 = vld [vmem:[%s2 + $0x17b8] sm:$0xff]
    %v855 = vld [vmem:[%s2 + $0x17c0] sm:$0xff]
    %v856 = vld [vmem:[%s2 + $0x17c8] sm:$0xff]
    %v857 = vld [vmem:[%s2 + $0x17d0] sm:$0xff]
    %v858 = vld [vmem:[%s2 + $0x17d8] sm:$0xff]
    %v859 = vld [vmem:[%s2 + $0x17e0] sm:$0xff]
    %v860 = vld [vmem:[%s2 + $0x17e8] sm:$0xff]
    %v861 = vld [vmem:[%s2 + $0x17f0] sm:$0xff]
    %v862 = vld [vmem:[%s2 + $0x17f8] sm:$0xff]
    %v863 = vld [vmem:[%s3] sm:$0xf]
    %v865 = vperm.slane %v863, 0
    %v866 = vperm.slane %v863, 1
    %v867 = vperm.slane %v863, 2
    %v868 = vperm.slane %v863, 3
    %v1641 = vunpack.c.l.b16 %v95
    %v1642 = vunpack.c.h.b16 %v95
    %v1643 = vunpack.c.l.b16 %v96
    %v1644 = vunpack.c.h.b16 %v96
    %v1645 = vunpack.c.l.b16 %v97
    %v1646 = vunpack.c.h.b16 %v97
    %v1647 = vunpack.c.l.b16 %v98
    %v1648 = vunpack.c.h.b16 %v98
    %v1649 = vunpack.c.l.b16 %v99
    %v1650 = vunpack.c.h.b16 %v99
    %v1651 = vunpack.c.l.b16 %v100
    %v1652 = vunpack.c.h.b16 %v100
    %v1653 = vunpack.c.l.b16 %v101
    %v1654 = vunpack.c.h.b16 %v101
    %v1655 = vunpack.c.l.b16 %v102
    %v1656 = vunpack.c.h.b16 %v102
    %v1657 = vunpack.c.l.b16 %v103
    %v1658 = vunpack.c.h.b16 %v103
    %v1659 = vunpack.c.l.b16 %v104
    %v1660 = vunpack.c.h.b16 %v104
    %v1661 = vunpack.c.l.b16 %v105
    %v1662 = vunpack.c.h.b16 %v105
    %v1663 = vunpack.c.l.b16 %v106
    %v1664 = vunpack.c.h.b16 %v106
    %v1665 = vunpack.c.l.b16 %v107
    %v1666 = vunpack.c.h.b16 %v107
    %v1667 = vunpack.c.l.b16 %v108
    %v1668 = vunpack.c.h.b16 %v108
    %v1669 = vunpack.c.l.b16 %v109
    %v1670 = vunpack.c.h.b16 %v109
    %v1671 = vunpack.c.l.b16 %v110
    %v1672 = vunpack.c.h.b16 %v110
    %v1673 = vunpack.c.l.b16 %v111
    %v1674 = vunpack.c.h.b16 %v111
    %v1675 = vunpack.c.l.b16 %v112
    %v1676 = vunpack.c.h.b16 %v112
    %v1677 = vunpack.c.l.b16 %v113
    %v1678 = vunpack.c.h.b16 %v113
    %v1679 = vunpack.c.l.b16 %v114
    %v1680 = vunpack.c.h.b16 %v114
    %v1681 = vunpack.c.l.b16 %v115
    %v1682 = vunpack.c.h.b16 %v115
    %v1683 = vunpack.c.l.b16 %v116
    %v1684 = vunpack.c.h.b16 %v116
    %v1685 = vunpack.c.l.b16 %v117
    %v1686 = vunpack.c.h.b16 %v117
    %v1687 = vunpack.c.l.b16 %v118
    %v1688 = vunpack.c.h.b16 %v118
    %v1689 = vunpack.c.l.b16 %v119
    %v1690 = vunpack.c.h.b16 %v119
    %v1691 = vunpack.c.l.b16 %v120
    %v1692 = vunpack.c.h.b16 %v120
    %v1693 = vunpack.c.l.b16 %v121
    %v1694 = vunpack.c.h.b16 %v121
    %v1695 = vunpack.c.l.b16 %v122
    %v1696 = vunpack.c.h.b16 %v122
    %v1697 = vunpack.c.l.b16 %v123
    %v1698 = vunpack.c.h.b16 %v123
    %v1699 = vunpack.c.l.b16 %v124
    %v1700 = vunpack.c.h.b16 %v124
    %v1701 = vunpack.c.l.b16 %v125
    %v1702 = vunpack.c.h.b16 %v125
    %v1703 = vunpack.c.l.b16 %v126
    %v1704 = vunpack.c.h.b16 %v126
    %v1705 = vunpack.c.l.b16 %v127
    %v1706 = vunpack.c.h.b16 %v127
    %v1707 = vunpack.c.l.b16 %v128
    %v1708 = vunpack.c.h.b16 %v128
    %v1709 = vunpack.c.l.b16 %v129
    %v1710 = vunpack.c.h.b16 %v129
    %v1711 = vunpack.c.l.b16 %v130
    %v1712 = vunpack.c.h.b16 %v130
    %v1713 = vunpack.c.l.b16 %v131
    %v1714 = vunpack.c.h.b16 %v131
    %v1715 = vunpack.c.l.b16 %v132
    %v1716 = vunpack.c.h.b16 %v132
    %v1717 = vunpack.c.l.b16 %v133
    %v1718 = vunpack.c.h.b16 %v133
    %v1719 = vunpack.c.l.b16 %v134
    %v1720 = vunpack.c.h.b16 %v134
    %v1721 = vunpack.c.l.b16 %v135
    %v1722 = vunpack.c.h.b16 %v135
    %v1723 = vunpack.c.l.b16 %v136
    %v1724 = vunpack.c.h.b16 %v136
    %v1725 = vunpack.c.l.b16 %v137
    %v1726 = vunpack.c.h.b16 %v137
    %v1727 = vunpack.c.l.b16 %v138
    %v1728 = vunpack.c.h.b16 %v138
    %v1729 = vunpack.c.l.b16 %v139
    %v1730 = vunpack.c.h.b16 %v139
    %v1731 = vunpack.c.l.b16 %v140
    %v1732 = vunpack.c.h.b16 %v140
    %v1733 = vunpack.c.l.b16 %v141
    %v1734 = vunpack.c.h.b16 %v141
    %v1735 = vunpack.c.l.b16 %v142
    %v1736 = vunpack.c.h.b16 %v142
    %v1737 = vunpack.c.l.b16 %v143
    %v1738 = vunpack.c.h.b16 %v143
    %v1739 = vunpack.c.l.b16 %v144
    %v1740 = vunpack.c.h.b16 %v144
    %v1741 = vunpack.c.l.b16 %v145
    %v1742 = vunpack.c.h.b16 %v145
    %v1743 = vunpack.c.l.b16 %v146
    %v1744 = vunpack.c.h.b16 %v146
    %v1745 = vunpack.c.l.b16 %v147
    %v1746 = vunpack.c.h.b16 %v147
    %v1747 = vunpack.c.l.b16 %v148
    %v1748 = vunpack.c.h.b16 %v148
    %v1749 = vunpack.c.l.b16 %v149
    %v1750 = vunpack.c.h.b16 %v149
    %v1751 = vunpack.c.l.b16 %v150
    %v1752 = vunpack.c.h.b16 %v150
    %v1753 = vunpack.c.l.b16 %v151
    %v1754 = vunpack.c.h.b16 %v151
    %v1755 = vunpack.c.l.b16 %v152
    %v1756 = vunpack.c.h.b16 %v152
    %v1757 = vunpack.c.l.b16 %v153
    %v1758 = vunpack.c.h.b16 %v153
    %v1759 = vunpack.c.l.b16 %v154
    %v1760 = vunpack.c.h.b16 %v154
    %v1761 = vunpack.c.l.b16 %v155
    %v1762 = vunpack.c.h.b16 %v155
    %v1763 = vunpack.c.l.b16 %v156
    %v1764 = vunpack.c.h.b16 %v156
    %v1765 = vunpack.c.l.b16 %v157
    %v1766 = vunpack.c.h.b16 %v157
    %v1767 = vunpack.c.l.b16 %v158
    %v1768 = vunpack.c.h.b16 %v158
    %v1769 = vunpack.c.l.b16 %v159
    %v1770 = vunpack.c.h.b16 %v159
    %v1771 = vunpack.c.l.b16 %v160
    %v1772 = vunpack.c.h.b16 %v160
    %v1773 = vunpack.c.l.b16 %v161
    %v1774 = vunpack.c.h.b16 %v161
    %v1775 = vunpack.c.l.b16 %v162
    %v1776 = vunpack.c.h.b16 %v162
    %v1777 = vunpack.c.l.b16 %v163
    %v1778 = vunpack.c.h.b16 %v163
    %v1779 = vunpack.c.l.b16 %v164
    %v1780 = vunpack.c.h.b16 %v164
    %v1781 = vunpack.c.l.b16 %v165
    %v1782 = vunpack.c.h.b16 %v165
    %v1783 = vunpack.c.l.b16 %v166
    %v1784 = vunpack.c.h.b16 %v166
    %v1785 = vunpack.c.l.b16 %v167
    %v1786 = vunpack.c.h.b16 %v167
    %v1787 = vunpack.c.l.b16 %v168
    %v1788 = vunpack.c.h.b16 %v168
    %v1789 = vunpack.c.l.b16 %v169
    %v1790 = vunpack.c.h.b16 %v169
    %v1791 = vunpack.c.l.b16 %v170
    %v1792 = vunpack.c.h.b16 %v170
    %v1793 = vunpack.c.l.b16 %v171
    %v1794 = vunpack.c.h.b16 %v171
    %v1795 = vunpack.c.l.b16 %v172
    %v1796 = vunpack.c.h.b16 %v172
    %v1797 = vunpack.c.l.b16 %v173
    %v1798 = vunpack.c.h.b16 %v173
    %v1799 = vunpack.c.l.b16 %v174
    %v1800 = vunpack.c.h.b16 %v174
    %v1801 = vunpack.c.l.b16 %v175
    %v1802 = vunpack.c.h.b16 %v175
    %v1803 = vunpack.c.l.b16 %v176
    %v1804 = vunpack.c.h.b16 %v176
    %v1805 = vunpack.c.l.b16 %v177
    %v1806 = vunpack.c.h.b16 %v177
    %v1807 = vunpack.c.l.b16 %v178
    %v1808 = vunpack.c.h.b16 %v178
    %v1809 = vunpack.c.l.b16 %v179
    %v1810 = vunpack.c.h.b16 %v179
    %v1811 = vunpack.c.l.b16 %v180
    %v1812 = vunpack.c.h.b16 %v180
    %v1813 = vunpack.c.l.b16 %v181
    %v1814 = vunpack.c.h.b16 %v181
    %v1815 = vunpack.c.l.b16 %v182
    %v1816 = vunpack.c.h.b16 %v182
    %v1817 = vunpack.c.l.b16 %v183
    %v1818 = vunpack.c.h.b16 %v183
    %v1819 = vunpack.c.l.b16 %v184
    %v1820 = vunpack.c.h.b16 %v184
    %v1821 = vunpack.c.l.b16 %v185
    %v1822 = vunpack.c.h.b16 %v185
    %v1823 = vunpack.c.l.b16 %v186
    %v1824 = vunpack.c.h.b16 %v186
    %v1825 = vunpack.c.l.b16 %v187
    %v1826 = vunpack.c.h.b16 %v187
    %v1827 = vunpack.c.l.b16 %v188
    %v1828 = vunpack.c.h.b16 %v188
    %v1829 = vunpack.c.l.b16 %v189
    %v1830 = vunpack.c.h.b16 %v189
    %v1831 = vunpack.c.l.b16 %v190
    %v1832 = vunpack.c.h.b16 %v190
    %v1833 = vunpack.c.l.b16 %v191
    %v1834 = vunpack.c.h.b16 %v191
    %v1835 = vunpack.c.l.b16 %v192
    %v1836 = vunpack.c.h.b16 %v192
    %v1837 = vunpack.c.l.b16 %v193
    %v1838 = vunpack.c.h.b16 %v193
    %v1839 = vunpack.c.l.b16 %v194
    %v1840 = vunpack.c.h.b16 %v194
    %v1841 = vunpack.c.l.b16 %v195
    %v1842 = vunpack.c.h.b16 %v195
    %v1843 = vunpack.c.l.b16 %v196
    %v1844 = vunpack.c.h.b16 %v196
    %v1845 = vunpack.c.l.b16 %v197
    %v1846 = vunpack.c.h.b16 %v197
    %v1847 = vunpack.c.l.b16 %v198
    %v1848 = vunpack.c.h.b16 %v198
    %v1849 = vunpack.c.l.b16 %v199
    %v1850 = vunpack.c.h.b16 %v199
    %v1851 = vunpack.c.l.b16 %v200
    %v1852 = vunpack.c.h.b16 %v200
    %v1853 = vunpack.c.l.b16 %v201
    %v1854 = vunpack.c.h.b16 %v201
    %v1855 = vunpack.c.l.b16 %v202
    %v1856 = vunpack.c.h.b16 %v202
    %v1857 = vunpack.c.l.b16 %v203
    %v1858 = vunpack.c.h.b16 %v203
    %v1859 = vunpack.c.l.b16 %v204
    %v1860 = vunpack.c.h.b16 %v204
    %v1861 = vunpack.c.l.b16 %v205
    %v1862 = vunpack.c.h.b16 %v205
    %v1863 = vunpack.c.l.b16 %v206
    %v1864 = vunpack.c.h.b16 %v206
    %v1865 = vunpack.c.l.b16 %v207
    %v1866 = vunpack.c.h.b16 %v207
    %v1867 = vunpack.c.l.b16 %v208
    %v1868 = vunpack.c.h.b16 %v208
    %v1869 = vunpack.c.l.b16 %v209
    %v1870 = vunpack.c.h.b16 %v209
    %v1871 = vunpack.c.l.b16 %v210
    %v1872 = vunpack.c.h.b16 %v210
    %v1873 = vunpack.c.l.b16 %v211
    %v1874 = vunpack.c.h.b16 %v211
    %v1875 = vunpack.c.l.b16 %v212
    %v1876 = vunpack.c.h.b16 %v212
    %v1877 = vunpack.c.l.b16 %v213
    %v1878 = vunpack.c.h.b16 %v213
    %v1879 = vunpack.c.l.b16 %v214
    %v1880 = vunpack.c.h.b16 %v214
    %v1881 = vunpack.c.l.b16 %v215
    %v1882 = vunpack.c.h.b16 %v215
    %v1883 = vunpack.c.l.b16 %v216
    %v1884 = vunpack.c.h.b16 %v216
    %v1885 = vunpack.c.l.b16 %v217
    %v1886 = vunpack.c.h.b16 %v217
    %v1887 = vunpack.c.l.b16 %v218
    %v1888 = vunpack.c.h.b16 %v218
    %v1889 = vunpack.c.l.b16 %v219
    %v1890 = vunpack.c.h.b16 %v219
    %v1891 = vunpack.c.l.b16 %v220
    %v1892 = vunpack.c.h.b16 %v220
    %v1893 = vunpack.c.l.b16 %v221
    %v1894 = vunpack.c.h.b16 %v221
    %v1895 = vunpack.c.l.b16 %v222
    %v1896 = vunpack.c.h.b16 %v222
    %v1897 = vunpack.c.l.b16 %v223
    %v1898 = vunpack.c.h.b16 %v223
    %v1899 = vunpack.c.l.b16 %v224
    %v1900 = vunpack.c.h.b16 %v224
    %v1901 = vunpack.c.l.b16 %v225
    %v1902 = vunpack.c.h.b16 %v225
    %v1903 = vunpack.c.l.b16 %v226
    %v1904 = vunpack.c.h.b16 %v226
    %v1905 = vunpack.c.l.b16 %v227
    %v1906 = vunpack.c.h.b16 %v227
    %v1907 = vunpack.c.l.b16 %v228
    %v1908 = vunpack.c.h.b16 %v228
    %v1909 = vunpack.c.l.b16 %v229
    %v1910 = vunpack.c.h.b16 %v229
    %v1911 = vunpack.c.l.b16 %v230
    %v1912 = vunpack.c.h.b16 %v230
    %v1913 = vunpack.c.l.b16 %v231
    %v1914 = vunpack.c.h.b16 %v231
    %v1915 = vunpack.c.l.b16 %v232
    %v1916 = vunpack.c.h.b16 %v232
    %v1917 = vunpack.c.l.b16 %v233
    %v1918 = vunpack.c.h.b16 %v233
    %v1919 = vunpack.c.l.b16 %v234
    %v1920 = vunpack.c.h.b16 %v234
    %v1921 = vunpack.c.l.b16 %v235
    %v1922 = vunpack.c.h.b16 %v235
    %v1923 = vunpack.c.l.b16 %v236
    %v1924 = vunpack.c.h.b16 %v236
    %v1925 = vunpack.c.l.b16 %v237
    %v1926 = vunpack.c.h.b16 %v237
    %v1927 = vunpack.c.l.b16 %v238
    %v1928 = vunpack.c.h.b16 %v238
    %v1929 = vunpack.c.l.b16 %v239
    %v1930 = vunpack.c.h.b16 %v239
    %v1931 = vunpack.c.l.b16 %v240
    %v1932 = vunpack.c.h.b16 %v240
    %v1933 = vunpack.c.l.b16 %v241
    %v1934 = vunpack.c.h.b16 %v241
    %v1935 = vunpack.c.l.b16 %v242
    %v1936 = vunpack.c.h.b16 %v242
    %v1937 = vunpack.c.l.b16 %v243
    %v1938 = vunpack.c.h.b16 %v243
    %v1939 = vunpack.c.l.b16 %v244
    %v1940 = vunpack.c.h.b16 %v244
    %v1941 = vunpack.c.l.b16 %v245
    %v1942 = vunpack.c.h.b16 %v245
    %v1943 = vunpack.c.l.b16 %v246
    %v1944 = vunpack.c.h.b16 %v246
    %v1945 = vunpack.c.l.b16 %v247
    %v1946 = vunpack.c.h.b16 %v247
    %v1947 = vunpack.c.l.b16 %v248
    %v1948 = vunpack.c.h.b16 %v248
    %v1949 = vunpack.c.l.b16 %v249
    %v1950 = vunpack.c.h.b16 %v249
    %v1951 = vunpack.c.l.b16 %v250
    %v1952 = vunpack.c.h.b16 %v250
    %v1953 = vunpack.c.l.b16 %v251
    %v1954 = vunpack.c.h.b16 %v251
    %v1955 = vunpack.c.l.b16 %v252
    %v1956 = vunpack.c.h.b16 %v252
    %v1957 = vunpack.c.l.b16 %v253
    %v1958 = vunpack.c.h.b16 %v253
    %v1959 = vunpack.c.l.b16 %v254
    %v1960 = vunpack.c.h.b16 %v254
    %v1961 = vunpack.c.l.b16 %v255
    %v1962 = vunpack.c.h.b16 %v255
    %v1963 = vunpack.c.l.b16 %v256
    %v1964 = vunpack.c.h.b16 %v256
    %v1965 = vunpack.c.l.b16 %v257
    %v1966 = vunpack.c.h.b16 %v257
    %v1967 = vunpack.c.l.b16 %v258
    %v1968 = vunpack.c.h.b16 %v258
    %v1969 = vunpack.c.l.b16 %v259
    %v1970 = vunpack.c.h.b16 %v259
    %v1971 = vunpack.c.l.b16 %v260
    %v1972 = vunpack.c.h.b16 %v260
    %v1973 = vunpack.c.l.b16 %v261
    %v1974 = vunpack.c.h.b16 %v261
    %v1975 = vunpack.c.l.b16 %v262
    %v1976 = vunpack.c.h.b16 %v262
    %v1977 = vunpack.c.l.b16 %v263
    %v1978 = vunpack.c.h.b16 %v263
    %v1979 = vunpack.c.l.b16 %v264
    %v1980 = vunpack.c.h.b16 %v264
    %v1981 = vunpack.c.l.b16 %v265
    %v1982 = vunpack.c.h.b16 %v265
    %v1983 = vunpack.c.l.b16 %v266
    %v1984 = vunpack.c.h.b16 %v266
    %v1985 = vunpack.c.l.b16 %v267
    %v1986 = vunpack.c.h.b16 %v267
    %v1987 = vunpack.c.l.b16 %v268
    %v1988 = vunpack.c.h.b16 %v268
    %v1989 = vunpack.c.l.b16 %v269
    %v1990 = vunpack.c.h.b16 %v269
    %v1991 = vunpack.c.l.b16 %v270
    %v1992 = vunpack.c.h.b16 %v270
    %v1993 = vunpack.c.l.b16 %v271
    %v1994 = vunpack.c.h.b16 %v271
    %v1995 = vunpack.c.l.b16 %v272
    %v1996 = vunpack.c.h.b16 %v272
    %v1997 = vunpack.c.l.b16 %v273
    %v1998 = vunpack.c.h.b16 %v273
    %v1999 = vunpack.c.l.b16 %v274
    %v2000 = vunpack.c.h.b16 %v274
    %v2001 = vunpack.c.l.b16 %v275
    %v2002 = vunpack.c.h.b16 %v275
    %v2003 = vunpack.c.l.b16 %v276
    %v2004 = vunpack.c.h.b16 %v276
    %v2005 = vunpack.c.l.b16 %v277
    %v2006 = vunpack.c.h.b16 %v277
    %v2007 = vunpack.c.l.b16 %v278
    %v2008 = vunpack.c.h.b16 %v278
    %v2009 = vunpack.c.l.b16 %v279
    %v2010 = vunpack.c.h.b16 %v279
    %v2011 = vunpack.c.l.b16 %v280
    %v2012 = vunpack.c.h.b16 %v280
    %v2013 = vunpack.c.l.b16 %v281
    %v2014 = vunpack.c.h.b16 %v281
    %v2015 = vunpack.c.l.b16 %v282
    %v2016 = vunpack.c.h.b16 %v282
    %v2017 = vunpack.c.l.b16 %v283
    %v2018 = vunpack.c.h.b16 %v283
    %v2019 = vunpack.c.l.b16 %v284
    %v2020 = vunpack.c.h.b16 %v284
    %v2021 = vunpack.c.l.b16 %v285
    %v2022 = vunpack.c.h.b16 %v285
    %v2023 = vunpack.c.l.b16 %v286
    %v2024 = vunpack.c.h.b16 %v286
    %v2025 = vunpack.c.l.b16 %v287
    %v2026 = vunpack.c.h.b16 %v287
    %v2027 = vunpack.c.l.b16 %v288
    %v2028 = vunpack.c.h.b16 %v288
    %v2029 = vunpack.c.l.b16 %v289
    %v2030 = vunpack.c.h.b16 %v289
    %v2031 = vunpack.c.l.b16 %v290
    %v2032 = vunpack.c.h.b16 %v290
    %v2033 = vunpack.c.l.b16 %v291
    %v2034 = vunpack.c.h.b16 %v291
    %v2035 = vunpack.c.l.b16 %v292
    %v2036 = vunpack.c.h.b16 %v292
    %v2037 = vunpack.c.l.b16 %v293
    %v2038 = vunpack.c.h.b16 %v293
    %v2039 = vunpack.c.l.b16 %v294
    %v2040 = vunpack.c.h.b16 %v294
    %v2041 = vunpack.c.l.b16 %v295
    %v2042 = vunpack.c.h.b16 %v295
    %v2043 = vunpack.c.l.b16 %v296
    %v2044 = vunpack.c.h.b16 %v296
    %v2045 = vunpack.c.l.b16 %v297
    %v2046 = vunpack.c.h.b16 %v297
    %v2047 = vunpack.c.l.b16 %v298
    %v2048 = vunpack.c.h.b16 %v298
    %v2049 = vunpack.c.l.b16 %v299
    %v2050 = vunpack.c.h.b16 %v299
    %v2051 = vunpack.c.l.b16 %v300
    %v2052 = vunpack.c.h.b16 %v300
    %v2053 = vunpack.c.l.b16 %v301
    %v2054 = vunpack.c.h.b16 %v301
    %v2055 = vunpack.c.l.b16 %v302
    %v2056 = vunpack.c.h.b16 %v302
    %v2057 = vunpack.c.l.b16 %v303
    %v2058 = vunpack.c.h.b16 %v303
    %v2059 = vunpack.c.l.b16 %v304
    %v2060 = vunpack.c.h.b16 %v304
    %v2061 = vunpack.c.l.b16 %v305
    %v2062 = vunpack.c.h.b16 %v305
    %v2063 = vunpack.c.l.b16 %v306
    %v2064 = vunpack.c.h.b16 %v306
    %v2065 = vunpack.c.l.b16 %v307
    %v2066 = vunpack.c.h.b16 %v307
    %v2067 = vunpack.c.l.b16 %v308
    %v2068 = vunpack.c.h.b16 %v308
    %v2069 = vunpack.c.l.b16 %v309
    %v2070 = vunpack.c.h.b16 %v309
    %v2071 = vunpack.c.l.b16 %v310
    %v2072 = vunpack.c.h.b16 %v310
    %v2073 = vunpack.c.l.b16 %v311
    %v2074 = vunpack.c.h.b16 %v311
    %v2075 = vunpack.c.l.b16 %v312
    %v2076 = vunpack.c.h.b16 %v312
    %v2077 = vunpack.c.l.b16 %v313
    %v2078 = vunpack.c.h.b16 %v313
    %v2079 = vunpack.c.l.b16 %v314
    %v2080 = vunpack.c.h.b16 %v314
    %v2081 = vunpack.c.l.b16 %v315
    %v2082 = vunpack.c.h.b16 %v315
    %v2083 = vunpack.c.l.b16 %v316
    %v2084 = vunpack.c.h.b16 %v316
    %v2085 = vunpack.c.l.b16 %v317
    %v2086 = vunpack.c.h.b16 %v317
    %v2087 = vunpack.c.l.b16 %v318
    %v2088 = vunpack.c.h.b16 %v318
    %v2089 = vunpack.c.l.b16 %v319
    %v2090 = vunpack.c.h.b16 %v319
    %v2091 = vunpack.c.l.b16 %v320
    %v2092 = vunpack.c.h.b16 %v320
    %v2093 = vunpack.c.l.b16 %v321
    %v2094 = vunpack.c.h.b16 %v321
    %v2095 = vunpack.c.l.b16 %v322
    %v2096 = vunpack.c.h.b16 %v322
    %v2097 = vunpack.c.l.b16 %v323
    %v2098 = vunpack.c.h.b16 %v323
    %v2099 = vunpack.c.l.b16 %v324
    %v2100 = vunpack.c.h.b16 %v324
    %v2101 = vunpack.c.l.b16 %v325
    %v2102 = vunpack.c.h.b16 %v325
    %v2103 = vunpack.c.l.b16 %v326
    %v2104 = vunpack.c.h.b16 %v326
    %v2105 = vunpack.c.l.b16 %v327
    %v2106 = vunpack.c.h.b16 %v327
    %v2107 = vunpack.c.l.b16 %v328
    %v2108 = vunpack.c.h.b16 %v328
    %v2109 = vunpack.c.l.b16 %v329
    %v2110 = vunpack.c.h.b16 %v329
    %v2111 = vunpack.c.l.b16 %v330
    %v2112 = vunpack.c.h.b16 %v330
    %v2113 = vunpack.c.l.b16 %v331
    %v2114 = vunpack.c.h.b16 %v331
    %v2115 = vunpack.c.l.b16 %v332
    %v2116 = vunpack.c.h.b16 %v332
    %v2117 = vunpack.c.l.b16 %v333
    %v2118 = vunpack.c.h.b16 %v333
    %v2119 = vunpack.c.l.b16 %v334
    %v2120 = vunpack.c.h.b16 %v334
    %v2121 = vunpack.c.l.b16 %v335
    %v2122 = vunpack.c.h.b16 %v335
    %v2123 = vunpack.c.l.b16 %v336
    %v2124 = vunpack.c.h.b16 %v336
    %v2125 = vunpack.c.l.b16 %v337
    %v2126 = vunpack.c.h.b16 %v337
    %v2127 = vunpack.c.l.b16 %v338
    %v2128 = vunpack.c.h.b16 %v338
    %v2129 = vunpack.c.l.b16 %v339
    %v2130 = vunpack.c.h.b16 %v339
    %v2131 = vunpack.c.l.b16 %v340
    %v2132 = vunpack.c.h.b16 %v340
    %v2133 = vunpack.c.l.b16 %v341
    %v2134 = vunpack.c.h.b16 %v341
    %v2135 = vunpack.c.l.b16 %v342
    %v2136 = vunpack.c.h.b16 %v342
    %v2137 = vunpack.c.l.b16 %v343
    %v2138 = vunpack.c.h.b16 %v343
    %v2139 = vunpack.c.l.b16 %v344
    %v2140 = vunpack.c.h.b16 %v344
    %v2141 = vunpack.c.l.b16 %v345
    %v2142 = vunpack.c.h.b16 %v345
    %v2143 = vunpack.c.l.b16 %v346
    %v2144 = vunpack.c.h.b16 %v346
    %v2145 = vunpack.c.l.b16 %v347
    %v2146 = vunpack.c.h.b16 %v347
    %v2147 = vunpack.c.l.b16 %v348
    %v2148 = vunpack.c.h.b16 %v348
    %v2149 = vunpack.c.l.b16 %v349
    %v2150 = vunpack.c.h.b16 %v349
    %v2151 = vunpack.c.l.b16 %v350
    %v2152 = vunpack.c.h.b16 %v350
    %v2153 = vunpack.c.l.b16 %v351
    %v2154 = vunpack.c.h.b16 %v351
    %v2155 = vunpack.c.l.b16 %v352
    %v2156 = vunpack.c.h.b16 %v352
    %v2157 = vunpack.c.l.b16 %v353
    %v2158 = vunpack.c.h.b16 %v353
    %v2159 = vunpack.c.l.b16 %v354
    %v2160 = vunpack.c.h.b16 %v354
    %v2161 = vunpack.c.l.b16 %v355
    %v2162 = vunpack.c.h.b16 %v355
    %v2163 = vunpack.c.l.b16 %v356
    %v2164 = vunpack.c.h.b16 %v356
    %v2165 = vunpack.c.l.b16 %v357
    %v2166 = vunpack.c.h.b16 %v357
    %v2167 = vunpack.c.l.b16 %v358
    %v2168 = vunpack.c.h.b16 %v358
    %v2169 = vunpack.c.l.b16 %v359
    %v2170 = vunpack.c.h.b16 %v359
    %v2171 = vunpack.c.l.b16 %v360
    %v2172 = vunpack.c.h.b16 %v360
    %v2173 = vunpack.c.l.b16 %v361
    %v2174 = vunpack.c.h.b16 %v361
    %v2175 = vunpack.c.l.b16 %v362
    %v2176 = vunpack.c.h.b16 %v362
    %v2177 = vunpack.c.l.b16 %v363
    %v2178 = vunpack.c.h.b16 %v363
    %v2179 = vunpack.c.l.b16 %v364
    %v2180 = vunpack.c.h.b16 %v364
    %v2181 = vunpack.c.l.b16 %v365
    %v2182 = vunpack.c.h.b16 %v365
    %v2183 = vunpack.c.l.b16 %v366
    %v2184 = vunpack.c.h.b16 %v366
    %v2185 = vunpack.c.l.b16 %v367
    %v2186 = vunpack.c.h.b16 %v367
    %v2187 = vunpack.c.l.b16 %v368
    %v2188 = vunpack.c.h.b16 %v368
    %v2189 = vunpack.c.l.b16 %v369
    %v2190 = vunpack.c.h.b16 %v369
    %v2191 = vunpack.c.l.b16 %v370
    %v2192 = vunpack.c.h.b16 %v370
    %v2193 = vunpack.c.l.b16 %v371
    %v2194 = vunpack.c.h.b16 %v371
    %v2195 = vunpack.c.l.b16 %v372
    %v2196 = vunpack.c.h.b16 %v372
    %v2197 = vunpack.c.l.b16 %v373
    %v2198 = vunpack.c.h.b16 %v373
    %v2199 = vunpack.c.l.b16 %v374
    %v2200 = vunpack.c.h.b16 %v374
    %v2201 = vunpack.c.l.b16 %v375
    %v2202 = vunpack.c.h.b16 %v375
    %v2203 = vunpack.c.l.b16 %v376
    %v2204 = vunpack.c.h.b16 %v376
    %v2205 = vunpack.c.l.b16 %v377
    %v2206 = vunpack.c.h.b16 %v377
    %v2207 = vunpack.c.l.b16 %v378
    %v2208 = vunpack.c.h.b16 %v378
    %v2209 = vunpack.c.l.b16 %v379
    %v2210 = vunpack.c.h.b16 %v379
    %v2211 = vunpack.c.l.b16 %v380
    %v2212 = vunpack.c.h.b16 %v380
    %v2213 = vunpack.c.l.b16 %v381
    %v2214 = vunpack.c.h.b16 %v381
    %v2215 = vunpack.c.l.b16 %v382
    %v2216 = vunpack.c.h.b16 %v382
    %v2217 = vunpack.c.l.b16 %v383
    %v2218 = vunpack.c.h.b16 %v383
    %v2219 = vunpack.c.l.b16 %v384
    %v2220 = vunpack.c.h.b16 %v384
    %v2221 = vunpack.c.l.b16 %v385
    %v2222 = vunpack.c.h.b16 %v385
    %v2223 = vunpack.c.l.b16 %v386
    %v2224 = vunpack.c.h.b16 %v386
    %v2225 = vunpack.c.l.b16 %v387
    %v2226 = vunpack.c.h.b16 %v387
    %v2227 = vunpack.c.l.b16 %v388
    %v2228 = vunpack.c.h.b16 %v388
    %v2229 = vunpack.c.l.b16 %v389
    %v2230 = vunpack.c.h.b16 %v389
    %v2231 = vunpack.c.l.b16 %v390
    %v2232 = vunpack.c.h.b16 %v390
    %v2233 = vunpack.c.l.b16 %v391
    %v2234 = vunpack.c.h.b16 %v391
    %v2235 = vunpack.c.l.b16 %v392
    %v2236 = vunpack.c.h.b16 %v392
    %v2237 = vunpack.c.l.b16 %v393
    %v2238 = vunpack.c.h.b16 %v393
    %v2239 = vunpack.c.l.b16 %v394
    %v2240 = vunpack.c.h.b16 %v394
    %v2241 = vunpack.c.l.b16 %v395
    %v2242 = vunpack.c.h.b16 %v395
    %v2243 = vunpack.c.l.b16 %v396
    %v2244 = vunpack.c.h.b16 %v396
    %v2245 = vunpack.c.l.b16 %v397
    %v2246 = vunpack.c.h.b16 %v397
    %v2247 = vunpack.c.l.b16 %v398
    %v2248 = vunpack.c.h.b16 %v398
    %v2249 = vunpack.c.l.b16 %v399
    %v2250 = vunpack.c.h.b16 %v399
    %v2251 = vunpack.c.l.b16 %v400
    %v2252 = vunpack.c.h.b16 %v400
    %v2253 = vunpack.c.l.b16 %v401
    %v2254 = vunpack.c.h.b16 %v401
    %v2255 = vunpack.c.l.b16 %v402
    %v2256 = vunpack.c.h.b16 %v402
    %v2257 = vunpack.c.l.b16 %v403
    %v2258 = vunpack.c.h.b16 %v403
    %v2259 = vunpack.c.l.b16 %v404
    %v2260 = vunpack.c.h.b16 %v404
    %v2261 = vunpack.c.l.b16 %v405
    %v2262 = vunpack.c.h.b16 %v405
    %v2263 = vunpack.c.l.b16 %v406
    %v2264 = vunpack.c.h.b16 %v406
    %v2265 = vunpack.c.l.b16 %v407
    %v2266 = vunpack.c.h.b16 %v407
    %v2267 = vunpack.c.l.b16 %v408
    %v2268 = vunpack.c.h.b16 %v408
    %v2269 = vunpack.c.l.b16 %v409
    %v2270 = vunpack.c.h.b16 %v409
    %v2271 = vunpack.c.l.b16 %v410
    %v2272 = vunpack.c.h.b16 %v410
    %v2273 = vunpack.c.l.b16 %v411
    %v2274 = vunpack.c.h.b16 %v411
    %v2275 = vunpack.c.l.b16 %v412
    %v2276 = vunpack.c.h.b16 %v412
    %v2277 = vunpack.c.l.b16 %v413
    %v2278 = vunpack.c.h.b16 %v413
    %v2279 = vunpack.c.l.b16 %v414
    %v2280 = vunpack.c.h.b16 %v414
    %v2281 = vunpack.c.l.b16 %v415
    %v2282 = vunpack.c.h.b16 %v415
    %v2283 = vunpack.c.l.b16 %v416
    %v2284 = vunpack.c.h.b16 %v416
    %v2285 = vunpack.c.l.b16 %v417
    %v2286 = vunpack.c.h.b16 %v417
    %v2287 = vunpack.c.l.b16 %v418
    %v2288 = vunpack.c.h.b16 %v418
    %v2289 = vunpack.c.l.b16 %v419
    %v2290 = vunpack.c.h.b16 %v419
    %v2291 = vunpack.c.l.b16 %v420
    %v2292 = vunpack.c.h.b16 %v420
    %v2293 = vunpack.c.l.b16 %v421
    %v2294 = vunpack.c.h.b16 %v421
    %v2295 = vunpack.c.l.b16 %v422
    %v2296 = vunpack.c.h.b16 %v422
    %v2297 = vunpack.c.l.b16 %v423
    %v2298 = vunpack.c.h.b16 %v423
    %v2299 = vunpack.c.l.b16 %v424
    %v2300 = vunpack.c.h.b16 %v424
    %v2301 = vunpack.c.l.b16 %v425
    %v2302 = vunpack.c.h.b16 %v425
    %v2303 = vunpack.c.l.b16 %v426
    %v2304 = vunpack.c.h.b16 %v426
    %v2305 = vunpack.c.l.b16 %v427
    %v2306 = vunpack.c.h.b16 %v427
    %v2307 = vunpack.c.l.b16 %v428
    %v2308 = vunpack.c.h.b16 %v428
    %v2309 = vunpack.c.l.b16 %v429
    %v2310 = vunpack.c.h.b16 %v429
    %v2311 = vunpack.c.l.b16 %v430
    %v2312 = vunpack.c.h.b16 %v430
    %v2313 = vunpack.c.l.b16 %v431
    %v2314 = vunpack.c.h.b16 %v431
    %v2315 = vunpack.c.l.b16 %v432
    %v2316 = vunpack.c.h.b16 %v432
    %v2317 = vunpack.c.l.b16 %v433
    %v2318 = vunpack.c.h.b16 %v433
    %v2319 = vunpack.c.l.b16 %v434
    %v2320 = vunpack.c.h.b16 %v434
    %v2321 = vunpack.c.l.b16 %v435
    %v2322 = vunpack.c.h.b16 %v435
    %v2323 = vunpack.c.l.b16 %v436
    %v2324 = vunpack.c.h.b16 %v436
    %v2325 = vunpack.c.l.b16 %v437
    %v2326 = vunpack.c.h.b16 %v437
    %v2327 = vunpack.c.l.b16 %v438
    %v2328 = vunpack.c.h.b16 %v438
    %v2329 = vunpack.c.l.b16 %v439
    %v2330 = vunpack.c.h.b16 %v439
    %v2331 = vunpack.c.l.b16 %v440
    %v2332 = vunpack.c.h.b16 %v440
    %v2333 = vunpack.c.l.b16 %v441
    %v2334 = vunpack.c.h.b16 %v441
    %v2335 = vunpack.c.l.b16 %v442
    %v2336 = vunpack.c.h.b16 %v442
    %v2337 = vunpack.c.l.b16 %v443
    %v2338 = vunpack.c.h.b16 %v443
    %v2339 = vunpack.c.l.b16 %v444
    %v2340 = vunpack.c.h.b16 %v444
    %v2341 = vunpack.c.l.b16 %v445
    %v2342 = vunpack.c.h.b16 %v445
    %v2343 = vunpack.c.l.b16 %v446
    %v2344 = vunpack.c.h.b16 %v446
    %v2345 = vunpack.c.l.b16 %v447
    %v2346 = vunpack.c.h.b16 %v447
    %v2347 = vunpack.c.l.b16 %v448
    %v2348 = vunpack.c.h.b16 %v448
    %v2349 = vunpack.c.l.b16 %v449
    %v2350 = vunpack.c.h.b16 %v449
    %v2351 = vunpack.c.l.b16 %v450
    %v2352 = vunpack.c.h.b16 %v450
    %v2353 = vunpack.c.l.b16 %v451
    %v2354 = vunpack.c.h.b16 %v451
    %v2355 = vunpack.c.l.b16 %v452
    %v2356 = vunpack.c.h.b16 %v452
    %v2357 = vunpack.c.l.b16 %v453
    %v2358 = vunpack.c.h.b16 %v453
    %v2359 = vunpack.c.l.b16 %v454
    %v2360 = vunpack.c.h.b16 %v454
    %v2361 = vunpack.c.l.b16 %v455
    %v2362 = vunpack.c.h.b16 %v455
    %v2363 = vunpack.c.l.b16 %v456
    %v2364 = vunpack.c.h.b16 %v456
    %v2365 = vunpack.c.l.b16 %v457
    %v2366 = vunpack.c.h.b16 %v457
    %v2367 = vunpack.c.l.b16 %v458
    %v2368 = vunpack.c.h.b16 %v458
    %v2369 = vunpack.c.l.b16 %v459
    %v2370 = vunpack.c.h.b16 %v459
    %v2371 = vunpack.c.l.b16 %v460
    %v2372 = vunpack.c.h.b16 %v460
    %v2373 = vunpack.c.l.b16 %v461
    %v2374 = vunpack.c.h.b16 %v461
    %v2375 = vunpack.c.l.b16 %v462
    %v2376 = vunpack.c.h.b16 %v462
    %v2377 = vunpack.c.l.b16 %v463
    %v2378 = vunpack.c.h.b16 %v463
    %v2379 = vunpack.c.l.b16 %v464
    %v2380 = vunpack.c.h.b16 %v464
    %v2381 = vunpack.c.l.b16 %v465
    %v2382 = vunpack.c.h.b16 %v465
    %v2383 = vunpack.c.l.b16 %v466
    %v2384 = vunpack.c.h.b16 %v466
    %v2385 = vunpack.c.l.b16 %v467
    %v2386 = vunpack.c.h.b16 %v467
    %v2387 = vunpack.c.l.b16 %v468
    %v2388 = vunpack.c.h.b16 %v468
    %v2389 = vunpack.c.l.b16 %v469
    %v2390 = vunpack.c.h.b16 %v469
    %v2391 = vunpack.c.l.b16 %v470
    %v2392 = vunpack.c.h.b16 %v470
    %v2393 = vunpack.c.l.b16 %v471
    %v2394 = vunpack.c.h.b16 %v471
    %v2395 = vunpack.c.l.b16 %v472
    %v2396 = vunpack.c.h.b16 %v472
    %v2397 = vunpack.c.l.b16 %v473
    %v2398 = vunpack.c.h.b16 %v473
    %v2399 = vunpack.c.l.b16 %v474
    %v2400 = vunpack.c.h.b16 %v474
    %v2401 = vunpack.c.l.b16 %v475
    %v2402 = vunpack.c.h.b16 %v475
    %v2403 = vunpack.c.l.b16 %v476
    %v2404 = vunpack.c.h.b16 %v476
    %v2405 = vunpack.c.l.b16 %v477
    %v2406 = vunpack.c.h.b16 %v477
    %v2407 = vunpack.c.l.b16 %v478
    %v2408 = vunpack.c.h.b16 %v478
    %v2409 = vunpack.c.l.b16 %v479
    %v2410 = vunpack.c.h.b16 %v479
    %v2411 = vunpack.c.l.b16 %v480
    %v2412 = vunpack.c.h.b16 %v480
    %v2413 = vunpack.c.l.b16 %v481
    %v2414 = vunpack.c.h.b16 %v481
    %v2415 = vunpack.c.l.b16 %v482
    %v2416 = vunpack.c.h.b16 %v482
    %v2417 = vunpack.c.l.b16 %v483
    %v2418 = vunpack.c.h.b16 %v483
    %v2419 = vunpack.c.l.b16 %v484
    %v2420 = vunpack.c.h.b16 %v484
    %v2421 = vunpack.c.l.b16 %v485
    %v2422 = vunpack.c.h.b16 %v485
    %v2423 = vunpack.c.l.b16 %v486
    %v2424 = vunpack.c.h.b16 %v486
    %v2425 = vunpack.c.l.b16 %v487
    %v2426 = vunpack.c.h.b16 %v487
    %v2427 = vunpack.c.l.b16 %v488
    %v2428 = vunpack.c.h.b16 %v488
    %v2429 = vunpack.c.l.b16 %v489
    %v2430 = vunpack.c.h.b16 %v489
    %v2431 = vunpack.c.l.b16 %v490
    %v2432 = vunpack.c.h.b16 %v490
    %v2433 = vunpack.c.l.b16 %v491
    %v2434 = vunpack.c.h.b16 %v491
    %v2435 = vunpack.c.l.b16 %v492
    %v2436 = vunpack.c.h.b16 %v492
    %v2437 = vunpack.c.l.b16 %v493
    %v2438 = vunpack.c.h.b16 %v493
    %v2439 = vunpack.c.l.b16 %v494
    %v2440 = vunpack.c.h.b16 %v494
    %v2441 = vunpack.c.l.b16 %v495
    %v2442 = vunpack.c.h.b16 %v495
    %v2443 = vunpack.c.l.b16 %v496
    %v2444 = vunpack.c.h.b16 %v496
    %v2445 = vunpack.c.l.b16 %v497
    %v2446 = vunpack.c.h.b16 %v497
    %v2447 = vunpack.c.l.b16 %v498
    %v2448 = vunpack.c.h.b16 %v498
    %v2449 = vunpack.c.l.b16 %v499
    %v2450 = vunpack.c.h.b16 %v499
    %v2451 = vunpack.c.l.b16 %v500
    %v2452 = vunpack.c.h.b16 %v500
    %v2453 = vunpack.c.l.b16 %v501
    %v2454 = vunpack.c.h.b16 %v501
    %v2455 = vunpack.c.l.b16 %v502
    %v2456 = vunpack.c.h.b16 %v502
    %v2457 = vunpack.c.l.b16 %v503
    %v2458 = vunpack.c.h.b16 %v503
    %v2459 = vunpack.c.l.b16 %v504
    %v2460 = vunpack.c.h.b16 %v504
    %v2461 = vunpack.c.l.b16 %v505
    %v2462 = vunpack.c.h.b16 %v505
    %v2463 = vunpack.c.l.b16 %v506
    %v2464 = vunpack.c.h.b16 %v506
    %v2465 = vunpack.c.l.b16 %v507
    %v2466 = vunpack.c.h.b16 %v507
    %v2467 = vunpack.c.l.b16 %v508
    %v2468 = vunpack.c.h.b16 %v508
    %v2469 = vunpack.c.l.b16 %v509
    %v2470 = vunpack.c.h.b16 %v509
    %v2471 = vunpack.c.l.b16 %v510
    %v2472 = vunpack.c.h.b16 %v510
    %v2473 = vunpack.c.l.b16 %v511
    %v2474 = vunpack.c.h.b16 %v511
    %v2475 = vunpack.c.l.b16 %v512
    %v2476 = vunpack.c.h.b16 %v512
    %v2477 = vunpack.c.l.b16 %v513
    %v2478 = vunpack.c.h.b16 %v513
    %v2479 = vunpack.c.l.b16 %v514
    %v2480 = vunpack.c.h.b16 %v514
    %v2481 = vunpack.c.l.b16 %v515
    %v2482 = vunpack.c.h.b16 %v515
    %v2483 = vunpack.c.l.b16 %v516
    %v2484 = vunpack.c.h.b16 %v516
    %v2485 = vunpack.c.l.b16 %v517
    %v2486 = vunpack.c.h.b16 %v517
    %v2487 = vunpack.c.l.b16 %v518
    %v2488 = vunpack.c.h.b16 %v518
    %v2489 = vunpack.c.l.b16 %v519
    %v2490 = vunpack.c.h.b16 %v519
    %v2491 = vunpack.c.l.b16 %v520
    %v2492 = vunpack.c.h.b16 %v520
    %v2493 = vunpack.c.l.b16 %v521
    %v2494 = vunpack.c.h.b16 %v521
    %v2495 = vunpack.c.l.b16 %v522
    %v2496 = vunpack.c.h.b16 %v522
    %v2497 = vunpack.c.l.b16 %v523
    %v2498 = vunpack.c.h.b16 %v523
    %v2499 = vunpack.c.l.b16 %v524
    %v2500 = vunpack.c.h.b16 %v524
    %v2501 = vunpack.c.l.b16 %v525
    %v2502 = vunpack.c.h.b16 %v525
    %v2503 = vunpack.c.l.b16 %v526
    %v2504 = vunpack.c.h.b16 %v526
    %v2505 = vunpack.c.l.b16 %v527
    %v2506 = vunpack.c.h.b16 %v527
    %v2507 = vunpack.c.l.b16 %v528
    %v2508 = vunpack.c.h.b16 %v528
    %v2509 = vunpack.c.l.b16 %v529
    %v2510 = vunpack.c.h.b16 %v529
    %v2511 = vunpack.c.l.b16 %v530
    %v2512 = vunpack.c.h.b16 %v530
    %v2513 = vunpack.c.l.b16 %v531
    %v2514 = vunpack.c.h.b16 %v531
    %v2515 = vunpack.c.l.b16 %v532
    %v2516 = vunpack.c.h.b16 %v532
    %v2517 = vunpack.c.l.b16 %v533
    %v2518 = vunpack.c.h.b16 %v533
    %v2519 = vunpack.c.l.b16 %v534
    %v2520 = vunpack.c.h.b16 %v534
    %v2521 = vunpack.c.l.b16 %v535
    %v2522 = vunpack.c.h.b16 %v535
    %v2523 = vunpack.c.l.b16 %v536
    %v2524 = vunpack.c.h.b16 %v536
    %v2525 = vunpack.c.l.b16 %v537
    %v2526 = vunpack.c.h.b16 %v537
    %v2527 = vunpack.c.l.b16 %v538
    %v2528 = vunpack.c.h.b16 %v538
    %v2529 = vunpack.c.l.b16 %v539
    %v2530 = vunpack.c.h.b16 %v539
    %v2531 = vunpack.c.l.b16 %v540
    %v2532 = vunpack.c.h.b16 %v540
    %v2533 = vunpack.c.l.b16 %v541
    %v2534 = vunpack.c.h.b16 %v541
    %v2535 = vunpack.c.l.b16 %v542
    %v2536 = vunpack.c.h.b16 %v542
    %v2537 = vunpack.c.l.b16 %v543
    %v2538 = vunpack.c.h.b16 %v543
    %v2539 = vunpack.c.l.b16 %v544
    %v2540 = vunpack.c.h.b16 %v544
    %v2541 = vunpack.c.l.b16 %v545
    %v2542 = vunpack.c.h.b16 %v545
    %v2543 = vunpack.c.l.b16 %v546
    %v2544 = vunpack.c.h.b16 %v546
    %v2545 = vunpack.c.l.b16 %v547
    %v2546 = vunpack.c.h.b16 %v547
    %v2547 = vunpack.c.l.b16 %v548
    %v2548 = vunpack.c.h.b16 %v548
    %v2549 = vunpack.c.l.b16 %v549
    %v2550 = vunpack.c.h.b16 %v549
    %v2551 = vunpack.c.l.b16 %v550
    %v2552 = vunpack.c.h.b16 %v550
    %v2553 = vunpack.c.l.b16 %v551
    %v2554 = vunpack.c.h.b16 %v551
    %v2555 = vunpack.c.l.b16 %v552
    %v2556 = vunpack.c.h.b16 %v552
    %v2557 = vunpack.c.l.b16 %v553
    %v2558 = vunpack.c.h.b16 %v553
    %v2559 = vunpack.c.l.b16 %v554
    %v2560 = vunpack.c.h.b16 %v554
    %v2561 = vunpack.c.l.b16 %v555
    %v2562 = vunpack.c.h.b16 %v555
    %v2563 = vunpack.c.l.b16 %v556
    %v2564 = vunpack.c.h.b16 %v556
    %v2565 = vunpack.c.l.b16 %v557
    %v2566 = vunpack.c.h.b16 %v557
    %v2567 = vunpack.c.l.b16 %v558
    %v2568 = vunpack.c.h.b16 %v558
    %v2569 = vunpack.c.l.b16 %v559
    %v2570 = vunpack.c.h.b16 %v559
    %v2571 = vunpack.c.l.b16 %v560
    %v2572 = vunpack.c.h.b16 %v560
    %v2573 = vunpack.c.l.b16 %v561
    %v2574 = vunpack.c.h.b16 %v561
    %v2575 = vunpack.c.l.b16 %v562
    %v2576 = vunpack.c.h.b16 %v562
    %v2577 = vunpack.c.l.b16 %v563
    %v2578 = vunpack.c.h.b16 %v563
    %v2579 = vunpack.c.l.b16 %v564
    %v2580 = vunpack.c.h.b16 %v564
    %v2581 = vunpack.c.l.b16 %v565
    %v2582 = vunpack.c.h.b16 %v565
    %v2583 = vunpack.c.l.b16 %v566
    %v2584 = vunpack.c.h.b16 %v566
    %v2585 = vunpack.c.l.b16 %v567
    %v2586 = vunpack.c.h.b16 %v567
    %v2587 = vunpack.c.l.b16 %v568
    %v2588 = vunpack.c.h.b16 %v568
    %v2589 = vunpack.c.l.b16 %v569
    %v2590 = vunpack.c.h.b16 %v569
    %v2591 = vunpack.c.l.b16 %v570
    %v2592 = vunpack.c.h.b16 %v570
    %v2593 = vunpack.c.l.b16 %v571
    %v2594 = vunpack.c.h.b16 %v571
    %v2595 = vunpack.c.l.b16 %v572
    %v2596 = vunpack.c.h.b16 %v572
    %v2597 = vunpack.c.l.b16 %v573
    %v2598 = vunpack.c.h.b16 %v573
    %v2599 = vunpack.c.l.b16 %v574
    %v2600 = vunpack.c.h.b16 %v574
    %v2601 = vunpack.c.l.b16 %v575
    %v2602 = vunpack.c.h.b16 %v575
    %v2603 = vunpack.c.l.b16 %v576
    %v2604 = vunpack.c.h.b16 %v576
    %v2605 = vunpack.c.l.b16 %v577
    %v2606 = vunpack.c.h.b16 %v577
    %v2607 = vunpack.c.l.b16 %v578
    %v2608 = vunpack.c.h.b16 %v578
    %v2609 = vunpack.c.l.b16 %v579
    %v2610 = vunpack.c.h.b16 %v579
    %v2611 = vunpack.c.l.b16 %v580
    %v2612 = vunpack.c.h.b16 %v580
    %v2613 = vunpack.c.l.b16 %v581
    %v2614 = vunpack.c.h.b16 %v581
    %v2615 = vunpack.c.l.b16 %v582
    %v2616 = vunpack.c.h.b16 %v582
    %v2617 = vunpack.c.l.b16 %v583
    %v2618 = vunpack.c.h.b16 %v583
    %v2619 = vunpack.c.l.b16 %v584
    %v2620 = vunpack.c.h.b16 %v584
    %v2621 = vunpack.c.l.b16 %v585
    %v2622 = vunpack.c.h.b16 %v585
    %v2623 = vunpack.c.l.b16 %v586
    %v2624 = vunpack.c.h.b16 %v586
    %v2625 = vunpack.c.l.b16 %v587
    %v2626 = vunpack.c.h.b16 %v587
    %v2627 = vunpack.c.l.b16 %v588
    %v2628 = vunpack.c.h.b16 %v588
    %v2629 = vunpack.c.l.b16 %v589
    %v2630 = vunpack.c.h.b16 %v589
    %v2631 = vunpack.c.l.b16 %v590
    %v2632 = vunpack.c.h.b16 %v590
    %v2633 = vunpack.c.l.b16 %v591
    %v2634 = vunpack.c.h.b16 %v591
    %v2635 = vunpack.c.l.b16 %v592
    %v2636 = vunpack.c.h.b16 %v592
    %v2637 = vunpack.c.l.b16 %v593
    %v2638 = vunpack.c.h.b16 %v593
    %v2639 = vunpack.c.l.b16 %v594
    %v2640 = vunpack.c.h.b16 %v594
    %v2641 = vunpack.c.l.b16 %v595
    %v2642 = vunpack.c.h.b16 %v595
    %v2643 = vunpack.c.l.b16 %v596
    %v2644 = vunpack.c.h.b16 %v596
    %v2645 = vunpack.c.l.b16 %v597
    %v2646 = vunpack.c.h.b16 %v597
    %v2647 = vunpack.c.l.b16 %v598
    %v2648 = vunpack.c.h.b16 %v598
    %v2649 = vunpack.c.l.b16 %v599
    %v2650 = vunpack.c.h.b16 %v599
    %v2651 = vunpack.c.l.b16 %v600
    %v2652 = vunpack.c.h.b16 %v600
    %v2653 = vunpack.c.l.b16 %v601
    %v2654 = vunpack.c.h.b16 %v601
    %v2655 = vunpack.c.l.b16 %v602
    %v2656 = vunpack.c.h.b16 %v602
    %v2657 = vunpack.c.l.b16 %v603
    %v2658 = vunpack.c.h.b16 %v603
    %v2659 = vunpack.c.l.b16 %v604
    %v2660 = vunpack.c.h.b16 %v604
    %v2661 = vunpack.c.l.b16 %v605
    %v2662 = vunpack.c.h.b16 %v605
    %v2663 = vunpack.c.l.b16 %v606
    %v2664 = vunpack.c.h.b16 %v606
    %v2665 = vunpack.c.l.b16 %v607
    %v2666 = vunpack.c.h.b16 %v607
    %v2667 = vunpack.c.l.b16 %v608
    %v2668 = vunpack.c.h.b16 %v608
    %v2669 = vunpack.c.l.b16 %v609
    %v2670 = vunpack.c.h.b16 %v609
    %v2671 = vunpack.c.l.b16 %v610
    %v2672 = vunpack.c.h.b16 %v610
    %v2673 = vunpack.c.l.b16 %v611
    %v2674 = vunpack.c.h.b16 %v611
    %v2675 = vunpack.c.l.b16 %v612
    %v2676 = vunpack.c.h.b16 %v612
    %v2677 = vunpack.c.l.b16 %v613
    %v2678 = vunpack.c.h.b16 %v613
    %v2679 = vunpack.c.l.b16 %v614
    %v2680 = vunpack.c.h.b16 %v614
    %v2681 = vunpack.c.l.b16 %v615
    %v2682 = vunpack.c.h.b16 %v615
    %v2683 = vunpack.c.l.b16 %v616
    %v2684 = vunpack.c.h.b16 %v616
    %v2685 = vunpack.c.l.b16 %v617
    %v2686 = vunpack.c.h.b16 %v617
    %v2687 = vunpack.c.l.b16 %v618
    %v2688 = vunpack.c.h.b16 %v618
    %v2689 = vunpack.c.l.b16 %v619
    %v2690 = vunpack.c.h.b16 %v619
    %v2691 = vunpack.c.l.b16 %v620
    %v2692 = vunpack.c.h.b16 %v620
    %v2693 = vunpack.c.l.b16 %v621
    %v2694 = vunpack.c.h.b16 %v621
    %v2695 = vunpack.c.l.b16 %v622
    %v2696 = vunpack.c.h.b16 %v622
    %v2697 = vunpack.c.l.b16 %v623
    %v2698 = vunpack.c.h.b16 %v623
    %v2699 = vunpack.c.l.b16 %v624
    %v2700 = vunpack.c.h.b16 %v624
    %v2701 = vunpack.c.l.b16 %v625
    %v2702 = vunpack.c.h.b16 %v625
    %v2703 = vunpack.c.l.b16 %v626
    %v2704 = vunpack.c.h.b16 %v626
    %v2705 = vunpack.c.l.b16 %v627
    %v2706 = vunpack.c.h.b16 %v627
    %v2707 = vunpack.c.l.b16 %v628
    %v2708 = vunpack.c.h.b16 %v628
    %v2709 = vunpack.c.l.b16 %v629
    %v2710 = vunpack.c.h.b16 %v629
    %v2711 = vunpack.c.l.b16 %v630
    %v2712 = vunpack.c.h.b16 %v630
    %v2713 = vunpack.c.l.b16 %v631
    %v2714 = vunpack.c.h.b16 %v631
    %v2715 = vunpack.c.l.b16 %v632
    %v2716 = vunpack.c.h.b16 %v632
    %v2717 = vunpack.c.l.b16 %v633
    %v2718 = vunpack.c.h.b16 %v633
    %v2719 = vunpack.c.l.b16 %v634
    %v2720 = vunpack.c.h.b16 %v634
    %v2721 = vunpack.c.l.b16 %v635
    %v2722 = vunpack.c.h.b16 %v635
    %v2723 = vunpack.c.l.b16 %v636
    %v2724 = vunpack.c.h.b16 %v636
    %v2725 = vunpack.c.l.b16 %v637
    %v2726 = vunpack.c.h.b16 %v637
    %v2727 = vunpack.c.l.b16 %v638
    %v2728 = vunpack.c.h.b16 %v638
    %v2729 = vunpack.c.l.b16 %v639
    %v2730 = vunpack.c.h.b16 %v639
    %v2731 = vunpack.c.l.b16 %v640
    %v2732 = vunpack.c.h.b16 %v640
    %v2733 = vunpack.c.l.b16 %v641
    %v2734 = vunpack.c.h.b16 %v641
    %v2735 = vunpack.c.l.b16 %v642
    %v2736 = vunpack.c.h.b16 %v642
    %v2737 = vunpack.c.l.b16 %v643
    %v2738 = vunpack.c.h.b16 %v643
    %v2739 = vunpack.c.l.b16 %v644
    %v2740 = vunpack.c.h.b16 %v644
    %v2741 = vunpack.c.l.b16 %v645
    %v2742 = vunpack.c.h.b16 %v645
    %v2743 = vunpack.c.l.b16 %v646
    %v2744 = vunpack.c.h.b16 %v646
    %v2745 = vunpack.c.l.b16 %v647
    %v2746 = vunpack.c.h.b16 %v647
    %v2747 = vunpack.c.l.b16 %v648
    %v2748 = vunpack.c.h.b16 %v648
    %v2749 = vunpack.c.l.b16 %v649
    %v2750 = vunpack.c.h.b16 %v649
    %v2751 = vunpack.c.l.b16 %v650
    %v2752 = vunpack.c.h.b16 %v650
    %v2753 = vunpack.c.l.b16 %v651
    %v2754 = vunpack.c.h.b16 %v651
    %v2755 = vunpack.c.l.b16 %v652
    %v2756 = vunpack.c.h.b16 %v652
    %v2757 = vunpack.c.l.b16 %v653
    %v2758 = vunpack.c.h.b16 %v653
    %v2759 = vunpack.c.l.b16 %v654
    %v2760 = vunpack.c.h.b16 %v654
    %v2761 = vunpack.c.l.b16 %v655
    %v2762 = vunpack.c.h.b16 %v655
    %v2763 = vunpack.c.l.b16 %v656
    %v2764 = vunpack.c.h.b16 %v656
    %v2765 = vunpack.c.l.b16 %v657
    %v2766 = vunpack.c.h.b16 %v657
    %v2767 = vunpack.c.l.b16 %v658
    %v2768 = vunpack.c.h.b16 %v658
    %v2769 = vunpack.c.l.b16 %v659
    %v2770 = vunpack.c.h.b16 %v659
    %v2771 = vunpack.c.l.b16 %v660
    %v2772 = vunpack.c.h.b16 %v660
    %v2773 = vunpack.c.l.b16 %v661
    %v2774 = vunpack.c.h.b16 %v661
    %v2775 = vunpack.c.l.b16 %v662
    %v2776 = vunpack.c.h.b16 %v662
    %v2777 = vunpack.c.l.b16 %v663
    %v2778 = vunpack.c.h.b16 %v663
    %v2779 = vunpack.c.l.b16 %v664
    %v2780 = vunpack.c.h.b16 %v664
    %v2781 = vunpack.c.l.b16 %v665
    %v2782 = vunpack.c.h.b16 %v665
    %v2783 = vunpack.c.l.b16 %v666
    %v2784 = vunpack.c.h.b16 %v666
    %v2785 = vunpack.c.l.b16 %v667
    %v2786 = vunpack.c.h.b16 %v667
    %v2787 = vunpack.c.l.b16 %v668
    %v2788 = vunpack.c.h.b16 %v668
    %v2789 = vunpack.c.l.b16 %v669
    %v2790 = vunpack.c.h.b16 %v669
    %v2791 = vunpack.c.l.b16 %v670
    %v2792 = vunpack.c.h.b16 %v670
    %v2793 = vunpack.c.l.b16 %v671
    %v2794 = vunpack.c.h.b16 %v671
    %v2795 = vunpack.c.l.b16 %v672
    %v2796 = vunpack.c.h.b16 %v672
    %v2797 = vunpack.c.l.b16 %v673
    %v2798 = vunpack.c.h.b16 %v673
    %v2799 = vunpack.c.l.b16 %v674
    %v2800 = vunpack.c.h.b16 %v674
    %v2801 = vunpack.c.l.b16 %v675
    %v2802 = vunpack.c.h.b16 %v675
    %v2803 = vunpack.c.l.b16 %v676
    %v2804 = vunpack.c.h.b16 %v676
    %v2805 = vunpack.c.l.b16 %v677
    %v2806 = vunpack.c.h.b16 %v677
    %v2807 = vunpack.c.l.b16 %v678
    %v2808 = vunpack.c.h.b16 %v678
    %v2809 = vunpack.c.l.b16 %v679
    %v2810 = vunpack.c.h.b16 %v679
    %v2811 = vunpack.c.l.b16 %v680
    %v2812 = vunpack.c.h.b16 %v680
    %v2813 = vunpack.c.l.b16 %v681
    %v2814 = vunpack.c.h.b16 %v681
    %v2815 = vunpack.c.l.b16 %v682
    %v2816 = vunpack.c.h.b16 %v682
    %v2817 = vunpack.c.l.b16 %v683
    %v2818 = vunpack.c.h.b16 %v683
    %v2819 = vunpack.c.l.b16 %v684
    %v2820 = vunpack.c.h.b16 %v684
    %v2821 = vunpack.c.l.b16 %v685
    %v2822 = vunpack.c.h.b16 %v685
    %v2823 = vunpack.c.l.b16 %v686
    %v2824 = vunpack.c.h.b16 %v686
    %v2825 = vunpack.c.l.b16 %v687
    %v2826 = vunpack.c.h.b16 %v687
    %v2827 = vunpack.c.l.b16 %v688
    %v2828 = vunpack.c.h.b16 %v688
    %v2829 = vunpack.c.l.b16 %v689
    %v2830 = vunpack.c.h.b16 %v689
    %v2831 = vunpack.c.l.b16 %v690
    %v2832 = vunpack.c.h.b16 %v690
    %v2833 = vunpack.c.l.b16 %v691
    %v2834 = vunpack.c.h.b16 %v691
    %v2835 = vunpack.c.l.b16 %v692
    %v2836 = vunpack.c.h.b16 %v692
    %v2837 = vunpack.c.l.b16 %v693
    %v2838 = vunpack.c.h.b16 %v693
    %v2839 = vunpack.c.l.b16 %v694
    %v2840 = vunpack.c.h.b16 %v694
    %v2841 = vunpack.c.l.b16 %v695
    %v2842 = vunpack.c.h.b16 %v695
    %v2843 = vunpack.c.l.b16 %v696
    %v2844 = vunpack.c.h.b16 %v696
    %v2845 = vunpack.c.l.b16 %v697
    %v2846 = vunpack.c.h.b16 %v697
    %v2847 = vunpack.c.l.b16 %v698
    %v2848 = vunpack.c.h.b16 %v698
    %v2849 = vunpack.c.l.b16 %v699
    %v2850 = vunpack.c.h.b16 %v699
    %v2851 = vunpack.c.l.b16 %v700
    %v2852 = vunpack.c.h.b16 %v700
    %v2853 = vunpack.c.l.b16 %v701
    %v2854 = vunpack.c.h.b16 %v701
    %v2855 = vunpack.c.l.b16 %v702
    %v2856 = vunpack.c.h.b16 %v702
    %v2857 = vunpack.c.l.b16 %v703
    %v2858 = vunpack.c.h.b16 %v703
    %v2859 = vunpack.c.l.b16 %v704
    %v2860 = vunpack.c.h.b16 %v704
    %v2861 = vunpack.c.l.b16 %v705
    %v2862 = vunpack.c.h.b16 %v705
    %v2863 = vunpack.c.l.b16 %v706
    %v2864 = vunpack.c.h.b16 %v706
    %v2865 = vunpack.c.l.b16 %v707
    %v2866 = vunpack.c.h.b16 %v707
    %v2867 = vunpack.c.l.b16 %v708
    %v2868 = vunpack.c.h.b16 %v708
    %v2869 = vunpack.c.l.b16 %v709
    %v2870 = vunpack.c.h.b16 %v709
    %v2871 = vunpack.c.l.b16 %v710
    %v2872 = vunpack.c.h.b16 %v710
    %v2873 = vunpack.c.l.b16 %v711
    %v2874 = vunpack.c.h.b16 %v711
    %v2875 = vunpack.c.l.b16 %v712
    %v2876 = vunpack.c.h.b16 %v712
    %v2877 = vunpack.c.l.b16 %v713
    %v2878 = vunpack.c.h.b16 %v713
    %v2879 = vunpack.c.l.b16 %v714
    %v2880 = vunpack.c.h.b16 %v714
    %v2881 = vunpack.c.l.b16 %v715
    %v2882 = vunpack.c.h.b16 %v715
    %v2883 = vunpack.c.l.b16 %v716
    %v2884 = vunpack.c.h.b16 %v716
    %v2885 = vunpack.c.l.b16 %v717
    %v2886 = vunpack.c.h.b16 %v717
    %v2887 = vunpack.c.l.b16 %v718
    %v2888 = vunpack.c.h.b16 %v718
    %v2889 = vunpack.c.l.b16 %v719
    %v2890 = vunpack.c.h.b16 %v719
    %v2891 = vunpack.c.l.b16 %v720
    %v2892 = vunpack.c.h.b16 %v720
    %v2893 = vunpack.c.l.b16 %v721
    %v2894 = vunpack.c.h.b16 %v721
    %v2895 = vunpack.c.l.b16 %v722
    %v2896 = vunpack.c.h.b16 %v722
    %v2897 = vunpack.c.l.b16 %v723
    %v2898 = vunpack.c.h.b16 %v723
    %v2899 = vunpack.c.l.b16 %v724
    %v2900 = vunpack.c.h.b16 %v724
    %v2901 = vunpack.c.l.b16 %v725
    %v2902 = vunpack.c.h.b16 %v725
    %v2903 = vunpack.c.l.b16 %v726
    %v2904 = vunpack.c.h.b16 %v726
    %v2905 = vunpack.c.l.b16 %v727
    %v2906 = vunpack.c.h.b16 %v727
    %v2907 = vunpack.c.l.b16 %v728
    %v2908 = vunpack.c.h.b16 %v728
    %v2909 = vunpack.c.l.b16 %v729
    %v2910 = vunpack.c.h.b16 %v729
    %v2911 = vunpack.c.l.b16 %v730
    %v2912 = vunpack.c.h.b16 %v730
    %v2913 = vunpack.c.l.b16 %v731
    %v2914 = vunpack.c.h.b16 %v731
    %v2915 = vunpack.c.l.b16 %v732
    %v2916 = vunpack.c.h.b16 %v732
    %v2917 = vunpack.c.l.b16 %v733
    %v2918 = vunpack.c.h.b16 %v733
    %v2919 = vunpack.c.l.b16 %v734
    %v2920 = vunpack.c.h.b16 %v734
    %v2921 = vunpack.c.l.b16 %v735
    %v2922 = vunpack.c.h.b16 %v735
    %v2923 = vunpack.c.l.b16 %v736
    %v2924 = vunpack.c.h.b16 %v736
    %v2925 = vunpack.c.l.b16 %v737
    %v2926 = vunpack.c.h.b16 %v737
    %v2927 = vunpack.c.l.b16 %v738
    %v2928 = vunpack.c.h.b16 %v738
    %v2929 = vunpack.c.l.b16 %v739
    %v2930 = vunpack.c.h.b16 %v739
    %v2931 = vunpack.c.l.b16 %v740
    %v2932 = vunpack.c.h.b16 %v740
    %v2933 = vunpack.c.l.b16 %v741
    %v2934 = vunpack.c.h.b16 %v741
    %v2935 = vunpack.c.l.b16 %v742
    %v2936 = vunpack.c.h.b16 %v742
    %v2937 = vunpack.c.l.b16 %v743
    %v2938 = vunpack.c.h.b16 %v743
    %v2939 = vunpack.c.l.b16 %v744
    %v2940 = vunpack.c.h.b16 %v744
    %v2941 = vunpack.c.l.b16 %v745
    %v2942 = vunpack.c.h.b16 %v745
    %v2943 = vunpack.c.l.b16 %v746
    %v2944 = vunpack.c.h.b16 %v746
    %v2945 = vunpack.c.l.b16 %v747
    %v2946 = vunpack.c.h.b16 %v747
    %v2947 = vunpack.c.l.b16 %v748
    %v2948 = vunpack.c.h.b16 %v748
    %v2949 = vunpack.c.l.b16 %v749
    %v2950 = vunpack.c.h.b16 %v749
    %v2951 = vunpack.c.l.b16 %v750
    %v2952 = vunpack.c.h.b16 %v750
    %v2953 = vunpack.c.l.b16 %v751
    %v2954 = vunpack.c.h.b16 %v751
    %v2955 = vunpack.c.l.b16 %v752
    %v2956 = vunpack.c.h.b16 %v752
    %v2957 = vunpack.c.l.b16 %v753
    %v2958 = vunpack.c.h.b16 %v753
    %v2959 = vunpack.c.l.b16 %v754
    %v2960 = vunpack.c.h.b16 %v754
    %v2961 = vunpack.c.l.b16 %v755
    %v2962 = vunpack.c.h.b16 %v755
    %v2963 = vunpack.c.l.b16 %v756
    %v2964 = vunpack.c.h.b16 %v756
    %v2965 = vunpack.c.l.b16 %v757
    %v2966 = vunpack.c.h.b16 %v757
    %v2967 = vunpack.c.l.b16 %v758
    %v2968 = vunpack.c.h.b16 %v758
    %v2969 = vunpack.c.l.b16 %v759
    %v2970 = vunpack.c.h.b16 %v759
    %v2971 = vunpack.c.l.b16 %v760
    %v2972 = vunpack.c.h.b16 %v760
    %v2973 = vunpack.c.l.b16 %v761
    %v2974 = vunpack.c.h.b16 %v761
    %v2975 = vunpack.c.l.b16 %v762
    %v2976 = vunpack.c.h.b16 %v762
    %v2977 = vunpack.c.l.b16 %v763
    %v2978 = vunpack.c.h.b16 %v763
    %v2979 = vunpack.c.l.b16 %v764
    %v2980 = vunpack.c.h.b16 %v764
    %v2981 = vunpack.c.l.b16 %v765
    %v2982 = vunpack.c.h.b16 %v765
    %v2983 = vunpack.c.l.b16 %v766
    %v2984 = vunpack.c.h.b16 %v766
    %v2985 = vunpack.c.l.b16 %v767
    %v2986 = vunpack.c.h.b16 %v767
    %v2987 = vunpack.c.l.b16 %v768
    %v2988 = vunpack.c.h.b16 %v768
    %v2989 = vunpack.c.l.b16 %v769
    %v2990 = vunpack.c.h.b16 %v769
    %v2991 = vunpack.c.l.b16 %v770
    %v2992 = vunpack.c.h.b16 %v770
    %v2993 = vunpack.c.l.b16 %v771
    %v2994 = vunpack.c.h.b16 %v771
    %v2995 = vunpack.c.l.b16 %v772
    %v2996 = vunpack.c.h.b16 %v772
    %v2997 = vunpack.c.l.b16 %v773
    %v2998 = vunpack.c.h.b16 %v773
    %v2999 = vunpack.c.l.b16 %v774
    %v3000 = vunpack.c.h.b16 %v774
    %v3001 = vunpack.c.l.b16 %v775
    %v3002 = vunpack.c.h.b16 %v775
    %v3003 = vunpack.c.l.b16 %v776
    %v3004 = vunpack.c.h.b16 %v776
    %v3005 = vunpack.c.l.b16 %v777
    %v3006 = vunpack.c.h.b16 %v777
    %v3007 = vunpack.c.l.b16 %v778
    %v3008 = vunpack.c.h.b16 %v778
    %v3009 = vunpack.c.l.b16 %v779
    %v3010 = vunpack.c.h.b16 %v779
    %v3011 = vunpack.c.l.b16 %v780
    %v3012 = vunpack.c.h.b16 %v780
    %v3013 = vunpack.c.l.b16 %v781
    %v3014 = vunpack.c.h.b16 %v781
    %v3015 = vunpack.c.l.b16 %v782
    %v3016 = vunpack.c.h.b16 %v782
    %v3017 = vunpack.c.l.b16 %v783
    %v3018 = vunpack.c.h.b16 %v783
    %v3019 = vunpack.c.l.b16 %v784
    %v3020 = vunpack.c.h.b16 %v784
    %v3021 = vunpack.c.l.b16 %v785
    %v3022 = vunpack.c.h.b16 %v785
    %v3023 = vunpack.c.l.b16 %v786
    %v3024 = vunpack.c.h.b16 %v786
    %v3025 = vunpack.c.l.b16 %v787
    %v3026 = vunpack.c.h.b16 %v787
    %v3027 = vunpack.c.l.b16 %v788
    %v3028 = vunpack.c.h.b16 %v788
    %v3029 = vunpack.c.l.b16 %v789
    %v3030 = vunpack.c.h.b16 %v789
    %v3031 = vunpack.c.l.b16 %v790
    %v3032 = vunpack.c.h.b16 %v790
    %v3033 = vunpack.c.l.b16 %v791
    %v3034 = vunpack.c.h.b16 %v791
    %v3035 = vunpack.c.l.b16 %v792
    %v3036 = vunpack.c.h.b16 %v792
    %v3037 = vunpack.c.l.b16 %v793
    %v3038 = vunpack.c.h.b16 %v793
    %v3039 = vunpack.c.l.b16 %v794
    %v3040 = vunpack.c.h.b16 %v794
    %v3041 = vunpack.c.l.b16 %v795
    %v3042 = vunpack.c.h.b16 %v795
    %v3043 = vunpack.c.l.b16 %v796
    %v3044 = vunpack.c.h.b16 %v796
    %v3045 = vunpack.c.l.b16 %v797
    %v3046 = vunpack.c.h.b16 %v797
    %v3047 = vunpack.c.l.b16 %v798
    %v3048 = vunpack.c.h.b16 %v798
    %v3049 = vunpack.c.l.b16 %v799
    %v3050 = vunpack.c.h.b16 %v799
    %v3051 = vunpack.c.l.b16 %v800
    %v3052 = vunpack.c.h.b16 %v800
    %v3053 = vunpack.c.l.b16 %v801
    %v3054 = vunpack.c.h.b16 %v801
    %v3055 = vunpack.c.l.b16 %v802
    %v3056 = vunpack.c.h.b16 %v802
    %v3057 = vunpack.c.l.b16 %v803
    %v3058 = vunpack.c.h.b16 %v803
    %v3059 = vunpack.c.l.b16 %v804
    %v3060 = vunpack.c.h.b16 %v804
    %v3061 = vunpack.c.l.b16 %v805
    %v3062 = vunpack.c.h.b16 %v805
    %v3063 = vunpack.c.l.b16 %v806
    %v3064 = vunpack.c.h.b16 %v806
    %v3065 = vunpack.c.l.b16 %v807
    %v3066 = vunpack.c.h.b16 %v807
    %v3067 = vunpack.c.l.b16 %v808
    %v3068 = vunpack.c.h.b16 %v808
    %v3069 = vunpack.c.l.b16 %v809
    %v3070 = vunpack.c.h.b16 %v809
    %v3071 = vunpack.c.l.b16 %v810
    %v3072 = vunpack.c.h.b16 %v810
    %v3073 = vunpack.c.l.b16 %v811
    %v3074 = vunpack.c.h.b16 %v811
    %v3075 = vunpack.c.l.b16 %v812
    %v3076 = vunpack.c.h.b16 %v812
    %v3077 = vunpack.c.l.b16 %v813
    %v3078 = vunpack.c.h.b16 %v813
    %v3079 = vunpack.c.l.b16 %v814
    %v3080 = vunpack.c.h.b16 %v814
    %v3081 = vunpack.c.l.b16 %v815
    %v3082 = vunpack.c.h.b16 %v815
    %v3083 = vunpack.c.l.b16 %v816
    %v3084 = vunpack.c.h.b16 %v816
    %v3085 = vunpack.c.l.b16 %v817
    %v3086 = vunpack.c.h.b16 %v817
    %v3087 = vunpack.c.l.b16 %v818
    %v3088 = vunpack.c.h.b16 %v818
    %v3089 = vunpack.c.l.b16 %v819
    %v3090 = vunpack.c.h.b16 %v819
    %v3091 = vunpack.c.l.b16 %v820
    %v3092 = vunpack.c.h.b16 %v820
    %v3093 = vunpack.c.l.b16 %v821
    %v3094 = vunpack.c.h.b16 %v821
    %v3095 = vunpack.c.l.b16 %v822
    %v3096 = vunpack.c.h.b16 %v822
    %v3097 = vunpack.c.l.b16 %v823
    %v3098 = vunpack.c.h.b16 %v823
    %v3099 = vunpack.c.l.b16 %v824
    %v3100 = vunpack.c.h.b16 %v824
    %v3101 = vunpack.c.l.b16 %v825
    %v3102 = vunpack.c.h.b16 %v825
    %v3103 = vunpack.c.l.b16 %v826
    %v3104 = vunpack.c.h.b16 %v826
    %v3105 = vunpack.c.l.b16 %v827
    %v3106 = vunpack.c.h.b16 %v827
    %v3107 = vunpack.c.l.b16 %v828
    %v3108 = vunpack.c.h.b16 %v828
    %v3109 = vunpack.c.l.b16 %v829
    %v3110 = vunpack.c.h.b16 %v829
    %v3111 = vunpack.c.l.b16 %v830
    %v3112 = vunpack.c.h.b16 %v830
    %v3113 = vunpack.c.l.b16 %v831
    %v3114 = vunpack.c.h.b16 %v831
    %v3115 = vunpack.c.l.b16 %v832
    %v3116 = vunpack.c.h.b16 %v832
    %v3117 = vunpack.c.l.b16 %v833
    %v3118 = vunpack.c.h.b16 %v833
    %v3119 = vunpack.c.l.b16 %v834
    %v3120 = vunpack.c.h.b16 %v834
    %v3121 = vunpack.c.l.b16 %v835
    %v3122 = vunpack.c.h.b16 %v835
    %v3123 = vunpack.c.l.b16 %v836
    %v3124 = vunpack.c.h.b16 %v836
    %v3125 = vunpack.c.l.b16 %v837
    %v3126 = vunpack.c.h.b16 %v837
    %v3127 = vunpack.c.l.b16 %v838
    %v3128 = vunpack.c.h.b16 %v838
    %v3129 = vunpack.c.l.b16 %v839
    %v3130 = vunpack.c.h.b16 %v839
    %v3131 = vunpack.c.l.b16 %v840
    %v3132 = vunpack.c.h.b16 %v840
    %v3133 = vunpack.c.l.b16 %v841
    %v3134 = vunpack.c.h.b16 %v841
    %v3135 = vunpack.c.l.b16 %v842
    %v3136 = vunpack.c.h.b16 %v842
    %v3137 = vunpack.c.l.b16 %v843
    %v3138 = vunpack.c.h.b16 %v843
    %v3139 = vunpack.c.l.b16 %v844
    %v3140 = vunpack.c.h.b16 %v844
    %v3141 = vunpack.c.l.b16 %v845
    %v3142 = vunpack.c.h.b16 %v845
    %v3143 = vunpack.c.l.b16 %v846
    %v3144 = vunpack.c.h.b16 %v846
    %v3145 = vunpack.c.l.b16 %v847
    %v3146 = vunpack.c.h.b16 %v847
    %v3147 = vunpack.c.l.b16 %v848
    %v3148 = vunpack.c.h.b16 %v848
    %v3149 = vunpack.c.l.b16 %v849
    %v3150 = vunpack.c.h.b16 %v849
    %v3151 = vunpack.c.l.b16 %v850
    %v3152 = vunpack.c.h.b16 %v850
    %v3153 = vunpack.c.l.b16 %v851
    %v3154 = vunpack.c.h.b16 %v851
    %v3155 = vunpack.c.l.b16 %v852
    %v3156 = vunpack.c.h.b16 %v852
    %v3157 = vunpack.c.l.b16 %v853
    %v3158 = vunpack.c.h.b16 %v853
    %v3159 = vunpack.c.l.b16 %v854
    %v3160 = vunpack.c.h.b16 %v854
    %v3161 = vunpack.c.l.b16 %v855
    %v3162 = vunpack.c.h.b16 %v855
    %v3163 = vunpack.c.l.b16 %v856
    %v3164 = vunpack.c.h.b16 %v856
    %v3165 = vunpack.c.l.b16 %v857
    %v3166 = vunpack.c.h.b16 %v857
    %v3167 = vunpack.c.l.b16 %v858
    %v3168 = vunpack.c.h.b16 %v858
    %v3169 = vunpack.c.l.b16 %v859
    %v3170 = vunpack.c.h.b16 %v859
    %v3171 = vunpack.c.l.b16 %v860
    %v3172 = vunpack.c.h.b16 %v860
    %v3173 = vunpack.c.l.b16 %v861
    %v3174 = vunpack.c.h.b16 %v861
    %v3175 = vunpack.c.l.b16 %v862
    %v3176 = vunpack.c.h.b16 %v862
    %v3177 = vpack.c.b16 %v1645, %v1641
    %v3178 = vpack.c.b16 %v1646, %v1642
    %v3179 = vpack.c.b16 %v1647, %v1643
    %v3180 = vpack.c.b16 %v1648, %v1644
    %v3181 = vpack.c.b16 %v1653, %v1649
    %v3182 = vpack.c.b16 %v1654, %v1650
    %v3183 = vpack.c.b16 %v1655, %v1651
    %v3184 = vpack.c.b16 %v1656, %v1652
    %v3185 = vpack.c.b16 %v1661, %v1657
    %v3186 = vpack.c.b16 %v1662, %v1658
    %v3187 = vpack.c.b16 %v1663, %v1659
    %v3188 = vpack.c.b16 %v1664, %v1660
    %v3189 = vpack.c.b16 %v1669, %v1665
    %v3190 = vpack.c.b16 %v1670, %v1666
    %v3191 = vpack.c.b16 %v1671, %v1667
    %v3192 = vpack.c.b16 %v1672, %v1668
    %v3193 = vpack.c.b16 %v1677, %v1673
    %v3194 = vpack.c.b16 %v1678, %v1674
    %v3195 = vpack.c.b16 %v1679, %v1675
    %v3196 = vpack.c.b16 %v1680, %v1676
    %v3197 = vpack.c.b16 %v1685, %v1681
    %v3198 = vpack.c.b16 %v1686, %v1682
    %v3199 = vpack.c.b16 %v1687, %v1683
    %v3200 = vpack.c.b16 %v1688, %v1684
    %v3201 = vpack.c.b16 %v1693, %v1689
    %v3202 = vpack.c.b16 %v1694, %v1690
    %v3203 = vpack.c.b16 %v1695, %v1691
    %v3204 = vpack.c.b16 %v1696, %v1692
    %v3205 = vpack.c.b16 %v1701, %v1697
    %v3206 = vpack.c.b16 %v1702, %v1698
    %v3207 = vpack.c.b16 %v1703, %v1699
    %v3208 = vpack.c.b16 %v1704, %v1700
    %v3209 = vpack.c.b16 %v1709, %v1705
    %v3210 = vpack.c.b16 %v1710, %v1706
    %v3211 = vpack.c.b16 %v1711, %v1707
    %v3212 = vpack.c.b16 %v1712, %v1708
    %v3213 = vpack.c.b16 %v1717, %v1713
    %v3214 = vpack.c.b16 %v1718, %v1714
    %v3215 = vpack.c.b16 %v1719, %v1715
    %v3216 = vpack.c.b16 %v1720, %v1716
    %v3217 = vpack.c.b16 %v1725, %v1721
    %v3218 = vpack.c.b16 %v1726, %v1722
    %v3219 = vpack.c.b16 %v1727, %v1723
    %v3220 = vpack.c.b16 %v1728, %v1724
    %v3221 = vpack.c.b16 %v1733, %v1729
    %v3222 = vpack.c.b16 %v1734, %v1730
    %v3223 = vpack.c.b16 %v1735, %v1731
    %v3224 = vpack.c.b16 %v1736, %v1732
    %v3225 = vpack.c.b16 %v1741, %v1737
    %v3226 = vpack.c.b16 %v1742, %v1738
    %v3227 = vpack.c.b16 %v1743, %v1739
    %v3228 = vpack.c.b16 %v1744, %v1740
    %v3229 = vpack.c.b16 %v1749, %v1745
    %v3230 = vpack.c.b16 %v1750, %v1746
    %v3231 = vpack.c.b16 %v1751, %v1747
    %v3232 = vpack.c.b16 %v1752, %v1748
    %v3233 = vpack.c.b16 %v1757, %v1753
    %v3234 = vpack.c.b16 %v1758, %v1754
    %v3235 = vpack.c.b16 %v1759, %v1755
    %v3236 = vpack.c.b16 %v1760, %v1756
    %v3237 = vpack.c.b16 %v1765, %v1761
    %v3238 = vpack.c.b16 %v1766, %v1762
    %v3239 = vpack.c.b16 %v1767, %v1763
    %v3240 = vpack.c.b16 %v1768, %v1764
    %v3241 = vpack.c.b16 %v1773, %v1769
    %v3242 = vpack.c.b16 %v1774, %v1770
    %v3243 = vpack.c.b16 %v1775, %v1771
    %v3244 = vpack.c.b16 %v1776, %v1772
    %v3245 = vpack.c.b16 %v1781, %v1777
    %v3246 = vpack.c.b16 %v1782, %v1778
    %v3247 = vpack.c.b16 %v1783, %v1779
    %v3248 = vpack.c.b16 %v1784, %v1780
    %v3249 = vpack.c.b16 %v1789, %v1785
    %v3250 = vpack.c.b16 %v1790, %v1786
    %v3251 = vpack.c.b16 %v1791, %v1787
    %v3252 = vpack.c.b16 %v1792, %v1788
    %v3253 = vpack.c.b16 %v1797, %v1793
    %v3254 = vpack.c.b16 %v1798, %v1794
    %v3255 = vpack.c.b16 %v1799, %v1795
    %v3256 = vpack.c.b16 %v1800, %v1796
    %v3257 = vpack.c.b16 %v1805, %v1801
    %v3258 = vpack.c.b16 %v1806, %v1802
    %v3259 = vpack.c.b16 %v1807, %v1803
    %v3260 = vpack.c.b16 %v1808, %v1804
    %v3261 = vpack.c.b16 %v1813, %v1809
    %v3262 = vpack.c.b16 %v1814, %v1810
    %v3263 = vpack.c.b16 %v1815, %v1811
    %v3264 = vpack.c.b16 %v1816, %v1812
    %v3265 = vpack.c.b16 %v1821, %v1817
    %v3266 = vpack.c.b16 %v1822, %v1818
    %v3267 = vpack.c.b16 %v1823, %v1819
    %v3268 = vpack.c.b16 %v1824, %v1820
    %v3269 = vpack.c.b16 %v1829, %v1825
    %v3270 = vpack.c.b16 %v1830, %v1826
    %v3271 = vpack.c.b16 %v1831, %v1827
    %v3272 = vpack.c.b16 %v1832, %v1828
    %v3273 = vpack.c.b16 %v1837, %v1833
    %v3274 = vpack.c.b16 %v1838, %v1834
    %v3275 = vpack.c.b16 %v1839, %v1835
    %v3276 = vpack.c.b16 %v1840, %v1836
    %v3277 = vpack.c.b16 %v1845, %v1841
    %v3278 = vpack.c.b16 %v1846, %v1842
    %v3279 = vpack.c.b16 %v1847, %v1843
    %v3280 = vpack.c.b16 %v1848, %v1844
    %v3281 = vpack.c.b16 %v1853, %v1849
    %v3282 = vpack.c.b16 %v1854, %v1850
    %v3283 = vpack.c.b16 %v1855, %v1851
    %v3284 = vpack.c.b16 %v1856, %v1852
    %v3285 = vpack.c.b16 %v1861, %v1857
    %v3286 = vpack.c.b16 %v1862, %v1858
    %v3287 = vpack.c.b16 %v1863, %v1859
    %v3288 = vpack.c.b16 %v1864, %v1860
    %v3289 = vpack.c.b16 %v1869, %v1865
    %v3290 = vpack.c.b16 %v1870, %v1866
    %v3291 = vpack.c.b16 %v1871, %v1867
    %v3292 = vpack.c.b16 %v1872, %v1868
    %v3293 = vpack.c.b16 %v1877, %v1873
    %v3294 = vpack.c.b16 %v1878, %v1874
    %v3295 = vpack.c.b16 %v1879, %v1875
    %v3296 = vpack.c.b16 %v1880, %v1876
    %v3297 = vpack.c.b16 %v1885, %v1881
    %v3298 = vpack.c.b16 %v1886, %v1882
    %v3299 = vpack.c.b16 %v1887, %v1883
    %v3300 = vpack.c.b16 %v1888, %v1884
    %v3301 = vpack.c.b16 %v1893, %v1889
    %v3302 = vpack.c.b16 %v1894, %v1890
    %v3303 = vpack.c.b16 %v1895, %v1891
    %v3304 = vpack.c.b16 %v1896, %v1892
    %v3305 = vpack.c.b16 %v1901, %v1897
    %v3306 = vpack.c.b16 %v1902, %v1898
    %v3307 = vpack.c.b16 %v1903, %v1899
    %v3308 = vpack.c.b16 %v1904, %v1900
    %v3309 = vpack.c.b16 %v1909, %v1905
    %v3310 = vpack.c.b16 %v1910, %v1906
    %v3311 = vpack.c.b16 %v1911, %v1907
    %v3312 = vpack.c.b16 %v1912, %v1908
    %v3313 = vpack.c.b16 %v1917, %v1913
    %v3314 = vpack.c.b16 %v1918, %v1914
    %v3315 = vpack.c.b16 %v1919, %v1915
    %v3316 = vpack.c.b16 %v1920, %v1916
    %v3317 = vpack.c.b16 %v1925, %v1921
    %v3318 = vpack.c.b16 %v1926, %v1922
    %v3319 = vpack.c.b16 %v1927, %v1923
    %v3320 = vpack.c.b16 %v1928, %v1924
    %v3321 = vpack.c.b16 %v1933, %v1929
    %v3322 = vpack.c.b16 %v1934, %v1930
    %v3323 = vpack.c.b16 %v1935, %v1931
    %v3324 = vpack.c.b16 %v1936, %v1932
    %v3325 = vpack.c.b16 %v1941, %v1937
    %v3326 = vpack.c.b16 %v1942, %v1938
    %v3327 = vpack.c.b16 %v1943, %v1939
    %v3328 = vpack.c.b16 %v1944, %v1940
    %v3329 = vpack.c.b16 %v1949, %v1945
    %v3330 = vpack.c.b16 %v1950, %v1946
    %v3331 = vpack.c.b16 %v1951, %v1947
    %v3332 = vpack.c.b16 %v1952, %v1948
    %v3333 = vpack.c.b16 %v1957, %v1953
    %v3334 = vpack.c.b16 %v1958, %v1954
    %v3335 = vpack.c.b16 %v1959, %v1955
    %v3336 = vpack.c.b16 %v1960, %v1956
    %v3337 = vpack.c.b16 %v1965, %v1961
    %v3338 = vpack.c.b16 %v1966, %v1962
    %v3339 = vpack.c.b16 %v1967, %v1963
    %v3340 = vpack.c.b16 %v1968, %v1964
    %v3341 = vpack.c.b16 %v1973, %v1969
    %v3342 = vpack.c.b16 %v1974, %v1970
    %v3343 = vpack.c.b16 %v1975, %v1971
    %v3344 = vpack.c.b16 %v1976, %v1972
    %v3345 = vpack.c.b16 %v1981, %v1977
    %v3346 = vpack.c.b16 %v1982, %v1978
    %v3347 = vpack.c.b16 %v1983, %v1979
    %v3348 = vpack.c.b16 %v1984, %v1980
    %v3349 = vpack.c.b16 %v1989, %v1985
    %v3350 = vpack.c.b16 %v1990, %v1986
    %v3351 = vpack.c.b16 %v1991, %v1987
    %v3352 = vpack.c.b16 %v1992, %v1988
    %v3353 = vpack.c.b16 %v1997, %v1993
    %v3354 = vpack.c.b16 %v1998, %v1994
    %v3355 = vpack.c.b16 %v1999, %v1995
    %v3356 = vpack.c.b16 %v2000, %v1996
    %v3357 = vpack.c.b16 %v2005, %v2001
    %v3358 = vpack.c.b16 %v2006, %v2002
    %v3359 = vpack.c.b16 %v2007, %v2003
    %v3360 = vpack.c.b16 %v2008, %v2004
    %v3361 = vpack.c.b16 %v2013, %v2009
    %v3362 = vpack.c.b16 %v2014, %v2010
    %v3363 = vpack.c.b16 %v2015, %v2011
    %v3364 = vpack.c.b16 %v2016, %v2012
    %v3365 = vpack.c.b16 %v2021, %v2017
    %v3366 = vpack.c.b16 %v2022, %v2018
    %v3367 = vpack.c.b16 %v2023, %v2019
    %v3368 = vpack.c.b16 %v2024, %v2020
    %v3369 = vpack.c.b16 %v2029, %v2025
    %v3370 = vpack.c.b16 %v2030, %v2026
    %v3371 = vpack.c.b16 %v2031, %v2027
    %v3372 = vpack.c.b16 %v2032, %v2028
    %v3373 = vpack.c.b16 %v2037, %v2033
    %v3374 = vpack.c.b16 %v2038, %v2034
    %v3375 = vpack.c.b16 %v2039, %v2035
    %v3376 = vpack.c.b16 %v2040, %v2036
    %v3377 = vpack.c.b16 %v2045, %v2041
    %v3378 = vpack.c.b16 %v2046, %v2042
    %v3379 = vpack.c.b16 %v2047, %v2043
    %v3380 = vpack.c.b16 %v2048, %v2044
    %v3381 = vpack.c.b16 %v2053, %v2049
    %v3382 = vpack.c.b16 %v2054, %v2050
    %v3383 = vpack.c.b16 %v2055, %v2051
    %v3384 = vpack.c.b16 %v2056, %v2052
    %v3385 = vpack.c.b16 %v2061, %v2057
    %v3386 = vpack.c.b16 %v2062, %v2058
    %v3387 = vpack.c.b16 %v2063, %v2059
    %v3388 = vpack.c.b16 %v2064, %v2060
    %v3389 = vpack.c.b16 %v2069, %v2065
    %v3390 = vpack.c.b16 %v2070, %v2066
    %v3391 = vpack.c.b16 %v2071, %v2067
    %v3392 = vpack.c.b16 %v2072, %v2068
    %v3393 = vpack.c.b16 %v2077, %v2073
    %v3394 = vpack.c.b16 %v2078, %v2074
    %v3395 = vpack.c.b16 %v2079, %v2075
    %v3396 = vpack.c.b16 %v2080, %v2076
    %v3397 = vpack.c.b16 %v2085, %v2081
    %v3398 = vpack.c.b16 %v2086, %v2082
    %v3399 = vpack.c.b16 %v2087, %v2083
    %v3400 = vpack.c.b16 %v2088, %v2084
    %v3401 = vpack.c.b16 %v2093, %v2089
    %v3402 = vpack.c.b16 %v2094, %v2090
    %v3403 = vpack.c.b16 %v2095, %v2091
    %v3404 = vpack.c.b16 %v2096, %v2092
    %v3405 = vpack.c.b16 %v2101, %v2097
    %v3406 = vpack.c.b16 %v2102, %v2098
    %v3407 = vpack.c.b16 %v2103, %v2099
    %v3408 = vpack.c.b16 %v2104, %v2100
    %v3409 = vpack.c.b16 %v2109, %v2105
    %v3410 = vpack.c.b16 %v2110, %v2106
    %v3411 = vpack.c.b16 %v2111, %v2107
    %v3412 = vpack.c.b16 %v2112, %v2108
    %v3413 = vpack.c.b16 %v2117, %v2113
    %v3414 = vpack.c.b16 %v2118, %v2114
    %v3415 = vpack.c.b16 %v2119, %v2115
    %v3416 = vpack.c.b16 %v2120, %v2116
    %v3417 = vpack.c.b16 %v2125, %v2121
    %v3418 = vpack.c.b16 %v2126, %v2122
    %v3419 = vpack.c.b16 %v2127, %v2123
    %v3420 = vpack.c.b16 %v2128, %v2124
    %v3421 = vpack.c.b16 %v2133, %v2129
    %v3422 = vpack.c.b16 %v2134, %v2130
    %v3423 = vpack.c.b16 %v2135, %v2131
    %v3424 = vpack.c.b16 %v2136, %v2132
    %v3425 = vpack.c.b16 %v2141, %v2137
    %v3426 = vpack.c.b16 %v2142, %v2138
    %v3427 = vpack.c.b16 %v2143, %v2139
    %v3428 = vpack.c.b16 %v2144, %v2140
    %v3429 = vpack.c.b16 %v2149, %v2145
    %v3430 = vpack.c.b16 %v2150, %v2146
    %v3431 = vpack.c.b16 %v2151, %v2147
    %v3432 = vpack.c.b16 %v2152, %v2148
    %v3433 = vpack.c.b16 %v2157, %v2153
    %v3434 = vpack.c.b16 %v2158, %v2154
    %v3435 = vpack.c.b16 %v2159, %v2155
    %v3436 = vpack.c.b16 %v2160, %v2156
    %v3437 = vpack.c.b16 %v2165, %v2161
    %v3438 = vpack.c.b16 %v2166, %v2162
    %v3439 = vpack.c.b16 %v2167, %v2163
    %v3440 = vpack.c.b16 %v2168, %v2164
    %v3441 = vpack.c.b16 %v2173, %v2169
    %v3442 = vpack.c.b16 %v2174, %v2170
    %v3443 = vpack.c.b16 %v2175, %v2171
    %v3444 = vpack.c.b16 %v2176, %v2172
    %v3445 = vpack.c.b16 %v2181, %v2177
    %v3446 = vpack.c.b16 %v2182, %v2178
    %v3447 = vpack.c.b16 %v2183, %v2179
    %v3448 = vpack.c.b16 %v2184, %v2180
    %v3449 = vpack.c.b16 %v2189, %v2185
    %v3450 = vpack.c.b16 %v2190, %v2186
    %v3451 = vpack.c.b16 %v2191, %v2187
    %v3452 = vpack.c.b16 %v2192, %v2188
    %v3453 = vpack.c.b16 %v2197, %v2193
    %v3454 = vpack.c.b16 %v2198, %v2194
    %v3455 = vpack.c.b16 %v2199, %v2195
    %v3456 = vpack.c.b16 %v2200, %v2196
    %v3457 = vpack.c.b16 %v2205, %v2201
    %v3458 = vpack.c.b16 %v2206, %v2202
    %v3459 = vpack.c.b16 %v2207, %v2203
    %v3460 = vpack.c.b16 %v2208, %v2204
    %v3461 = vpack.c.b16 %v2213, %v2209
    %v3462 = vpack.c.b16 %v2214, %v2210
    %v3463 = vpack.c.b16 %v2215, %v2211
    %v3464 = vpack.c.b16 %v2216, %v2212
    %v3465 = vpack.c.b16 %v2221, %v2217
    %v3466 = vpack.c.b16 %v2222, %v2218
    %v3467 = vpack.c.b16 %v2223, %v2219
    %v3468 = vpack.c.b16 %v2224, %v2220
    %v3469 = vpack.c.b16 %v2229, %v2225
    %v3470 = vpack.c.b16 %v2230, %v2226
    %v3471 = vpack.c.b16 %v2231, %v2227
    %v3472 = vpack.c.b16 %v2232, %v2228
    %v3473 = vpack.c.b16 %v2237, %v2233
    %v3474 = vpack.c.b16 %v2238, %v2234
    %v3475 = vpack.c.b16 %v2239, %v2235
    %v3476 = vpack.c.b16 %v2240, %v2236
    %v3477 = vpack.c.b16 %v2245, %v2241
    %v3478 = vpack.c.b16 %v2246, %v2242
    %v3479 = vpack.c.b16 %v2247, %v2243
    %v3480 = vpack.c.b16 %v2248, %v2244
    %v3481 = vpack.c.b16 %v2253, %v2249
    %v3482 = vpack.c.b16 %v2254, %v2250
    %v3483 = vpack.c.b16 %v2255, %v2251
    %v3484 = vpack.c.b16 %v2256, %v2252
    %v3485 = vpack.c.b16 %v2261, %v2257
    %v3486 = vpack.c.b16 %v2262, %v2258
    %v3487 = vpack.c.b16 %v2263, %v2259
    %v3488 = vpack.c.b16 %v2264, %v2260
    %v3489 = vpack.c.b16 %v2269, %v2265
    %v3490 = vpack.c.b16 %v2270, %v2266
    %v3491 = vpack.c.b16 %v2271, %v2267
    %v3492 = vpack.c.b16 %v2272, %v2268
    %v3493 = vpack.c.b16 %v2277, %v2273
    %v3494 = vpack.c.b16 %v2278, %v2274
    %v3495 = vpack.c.b16 %v2279, %v2275
    %v3496 = vpack.c.b16 %v2280, %v2276
    %v3497 = vpack.c.b16 %v2285, %v2281
    %v3498 = vpack.c.b16 %v2286, %v2282
    %v3499 = vpack.c.b16 %v2287, %v2283
    %v3500 = vpack.c.b16 %v2288, %v2284
    %v3501 = vpack.c.b16 %v2293, %v2289
    %v3502 = vpack.c.b16 %v2294, %v2290
    %v3503 = vpack.c.b16 %v2295, %v2291
    %v3504 = vpack.c.b16 %v2296, %v2292
    %v3505 = vpack.c.b16 %v2301, %v2297
    %v3506 = vpack.c.b16 %v2302, %v2298
    %v3507 = vpack.c.b16 %v2303, %v2299
    %v3508 = vpack.c.b16 %v2304, %v2300
    %v3509 = vpack.c.b16 %v2309, %v2305
    %v3510 = vpack.c.b16 %v2310, %v2306
    %v3511 = vpack.c.b16 %v2311, %v2307
    %v3512 = vpack.c.b16 %v2312, %v2308
    %v3513 = vpack.c.b16 %v2317, %v2313
    %v3514 = vpack.c.b16 %v2318, %v2314
    %v3515 = vpack.c.b16 %v2319, %v2315
    %v3516 = vpack.c.b16 %v2320, %v2316
    %v3517 = vpack.c.b16 %v2325, %v2321
    %v3518 = vpack.c.b16 %v2326, %v2322
    %v3519 = vpack.c.b16 %v2327, %v2323
    %v3520 = vpack.c.b16 %v2328, %v2324
    %v3521 = vpack.c.b16 %v2333, %v2329
    %v3522 = vpack.c.b16 %v2334, %v2330
    %v3523 = vpack.c.b16 %v2335, %v2331
    %v3524 = vpack.c.b16 %v2336, %v2332
    %v3525 = vpack.c.b16 %v2341, %v2337
    %v3526 = vpack.c.b16 %v2342, %v2338
    %v3527 = vpack.c.b16 %v2343, %v2339
    %v3528 = vpack.c.b16 %v2344, %v2340
    %v3529 = vpack.c.b16 %v2349, %v2345
    %v3530 = vpack.c.b16 %v2350, %v2346
    %v3531 = vpack.c.b16 %v2351, %v2347
    %v3532 = vpack.c.b16 %v2352, %v2348
    %v3533 = vpack.c.b16 %v2357, %v2353
    %v3534 = vpack.c.b16 %v2358, %v2354
    %v3535 = vpack.c.b16 %v2359, %v2355
    %v3536 = vpack.c.b16 %v2360, %v2356
    %v3537 = vpack.c.b16 %v2365, %v2361
    %v3538 = vpack.c.b16 %v2366, %v2362
    %v3539 = vpack.c.b16 %v2367, %v2363
    %v3540 = vpack.c.b16 %v2368, %v2364
    %v3541 = vpack.c.b16 %v2373, %v2369
    %v3542 = vpack.c.b16 %v2374, %v2370
    %v3543 = vpack.c.b16 %v2375, %v2371
    %v3544 = vpack.c.b16 %v2376, %v2372
    %v3545 = vpack.c.b16 %v2381, %v2377
    %v3546 = vpack.c.b16 %v2382, %v2378
    %v3547 = vpack.c.b16 %v2383, %v2379
    %v3548 = vpack.c.b16 %v2384, %v2380
    %v3549 = vpack.c.b16 %v2389, %v2385
    %v3550 = vpack.c.b16 %v2390, %v2386
    %v3551 = vpack.c.b16 %v2391, %v2387
    %v3552 = vpack.c.b16 %v2392, %v2388
    %v3553 = vpack.c.b16 %v2397, %v2393
    %v3554 = vpack.c.b16 %v2398, %v2394
    %v3555 = vpack.c.b16 %v2399, %v2395
    %v3556 = vpack.c.b16 %v2400, %v2396
    %v3557 = vpack.c.b16 %v2405, %v2401
    %v3558 = vpack.c.b16 %v2406, %v2402
    %v3559 = vpack.c.b16 %v2407, %v2403
    %v3560 = vpack.c.b16 %v2408, %v2404
    %v3561 = vpack.c.b16 %v2413, %v2409
    %v3562 = vpack.c.b16 %v2414, %v2410
    %v3563 = vpack.c.b16 %v2415, %v2411
    %v3564 = vpack.c.b16 %v2416, %v2412
    %v3565 = vpack.c.b16 %v2421, %v2417
    %v3566 = vpack.c.b16 %v2422, %v2418
    %v3567 = vpack.c.b16 %v2423, %v2419
    %v3568 = vpack.c.b16 %v2424, %v2420
    %v3569 = vpack.c.b16 %v2429, %v2425
    %v3570 = vpack.c.b16 %v2430, %v2426
    %v3571 = vpack.c.b16 %v2431, %v2427
    %v3572 = vpack.c.b16 %v2432, %v2428
    %v3573 = vpack.c.b16 %v2437, %v2433
    %v3574 = vpack.c.b16 %v2438, %v2434
    %v3575 = vpack.c.b16 %v2439, %v2435
    %v3576 = vpack.c.b16 %v2440, %v2436
    %v3577 = vpack.c.b16 %v2445, %v2441
    %v3578 = vpack.c.b16 %v2446, %v2442
    %v3579 = vpack.c.b16 %v2447, %v2443
    %v3580 = vpack.c.b16 %v2448, %v2444
    %v3581 = vpack.c.b16 %v2453, %v2449
    %v3582 = vpack.c.b16 %v2454, %v2450
    %v3583 = vpack.c.b16 %v2455, %v2451
    %v3584 = vpack.c.b16 %v2456, %v2452
    %v3585 = vpack.c.b16 %v2461, %v2457
    %v3586 = vpack.c.b16 %v2462, %v2458
    %v3587 = vpack.c.b16 %v2463, %v2459
    %v3588 = vpack.c.b16 %v2464, %v2460
    %v3589 = vpack.c.b16 %v2469, %v2465
    %v3590 = vpack.c.b16 %v2470, %v2466
    %v3591 = vpack.c.b16 %v2471, %v2467
    %v3592 = vpack.c.b16 %v2472, %v2468
    %v3593 = vpack.c.b16 %v2477, %v2473
    %v3594 = vpack.c.b16 %v2478, %v2474
    %v3595 = vpack.c.b16 %v2479, %v2475
    %v3596 = vpack.c.b16 %v2480, %v2476
    %v3597 = vpack.c.b16 %v2485, %v2481
    %v3598 = vpack.c.b16 %v2486, %v2482
    %v3599 = vpack.c.b16 %v2487, %v2483
    %v3600 = vpack.c.b16 %v2488, %v2484
    %v3601 = vpack.c.b16 %v2493, %v2489
    %v3602 = vpack.c.b16 %v2494, %v2490
    %v3603 = vpack.c.b16 %v2495, %v2491
    %v3604 = vpack.c.b16 %v2496, %v2492
    %v3605 = vpack.c.b16 %v2501, %v2497
    %v3606 = vpack.c.b16 %v2502, %v2498
    %v3607 = vpack.c.b16 %v2503, %v2499
    %v3608 = vpack.c.b16 %v2504, %v2500
    %v3609 = vpack.c.b16 %v2509, %v2505
    %v3610 = vpack.c.b16 %v2510, %v2506
    %v3611 = vpack.c.b16 %v2511, %v2507
    %v3612 = vpack.c.b16 %v2512, %v2508
    %v3613 = vpack.c.b16 %v2517, %v2513
    %v3614 = vpack.c.b16 %v2518, %v2514
    %v3615 = vpack.c.b16 %v2519, %v2515
    %v3616 = vpack.c.b16 %v2520, %v2516
    %v3617 = vpack.c.b16 %v2525, %v2521
    %v3618 = vpack.c.b16 %v2526, %v2522
    %v3619 = vpack.c.b16 %v2527, %v2523
    %v3620 = vpack.c.b16 %v2528, %v2524
    %v3621 = vpack.c.b16 %v2533, %v2529
    %v3622 = vpack.c.b16 %v2534, %v2530
    %v3623 = vpack.c.b16 %v2535, %v2531
    %v3624 = vpack.c.b16 %v2536, %v2532
    %v3625 = vpack.c.b16 %v2541, %v2537
    %v3626 = vpack.c.b16 %v2542, %v2538
    %v3627 = vpack.c.b16 %v2543, %v2539
    %v3628 = vpack.c.b16 %v2544, %v2540
    %v3629 = vpack.c.b16 %v2549, %v2545
    %v3630 = vpack.c.b16 %v2550, %v2546
    %v3631 = vpack.c.b16 %v2551, %v2547
    %v3632 = vpack.c.b16 %v2552, %v2548
    %v3633 = vpack.c.b16 %v2557, %v2553
    %v3634 = vpack.c.b16 %v2558, %v2554
    %v3635 = vpack.c.b16 %v2559, %v2555
    %v3636 = vpack.c.b16 %v2560, %v2556
    %v3637 = vpack.c.b16 %v2565, %v2561
    %v3638 = vpack.c.b16 %v2566, %v2562
    %v3639 = vpack.c.b16 %v2567, %v2563
    %v3640 = vpack.c.b16 %v2568, %v2564
    %v3641 = vpack.c.b16 %v2573, %v2569
    %v3642 = vpack.c.b16 %v2574, %v2570
    %v3643 = vpack.c.b16 %v2575, %v2571
    %v3644 = vpack.c.b16 %v2576, %v2572
    %v3645 = vpack.c.b16 %v2581, %v2577
    %v3646 = vpack.c.b16 %v2582, %v2578
    %v3647 = vpack.c.b16 %v2583, %v2579
    %v3648 = vpack.c.b16 %v2584, %v2580
    %v3649 = vpack.c.b16 %v2589, %v2585
    %v3650 = vpack.c.b16 %v2590, %v2586
    %v3651 = vpack.c.b16 %v2591, %v2587
    %v3652 = vpack.c.b16 %v2592, %v2588
    %v3653 = vpack.c.b16 %v2597, %v2593
    %v3654 = vpack.c.b16 %v2598, %v2594
    %v3655 = vpack.c.b16 %v2599, %v2595
    %v3656 = vpack.c.b16 %v2600, %v2596
    %v3657 = vpack.c.b16 %v2605, %v2601
    %v3658 = vpack.c.b16 %v2606, %v2602
    %v3659 = vpack.c.b16 %v2607, %v2603
    %v3660 = vpack.c.b16 %v2608, %v2604
    %v3661 = vpack.c.b16 %v2613, %v2609
    %v3662 = vpack.c.b16 %v2614, %v2610
    %v3663 = vpack.c.b16 %v2615, %v2611
    %v3664 = vpack.c.b16 %v2616, %v2612
    %v3665 = vpack.c.b16 %v2621, %v2617
    %v3666 = vpack.c.b16 %v2622, %v2618
    %v3667 = vpack.c.b16 %v2623, %v2619
    %v3668 = vpack.c.b16 %v2624, %v2620
    %v3669 = vpack.c.b16 %v2629, %v2625
    %v3670 = vpack.c.b16 %v2630, %v2626
    %v3671 = vpack.c.b16 %v2631, %v2627
    %v3672 = vpack.c.b16 %v2632, %v2628
    %v3673 = vpack.c.b16 %v2637, %v2633
    %v3674 = vpack.c.b16 %v2638, %v2634
    %v3675 = vpack.c.b16 %v2639, %v2635
    %v3676 = vpack.c.b16 %v2640, %v2636
    %v3677 = vpack.c.b16 %v2645, %v2641
    %v3678 = vpack.c.b16 %v2646, %v2642
    %v3679 = vpack.c.b16 %v2647, %v2643
    %v3680 = vpack.c.b16 %v2648, %v2644
    %v3681 = vpack.c.b16 %v2653, %v2649
    %v3682 = vpack.c.b16 %v2654, %v2650
    %v3683 = vpack.c.b16 %v2655, %v2651
    %v3684 = vpack.c.b16 %v2656, %v2652
    %v3685 = vpack.c.b16 %v2661, %v2657
    %v3686 = vpack.c.b16 %v2662, %v2658
    %v3687 = vpack.c.b16 %v2663, %v2659
    %v3688 = vpack.c.b16 %v2664, %v2660
    %v3689 = vpack.c.b16 %v2669, %v2665
    %v3690 = vpack.c.b16 %v2670, %v2666
    %v3691 = vpack.c.b16 %v2671, %v2667
    %v3692 = vpack.c.b16 %v2672, %v2668
    %v3693 = vpack.c.b16 %v2677, %v2673
    %v3694 = vpack.c.b16 %v2678, %v2674
    %v3695 = vpack.c.b16 %v2679, %v2675
    %v3696 = vpack.c.b16 %v2680, %v2676
    %v3697 = vpack.c.b16 %v2685, %v2681
    %v3698 = vpack.c.b16 %v2686, %v2682
    %v3699 = vpack.c.b16 %v2687, %v2683
    %v3700 = vpack.c.b16 %v2688, %v2684
    %v3701 = vpack.c.b16 %v2693, %v2689
    %v3702 = vpack.c.b16 %v2694, %v2690
    %v3703 = vpack.c.b16 %v2695, %v2691
    %v3704 = vpack.c.b16 %v2696, %v2692
    %v3705 = vpack.c.b16 %v2701, %v2697
    %v3706 = vpack.c.b16 %v2702, %v2698
    %v3707 = vpack.c.b16 %v2703, %v2699
    %v3708 = vpack.c.b16 %v2704, %v2700
    %v3709 = vpack.c.b16 %v2709, %v2705
    %v3710 = vpack.c.b16 %v2710, %v2706
    %v3711 = vpack.c.b16 %v2711, %v2707
    %v3712 = vpack.c.b16 %v2712, %v2708
    %v3713 = vpack.c.b16 %v2717, %v2713
    %v3714 = vpack.c.b16 %v2718, %v2714
    %v3715 = vpack.c.b16 %v2719, %v2715
    %v3716 = vpack.c.b16 %v2720, %v2716
    %v3717 = vpack.c.b16 %v2725, %v2721
    %v3718 = vpack.c.b16 %v2726, %v2722
    %v3719 = vpack.c.b16 %v2727, %v2723
    %v3720 = vpack.c.b16 %v2728, %v2724
    %v3721 = vpack.c.b16 %v2733, %v2729
    %v3722 = vpack.c.b16 %v2734, %v2730
    %v3723 = vpack.c.b16 %v2735, %v2731
    %v3724 = vpack.c.b16 %v2736, %v2732
    %v3725 = vpack.c.b16 %v2741, %v2737
    %v3726 = vpack.c.b16 %v2742, %v2738
    %v3727 = vpack.c.b16 %v2743, %v2739
    %v3728 = vpack.c.b16 %v2744, %v2740
    %v3729 = vpack.c.b16 %v2749, %v2745
    %v3730 = vpack.c.b16 %v2750, %v2746
    %v3731 = vpack.c.b16 %v2751, %v2747
    %v3732 = vpack.c.b16 %v2752, %v2748
    %v3733 = vpack.c.b16 %v2757, %v2753
    %v3734 = vpack.c.b16 %v2758, %v2754
    %v3735 = vpack.c.b16 %v2759, %v2755
    %v3736 = vpack.c.b16 %v2760, %v2756
    %v3737 = vpack.c.b16 %v2765, %v2761
    %v3738 = vpack.c.b16 %v2766, %v2762
    %v3739 = vpack.c.b16 %v2767, %v2763
    %v3740 = vpack.c.b16 %v2768, %v2764
    %v3741 = vpack.c.b16 %v2773, %v2769
    %v3742 = vpack.c.b16 %v2774, %v2770
    %v3743 = vpack.c.b16 %v2775, %v2771
    %v3744 = vpack.c.b16 %v2776, %v2772
    %v3745 = vpack.c.b16 %v2781, %v2777
    %v3746 = vpack.c.b16 %v2782, %v2778
    %v3747 = vpack.c.b16 %v2783, %v2779
    %v3748 = vpack.c.b16 %v2784, %v2780
    %v3749 = vpack.c.b16 %v2789, %v2785
    %v3750 = vpack.c.b16 %v2790, %v2786
    %v3751 = vpack.c.b16 %v2791, %v2787
    %v3752 = vpack.c.b16 %v2792, %v2788
    %v3753 = vpack.c.b16 %v2797, %v2793
    %v3754 = vpack.c.b16 %v2798, %v2794
    %v3755 = vpack.c.b16 %v2799, %v2795
    %v3756 = vpack.c.b16 %v2800, %v2796
    %v3757 = vpack.c.b16 %v2805, %v2801
    %v3758 = vpack.c.b16 %v2806, %v2802
    %v3759 = vpack.c.b16 %v2807, %v2803
    %v3760 = vpack.c.b16 %v2808, %v2804
    %v3761 = vpack.c.b16 %v2813, %v2809
    %v3762 = vpack.c.b16 %v2814, %v2810
    %v3763 = vpack.c.b16 %v2815, %v2811
    %v3764 = vpack.c.b16 %v2816, %v2812
    %v3765 = vpack.c.b16 %v2821, %v2817
    %v3766 = vpack.c.b16 %v2822, %v2818
    %v3767 = vpack.c.b16 %v2823, %v2819
    %v3768 = vpack.c.b16 %v2824, %v2820
    %v3769 = vpack.c.b16 %v2829, %v2825
    %v3770 = vpack.c.b16 %v2830, %v2826
    %v3771 = vpack.c.b16 %v2831, %v2827
    %v3772 = vpack.c.b16 %v2832, %v2828
    %v3773 = vpack.c.b16 %v2837, %v2833
    %v3774 = vpack.c.b16 %v2838, %v2834
    %v3775 = vpack.c.b16 %v2839, %v2835
    %v3776 = vpack.c.b16 %v2840, %v2836
    %v3777 = vpack.c.b16 %v2845, %v2841
    %v3778 = vpack.c.b16 %v2846, %v2842
    %v3779 = vpack.c.b16 %v2847, %v2843
    %v3780 = vpack.c.b16 %v2848, %v2844
    %v3781 = vpack.c.b16 %v2853, %v2849
    %v3782 = vpack.c.b16 %v2854, %v2850
    %v3783 = vpack.c.b16 %v2855, %v2851
    %v3784 = vpack.c.b16 %v2856, %v2852
    %v3785 = vpack.c.b16 %v2861, %v2857
    %v3786 = vpack.c.b16 %v2862, %v2858
    %v3787 = vpack.c.b16 %v2863, %v2859
    %v3788 = vpack.c.b16 %v2864, %v2860
    %v3789 = vpack.c.b16 %v2869, %v2865
    %v3790 = vpack.c.b16 %v2870, %v2866
    %v3791 = vpack.c.b16 %v2871, %v2867
    %v3792 = vpack.c.b16 %v2872, %v2868
    %v3793 = vpack.c.b16 %v2877, %v2873
    %v3794 = vpack.c.b16 %v2878, %v2874
    %v3795 = vpack.c.b16 %v2879, %v2875
    %v3796 = vpack.c.b16 %v2880, %v2876
    %v3797 = vpack.c.b16 %v2885, %v2881
    %v3798 = vpack.c.b16 %v2886, %v2882
    %v3799 = vpack.c.b16 %v2887, %v2883
    %v3800 = vpack.c.b16 %v2888, %v2884
    %v3801 = vpack.c.b16 %v2893, %v2889
    %v3802 = vpack.c.b16 %v2894, %v2890
    %v3803 = vpack.c.b16 %v2895, %v2891
    %v3804 = vpack.c.b16 %v2896, %v2892
    %v3805 = vpack.c.b16 %v2901, %v2897
    %v3806 = vpack.c.b16 %v2902, %v2898
    %v3807 = vpack.c.b16 %v2903, %v2899
    %v3808 = vpack.c.b16 %v2904, %v2900
    %v3809 = vpack.c.b16 %v2909, %v2905
    %v3810 = vpack.c.b16 %v2910, %v2906
    %v3811 = vpack.c.b16 %v2911, %v2907
    %v3812 = vpack.c.b16 %v2912, %v2908
    %v3813 = vpack.c.b16 %v2917, %v2913
    %v3814 = vpack.c.b16 %v2918, %v2914
    %v3815 = vpack.c.b16 %v2919, %v2915
    %v3816 = vpack.c.b16 %v2920, %v2916
    %v3817 = vpack.c.b16 %v2925, %v2921
    %v3818 = vpack.c.b16 %v2926, %v2922
    %v3819 = vpack.c.b16 %v2927, %v2923
    %v3820 = vpack.c.b16 %v2928, %v2924
    %v3821 = vpack.c.b16 %v2933, %v2929
    %v3822 = vpack.c.b16 %v2934, %v2930
    %v3823 = vpack.c.b16 %v2935, %v2931
    %v3824 = vpack.c.b16 %v2936, %v2932
    %v3825 = vpack.c.b16 %v2941, %v2937
    %v3826 = vpack.c.b16 %v2942, %v2938
    %v3827 = vpack.c.b16 %v2943, %v2939
    %v3828 = vpack.c.b16 %v2944, %v2940
    %v3829 = vpack.c.b16 %v2949, %v2945
    %v3830 = vpack.c.b16 %v2950, %v2946
    %v3831 = vpack.c.b16 %v2951, %v2947
    %v3832 = vpack.c.b16 %v2952, %v2948
    %v3833 = vpack.c.b16 %v2957, %v2953
    %v3834 = vpack.c.b16 %v2958, %v2954
    %v3835 = vpack.c.b16 %v2959, %v2955
    %v3836 = vpack.c.b16 %v2960, %v2956
    %v3837 = vpack.c.b16 %v2965, %v2961
    %v3838 = vpack.c.b16 %v2966, %v2962
    %v3839 = vpack.c.b16 %v2967, %v2963
    %v3840 = vpack.c.b16 %v2968, %v2964
    %v3841 = vpack.c.b16 %v2973, %v2969
    %v3842 = vpack.c.b16 %v2974, %v2970
    %v3843 = vpack.c.b16 %v2975, %v2971
    %v3844 = vpack.c.b16 %v2976, %v2972
    %v3845 = vpack.c.b16 %v2981, %v2977
    %v3846 = vpack.c.b16 %v2982, %v2978
    %v3847 = vpack.c.b16 %v2983, %v2979
    %v3848 = vpack.c.b16 %v2984, %v2980
    %v3849 = vpack.c.b16 %v2989, %v2985
    %v3850 = vpack.c.b16 %v2990, %v2986
    %v3851 = vpack.c.b16 %v2991, %v2987
    %v3852 = vpack.c.b16 %v2992, %v2988
    %v3853 = vpack.c.b16 %v2997, %v2993
    %v3854 = vpack.c.b16 %v2998, %v2994
    %v3855 = vpack.c.b16 %v2999, %v2995
    %v3856 = vpack.c.b16 %v3000, %v2996
    %v3857 = vpack.c.b16 %v3005, %v3001
    %v3858 = vpack.c.b16 %v3006, %v3002
    %v3859 = vpack.c.b16 %v3007, %v3003
    %v3860 = vpack.c.b16 %v3008, %v3004
    %v3861 = vpack.c.b16 %v3013, %v3009
    %v3862 = vpack.c.b16 %v3014, %v3010
    %v3863 = vpack.c.b16 %v3015, %v3011
    %v3864 = vpack.c.b16 %v3016, %v3012
    %v3865 = vpack.c.b16 %v3021, %v3017
    %v3866 = vpack.c.b16 %v3022, %v3018
    %v3867 = vpack.c.b16 %v3023, %v3019
    %v3868 = vpack.c.b16 %v3024, %v3020
    %v3869 = vpack.c.b16 %v3029, %v3025
    %v3870 = vpack.c.b16 %v3030, %v3026
    %v3871 = vpack.c.b16 %v3031, %v3027
    %v3872 = vpack.c.b16 %v3032, %v3028
    %v3873 = vpack.c.b16 %v3037, %v3033
    %v3874 = vpack.c.b16 %v3038, %v3034
    %v3875 = vpack.c.b16 %v3039, %v3035
    %v3876 = vpack.c.b16 %v3040, %v3036
    %v3877 = vpack.c.b16 %v3045, %v3041
    %v3878 = vpack.c.b16 %v3046, %v3042
    %v3879 = vpack.c.b16 %v3047, %v3043
    %v3880 = vpack.c.b16 %v3048, %v3044
    %v3881 = vpack.c.b16 %v3053, %v3049
    %v3882 = vpack.c.b16 %v3054, %v3050
    %v3883 = vpack.c.b16 %v3055, %v3051
    %v3884 = vpack.c.b16 %v3056, %v3052
    %v3885 = vpack.c.b16 %v3061, %v3057
    %v3886 = vpack.c.b16 %v3062, %v3058
    %v3887 = vpack.c.b16 %v3063, %v3059
    %v3888 = vpack.c.b16 %v3064, %v3060
    %v3889 = vpack.c.b16 %v3069, %v3065
    %v3890 = vpack.c.b16 %v3070, %v3066
    %v3891 = vpack.c.b16 %v3071, %v3067
    %v3892 = vpack.c.b16 %v3072, %v3068
    %v3893 = vpack.c.b16 %v3077, %v3073
    %v3894 = vpack.c.b16 %v3078, %v3074
    %v3895 = vpack.c.b16 %v3079, %v3075
    %v3896 = vpack.c.b16 %v3080, %v3076
    %v3897 = vpack.c.b16 %v3085, %v3081
    %v3898 = vpack.c.b16 %v3086, %v3082
    %v3899 = vpack.c.b16 %v3087, %v3083
    %v3900 = vpack.c.b16 %v3088, %v3084
    %v3901 = vpack.c.b16 %v3093, %v3089
    %v3902 = vpack.c.b16 %v3094, %v3090
    %v3903 = vpack.c.b16 %v3095, %v3091
    %v3904 = vpack.c.b16 %v3096, %v3092
    %v3905 = vpack.c.b16 %v3101, %v3097
    %v3906 = vpack.c.b16 %v3102, %v3098
    %v3907 = vpack.c.b16 %v3103, %v3099
    %v3908 = vpack.c.b16 %v3104, %v3100
    %v3909 = vpack.c.b16 %v3109, %v3105
    %v3910 = vpack.c.b16 %v3110, %v3106
    %v3911 = vpack.c.b16 %v3111, %v3107
    %v3912 = vpack.c.b16 %v3112, %v3108
    %v3913 = vpack.c.b16 %v3117, %v3113
    %v3914 = vpack.c.b16 %v3118, %v3114
    %v3915 = vpack.c.b16 %v3119, %v3115
    %v3916 = vpack.c.b16 %v3120, %v3116
    %v3917 = vpack.c.b16 %v3125, %v3121
    %v3918 = vpack.c.b16 %v3126, %v3122
    %v3919 = vpack.c.b16 %v3127, %v3123
    %v3920 = vpack.c.b16 %v3128, %v3124
    %v3921 = vpack.c.b16 %v3133, %v3129
    %v3922 = vpack.c.b16 %v3134, %v3130
    %v3923 = vpack.c.b16 %v3135, %v3131
    %v3924 = vpack.c.b16 %v3136, %v3132
    %v3925 = vpack.c.b16 %v3141, %v3137
    %v3926 = vpack.c.b16 %v3142, %v3138
    %v3927 = vpack.c.b16 %v3143, %v3139
    %v3928 = vpack.c.b16 %v3144, %v3140
    %v3929 = vpack.c.b16 %v3149, %v3145
    %v3930 = vpack.c.b16 %v3150, %v3146
    %v3931 = vpack.c.b16 %v3151, %v3147
    %v3932 = vpack.c.b16 %v3152, %v3148
    %v3933 = vpack.c.b16 %v3157, %v3153
    %v3934 = vpack.c.b16 %v3158, %v3154
    %v3935 = vpack.c.b16 %v3159, %v3155
    %v3936 = vpack.c.b16 %v3160, %v3156
    %v3937 = vpack.c.b16 %v3165, %v3161
    %v3938 = vpack.c.b16 %v3166, %v3162
    %v3939 = vpack.c.b16 %v3167, %v3163
    %v3940 = vpack.c.b16 %v3168, %v3164
    %v3941 = vpack.c.b16 %v3173, %v3169
    %v3942 = vpack.c.b16 %v3174, %v3170
    %v3943 = vpack.c.b16 %v3175, %v3171
    %v3944 = vpack.c.b16 %v3176, %v3172
    %4713 = vmatpush.bf16.msra.mxu0 %v3205
    %4714 = vmatpush.bf16.msra.mxu0 %v3201
    %4715 = vmatpush.bf16.msra.mxu0 %v3197
    %4716 = vmatpush.bf16.msra.mxu0 %v3193
    %4717 = vmatpush.bf16.msra.mxu0 %v3189
    %4718 = vmatpush.bf16.msra.mxu0 %v3185
    %4719 = vmatpush.bf16.msra.mxu0 %v3181
    %4720 = vmatpush.bf16.msra.mxu0 %v3177
    %4721 = vmatmul.bf16.gmra.mxu0 %v71
    %v4722 = vpop.f32.mrf.mxu0
    %v4723 = vadd.f32 %v865, %v4722
    %v4724 = vpop.f32.mrf.mxu0
    %4725 = vdwg.mxu0
    %4726 = vmatpush.bf16.msra.mxu0 %v3237
    %4727 = vmatpush.bf16.msra.mxu0 %v3233
    %4728 = vmatpush.bf16.msra.mxu0 %v3229
    %4729 = vmatpush.bf16.msra.mxu0 %v3225
    %4730 = vmatpush.bf16.msra.mxu0 %v3221
    %4731 = vmatpush.bf16.msra.mxu0 %v3217
    %4732 = vmatpush.bf16.msra.mxu0 %v3213
    %4733 = vmatpush.bf16.msra.mxu0 %v3209
    %4734 = vmatmul.bf16.gmra.mxu0 %v72
    %v4735 = vpop.f32.mrf.mxu0
    %v4736 = vadd.f32 %v4723, %v4735
    %v4737 = vpop.f32.mrf.mxu0
    %4738 = vdwg.mxu0
    %4739 = vmatpush.bf16.msra.mxu0 %v3269
    %4740 = vmatpush.bf16.msra.mxu0 %v3265
    %4741 = vmatpush.bf16.msra.mxu0 %v3261
    %4742 = vmatpush.bf16.msra.mxu0 %v3257
    %4743 = vmatpush.bf16.msra.mxu0 %v3253
    %4744 = vmatpush.bf16.msra.mxu0 %v3249
    %4745 = vmatpush.bf16.msra.mxu0 %v3245
    %4746 = vmatpush.bf16.msra.mxu0 %v3241
    %4747 = vmatmul.bf16.gmra.mxu0 %v73
    %v4748 = vpop.f32.mrf.mxu0
    %v4749 = vadd.f32 %v4736, %v4748
    %v4750 = vpop.f32.mrf.mxu0
    %4751 = vdwg.mxu0
    %4752 = vmatpush.bf16.msra.mxu0 %v3301
    %4753 = vmatpush.bf16.msra.mxu0 %v3297
    %4754 = vmatpush.bf16.msra.mxu0 %v3293
    %4755 = vmatpush.bf16.msra.mxu0 %v3289
    %4756 = vmatpush.bf16.msra.mxu0 %v3285
    %4757 = vmatpush.bf16.msra.mxu0 %v3281
    %4758 = vmatpush.bf16.msra.mxu0 %v3277
    %4759 = vmatpush.bf16.msra.mxu0 %v3273
    %4760 = vmatmul.bf16.gmra.mxu0 %v74
    %v4761 = vpop.f32.mrf.mxu0
    %v4762 = vadd.f32 %v4749, %v4761
    %v4763 = vpop.f32.mrf.mxu0
    %4764 = vdwg.mxu0
    %4765 = vmatpush.bf16.msra.mxu0 %v3333
    %4766 = vmatpush.bf16.msra.mxu0 %v3329
    %4767 = vmatpush.bf16.msra.mxu0 %v3325
    %4768 = vmatpush.bf16.msra.mxu0 %v3321
    %4769 = vmatpush.bf16.msra.mxu0 %v3317
    %4770 = vmatpush.bf16.msra.mxu0 %v3313
    %4771 = vmatpush.bf16.msra.mxu0 %v3309
    %4772 = vmatpush.bf16.msra.mxu0 %v3305
    %4773 = vmatmul.bf16.gmra.mxu0 %v75
    %v4774 = vpop.f32.mrf.mxu0
    %v4775 = vadd.f32 %v4762, %v4774
    %v4776 = vpop.f32.mrf.mxu0
    %4777 = vdwg.mxu0
    %4778 = vmatpush.bf16.msra.mxu0 %v3365
    %4779 = vmatpush.bf16.msra.mxu0 %v3361
    %4780 = vmatpush.bf16.msra.mxu0 %v3357
    %4781 = vmatpush.bf16.msra.mxu0 %v3353
    %4782 = vmatpush.bf16.msra.mxu0 %v3349
    %4783 = vmatpush.bf16.msra.mxu0 %v3345
    %4784 = vmatpush.bf16.msra.mxu0 %v3341
    %4785 = vmatpush.bf16.msra.mxu0 %v3337
    %4786 = vmatmul.bf16.gmra.mxu0 %v76
    %v4787 = vpop.f32.mrf.mxu0
    %v4788 = vadd.f32 %v4775, %v4787
    %v4789 = vpop.f32.mrf.mxu0
    %4790 = vdwg.mxu0
    %4791 = vmatpush.bf16.msra.mxu0 %v3397
    %4792 = vmatpush.bf16.msra.mxu0 %v3393
    %4793 = vmatpush.bf16.msra.mxu0 %v3389
    %4794 = vmatpush.bf16.msra.mxu0 %v3385
    %4795 = vmatpush.bf16.msra.mxu0 %v3381
    %4796 = vmatpush.bf16.msra.mxu0 %v3377
    %4797 = vmatpush.bf16.msra.mxu0 %v3373
    %4798 = vmatpush.bf16.msra.mxu0 %v3369
    %4799 = vmatmul.bf16.gmra.mxu0 %v77
    %v4800 = vpop.f32.mrf.mxu0
    %v4801 = vadd.f32 %v4788, %v4800
    %v4802 = vpop.f32.mrf.mxu0
    %4803 = vdwg.mxu0
    %4804 = vmatpush.bf16.msra.mxu0 %v3429
    %4805 = vmatpush.bf16.msra.mxu0 %v3425
    %4806 = vmatpush.bf16.msra.mxu0 %v3421
    %4807 = vmatpush.bf16.msra.mxu0 %v3417
    %4808 = vmatpush.bf16.msra.mxu0 %v3413
    %4809 = vmatpush.bf16.msra.mxu0 %v3409
    %4810 = vmatpush.bf16.msra.mxu0 %v3405
    %4811 = vmatpush.bf16.msra.mxu0 %v3401
    %4812 = vmatmul.bf16.gmra.mxu0 %v78
    %v4813 = vpop.f32.mrf.mxu0
    %v4814 = vadd.f32 %v4801, %v4813
    %v4815 = vpop.f32.mrf.mxu0
    %4816 = vdwg.mxu0
    %4817 = vmatpush.bf16.msra.mxu0 %v3461
    %4818 = vmatpush.bf16.msra.mxu0 %v3457
    %4819 = vmatpush.bf16.msra.mxu0 %v3453
    %4820 = vmatpush.bf16.msra.mxu0 %v3449
    %4821 = vmatpush.bf16.msra.mxu0 %v3445
    %4822 = vmatpush.bf16.msra.mxu0 %v3441
    %4823 = vmatpush.bf16.msra.mxu0 %v3437
    %4824 = vmatpush.bf16.msra.mxu0 %v3433
    %4825 = vmatmul.bf16.gmra.mxu0 %v79
    %v4826 = vpop.f32.mrf.mxu0
    %v4827 = vadd.f32 %v4814, %v4826
    %v4828 = vpop.f32.mrf.mxu0
    %4829 = vdwg.mxu0
    %4830 = vmatpush.bf16.msra.mxu0 %v3493
    %4831 = vmatpush.bf16.msra.mxu0 %v3489
    %4832 = vmatpush.bf16.msra.mxu0 %v3485
    %4833 = vmatpush.bf16.msra.mxu0 %v3481
    %4834 = vmatpush.bf16.msra.mxu0 %v3477
    %4835 = vmatpush.bf16.msra.mxu0 %v3473
    %4836 = vmatpush.bf16.msra.mxu0 %v3469
    %4837 = vmatpush.bf16.msra.mxu0 %v3465
    %4838 = vmatmul.bf16.gmra.mxu0 %v80
    %v4839 = vpop.f32.mrf.mxu0
    %v4840 = vadd.f32 %v4827, %v4839
    %v4841 = vpop.f32.mrf.mxu0
    %4842 = vdwg.mxu0
    %4843 = vmatpush.bf16.msra.mxu0 %v3525
    %4844 = vmatpush.bf16.msra.mxu0 %v3521
    %4845 = vmatpush.bf16.msra.mxu0 %v3517
    %4846 = vmatpush.bf16.msra.mxu0 %v3513
    %4847 = vmatpush.bf16.msra.mxu0 %v3509
    %4848 = vmatpush.bf16.msra.mxu0 %v3505
    %4849 = vmatpush.bf16.msra.mxu0 %v3501
    %4850 = vmatpush.bf16.msra.mxu0 %v3497
    %4851 = vmatmul.bf16.gmra.mxu0 %v81
    %v4852 = vpop.f32.mrf.mxu0
    %v4853 = vadd.f32 %v4840, %v4852
    %v4854 = vpop.f32.mrf.mxu0
    %4855 = vdwg.mxu0
    %4856 = vmatpush.bf16.msra.mxu0 %v3557
    %4857 = vmatpush.bf16.msra.mxu0 %v3553
    %4858 = vmatpush.bf16.msra.mxu0 %v3549
    %4859 = vmatpush.bf16.msra.mxu0 %v3545
    %4860 = vmatpush.bf16.msra.mxu0 %v3541
    %4861 = vmatpush.bf16.msra.mxu0 %v3537
    %4862 = vmatpush.bf16.msra.mxu0 %v3533
    %4863 = vmatpush.bf16.msra.mxu0 %v3529
    %4864 = vmatmul.bf16.gmra.mxu0 %v82
    %v4865 = vpop.f32.mrf.mxu0
    %v4866 = vadd.f32 %v4853, %v4865
    %v4867 = vpop.f32.mrf.mxu0
    %4868 = vdwg.mxu0
    %4869 = vmatpush.bf16.msra.mxu0 %v3589
    %4870 = vmatpush.bf16.msra.mxu0 %v3585
    %4871 = vmatpush.bf16.msra.mxu0 %v3581
    %4872 = vmatpush.bf16.msra.mxu0 %v3577
    %4873 = vmatpush.bf16.msra.mxu0 %v3573
    %4874 = vmatpush.bf16.msra.mxu0 %v3569
    %4875 = vmatpush.bf16.msra.mxu0 %v3565
    %4876 = vmatpush.bf16.msra.mxu0 %v3561
    %4877 = vmatmul.bf16.gmra.mxu0 %v83
    %v4878 = vpop.f32.mrf.mxu0
    %v4879 = vadd.f32 %v4866, %v4878
    %v4880 = vpop.f32.mrf.mxu0
    %4881 = vdwg.mxu0
    %4882 = vmatpush.bf16.msra.mxu0 %v3621
    %4883 = vmatpush.bf16.msra.mxu0 %v3617
    %4884 = vmatpush.bf16.msra.mxu0 %v3613
    %4885 = vmatpush.bf16.msra.mxu0 %v3609
    %4886 = vmatpush.bf16.msra.mxu0 %v3605
    %4887 = vmatpush.bf16.msra.mxu0 %v3601
    %4888 = vmatpush.bf16.msra.mxu0 %v3597
    %4889 = vmatpush.bf16.msra.mxu0 %v3593
    %4890 = vmatmul.bf16.gmra.mxu0 %v84
    %v4891 = vpop.f32.mrf.mxu0
    %v4892 = vadd.f32 %v4879, %v4891
    %v4893 = vpop.f32.mrf.mxu0
    %4894 = vdwg.mxu0
    %4895 = vmatpush.bf16.msra.mxu0 %v3653
    %4896 = vmatpush.bf16.msra.mxu0 %v3649
    %4897 = vmatpush.bf16.msra.mxu0 %v3645
    %4898 = vmatpush.bf16.msra.mxu0 %v3641
    %4899 = vmatpush.bf16.msra.mxu0 %v3637
    %4900 = vmatpush.bf16.msra.mxu0 %v3633
    %4901 = vmatpush.bf16.msra.mxu0 %v3629
    %4902 = vmatpush.bf16.msra.mxu0 %v3625
    %4903 = vmatmul.bf16.gmra.mxu0 %v85
    %v4904 = vpop.f32.mrf.mxu0
    %v4905 = vadd.f32 %v4892, %v4904
    %v4906 = vpop.f32.mrf.mxu0
    %4907 = vdwg.mxu0
    %4908 = vmatpush.bf16.msra.mxu0 %v3685
    %4909 = vmatpush.bf16.msra.mxu0 %v3681
    %4910 = vmatpush.bf16.msra.mxu0 %v3677
    %4911 = vmatpush.bf16.msra.mxu0 %v3673
    %4912 = vmatpush.bf16.msra.mxu0 %v3669
    %4913 = vmatpush.bf16.msra.mxu0 %v3665
    %4914 = vmatpush.bf16.msra.mxu0 %v3661
    %4915 = vmatpush.bf16.msra.mxu0 %v3657
    %4916 = vmatmul.bf16.gmra.mxu0 %v86
    %v4917 = vpop.f32.mrf.mxu0
    %v4918 = vadd.f32 %v4905, %v4917
    %v4919 = vpop.f32.mrf.mxu0
    %4920 = vdwg.mxu0
    %4921 = vmatpush.bf16.msra.mxu0 %v3717
    %4922 = vmatpush.bf16.msra.mxu0 %v3713
    %4923 = vmatpush.bf16.msra.mxu0 %v3709
    %4924 = vmatpush.bf16.msra.mxu0 %v3705
    %4925 = vmatpush.bf16.msra.mxu0 %v3701
    %4926 = vmatpush.bf16.msra.mxu0 %v3697
    %4927 = vmatpush.bf16.msra.mxu0 %v3693
    %4928 = vmatpush.bf16.msra.mxu0 %v3689
    %4929 = vmatmul.bf16.gmra.mxu0 %v87
    %v4930 = vpop.f32.mrf.mxu0
    %v4931 = vadd.f32 %v4918, %v4930
    %v4932 = vpop.f32.mrf.mxu0
    %4933 = vdwg.mxu0
    %4934 = vmatpush.bf16.msra.mxu0 %v3749
    %4935 = vmatpush.bf16.msra.mxu0 %v3745
    %4936 = vmatpush.bf16.msra.mxu0 %v3741
    %4937 = vmatpush.bf16.msra.mxu0 %v3737
    %4938 = vmatpush.bf16.msra.mxu0 %v3733
    %4939 = vmatpush.bf16.msra.mxu0 %v3729
    %4940 = vmatpush.bf16.msra.mxu0 %v3725
    %4941 = vmatpush.bf16.msra.mxu0 %v3721
    %4942 = vmatmul.bf16.gmra.mxu0 %v88
    %v4943 = vpop.f32.mrf.mxu0
    %v4944 = vadd.f32 %v4931, %v4943
    %v4945 = vpop.f32.mrf.mxu0
    %4946 = vdwg.mxu0
    %4947 = vmatpush.bf16.msra.mxu0 %v3781
    %4948 = vmatpush.bf16.msra.mxu0 %v3777
    %4949 = vmatpush.bf16.msra.mxu0 %v3773
    %4950 = vmatpush.bf16.msra.mxu0 %v3769
    %4951 = vmatpush.bf16.msra.mxu0 %v3765
    %4952 = vmatpush.bf16.msra.mxu0 %v3761
    %4953 = vmatpush.bf16.msra.mxu0 %v3757
    %4954 = vmatpush.bf16.msra.mxu0 %v3753
    %4955 = vmatmul.bf16.gmra.mxu0 %v89
    %v4956 = vpop.f32.mrf.mxu0
    %v4957 = vadd.f32 %v4944, %v4956
    %v4958 = vpop.f32.mrf.mxu0
    %4959 = vdwg.mxu0
    %4960 = vmatpush.bf16.msra.mxu0 %v3813
    %4961 = vmatpush.bf16.msra.mxu0 %v3809
    %4962 = vmatpush.bf16.msra.mxu0 %v3805
    %4963 = vmatpush.bf16.msra.mxu0 %v3801
    %4964 = vmatpush.bf16.msra.mxu0 %v3797
    %4965 = vmatpush.bf16.msra.mxu0 %v3793
    %4966 = vmatpush.bf16.msra.mxu0 %v3789
    %4967 = vmatpush.bf16.msra.mxu0 %v3785
    %4968 = vmatmul.bf16.gmra.mxu0 %v90
    %v4969 = vpop.f32.mrf.mxu0
    %v4970 = vadd.f32 %v4957, %v4969
    %v4971 = vpop.f32.mrf.mxu0
    %4972 = vdwg.mxu0
    %4973 = vmatpush.bf16.msra.mxu0 %v3845
    %4974 = vmatpush.bf16.msra.mxu0 %v3841
    %4975 = vmatpush.bf16.msra.mxu0 %v3837
    %4976 = vmatpush.bf16.msra.mxu0 %v3833
    %4977 = vmatpush.bf16.msra.mxu0 %v3829
    %4978 = vmatpush.bf16.msra.mxu0 %v3825
    %4979 = vmatpush.bf16.msra.mxu0 %v3821
    %4980 = vmatpush.bf16.msra.mxu0 %v3817
    %4981 = vmatmul.bf16.gmra.mxu0 %v91
    %v4982 = vpop.f32.mrf.mxu0
    %v4983 = vadd.f32 %v4970, %v4982
    %v4984 = vpop.f32.mrf.mxu0
    %4985 = vdwg.mxu0
    %4986 = vmatpush.bf16.msra.mxu0 %v3877
    %4987 = vmatpush.bf16.msra.mxu0 %v3873
    %4988 = vmatpush.bf16.msra.mxu0 %v3869
    %4989 = vmatpush.bf16.msra.mxu0 %v3865
    %4990 = vmatpush.bf16.msra.mxu0 %v3861
    %4991 = vmatpush.bf16.msra.mxu0 %v3857
    %4992 = vmatpush.bf16.msra.mxu0 %v3853
    %4993 = vmatpush.bf16.msra.mxu0 %v3849
    %4994 = vmatmul.bf16.gmra.mxu0 %v92
    %v4995 = vpop.f32.mrf.mxu0
    %v4996 = vadd.f32 %v4983, %v4995
    %v4997 = vpop.f32.mrf.mxu0
    %4998 = vdwg.mxu0
    %4999 = vmatpush.bf16.msra.mxu0 %v3909
    %5000 = vmatpush.bf16.msra.mxu0 %v3905
    %5001 = vmatpush.bf16.msra.mxu0 %v3901
    %5002 = vmatpush.bf16.msra.mxu0 %v3897
    %5003 = vmatpush.bf16.msra.mxu0 %v3893
    %5004 = vmatpush.bf16.msra.mxu0 %v3889
    %5005 = vmatpush.bf16.msra.mxu0 %v3885
    %5006 = vmatpush.bf16.msra.mxu0 %v3881
    %5007 = vmatmul.bf16.gmra.mxu0 %v93
    %v5008 = vpop.f32.mrf.mxu0
    %v5009 = vadd.f32 %v4996, %v5008
    %v5010 = vpop.f32.mrf.mxu0
    %5011 = vdwg.mxu0
    %5012 = vmatpush.bf16.msra.mxu0 %v3941
    %5013 = vmatpush.bf16.msra.mxu0 %v3937
    %5014 = vmatpush.bf16.msra.mxu0 %v3933
    %5015 = vmatpush.bf16.msra.mxu0 %v3929
    %5016 = vmatpush.bf16.msra.mxu0 %v3925
    %5017 = vmatpush.bf16.msra.mxu0 %v3921
    %5018 = vmatpush.bf16.msra.mxu0 %v3917
    %5019 = vmatpush.bf16.msra.mxu0 %v3913
    %5020 = vmatmul.bf16.gmra.mxu0 %v94
    %v5021 = vpop.f32.mrf.mxu0
    %v5022 = vadd.f32 %v5009, %v5021
    %v5023 = vpop.f32.mrf.mxu0
    %5024 = vdwg.mxu0
    %5025 = vmatpush.bf16.msra.mxu0 %v3206
    %5026 = vmatpush.bf16.msra.mxu0 %v3202
    %5027 = vmatpush.bf16.msra.mxu0 %v3198
    %5028 = vmatpush.bf16.msra.mxu0 %v3194
    %5029 = vmatpush.bf16.msra.mxu0 %v3190
    %5030 = vmatpush.bf16.msra.mxu0 %v3186
    %5031 = vmatpush.bf16.msra.mxu0 %v3182
    %5032 = vmatpush.bf16.msra.mxu0 %v3178
    %5033 = vmatmul.bf16.gmra.mxu0 %v71
    %v5034 = vpop.f32.mrf.mxu0
    %v5035 = vadd.f32 %v866, %v5034
    %v5036 = vpop.f32.mrf.mxu0
    %5037 = vdwg.mxu0
    %5038 = vmatpush.bf16.msra.mxu0 %v3238
    %5039 = vmatpush.bf16.msra.mxu0 %v3234
    %5040 = vmatpush.bf16.msra.mxu0 %v3230
    %5041 = vmatpush.bf16.msra.mxu0 %v3226
    %5042 = vmatpush.bf16.msra.mxu0 %v3222
    %5043 = vmatpush.bf16.msra.mxu0 %v3218
    %5044 = vmatpush.bf16.msra.mxu0 %v3214
    %5045 = vmatpush.bf16.msra.mxu0 %v3210
    %5046 = vmatmul.bf16.gmra.mxu0 %v72
    %v5047 = vpop.f32.mrf.mxu0
    %v5048 = vadd.f32 %v5035, %v5047
    %v5049 = vpop.f32.mrf.mxu0
    %5050 = vdwg.mxu0
    %5051 = vmatpush.bf16.msra.mxu0 %v3270
    %5052 = vmatpush.bf16.msra.mxu0 %v3266
    %5053 = vmatpush.bf16.msra.mxu0 %v3262
    %5054 = vmatpush.bf16.msra.mxu0 %v3258
    %5055 = vmatpush.bf16.msra.mxu0 %v3254
    %5056 = vmatpush.bf16.msra.mxu0 %v3250
    %5057 = vmatpush.bf16.msra.mxu0 %v3246
    %5058 = vmatpush.bf16.msra.mxu0 %v3242
    %5059 = vmatmul.bf16.gmra.mxu0 %v73
    %v5060 = vpop.f32.mrf.mxu0
    %v5061 = vadd.f32 %v5048, %v5060
    %v5062 = vpop.f32.mrf.mxu0
    %5063 = vdwg.mxu0
    %5064 = vmatpush.bf16.msra.mxu0 %v3302
    %5065 = vmatpush.bf16.msra.mxu0 %v3298
    %5066 = vmatpush.bf16.msra.mxu0 %v3294
    %5067 = vmatpush.bf16.msra.mxu0 %v3290
    %5068 = vmatpush.bf16.msra.mxu0 %v3286
    %5069 = vmatpush.bf16.msra.mxu0 %v3282
    %5070 = vmatpush.bf16.msra.mxu0 %v3278
    %5071 = vmatpush.bf16.msra.mxu0 %v3274
    %5072 = vmatmul.bf16.gmra.mxu0 %v74
    %v5073 = vpop.f32.mrf.mxu0
    %v5074 = vadd.f32 %v5061, %v5073
    %v5075 = vpop.f32.mrf.mxu0
    %5076 = vdwg.mxu0
    %5077 = vmatpush.bf16.msra.mxu0 %v3334
    %5078 = vmatpush.bf16.msra.mxu0 %v3330
    %5079 = vmatpush.bf16.msra.mxu0 %v3326
    %5080 = vmatpush.bf16.msra.mxu0 %v3322
    %5081 = vmatpush.bf16.msra.mxu0 %v3318
    %5082 = vmatpush.bf16.msra.mxu0 %v3314
    %5083 = vmatpush.bf16.msra.mxu0 %v3310
    %5084 = vmatpush.bf16.msra.mxu0 %v3306
    %5085 = vmatmul.bf16.gmra.mxu0 %v75
    %v5086 = vpop.f32.mrf.mxu0
    %v5087 = vadd.f32 %v5074, %v5086
    %v5088 = vpop.f32.mrf.mxu0
    %5089 = vdwg.mxu0
    %5090 = vmatpush.bf16.msra.mxu0 %v3366
    %5091 = vmatpush.bf16.msra.mxu0 %v3362
    %5092 = vmatpush.bf16.msra.mxu0 %v3358
    %5093 = vmatpush.bf16.msra.mxu0 %v3354
    %5094 = vmatpush.bf16.msra.mxu0 %v3350
    %5095 = vmatpush.bf16.msra.mxu0 %v3346
    %5096 = vmatpush.bf16.msra.mxu0 %v3342
    %5097 = vmatpush.bf16.msra.mxu0 %v3338
    %5098 = vmatmul.bf16.gmra.mxu0 %v76
    %v5099 = vpop.f32.mrf.mxu0
    %v5100 = vadd.f32 %v5087, %v5099
    %v5101 = vpop.f32.mrf.mxu0
    %5102 = vdwg.mxu0
    %5103 = vmatpush.bf16.msra.mxu0 %v3398
    %5104 = vmatpush.bf16.msra.mxu0 %v3394
    %5105 = vmatpush.bf16.msra.mxu0 %v3390
    %5106 = vmatpush.bf16.msra.mxu0 %v3386
    %5107 = vmatpush.bf16.msra.mxu0 %v3382
    %5108 = vmatpush.bf16.msra.mxu0 %v3378
    %5109 = vmatpush.bf16.msra.mxu0 %v3374
    %5110 = vmatpush.bf16.msra.mxu0 %v3370
    %5111 = vmatmul.bf16.gmra.mxu0 %v77
    %v5112 = vpop.f32.mrf.mxu0
    %v5113 = vadd.f32 %v5100, %v5112
    %v5114 = vpop.f32.mrf.mxu0
    %5115 = vdwg.mxu0
    %5116 = vmatpush.bf16.msra.mxu0 %v3430
    %5117 = vmatpush.bf16.msra.mxu0 %v3426
    %5118 = vmatpush.bf16.msra.mxu0 %v3422
    %5119 = vmatpush.bf16.msra.mxu0 %v3418
    %5120 = vmatpush.bf16.msra.mxu0 %v3414
    %5121 = vmatpush.bf16.msra.mxu0 %v3410
    %5122 = vmatpush.bf16.msra.mxu0 %v3406
    %5123 = vmatpush.bf16.msra.mxu0 %v3402
    %5124 = vmatmul.bf16.gmra.mxu0 %v78
    %v5125 = vpop.f32.mrf.mxu0
    %v5126 = vadd.f32 %v5113, %v5125
    %v5127 = vpop.f32.mrf.mxu0
    %5128 = vdwg.mxu0
    %5129 = vmatpush.bf16.msra.mxu0 %v3462
    %5130 = vmatpush.bf16.msra.mxu0 %v3458
    %5131 = vmatpush.bf16.msra.mxu0 %v3454
    %5132 = vmatpush.bf16.msra.mxu0 %v3450
    %5133 = vmatpush.bf16.msra.mxu0 %v3446
    %5134 = vmatpush.bf16.msra.mxu0 %v3442
    %5135 = vmatpush.bf16.msra.mxu0 %v3438
    %5136 = vmatpush.bf16.msra.mxu0 %v3434
    %5137 = vmatmul.bf16.gmra.mxu0 %v79
    %v5138 = vpop.f32.mrf.mxu0
    %v5139 = vadd.f32 %v5126, %v5138
    %v5140 = vpop.f32.mrf.mxu0
    %5141 = vdwg.mxu0
    %5142 = vmatpush.bf16.msra.mxu0 %v3494
    %5143 = vmatpush.bf16.msra.mxu0 %v3490
    %5144 = vmatpush.bf16.msra.mxu0 %v3486
    %5145 = vmatpush.bf16.msra.mxu0 %v3482
    %5146 = vmatpush.bf16.msra.mxu0 %v3478
    %5147 = vmatpush.bf16.msra.mxu0 %v3474
    %5148 = vmatpush.bf16.msra.mxu0 %v3470
    %5149 = vmatpush.bf16.msra.mxu0 %v3466
    %5150 = vmatmul.bf16.gmra.mxu0 %v80
    %v5151 = vpop.f32.mrf.mxu0
    %v5152 = vadd.f32 %v5139, %v5151
    %v5153 = vpop.f32.mrf.mxu0
    %5154 = vdwg.mxu0
    %5155 = vmatpush.bf16.msra.mxu0 %v3526
    %5156 = vmatpush.bf16.msra.mxu0 %v3522
    %5157 = vmatpush.bf16.msra.mxu0 %v3518
    %5158 = vmatpush.bf16.msra.mxu0 %v3514
    %5159 = vmatpush.bf16.msra.mxu0 %v3510
    %5160 = vmatpush.bf16.msra.mxu0 %v3506
    %5161 = vmatpush.bf16.msra.mxu0 %v3502
    %5162 = vmatpush.bf16.msra.mxu0 %v3498
    %5163 = vmatmul.bf16.gmra.mxu0 %v81
    %v5164 = vpop.f32.mrf.mxu0
    %v5165 = vadd.f32 %v5152, %v5164
    %v5166 = vpop.f32.mrf.mxu0
    %5167 = vdwg.mxu0
    %5168 = vmatpush.bf16.msra.mxu0 %v3558
    %5169 = vmatpush.bf16.msra.mxu0 %v3554
    %5170 = vmatpush.bf16.msra.mxu0 %v3550
    %5171 = vmatpush.bf16.msra.mxu0 %v3546
    %5172 = vmatpush.bf16.msra.mxu0 %v3542
    %5173 = vmatpush.bf16.msra.mxu0 %v3538
    %5174 = vmatpush.bf16.msra.mxu0 %v3534
    %5175 = vmatpush.bf16.msra.mxu0 %v3530
    %5176 = vmatmul.bf16.gmra.mxu0 %v82
    %v5177 = vpop.f32.mrf.mxu0
    %v5178 = vadd.f32 %v5165, %v5177
    %v5179 = vpop.f32.mrf.mxu0
    %5180 = vdwg.mxu0
    %5181 = vmatpush.bf16.msra.mxu0 %v3590
    %5182 = vmatpush.bf16.msra.mxu0 %v3586
    %5183 = vmatpush.bf16.msra.mxu0 %v3582
    %5184 = vmatpush.bf16.msra.mxu0 %v3578
    %5185 = vmatpush.bf16.msra.mxu0 %v3574
    %5186 = vmatpush.bf16.msra.mxu0 %v3570
    %5187 = vmatpush.bf16.msra.mxu0 %v3566
    %5188 = vmatpush.bf16.msra.mxu0 %v3562
    %5189 = vmatmul.bf16.gmra.mxu0 %v83
    %v5190 = vpop.f32.mrf.mxu0
    %v5191 = vadd.f32 %v5178, %v5190
    %v5192 = vpop.f32.mrf.mxu0
    %5193 = vdwg.mxu0
    %5194 = vmatpush.bf16.msra.mxu0 %v3622
    %5195 = vmatpush.bf16.msra.mxu0 %v3618
    %5196 = vmatpush.bf16.msra.mxu0 %v3614
    %5197 = vmatpush.bf16.msra.mxu0 %v3610
    %5198 = vmatpush.bf16.msra.mxu0 %v3606
    %5199 = vmatpush.bf16.msra.mxu0 %v3602
    %5200 = vmatpush.bf16.msra.mxu0 %v3598
    %5201 = vmatpush.bf16.msra.mxu0 %v3594
    %5202 = vmatmul.bf16.gmra.mxu0 %v84
    %v5203 = vpop.f32.mrf.mxu0
    %v5204 = vadd.f32 %v5191, %v5203
    %v5205 = vpop.f32.mrf.mxu0
    %5206 = vdwg.mxu0
    %5207 = vmatpush.bf16.msra.mxu0 %v3654
    %5208 = vmatpush.bf16.msra.mxu0 %v3650
    %5209 = vmatpush.bf16.msra.mxu0 %v3646
    %5210 = vmatpush.bf16.msra.mxu0 %v3642
    %5211 = vmatpush.bf16.msra.mxu0 %v3638
    %5212 = vmatpush.bf16.msra.mxu0 %v3634
    %5213 = vmatpush.bf16.msra.mxu0 %v3630
    %5214 = vmatpush.bf16.msra.mxu0 %v3626
    %5215 = vmatmul.bf16.gmra.mxu0 %v85
    %v5216 = vpop.f32.mrf.mxu0
    %v5217 = vadd.f32 %v5204, %v5216
    %v5218 = vpop.f32.mrf.mxu0
    %5219 = vdwg.mxu0
    %5220 = vmatpush.bf16.msra.mxu0 %v3686
    %5221 = vmatpush.bf16.msra.mxu0 %v3682
    %5222 = vmatpush.bf16.msra.mxu0 %v3678
    %5223 = vmatpush.bf16.msra.mxu0 %v3674
    %5224 = vmatpush.bf16.msra.mxu0 %v3670
    %5225 = vmatpush.bf16.msra.mxu0 %v3666
    %5226 = vmatpush.bf16.msra.mxu0 %v3662
    %5227 = vmatpush.bf16.msra.mxu0 %v3658
    %5228 = vmatmul.bf16.gmra.mxu0 %v86
    %v5229 = vpop.f32.mrf.mxu0
    %v5230 = vadd.f32 %v5217, %v5229
    %v5231 = vpop.f32.mrf.mxu0
    %5232 = vdwg.mxu0
    %5233 = vmatpush.bf16.msra.mxu0 %v3718
    %5234 = vmatpush.bf16.msra.mxu0 %v3714
    %5235 = vmatpush.bf16.msra.mxu0 %v3710
    %5236 = vmatpush.bf16.msra.mxu0 %v3706
    %5237 = vmatpush.bf16.msra.mxu0 %v3702
    %5238 = vmatpush.bf16.msra.mxu0 %v3698
    %5239 = vmatpush.bf16.msra.mxu0 %v3694
    %5240 = vmatpush.bf16.msra.mxu0 %v3690
    %5241 = vmatmul.bf16.gmra.mxu0 %v87
    %v5242 = vpop.f32.mrf.mxu0
    %v5243 = vadd.f32 %v5230, %v5242
    %v5244 = vpop.f32.mrf.mxu0
    %5245 = vdwg.mxu0
    %5246 = vmatpush.bf16.msra.mxu0 %v3750
    %5247 = vmatpush.bf16.msra.mxu0 %v3746
    %5248 = vmatpush.bf16.msra.mxu0 %v3742
    %5249 = vmatpush.bf16.msra.mxu0 %v3738
    %5250 = vmatpush.bf16.msra.mxu0 %v3734
    %5251 = vmatpush.bf16.msra.mxu0 %v3730
    %5252 = vmatpush.bf16.msra.mxu0 %v3726
    %5253 = vmatpush.bf16.msra.mxu0 %v3722
    %5254 = vmatmul.bf16.gmra.mxu0 %v88
    %v5255 = vpop.f32.mrf.mxu0
    %v5256 = vadd.f32 %v5243, %v5255
    %v5257 = vpop.f32.mrf.mxu0
    %5258 = vdwg.mxu0
    %5259 = vmatpush.bf16.msra.mxu0 %v3782
    %5260 = vmatpush.bf16.msra.mxu0 %v3778
    %5261 = vmatpush.bf16.msra.mxu0 %v3774
    %5262 = vmatpush.bf16.msra.mxu0 %v3770
    %5263 = vmatpush.bf16.msra.mxu0 %v3766
    %5264 = vmatpush.bf16.msra.mxu0 %v3762
    %5265 = vmatpush.bf16.msra.mxu0 %v3758
    %5266 = vmatpush.bf16.msra.mxu0 %v3754
    %5267 = vmatmul.bf16.gmra.mxu0 %v89
    %v5268 = vpop.f32.mrf.mxu0
    %v5269 = vadd.f32 %v5256, %v5268
    %v5270 = vpop.f32.mrf.mxu0
    %5271 = vdwg.mxu0
    %5272 = vmatpush.bf16.msra.mxu0 %v3814
    %5273 = vmatpush.bf16.msra.mxu0 %v3810
    %5274 = vmatpush.bf16.msra.mxu0 %v3806
    %5275 = vmatpush.bf16.msra.mxu0 %v3802
    %5276 = vmatpush.bf16.msra.mxu0 %v3798
    %5277 = vmatpush.bf16.msra.mxu0 %v3794
    %5278 = vmatpush.bf16.msra.mxu0 %v3790
    %5279 = vmatpush.bf16.msra.mxu0 %v3786
    %5280 = vmatmul.bf16.gmra.mxu0 %v90
    %v5281 = vpop.f32.mrf.mxu0
    %v5282 = vadd.f32 %v5269, %v5281
    %v5283 = vpop.f32.mrf.mxu0
    %5284 = vdwg.mxu0
    %5285 = vmatpush.bf16.msra.mxu0 %v3846
    %5286 = vmatpush.bf16.msra.mxu0 %v3842
    %5287 = vmatpush.bf16.msra.mxu0 %v3838
    %5288 = vmatpush.bf16.msra.mxu0 %v3834
    %5289 = vmatpush.bf16.msra.mxu0 %v3830
    %5290 = vmatpush.bf16.msra.mxu0 %v3826
    %5291 = vmatpush.bf16.msra.mxu0 %v3822
    %5292 = vmatpush.bf16.msra.mxu0 %v3818
    %5293 = vmatmul.bf16.gmra.mxu0 %v91
    %v5294 = vpop.f32.mrf.mxu0
    %v5295 = vadd.f32 %v5282, %v5294
    %v5296 = vpop.f32.mrf.mxu0
    %5297 = vdwg.mxu0
    %5298 = vmatpush.bf16.msra.mxu0 %v3878
    %5299 = vmatpush.bf16.msra.mxu0 %v3874
    %5300 = vmatpush.bf16.msra.mxu0 %v3870
    %5301 = vmatpush.bf16.msra.mxu0 %v3866
    %5302 = vmatpush.bf16.msra.mxu0 %v3862
    %5303 = vmatpush.bf16.msra.mxu0 %v3858
    %5304 = vmatpush.bf16.msra.mxu0 %v3854
    %5305 = vmatpush.bf16.msra.mxu0 %v3850
    %5306 = vmatmul.bf16.gmra.mxu0 %v92
    %v5307 = vpop.f32.mrf.mxu0
    %v5308 = vadd.f32 %v5295, %v5307
    %v5309 = vpop.f32.mrf.mxu0
    %5310 = vdwg.mxu0
    %5311 = vmatpush.bf16.msra.mxu0 %v3910
    %5312 = vmatpush.bf16.msra.mxu0 %v3906
    %5313 = vmatpush.bf16.msra.mxu0 %v3902
    %5314 = vmatpush.bf16.msra.mxu0 %v3898
    %5315 = vmatpush.bf16.msra.mxu0 %v3894
    %5316 = vmatpush.bf16.msra.mxu0 %v3890
    %5317 = vmatpush.bf16.msra.mxu0 %v3886
    %5318 = vmatpush.bf16.msra.mxu0 %v3882
    %5319 = vmatmul.bf16.gmra.mxu0 %v93
    %v5320 = vpop.f32.mrf.mxu0
    %v5321 = vadd.f32 %v5308, %v5320
    %v5322 = vpop.f32.mrf.mxu0
    %5323 = vdwg.mxu0
    %5324 = vmatpush.bf16.msra.mxu0 %v3942
    %5325 = vmatpush.bf16.msra.mxu0 %v3938
    %5326 = vmatpush.bf16.msra.mxu0 %v3934
    %5327 = vmatpush.bf16.msra.mxu0 %v3930
    %5328 = vmatpush.bf16.msra.mxu0 %v3926
    %5329 = vmatpush.bf16.msra.mxu0 %v3922
    %5330 = vmatpush.bf16.msra.mxu0 %v3918
    %5331 = vmatpush.bf16.msra.mxu0 %v3914
    %5332 = vmatmul.bf16.gmra.mxu0 %v94
    %v5333 = vpop.f32.mrf.mxu0
    %v5334 = vadd.f32 %v5321, %v5333
    %v5335 = vpop.f32.mrf.mxu0
    %5336 = vdwg.mxu0
    %5337 = vmatpush.bf16.msra.mxu0 %v3207
    %5338 = vmatpush.bf16.msra.mxu0 %v3203
    %5339 = vmatpush.bf16.msra.mxu0 %v3199
    %5340 = vmatpush.bf16.msra.mxu0 %v3195
    %5341 = vmatpush.bf16.msra.mxu0 %v3191
    %5342 = vmatpush.bf16.msra.mxu0 %v3187
    %5343 = vmatpush.bf16.msra.mxu0 %v3183
    %5344 = vmatpush.bf16.msra.mxu0 %v3179
    %5345 = vmatmul.bf16.gmra.mxu0 %v71
    %v5346 = vpop.f32.mrf.mxu0
    %v5347 = vadd.f32 %v867, %v5346
    %v5348 = vpop.f32.mrf.mxu0
    %5349 = vdwg.mxu0
    %5350 = vmatpush.bf16.msra.mxu0 %v3239
    %5351 = vmatpush.bf16.msra.mxu0 %v3235
    %5352 = vmatpush.bf16.msra.mxu0 %v3231
    %5353 = vmatpush.bf16.msra.mxu0 %v3227
    %5354 = vmatpush.bf16.msra.mxu0 %v3223
    %5355 = vmatpush.bf16.msra.mxu0 %v3219
    %5356 = vmatpush.bf16.msra.mxu0 %v3215
    %5357 = vmatpush.bf16.msra.mxu0 %v3211
    %5358 = vmatmul.bf16.gmra.mxu0 %v72
    %v5359 = vpop.f32.mrf.mxu0
    %v5360 = vadd.f32 %v5347, %v5359
    %v5361 = vpop.f32.mrf.mxu0
    %5362 = vdwg.mxu0
    %5363 = vmatpush.bf16.msra.mxu0 %v3271
    %5364 = vmatpush.bf16.msra.mxu0 %v3267
    %5365 = vmatpush.bf16.msra.mxu0 %v3263
    %5366 = vmatpush.bf16.msra.mxu0 %v3259
    %5367 = vmatpush.bf16.msra.mxu0 %v3255
    %5368 = vmatpush.bf16.msra.mxu0 %v3251
    %5369 = vmatpush.bf16.msra.mxu0 %v3247
    %5370 = vmatpush.bf16.msra.mxu0 %v3243
    %5371 = vmatmul.bf16.gmra.mxu0 %v73
    %v5372 = vpop.f32.mrf.mxu0
    %v5373 = vadd.f32 %v5360, %v5372
    %v5374 = vpop.f32.mrf.mxu0
    %5375 = vdwg.mxu0
    %5376 = vmatpush.bf16.msra.mxu0 %v3303
    %5377 = vmatpush.bf16.msra.mxu0 %v3299
    %5378 = vmatpush.bf16.msra.mxu0 %v3295
    %5379 = vmatpush.bf16.msra.mxu0 %v3291
    %5380 = vmatpush.bf16.msra.mxu0 %v3287
    %5381 = vmatpush.bf16.msra.mxu0 %v3283
    %5382 = vmatpush.bf16.msra.mxu0 %v3279
    %5383 = vmatpush.bf16.msra.mxu0 %v3275
    %5384 = vmatmul.bf16.gmra.mxu0 %v74
    %v5385 = vpop.f32.mrf.mxu0
    %v5386 = vadd.f32 %v5373, %v5385
    %v5387 = vpop.f32.mrf.mxu0
    %5388 = vdwg.mxu0
    %5389 = vmatpush.bf16.msra.mxu0 %v3335
    %5390 = vmatpush.bf16.msra.mxu0 %v3331
    %5391 = vmatpush.bf16.msra.mxu0 %v3327
    %5392 = vmatpush.bf16.msra.mxu0 %v3323
    %5393 = vmatpush.bf16.msra.mxu0 %v3319
    %5394 = vmatpush.bf16.msra.mxu0 %v3315
    %5395 = vmatpush.bf16.msra.mxu0 %v3311
    %5396 = vmatpush.bf16.msra.mxu0 %v3307
    %5397 = vmatmul.bf16.gmra.mxu0 %v75
    %v5398 = vpop.f32.mrf.mxu0
    %v5399 = vadd.f32 %v5386, %v5398
    %v5400 = vpop.f32.mrf.mxu0
    %5401 = vdwg.mxu0
    %5402 = vmatpush.bf16.msra.mxu0 %v3367
    %5403 = vmatpush.bf16.msra.mxu0 %v3363
    %5404 = vmatpush.bf16.msra.mxu0 %v3359
    %5405 = vmatpush.bf16.msra.mxu0 %v3355
    %5406 = vmatpush.bf16.msra.mxu0 %v3351
    %5407 = vmatpush.bf16.msra.mxu0 %v3347
    %5408 = vmatpush.bf16.msra.mxu0 %v3343
    %5409 = vmatpush.bf16.msra.mxu0 %v3339
    %5410 = vmatmul.bf16.gmra.mxu0 %v76
    %v5411 = vpop.f32.mrf.mxu0
    %v5412 = vadd.f32 %v5399, %v5411
    %v5413 = vpop.f32.mrf.mxu0
    %5414 = vdwg.mxu0
    %5415 = vmatpush.bf16.msra.mxu0 %v3399
    %5416 = vmatpush.bf16.msra.mxu0 %v3395
    %5417 = vmatpush.bf16.msra.mxu0 %v3391
    %5418 = vmatpush.bf16.msra.mxu0 %v3387
    %5419 = vmatpush.bf16.msra.mxu0 %v3383
    %5420 = vmatpush.bf16.msra.mxu0 %v3379
    %5421 = vmatpush.bf16.msra.mxu0 %v3375
    %5422 = vmatpush.bf16.msra.mxu0 %v3371
    %5423 = vmatmul.bf16.gmra.mxu0 %v77
    %v5424 = vpop.f32.mrf.mxu0
    %v5425 = vadd.f32 %v5412, %v5424
    %v5426 = vpop.f32.mrf.mxu0
    %5427 = vdwg.mxu0
    %5428 = vmatpush.bf16.msra.mxu0 %v3431
    %5429 = vmatpush.bf16.msra.mxu0 %v3427
    %5430 = vmatpush.bf16.msra.mxu0 %v3423
    %5431 = vmatpush.bf16.msra.mxu0 %v3419
    %5432 = vmatpush.bf16.msra.mxu0 %v3415
    %5433 = vmatpush.bf16.msra.mxu0 %v3411
    %5434 = vmatpush.bf16.msra.mxu0 %v3407
    %5435 = vmatpush.bf16.msra.mxu0 %v3403
    %5436 = vmatmul.bf16.gmra.mxu0 %v78
    %v5437 = vpop.f32.mrf.mxu0
    %v5438 = vadd.f32 %v5425, %v5437
    %v5439 = vpop.f32.mrf.mxu0
    %5440 = vdwg.mxu0
    %5441 = vmatpush.bf16.msra.mxu0 %v3463
    %5442 = vmatpush.bf16.msra.mxu0 %v3459
    %5443 = vmatpush.bf16.msra.mxu0 %v3455
    %5444 = vmatpush.bf16.msra.mxu0 %v3451
    %5445 = vmatpush.bf16.msra.mxu0 %v3447
    %5446 = vmatpush.bf16.msra.mxu0 %v3443
    %5447 = vmatpush.bf16.msra.mxu0 %v3439
    %5448 = vmatpush.bf16.msra.mxu0 %v3435
    %5449 = vmatmul.bf16.gmra.mxu0 %v79
    %v5450 = vpop.f32.mrf.mxu0
    %v5451 = vadd.f32 %v5438, %v5450
    %v5452 = vpop.f32.mrf.mxu0
    %5453 = vdwg.mxu0
    %5454 = vmatpush.bf16.msra.mxu0 %v3495
    %5455 = vmatpush.bf16.msra.mxu0 %v3491
    %5456 = vmatpush.bf16.msra.mxu0 %v3487
    %5457 = vmatpush.bf16.msra.mxu0 %v3483
    %5458 = vmatpush.bf16.msra.mxu0 %v3479
    %5459 = vmatpush.bf16.msra.mxu0 %v3475
    %5460 = vmatpush.bf16.msra.mxu0 %v3471
    %5461 = vmatpush.bf16.msra.mxu0 %v3467
    %5462 = vmatmul.bf16.gmra.mxu0 %v80
    %v5463 = vpop.f32.mrf.mxu0
    %v5464 = vadd.f32 %v5451, %v5463
    %v5465 = vpop.f32.mrf.mxu0
    %5466 = vdwg.mxu0
    %5467 = vmatpush.bf16.msra.mxu0 %v3527
    %5468 = vmatpush.bf16.msra.mxu0 %v3523
    %5469 = vmatpush.bf16.msra.mxu0 %v3519
    %5470 = vmatpush.bf16.msra.mxu0 %v3515
    %5471 = vmatpush.bf16.msra.mxu0 %v3511
    %5472 = vmatpush.bf16.msra.mxu0 %v3507
    %5473 = vmatpush.bf16.msra.mxu0 %v3503
    %5474 = vmatpush.bf16.msra.mxu0 %v3499
    %5475 = vmatmul.bf16.gmra.mxu0 %v81
    %v5476 = vpop.f32.mrf.mxu0
    %v5477 = vadd.f32 %v5464, %v5476
    %v5478 = vpop.f32.mrf.mxu0
    %5479 = vdwg.mxu0
    %5480 = vmatpush.bf16.msra.mxu0 %v3559
    %5481 = vmatpush.bf16.msra.mxu0 %v3555
    %5482 = vmatpush.bf16.msra.mxu0 %v3551
    %5483 = vmatpush.bf16.msra.mxu0 %v3547
    %5484 = vmatpush.bf16.msra.mxu0 %v3543
    %5485 = vmatpush.bf16.msra.mxu0 %v3539
    %5486 = vmatpush.bf16.msra.mxu0 %v3535
    %5487 = vmatpush.bf16.msra.mxu0 %v3531
    %5488 = vmatmul.bf16.gmra.mxu0 %v82
    %v5489 = vpop.f32.mrf.mxu0
    %v5490 = vadd.f32 %v5477, %v5489
    %v5491 = vpop.f32.mrf.mxu0
    %5492 = vdwg.mxu0
    %5493 = vmatpush.bf16.msra.mxu0 %v3591
    %5494 = vmatpush.bf16.msra.mxu0 %v3587
    %5495 = vmatpush.bf16.msra.mxu0 %v3583
    %5496 = vmatpush.bf16.msra.mxu0 %v3579
    %5497 = vmatpush.bf16.msra.mxu0 %v3575
    %5498 = vmatpush.bf16.msra.mxu0 %v3571
    %5499 = vmatpush.bf16.msra.mxu0 %v3567
    %5500 = vmatpush.bf16.msra.mxu0 %v3563
    %5501 = vmatmul.bf16.gmra.mxu0 %v83
    %v5502 = vpop.f32.mrf.mxu0
    %v5503 = vadd.f32 %v5490, %v5502
    %v5504 = vpop.f32.mrf.mxu0
    %5505 = vdwg.mxu0
    %5506 = vmatpush.bf16.msra.mxu0 %v3623
    %5507 = vmatpush.bf16.msra.mxu0 %v3619
    %5508 = vmatpush.bf16.msra.mxu0 %v3615
    %5509 = vmatpush.bf16.msra.mxu0 %v3611
    %5510 = vmatpush.bf16.msra.mxu0 %v3607
    %5511 = vmatpush.bf16.msra.mxu0 %v3603
    %5512 = vmatpush.bf16.msra.mxu0 %v3599
    %5513 = vmatpush.bf16.msra.mxu0 %v3595
    %5514 = vmatmul.bf16.gmra.mxu0 %v84
    %v5515 = vpop.f32.mrf.mxu0
    %v5516 = vadd.f32 %v5503, %v5515
    %v5517 = vpop.f32.mrf.mxu0
    %5518 = vdwg.mxu0
    %5519 = vmatpush.bf16.msra.mxu0 %v3655
    %5520 = vmatpush.bf16.msra.mxu0 %v3651
    %5521 = vmatpush.bf16.msra.mxu0 %v3647
    %5522 = vmatpush.bf16.msra.mxu0 %v3643
    %5523 = vmatpush.bf16.msra.mxu0 %v3639
    %5524 = vmatpush.bf16.msra.mxu0 %v3635
    %5525 = vmatpush.bf16.msra.mxu0 %v3631
    %5526 = vmatpush.bf16.msra.mxu0 %v3627
    %5527 = vmatmul.bf16.gmra.mxu0 %v85
    %v5528 = vpop.f32.mrf.mxu0
    %v5529 = vadd.f32 %v5516, %v5528
    %v5530 = vpop.f32.mrf.mxu0
    %5531 = vdwg.mxu0
    %5532 = vmatpush.bf16.msra.mxu0 %v3687
    %5533 = vmatpush.bf16.msra.mxu0 %v3683
    %5534 = vmatpush.bf16.msra.mxu0 %v3679
    %5535 = vmatpush.bf16.msra.mxu0 %v3675
    %5536 = vmatpush.bf16.msra.mxu0 %v3671
    %5537 = vmatpush.bf16.msra.mxu0 %v3667
    %5538 = vmatpush.bf16.msra.mxu0 %v3663
    %5539 = vmatpush.bf16.msra.mxu0 %v3659
    %5540 = vmatmul.bf16.gmra.mxu0 %v86
    %v5541 = vpop.f32.mrf.mxu0
    %v5542 = vadd.f32 %v5529, %v5541
    %v5543 = vpop.f32.mrf.mxu0
    %5544 = vdwg.mxu0
    %5545 = vmatpush.bf16.msra.mxu0 %v3719
    %5546 = vmatpush.bf16.msra.mxu0 %v3715
    %5547 = vmatpush.bf16.msra.mxu0 %v3711
    %5548 = vmatpush.bf16.msra.mxu0 %v3707
    %5549 = vmatpush.bf16.msra.mxu0 %v3703
    %5550 = vmatpush.bf16.msra.mxu0 %v3699
    %5551 = vmatpush.bf16.msra.mxu0 %v3695
    %5552 = vmatpush.bf16.msra.mxu0 %v3691
    %5553 = vmatmul.bf16.gmra.mxu0 %v87
    %v5554 = vpop.f32.mrf.mxu0
    %v5555 = vadd.f32 %v5542, %v5554
    %v5556 = vpop.f32.mrf.mxu0
    %5557 = vdwg.mxu0
    %5558 = vmatpush.bf16.msra.mxu0 %v3751
    %5559 = vmatpush.bf16.msra.mxu0 %v3747
    %5560 = vmatpush.bf16.msra.mxu0 %v3743
    %5561 = vmatpush.bf16.msra.mxu0 %v3739
    %5562 = vmatpush.bf16.msra.mxu0 %v3735
    %5563 = vmatpush.bf16.msra.mxu0 %v3731
    %5564 = vmatpush.bf16.msra.mxu0 %v3727
    %5565 = vmatpush.bf16.msra.mxu0 %v3723
    %5566 = vmatmul.bf16.gmra.mxu0 %v88
    %v5567 = vpop.f32.mrf.mxu0
    %v5568 = vadd.f32 %v5555, %v5567
    %v5569 = vpop.f32.mrf.mxu0
    %5570 = vdwg.mxu0
    %5571 = vmatpush.bf16.msra.mxu0 %v3783
    %5572 = vmatpush.bf16.msra.mxu0 %v3779
    %5573 = vmatpush.bf16.msra.mxu0 %v3775
    %5574 = vmatpush.bf16.msra.mxu0 %v3771
    %5575 = vmatpush.bf16.msra.mxu0 %v3767
    %5576 = vmatpush.bf16.msra.mxu0 %v3763
    %5577 = vmatpush.bf16.msra.mxu0 %v3759
    %5578 = vmatpush.bf16.msra.mxu0 %v3755
    %5579 = vmatmul.bf16.gmra.mxu0 %v89
    %v5580 = vpop.f32.mrf.mxu0
    %v5581 = vadd.f32 %v5568, %v5580
    %v5582 = vpop.f32.mrf.mxu0
    %5583 = vdwg.mxu0
    %5584 = vmatpush.bf16.msra.mxu0 %v3815
    %5585 = vmatpush.bf16.msra.mxu0 %v3811
    %5586 = vmatpush.bf16.msra.mxu0 %v3807
    %5587 = vmatpush.bf16.msra.mxu0 %v3803
    %5588 = vmatpush.bf16.msra.mxu0 %v3799
    %5589 = vmatpush.bf16.msra.mxu0 %v3795
    %5590 = vmatpush.bf16.msra.mxu0 %v3791
    %5591 = vmatpush.bf16.msra.mxu0 %v3787
    %5592 = vmatmul.bf16.gmra.mxu0 %v90
    %v5593 = vpop.f32.mrf.mxu0
    %v5594 = vadd.f32 %v5581, %v5593
    %v5595 = vpop.f32.mrf.mxu0
    %5596 = vdwg.mxu0
    %5597 = vmatpush.bf16.msra.mxu0 %v3847
    %5598 = vmatpush.bf16.msra.mxu0 %v3843
    %5599 = vmatpush.bf16.msra.mxu0 %v3839
    %5600 = vmatpush.bf16.msra.mxu0 %v3835
    %5601 = vmatpush.bf16.msra.mxu0 %v3831
    %5602 = vmatpush.bf16.msra.mxu0 %v3827
    %5603 = vmatpush.bf16.msra.mxu0 %v3823
    %5604 = vmatpush.bf16.msra.mxu0 %v3819
    %5605 = vmatmul.bf16.gmra.mxu0 %v91
    %v5606 = vpop.f32.mrf.mxu0
    %v5607 = vadd.f32 %v5594, %v5606
    %v5608 = vpop.f32.mrf.mxu0
    %5609 = vdwg.mxu0
    %5610 = vmatpush.bf16.msra.mxu0 %v3879
    %5611 = vmatpush.bf16.msra.mxu0 %v3875
    %5612 = vmatpush.bf16.msra.mxu0 %v3871
    %5613 = vmatpush.bf16.msra.mxu0 %v3867
    %5614 = vmatpush.bf16.msra.mxu0 %v3863
    %5615 = vmatpush.bf16.msra.mxu0 %v3859
    %5616 = vmatpush.bf16.msra.mxu0 %v3855
    %5617 = vmatpush.bf16.msra.mxu0 %v3851
    %5618 = vmatmul.bf16.gmra.mxu0 %v92
    %v5619 = vpop.f32.mrf.mxu0
    %v5620 = vadd.f32 %v5607, %v5619
    %v5621 = vpop.f32.mrf.mxu0
    %5622 = vdwg.mxu0
    %5623 = vmatpush.bf16.msra.mxu0 %v3911
    %5624 = vmatpush.bf16.msra.mxu0 %v3907
    %5625 = vmatpush.bf16.msra.mxu0 %v3903
    %5626 = vmatpush.bf16.msra.mxu0 %v3899
    %5627 = vmatpush.bf16.msra.mxu0 %v3895
    %5628 = vmatpush.bf16.msra.mxu0 %v3891
    %5629 = vmatpush.bf16.msra.mxu0 %v3887
    %5630 = vmatpush.bf16.msra.mxu0 %v3883
    %5631 = vmatmul.bf16.gmra.mxu0 %v93
    %v5632 = vpop.f32.mrf.mxu0
    %v5633 = vadd.f32 %v5620, %v5632
    %v5634 = vpop.f32.mrf.mxu0
    %5635 = vdwg.mxu0
    %5636 = vmatpush.bf16.msra.mxu0 %v3943
    %5637 = vmatpush.bf16.msra.mxu0 %v3939
    %5638 = vmatpush.bf16.msra.mxu0 %v3935
    %5639 = vmatpush.bf16.msra.mxu0 %v3931
    %5640 = vmatpush.bf16.msra.mxu0 %v3927
    %5641 = vmatpush.bf16.msra.mxu0 %v3923
    %5642 = vmatpush.bf16.msra.mxu0 %v3919
    %5643 = vmatpush.bf16.msra.mxu0 %v3915
    %5644 = vmatmul.bf16.gmra.mxu0 %v94
    %v5645 = vpop.f32.mrf.mxu0
    %v5646 = vadd.f32 %v5633, %v5645
    %v5647 = vpop.f32.mrf.mxu0
    %5648 = vdwg.mxu0
    %5649 = vmatpush.bf16.msra.mxu0 %v3208
    %5650 = vmatpush.bf16.msra.mxu0 %v3204
    %5651 = vmatpush.bf16.msra.mxu0 %v3200
    %5652 = vmatpush.bf16.msra.mxu0 %v3196
    %5653 = vmatpush.bf16.msra.mxu0 %v3192
    %5654 = vmatpush.bf16.msra.mxu0 %v3188
    %5655 = vmatpush.bf16.msra.mxu0 %v3184
    %5656 = vmatpush.bf16.msra.mxu0 %v3180
    %5657 = vmatmul.bf16.gmra.mxu0 %v71
    %v5658 = vpop.f32.mrf.mxu0
    %v5659 = vadd.f32 %v868, %v5658
    %v5660 = vpop.f32.mrf.mxu0
    %5661 = vdwg.mxu0
    %5662 = vmatpush.bf16.msra.mxu0 %v3240
    %5663 = vmatpush.bf16.msra.mxu0 %v3236
    %5664 = vmatpush.bf16.msra.mxu0 %v3232
    %5665 = vmatpush.bf16.msra.mxu0 %v3228
    %5666 = vmatpush.bf16.msra.mxu0 %v3224
    %5667 = vmatpush.bf16.msra.mxu0 %v3220
    %5668 = vmatpush.bf16.msra.mxu0 %v3216
    %5669 = vmatpush.bf16.msra.mxu0 %v3212
    %5670 = vmatmul.bf16.gmra.mxu0 %v72
    %v5671 = vpop.f32.mrf.mxu0
    %v5672 = vadd.f32 %v5659, %v5671
    %v5673 = vpop.f32.mrf.mxu0
    %5674 = vdwg.mxu0
    %5675 = vmatpush.bf16.msra.mxu0 %v3272
    %5676 = vmatpush.bf16.msra.mxu0 %v3268
    %5677 = vmatpush.bf16.msra.mxu0 %v3264
    %5678 = vmatpush.bf16.msra.mxu0 %v3260
    %5679 = vmatpush.bf16.msra.mxu0 %v3256
    %5680 = vmatpush.bf16.msra.mxu0 %v3252
    %5681 = vmatpush.bf16.msra.mxu0 %v3248
    %5682 = vmatpush.bf16.msra.mxu0 %v3244
    %5683 = vmatmul.bf16.gmra.mxu0 %v73
    %v5684 = vpop.f32.mrf.mxu0
    %v5685 = vadd.f32 %v5672, %v5684
    %v5686 = vpop.f32.mrf.mxu0
    %5687 = vdwg.mxu0
    %5688 = vmatpush.bf16.msra.mxu0 %v3304
    %5689 = vmatpush.bf16.msra.mxu0 %v3300
    %5690 = vmatpush.bf16.msra.mxu0 %v3296
    %5691 = vmatpush.bf16.msra.mxu0 %v3292
    %5692 = vmatpush.bf16.msra.mxu0 %v3288
    %5693 = vmatpush.bf16.msra.mxu0 %v3284
    %5694 = vmatpush.bf16.msra.mxu0 %v3280
    %5695 = vmatpush.bf16.msra.mxu0 %v3276
    %5696 = vmatmul.bf16.gmra.mxu0 %v74
    %v5697 = vpop.f32.mrf.mxu0
    %v5698 = vadd.f32 %v5685, %v5697
    %v5699 = vpop.f32.mrf.mxu0
    %5700 = vdwg.mxu0
    %5701 = vmatpush.bf16.msra.mxu0 %v3336
    %5702 = vmatpush.bf16.msra.mxu0 %v3332
    %5703 = vmatpush.bf16.msra.mxu0 %v3328
    %5704 = vmatpush.bf16.msra.mxu0 %v3324
    %5705 = vmatpush.bf16.msra.mxu0 %v3320
    %5706 = vmatpush.bf16.msra.mxu0 %v3316
    %5707 = vmatpush.bf16.msra.mxu0 %v3312
    %5708 = vmatpush.bf16.msra.mxu0 %v3308
    %5709 = vmatmul.bf16.gmra.mxu0 %v75
    %v5710 = vpop.f32.mrf.mxu0
    %v5711 = vadd.f32 %v5698, %v5710
    %v5712 = vpop.f32.mrf.mxu0
    %5713 = vdwg.mxu0
    %5714 = vmatpush.bf16.msra.mxu0 %v3368
    %5715 = vmatpush.bf16.msra.mxu0 %v3364
    %5716 = vmatpush.bf16.msra.mxu0 %v3360
    %5717 = vmatpush.bf16.msra.mxu0 %v3356
    %5718 = vmatpush.bf16.msra.mxu0 %v3352
    %5719 = vmatpush.bf16.msra.mxu0 %v3348
    %5720 = vmatpush.bf16.msra.mxu0 %v3344
    %5721 = vmatpush.bf16.msra.mxu0 %v3340
    %5722 = vmatmul.bf16.gmra.mxu0 %v76
    %v5723 = vpop.f32.mrf.mxu0
    %v5724 = vadd.f32 %v5711, %v5723
    %v5725 = vpop.f32.mrf.mxu0
    %5726 = vdwg.mxu0
    %5727 = vmatpush.bf16.msra.mxu0 %v3400
    %5728 = vmatpush.bf16.msra.mxu0 %v3396
    %5729 = vmatpush.bf16.msra.mxu0 %v3392
    %5730 = vmatpush.bf16.msra.mxu0 %v3388
    %5731 = vmatpush.bf16.msra.mxu0 %v3384
    %5732 = vmatpush.bf16.msra.mxu0 %v3380
    %5733 = vmatpush.bf16.msra.mxu0 %v3376
    %5734 = vmatpush.bf16.msra.mxu0 %v3372
    %5735 = vmatmul.bf16.gmra.mxu0 %v77
    %v5736 = vpop.f32.mrf.mxu0
    %v5737 = vadd.f32 %v5724, %v5736
    %v5738 = vpop.f32.mrf.mxu0
    %5739 = vdwg.mxu0
    %5740 = vmatpush.bf16.msra.mxu0 %v3432
    %5741 = vmatpush.bf16.msra.mxu0 %v3428
    %5742 = vmatpush.bf16.msra.mxu0 %v3424
    %5743 = vmatpush.bf16.msra.mxu0 %v3420
    %5744 = vmatpush.bf16.msra.mxu0 %v3416
    %5745 = vmatpush.bf16.msra.mxu0 %v3412
    %5746 = vmatpush.bf16.msra.mxu0 %v3408
    %5747 = vmatpush.bf16.msra.mxu0 %v3404
    %5748 = vmatmul.bf16.gmra.mxu0 %v78
    %v5749 = vpop.f32.mrf.mxu0
    %v5750 = vadd.f32 %v5737, %v5749
    %v5751 = vpop.f32.mrf.mxu0
    %5752 = vdwg.mxu0
    %5753 = vmatpush.bf16.msra.mxu0 %v3464
    %5754 = vmatpush.bf16.msra.mxu0 %v3460
    %5755 = vmatpush.bf16.msra.mxu0 %v3456
    %5756 = vmatpush.bf16.msra.mxu0 %v3452
    %5757 = vmatpush.bf16.msra.mxu0 %v3448
    %5758 = vmatpush.bf16.msra.mxu0 %v3444
    %5759 = vmatpush.bf16.msra.mxu0 %v3440
    %5760 = vmatpush.bf16.msra.mxu0 %v3436
    %5761 = vmatmul.bf16.gmra.mxu0 %v79
    %v5762 = vpop.f32.mrf.mxu0
    %v5763 = vadd.f32 %v5750, %v5762
    %v5764 = vpop.f32.mrf.mxu0
    %5765 = vdwg.mxu0
    %5766 = vmatpush.bf16.msra.mxu0 %v3496
    %5767 = vmatpush.bf16.msra.mxu0 %v3492
    %5768 = vmatpush.bf16.msra.mxu0 %v3488
    %5769 = vmatpush.bf16.msra.mxu0 %v3484
    %5770 = vmatpush.bf16.msra.mxu0 %v3480
    %5771 = vmatpush.bf16.msra.mxu0 %v3476
    %5772 = vmatpush.bf16.msra.mxu0 %v3472
    %5773 = vmatpush.bf16.msra.mxu0 %v3468
    %5774 = vmatmul.bf16.gmra.mxu0 %v80
    %v5775 = vpop.f32.mrf.mxu0
    %v5776 = vadd.f32 %v5763, %v5775
    %v5777 = vpop.f32.mrf.mxu0
    %5778 = vdwg.mxu0
    %5779 = vmatpush.bf16.msra.mxu0 %v3528
    %5780 = vmatpush.bf16.msra.mxu0 %v3524
    %5781 = vmatpush.bf16.msra.mxu0 %v3520
    %5782 = vmatpush.bf16.msra.mxu0 %v3516
    %5783 = vmatpush.bf16.msra.mxu0 %v3512
    %5784 = vmatpush.bf16.msra.mxu0 %v3508
    %5785 = vmatpush.bf16.msra.mxu0 %v3504
    %5786 = vmatpush.bf16.msra.mxu0 %v3500
    %5787 = vmatmul.bf16.gmra.mxu0 %v81
    %v5788 = vpop.f32.mrf.mxu0
    %v5789 = vadd.f32 %v5776, %v5788
    %v5790 = vpop.f32.mrf.mxu0
    %5791 = vdwg.mxu0
    %5792 = vmatpush.bf16.msra.mxu0 %v3560
    %5793 = vmatpush.bf16.msra.mxu0 %v3556
    %5794 = vmatpush.bf16.msra.mxu0 %v3552
    %5795 = vmatpush.bf16.msra.mxu0 %v3548
    %5796 = vmatpush.bf16.msra.mxu0 %v3544
    %5797 = vmatpush.bf16.msra.mxu0 %v3540
    %5798 = vmatpush.bf16.msra.mxu0 %v3536
    %5799 = vmatpush.bf16.msra.mxu0 %v3532
    %5800 = vmatmul.bf16.gmra.mxu0 %v82
    %v5801 = vpop.f32.mrf.mxu0
    %v5802 = vadd.f32 %v5789, %v5801
    %v5803 = vpop.f32.mrf.mxu0
    %5804 = vdwg.mxu0
    %5805 = vmatpush.bf16.msra.mxu0 %v3592
    %5806 = vmatpush.bf16.msra.mxu0 %v3588
    %5807 = vmatpush.bf16.msra.mxu0 %v3584
    %5808 = vmatpush.bf16.msra.mxu0 %v3580
    %5809 = vmatpush.bf16.msra.mxu0 %v3576
    %5810 = vmatpush.bf16.msra.mxu0 %v3572
    %5811 = vmatpush.bf16.msra.mxu0 %v3568
    %5812 = vmatpush.bf16.msra.mxu0 %v3564
    %5813 = vmatmul.bf16.gmra.mxu0 %v83
    %v5814 = vpop.f32.mrf.mxu0
    %v5815 = vadd.f32 %v5802, %v5814
    %v5816 = vpop.f32.mrf.mxu0
    %5817 = vdwg.mxu0
    %5818 = vmatpush.bf16.msra.mxu0 %v3624
    %5819 = vmatpush.bf16.msra.mxu0 %v3620
    %5820 = vmatpush.bf16.msra.mxu0 %v3616
    %5821 = vmatpush.bf16.msra.mxu0 %v3612
    %5822 = vmatpush.bf16.msra.mxu0 %v3608
    %5823 = vmatpush.bf16.msra.mxu0 %v3604
    %5824 = vmatpush.bf16.msra.mxu0 %v3600
    %5825 = vmatpush.bf16.msra.mxu0 %v3596
    %5826 = vmatmul.bf16.gmra.mxu0 %v84
    %v5827 = vpop.f32.mrf.mxu0
    %v5828 = vadd.f32 %v5815, %v5827
    %v5829 = vpop.f32.mrf.mxu0
    %5830 = vdwg.mxu0
    %5831 = vmatpush.bf16.msra.mxu0 %v3656
    %5832 = vmatpush.bf16.msra.mxu0 %v3652
    %5833 = vmatpush.bf16.msra.mxu0 %v3648
    %5834 = vmatpush.bf16.msra.mxu0 %v3644
    %5835 = vmatpush.bf16.msra.mxu0 %v3640
    %5836 = vmatpush.bf16.msra.mxu0 %v3636
    %5837 = vmatpush.bf16.msra.mxu0 %v3632
    %5838 = vmatpush.bf16.msra.mxu0 %v3628
    %5839 = vmatmul.bf16.gmra.mxu0 %v85
    %v5840 = vpop.f32.mrf.mxu0
    %v5841 = vadd.f32 %v5828, %v5840
    %v5842 = vpop.f32.mrf.mxu0
    %5843 = vdwg.mxu0
    %5844 = vmatpush.bf16.msra.mxu0 %v3688
    %5845 = vmatpush.bf16.msra.mxu0 %v3684
    %5846 = vmatpush.bf16.msra.mxu0 %v3680
    %5847 = vmatpush.bf16.msra.mxu0 %v3676
    %5848 = vmatpush.bf16.msra.mxu0 %v3672
    %5849 = vmatpush.bf16.msra.mxu0 %v3668
    %5850 = vmatpush.bf16.msra.mxu0 %v3664
    %5851 = vmatpush.bf16.msra.mxu0 %v3660
    %5852 = vmatmul.bf16.gmra.mxu0 %v86
    %v5853 = vpop.f32.mrf.mxu0
    %v5854 = vadd.f32 %v5841, %v5853
    %v5855 = vpop.f32.mrf.mxu0
    %5856 = vdwg.mxu0
    %5857 = vmatpush.bf16.msra.mxu0 %v3720
    %5858 = vmatpush.bf16.msra.mxu0 %v3716
    %5859 = vmatpush.bf16.msra.mxu0 %v3712
    %5860 = vmatpush.bf16.msra.mxu0 %v3708
    %5861 = vmatpush.bf16.msra.mxu0 %v3704
    %5862 = vmatpush.bf16.msra.mxu0 %v3700
    %5863 = vmatpush.bf16.msra.mxu0 %v3696
    %5864 = vmatpush.bf16.msra.mxu0 %v3692
    %5865 = vmatmul.bf16.gmra.mxu0 %v87
    %v5866 = vpop.f32.mrf.mxu0
    %v5867 = vadd.f32 %v5854, %v5866
    %v5868 = vpop.f32.mrf.mxu0
    %5869 = vdwg.mxu0
    %5870 = vmatpush.bf16.msra.mxu0 %v3752
    %5871 = vmatpush.bf16.msra.mxu0 %v3748
    %5872 = vmatpush.bf16.msra.mxu0 %v3744
    %5873 = vmatpush.bf16.msra.mxu0 %v3740
    %5874 = vmatpush.bf16.msra.mxu0 %v3736
    %5875 = vmatpush.bf16.msra.mxu0 %v3732
    %5876 = vmatpush.bf16.msra.mxu0 %v3728
    %5877 = vmatpush.bf16.msra.mxu0 %v3724
    %5878 = vmatmul.bf16.gmra.mxu0 %v88
    %v5879 = vpop.f32.mrf.mxu0
    %v5880 = vadd.f32 %v5867, %v5879
    %v5881 = vpop.f32.mrf.mxu0
    %5882 = vdwg.mxu0
    %5883 = vmatpush.bf16.msra.mxu0 %v3784
    %5884 = vmatpush.bf16.msra.mxu0 %v3780
    %5885 = vmatpush.bf16.msra.mxu0 %v3776
    %5886 = vmatpush.bf16.msra.mxu0 %v3772
    %5887 = vmatpush.bf16.msra.mxu0 %v3768
    %5888 = vmatpush.bf16.msra.mxu0 %v3764
    %5889 = vmatpush.bf16.msra.mxu0 %v3760
    %5890 = vmatpush.bf16.msra.mxu0 %v3756
    %5891 = vmatmul.bf16.gmra.mxu0 %v89
    %v5892 = vpop.f32.mrf.mxu0
    %v5893 = vadd.f32 %v5880, %v5892
    %v5894 = vpop.f32.mrf.mxu0
    %5895 = vdwg.mxu0
    %5896 = vmatpush.bf16.msra.mxu0 %v3816
    %5897 = vmatpush.bf16.msra.mxu0 %v3812
    %5898 = vmatpush.bf16.msra.mxu0 %v3808
    %5899 = vmatpush.bf16.msra.mxu0 %v3804
    %5900 = vmatpush.bf16.msra.mxu0 %v3800
    %5901 = vmatpush.bf16.msra.mxu0 %v3796
    %5902 = vmatpush.bf16.msra.mxu0 %v3792
    %5903 = vmatpush.bf16.msra.mxu0 %v3788
    %5904 = vmatmul.bf16.gmra.mxu0 %v90
    %v5905 = vpop.f32.mrf.mxu0
    %v5906 = vadd.f32 %v5893, %v5905
    %v5907 = vpop.f32.mrf.mxu0
    %5908 = vdwg.mxu0
    %5909 = vmatpush.bf16.msra.mxu0 %v3848
    %5910 = vmatpush.bf16.msra.mxu0 %v3844
    %5911 = vmatpush.bf16.msra.mxu0 %v3840
    %5912 = vmatpush.bf16.msra.mxu0 %v3836
    %5913 = vmatpush.bf16.msra.mxu0 %v3832
    %5914 = vmatpush.bf16.msra.mxu0 %v3828
    %5915 = vmatpush.bf16.msra.mxu0 %v3824
    %5916 = vmatpush.bf16.msra.mxu0 %v3820
    %5917 = vmatmul.bf16.gmra.mxu0 %v91
    %v5918 = vpop.f32.mrf.mxu0
    %v5919 = vadd.f32 %v5906, %v5918
    %v5920 = vpop.f32.mrf.mxu0
    %5921 = vdwg.mxu0
    %5922 = vmatpush.bf16.msra.mxu0 %v3880
    %5923 = vmatpush.bf16.msra.mxu0 %v3876
    %5924 = vmatpush.bf16.msra.mxu0 %v3872
    %5925 = vmatpush.bf16.msra.mxu0 %v3868
    %5926 = vmatpush.bf16.msra.mxu0 %v3864
    %5927 = vmatpush.bf16.msra.mxu0 %v3860
    %5928 = vmatpush.bf16.msra.mxu0 %v3856
    %5929 = vmatpush.bf16.msra.mxu0 %v3852
    %5930 = vmatmul.bf16.gmra.mxu0 %v92
    %v5931 = vpop.f32.mrf.mxu0
    %v5932 = vadd.f32 %v5919, %v5931
    %v5933 = vpop.f32.mrf.mxu0
    %5934 = vdwg.mxu0
    %5935 = vmatpush.bf16.msra.mxu0 %v3912
    %5936 = vmatpush.bf16.msra.mxu0 %v3908
    %5937 = vmatpush.bf16.msra.mxu0 %v3904
    %5938 = vmatpush.bf16.msra.mxu0 %v3900
    %5939 = vmatpush.bf16.msra.mxu0 %v3896
    %5940 = vmatpush.bf16.msra.mxu0 %v3892
    %5941 = vmatpush.bf16.msra.mxu0 %v3888
    %5942 = vmatpush.bf16.msra.mxu0 %v3884
    %5943 = vmatmul.bf16.gmra.mxu0 %v93
    %v5944 = vpop.f32.mrf.mxu0
    %v5945 = vadd.f32 %v5932, %v5944
    %v5946 = vpop.f32.mrf.mxu0
    %5947 = vdwg.mxu0
    %5948 = vmatpush.bf16.msra.mxu0 %v3944
    %5949 = vmatpush.bf16.msra.mxu0 %v3940
    %5950 = vmatpush.bf16.msra.mxu0 %v3936
    %5951 = vmatpush.bf16.msra.mxu0 %v3932
    %5952 = vmatpush.bf16.msra.mxu0 %v3928
    %5953 = vmatpush.bf16.msra.mxu0 %v3924
    %5954 = vmatpush.bf16.msra.mxu0 %v3920
    %5955 = vmatpush.bf16.msra.mxu0 %v3916
    %5956 = vmatmul.bf16.gmra.mxu0 %v94
    %v5957 = vpop.f32.mrf.mxu0
    %v5958 = vadd.f32 %v5945, %v5957
    %v5959 = vpop.f32.mrf.mxu0
    %5960 = vdwg.mxu0
    %v5961 = vmax.f32 %v5022, 0.0
    %v5962 = vmax.f32 %v5334, 0.0
    %v5963 = vmax.f32 %v5646, 0.0
    %v5964 = vmax.f32 %v5958, 0.0
    %v5965 = vpack.c.bf16 %v5961, %v5961
    %v5966 = vpack.c.bf16 %v5962, %v5962
    %v5967 = vpack.c.bf16 %v5963, %v5963
    %v5968 = vpack.c.bf16 %v5964, %v5964
    %v5969 = vld [vmem:[%s4] sm:$0xf]
    %v5970 = vld [vmem:[%s4 + $0x4] sm:$0xf]
    %v5971 = vld [vmem:[%s4 + $0x8] sm:$0xf]
    %v5972 = vld [vmem:[%s4 + $0xc] sm:$0xf]
    %v5973 = vld [vmem:[%s4 + $0x10] sm:$0xf]
    %v5974 = vld [vmem:[%s4 + $0x14] sm:$0xf]
    %v5975 = vld [vmem:[%s4 + $0x18] sm:$0xf]
    %v5976 = vld [vmem:[%s4 + $0x1c] sm:$0xf]
    %v5977 = vld [vmem:[%s4 + $0x20] sm:$0xf]
    %v5978 = vld [vmem:[%s4 + $0x24] sm:$0xf]
    %v5979 = vld [vmem:[%s4 + $0x28] sm:$0xf]
    %v5980 = vld [vmem:[%s4 + $0x2c] sm:$0xf]
    %v5981 = vld [vmem:[%s4 + $0x30] sm:$0xf]
    %v5982 = vld [vmem:[%s4 + $0x34] sm:$0xf]
    %v5983 = vld [vmem:[%s4 + $0x38] sm:$0xf]
    %v5984 = vld [vmem:[%s4 + $0x3c] sm:$0xf]
    %v5985 = vld [vmem:[%s4 + $0x40] sm:$0xf]
    %v5986 = vld [vmem:[%s4 + $0x44] sm:$0xf]
    %v5987 = vld [vmem:[%s4 + $0x48] sm:$0xf]
    %v5988 = vld [vmem:[%s4 + $0x4c] sm:$0xf]
    %v5989 = vld [vmem:[%s4 + $0x50] sm:$0xf]
    %v5990 = vld [vmem:[%s4 + $0x54] sm:$0xf]
    %v5991 = vld [vmem:[%s4 + $0x58] sm:$0xf]
    %v5992 = vld [vmem:[%s4 + $0x5c] sm:$0xf]
    %v5993 = vld [vmem:[%s4 + $0x60] sm:$0xf]
    %v5994 = vld [vmem:[%s4 + $0x64] sm:$0xf]
    %v5995 = vld [vmem:[%s4 + $0x68] sm:$0xf]
    %v5996 = vld [vmem:[%s4 + $0x6c] sm:$0xf]
    %v5997 = vld [vmem:[%s4 + $0x70] sm:$0xf]
    %v5998 = vld [vmem:[%s4 + $0x74] sm:$0xf]
    %v5999 = vld [vmem:[%s4 + $0x78] sm:$0xf]
    %v6000 = vld [vmem:[%s4 + $0x7c] sm:$0xf]
    %v6001 = vld [vmem:[%s4 + $0x80] sm:$0xf]
    %v6002 = vld [vmem:[%s4 + $0x84] sm:$0xf]
    %v6003 = vld [vmem:[%s4 + $0x88] sm:$0xf]
    %v6004 = vld [vmem:[%s4 + $0x8c] sm:$0xf]
    %v6005 = vld [vmem:[%s4 + $0x90] sm:$0xf]
    %v6006 = vld [vmem:[%s4 + $0x94] sm:$0xf]
    %v6007 = vld [vmem:[%s4 + $0x98] sm:$0xf]
    %v6008 = vld [vmem:[%s4 + $0x9c] sm:$0xf]
    %v6009 = vld [vmem:[%s4 + $0xa0] sm:$0xf]
    %v6010 = vld [vmem:[%s4 + $0xa4] sm:$0xf]
    %v6011 = vld [vmem:[%s4 + $0xa8] sm:$0xf]
    %v6012 = vld [vmem:[%s4 + $0xac] sm:$0xf]
    %v6013 = vld [vmem:[%s4 + $0xb0] sm:$0xf]
    %v6014 = vld [vmem:[%s4 + $0xb4] sm:$0xf]
    %v6015 = vld [vmem:[%s4 + $0xb8] sm:$0xf]
    %v6016 = vld [vmem:[%s4 + $0xbc] sm:$0xf]
    %v6017 = vld [vmem:[%s4 + $0xc0] sm:$0xf]
    %v6018 = vld [vmem:[%s4 + $0xc4] sm:$0xf]
    %v6019 = vld [vmem:[%s5] sm:$0x1]
    %v6021 = vperm.slane %v6019, 0
    %v6073 = vunpack.c.l.b16 %v5969
    %v6074 = vunpack.c.l.b16 %v5970
    %v6075 = vunpack.c.l.b16 %v5971
    %v6076 = vunpack.c.l.b16 %v5972
    %v6077 = vunpack.c.l.b16 %v5973
    %v6078 = vunpack.c.l.b16 %v5974
    %v6079 = vunpack.c.l.b16 %v5975
    %v6080 = vunpack.c.l.b16 %v5976
    %v6081 = vunpack.c.l.b16 %v5977
    %v6082 = vunpack.c.l.b16 %v5978
    %v6083 = vunpack.c.l.b16 %v5979
    %v6084 = vunpack.c.l.b16 %v5980
    %v6085 = vunpack.c.l.b16 %v5981
    %v6086 = vunpack.c.l.b16 %v5982
    %v6087 = vunpack.c.l.b16 %v5983
    %v6088 = vunpack.c.l.b16 %v5984
    %v6089 = vunpack.c.l.b16 %v5985
    %v6090 = vunpack.c.l.b16 %v5986
    %v6091 = vunpack.c.l.b16 %v5987
    %v6092 = vunpack.c.l.b16 %v5988
    %v6093 = vunpack.c.l.b16 %v5989
    %v6094 = vunpack.c.l.b16 %v5990
    %v6095 = vunpack.c.l.b16 %v5991
    %v6096 = vunpack.c.l.b16 %v5992
    %v6097 = vunpack.c.l.b16 %v5993
    %v6098 = vunpack.c.l.b16 %v5994
    %v6099 = vunpack.c.l.b16 %v5995
    %v6100 = vunpack.c.l.b16 %v5996
    %v6101 = vunpack.c.l.b16 %v5997
    %v6102 = vunpack.c.l.b16 %v5998
    %v6103 = vunpack.c.l.b16 %v5999
    %v6104 = vunpack.c.l.b16 %v6000
    %v6105 = vunpack.c.l.b16 %v6001
    %v6106 = vunpack.c.l.b16 %v6002
    %v6107 = vunpack.c.l.b16 %v6003
    %v6108 = vunpack.c.l.b16 %v6004
    %v6109 = vunpack.c.l.b16 %v6005
    %v6110 = vunpack.c.l.b16 %v6006
    %v6111 = vunpack.c.l.b16 %v6007
    %v6112 = vunpack.c.l.b16 %v6008
    %v6113 = vunpack.c.l.b16 %v6009
    %v6114 = vunpack.c.l.b16 %v6010
    %v6115 = vunpack.c.l.b16 %v6011
    %v6116 = vunpack.c.l.b16 %v6012
    %v6117 = vunpack.c.l.b16 %v6013
    %v6118 = vunpack.c.l.b16 %v6014
    %v6119 = vunpack.c.l.b16 %v6015
    %v6120 = vunpack.c.l.b16 %v6016
    %v6121 = vunpack.c.l.b16 %v6017
    %v6122 = vunpack.c.l.b16 %v6018
    %v6123 = vpack.c.b16 %v6074, %v6073
    %v6124 = vpack.c.b16 %v6076, %v6075
    %v6125 = vpack.c.b16 %v6078, %v6077
    %v6126 = vpack.c.b16 %v6080, %v6079
    %v6127 = vpack.c.b16 %v6082, %v6081
    %v6128 = vpack.c.b16 %v6084, %v6083
    %v6129 = vpack.c.b16 %v6086, %v6085
    %v6130 = vpack.c.b16 %v6088, %v6087
    %v6131 = vpack.c.b16 %v6090, %v6089
    %v6132 = vpack.c.b16 %v6092, %v6091
    %v6133 = vpack.c.b16 %v6094, %v6093
    %v6134 = vpack.c.b16 %v6096, %v6095
    %v6135 = vpack.c.b16 %v6098, %v6097
    %v6136 = vpack.c.b16 %v6100, %v6099
    %v6137 = vpack.c.b16 %v6102, %v6101
    %v6138 = vpack.c.b16 %v6104, %v6103
    %v6139 = vpack.c.b16 %v6106, %v6105
    %v6140 = vpack.c.b16 %v6108, %v6107
    %v6141 = vpack.c.b16 %v6110, %v6109
    %v6142 = vpack.c.b16 %v6112, %v6111
    %v6143 = vpack.c.b16 %v6114, %v6113
    %v6144 = vpack.c.b16 %v6116, %v6115
    %v6145 = vpack.c.b16 %v6118, %v6117
    %v6146 = vpack.c.b16 %v6120, %v6119
    %v6147 = vpack.c.b16 %v6122, %v6121
    %vm6173 = vcmask 130048
    %v6175 = vsel %vm6173, %v5968, 0
    %6177 = vmatpush.bf16.msra.mxu0 %v6130
    %6178 = vmatpush.bf16.msra.mxu0 %v6129
    %6179 = vmatpush.bf16.msra.mxu0 %v6128
    %6180 = vmatpush.bf16.msra.mxu0 %v6127
    %6181 = vmatpush.bf16.msra.mxu0 %v6126
    %6182 = vmatpush.bf16.msra.mxu0 %v6125
    %6183 = vmatpush.bf16.msra.mxu0 %v6124
    %6184 = vmatpush.bf16.msra.mxu0 %v6123
    %6185 = vmatmul.bf16.gmra.mxu0 %v5965
    %v6186 = vpop.f32.mrf.mxu0
    %v6187 = vadd.f32 %v6021, %v6186
    %v6188 = vpop.f32.mrf.mxu0
    %6189 = vdwg.mxu0
    %6190 = vmatpush.bf16.msra.mxu0 %v6138
    %6191 = vmatpush.bf16.msra.mxu0 %v6137
    %6192 = vmatpush.bf16.msra.mxu0 %v6136
    %6193 = vmatpush.bf16.msra.mxu0 %v6135
    %6194 = vmatpush.bf16.msra.mxu0 %v6134
    %6195 = vmatpush.bf16.msra.mxu0 %v6133
    %6196 = vmatpush.bf16.msra.mxu0 %v6132
    %6197 = vmatpush.bf16.msra.mxu0 %v6131
    %6198 = vmatmul.bf16.gmra.mxu0 %v5966
    %v6199 = vpop.f32.mrf.mxu0
    %v6200 = vadd.f32 %v6187, %v6199
    %v6201 = vpop.f32.mrf.mxu0
    %6202 = vdwg.mxu0
    %6203 = vmatpush.bf16.msra.mxu0 %v6146
    %6204 = vmatpush.bf16.msra.mxu0 %v6145
    %6205 = vmatpush.bf16.msra.mxu0 %v6144
    %6206 = vmatpush.bf16.msra.mxu0 %v6143
    %6207 = vmatpush.bf16.msra.mxu0 %v6142
    %6208 = vmatpush.bf16.msra.mxu0 %v6141
    %6209 = vmatpush.bf16.msra.mxu0 %v6140
    %6210 = vmatpush.bf16.msra.mxu0 %v6139
    %6211 = vmatmul.bf16.gmra.mxu0 %v5967
    %v6212 = vpop.f32.mrf.mxu0
    %v6213 = vadd.f32 %v6200, %v6212
    %v6214 = vpop.f32.mrf.mxu0
    %6215 = vdwg.mxu0
    %6216 = vmatpush.bf16.msra.mxu0 0
    %6217 = vmatpush.bf16.msra.mxu0 0
    %6218 = vmatpush.bf16.msra.mxu0 0
    %6219 = vmatpush.bf16.msra.mxu0 0
    %6220 = vmatpush.bf16.msra.mxu0 0
    %6221 = vmatpush.bf16.msra.mxu0 0
    %6222 = vmatpush.bf16.msra.mxu0 0
    %6223 = vmatpush.bf16.msra.mxu0 %v6147
    %6224 = vmatmul.bf16.gmra.mxu0 %v6175
    %v6225 = vpop.f32.mrf.mxu0
    %v6226 = vadd.f32 %v6213, %v6225
    %v6227 = vpop.f32.mrf.mxu0
    %6228 = vdwg.mxu0
    %v6229 = vld [vmem:[%s6] sm:$0xf]
    %v6230 = vld [vmem:[%s6 + $0x4] sm:$0xf]
    %v6231 = vld [vmem:[%s6 + $0x8] sm:$0xf]
    %v6232 = vld [vmem:[%s6 + $0xc] sm:$0xf]
    %v6233 = vld [vmem:[%s6 + $0x10] sm:$0xf]
    %v6234 = vld [vmem:[%s6 + $0x14] sm:$0xf]
    %v6235 = vld [vmem:[%s6 + $0x18] sm:$0xf]
    %v6236 = vld [vmem:[%s6 + $0x1c] sm:$0xf]
    %v6237 = vld [vmem:[%s6 + $0x20] sm:$0xf]
    %v6238 = vld [vmem:[%s6 + $0x24] sm:$0xf]
    %v6239 = vld [vmem:[%s6 + $0x28] sm:$0xf]
    %v6240 = vld [vmem:[%s6 + $0x2c] sm:$0xf]
    %v6241 = vld [vmem:[%s6 + $0x30] sm:$0xf]
    %v6242 = vld [vmem:[%s6 + $0x34] sm:$0xf]
    %v6243 = vld [vmem:[%s6 + $0x38] sm:$0xf]
    %v6244 = vld [vmem:[%s6 + $0x3c] sm:$0xf]
    %v6245 = vld [vmem:[%s6 + $0x40] sm:$0xf]
    %v6246 = vld [vmem:[%s6 + $0x44] sm:$0xf]
    %v6247 = vld [vmem:[%s6 + $0x48] sm:$0xf]
    %v6248 = vld [vmem:[%s6 + $0x4c] sm:$0xf]
    %v6249 = vld [vmem:[%s6 + $0x50] sm:$0xf]
    %v6250 = vld [vmem:[%s6 + $0x54] sm:$0xf]
    %v6251 = vld [vmem:[%s6 + $0x58] sm:$0xf]
    %v6252 = vld [vmem:[%s6 + $0x5c] sm:$0xf]
    %v6253 = vld [vmem:[%s6 + $0x60] sm:$0xf]
    %v6254 = vld [vmem:[%s6 + $0x64] sm:$0xf]
    %v6255 = vld [vmem:[%s6 + $0x68] sm:$0xf]
    %v6256 = vld [vmem:[%s6 + $0x6c] sm:$0xf]
    %v6257 = vld [vmem:[%s6 + $0x70] sm:$0xf]
    %v6258 = vld [vmem:[%s6 + $0x74] sm:$0xf]
    %v6259 = vld [vmem:[%s6 + $0x78] sm:$0xf]
    %v6260 = vld [vmem:[%s6 + $0x7c] sm:$0xf]
    %v6261 = vld [vmem:[%s6 + $0x80] sm:$0xf]
    %v6262 = vld [vmem:[%s6 + $0x84] sm:$0xf]
    %v6263 = vld [vmem:[%s6 + $0x88] sm:$0xf]
    %v6264 = vld [vmem:[%s6 + $0x8c] sm:$0xf]
    %v6265 = vld [vmem:[%s6 + $0x90] sm:$0xf]
    %v6266 = vld [vmem:[%s6 + $0x94] sm:$0xf]
    %v6267 = vld [vmem:[%s6 + $0x98] sm:$0xf]
    %v6268 = vld [vmem:[%s6 + $0x9c] sm:$0xf]
    %v6269 = vld [vmem:[%s6 + $0xa0] sm:$0xf]
    %v6270 = vld [vmem:[%s6 + $0xa4] sm:$0xf]
    %v6271 = vld [vmem:[%s6 + $0xa8] sm:$0xf]
    %v6272 = vld [vmem:[%s6 + $0xac] sm:$0xf]
    %v6273 = vld [vmem:[%s6 + $0xb0] sm:$0xf]
    %v6274 = vld [vmem:[%s6 + $0xb4] sm:$0xf]
    %v6275 = vld [vmem:[%s6 + $0xb8] sm:$0xf]
    %v6276 = vld [vmem:[%s6 + $0xbc] sm:$0xf]
    %v6277 = vld [vmem:[%s6 + $0xc0] sm:$0xf]
    %v6278 = vld [vmem:[%s6 + $0xc4] sm:$0xf]
    %v6279 = vld [vmem:[%s7] sm:$0x1]
    %v6281 = vperm.slane %v6279, 0
    %v6333 = vunpack.c.l.b16 %v6229
    %v6334 = vunpack.c.l.b16 %v6230
    %v6335 = vunpack.c.l.b16 %v6231
    %v6336 = vunpack.c.l.b16 %v6232
    %v6337 = vunpack.c.l.b16 %v6233
    %v6338 = vunpack.c.l.b16 %v6234
    %v6339 = vunpack.c.l.b16 %v6235
    %v6340 = vunpack.c.l.b16 %v6236
    %v6341 = vunpack.c.l.b16 %v6237
    %v6342 = vunpack.c.l.b16 %v6238
    %v6343 = vunpack.c.l.b16 %v6239
    %v6344 = vunpack.c.l.b16 %v6240
    %v6345 = vunpack.c.l.b16 %v6241
    %v6346 = vunpack.c.l.b16 %v6242
    %v6347 = vunpack.c.l.b16 %v6243
    %v6348 = vunpack.c.l.b16 %v6244
    %v6349 = vunpack.c.l.b16 %v6245
    %v6350 = vunpack.c.l.b16 %v6246
    %v6351 = vunpack.c.l.b16 %v6247
    %v6352 = vunpack.c.l.b16 %v6248
    %v6353 = vunpack.c.l.b16 %v6249
    %v6354 = vunpack.c.l.b16 %v6250
    %v6355 = vunpack.c.l.b16 %v6251
    %v6356 = vunpack.c.l.b16 %v6252
    %v6357 = vunpack.c.l.b16 %v6253
    %v6358 = vunpack.c.l.b16 %v6254
    %v6359 = vunpack.c.l.b16 %v6255
    %v6360 = vunpack.c.l.b16 %v6256
    %v6361 = vunpack.c.l.b16 %v6257
    %v6362 = vunpack.c.l.b16 %v6258
    %v6363 = vunpack.c.l.b16 %v6259
    %v6364 = vunpack.c.l.b16 %v6260
    %v6365 = vunpack.c.l.b16 %v6261
    %v6366 = vunpack.c.l.b16 %v6262
    %v6367 = vunpack.c.l.b16 %v6263
    %v6368 = vunpack.c.l.b16 %v6264
    %v6369 = vunpack.c.l.b16 %v6265
    %v6370 = vunpack.c.l.b16 %v6266
    %v6371 = vunpack.c.l.b16 %v6267
    %v6372 = vunpack.c.l.b16 %v6268
    %v6373 = vunpack.c.l.b16 %v6269
    %v6374 = vunpack.c.l.b16 %v6270
    %v6375 = vunpack.c.l.b16 %v6271
    %v6376 = vunpack.c.l.b16 %v6272
    %v6377 = vunpack.c.l.b16 %v6273
    %v6378 = vunpack.c.l.b16 %v6274
    %v6379 = vunpack.c.l.b16 %v6275
    %v6380 = vunpack.c.l.b16 %v6276
    %v6381 = vunpack.c.l.b16 %v6277
    %v6382 = vunpack.c.l.b16 %v6278
    %v6383 = vpack.c.b16 %v6334, %v6333
    %v6384 = vpack.c.b16 %v6336, %v6335
    %v6385 = vpack.c.b16 %v6338, %v6337
    %v6386 = vpack.c.b16 %v6340, %v6339
    %v6387 = vpack.c.b16 %v6342, %v6341
    %v6388 = vpack.c.b16 %v6344, %v6343
    %v6389 = vpack.c.b16 %v6346, %v6345
    %v6390 = vpack.c.b16 %v6348, %v6347
    %v6391 = vpack.c.b16 %v6350, %v6349
    %v6392 = vpack.c.b16 %v6352, %v6351
    %v6393 = vpack.c.b16 %v6354, %v6353
    %v6394 = vpack.c.b16 %v6356, %v6355
    %v6395 = vpack.c.b16 %v6358, %v6357
    %v6396 = vpack.c.b16 %v6360, %v6359
    %v6397 = vpack.c.b16 %v6362, %v6361
    %v6398 = vpack.c.b16 %v6364, %v6363
    %v6399 = vpack.c.b16 %v6366, %v6365
    %v6400 = vpack.c.b16 %v6368, %v6367
    %v6401 = vpack.c.b16 %v6370, %v6369
    %v6402 = vpack.c.b16 %v6372, %v6371
    %v6403 = vpack.c.b16 %v6374, %v6373
    %v6404 = vpack.c.b16 %v6376, %v6375
    %v6405 = vpack.c.b16 %v6378, %v6377
    %v6406 = vpack.c.b16 %v6380, %v6379
    %v6407 = vpack.c.b16 %v6382, %v6381
    %6433 = vmatpush.bf16.msra.mxu0 %v6390
    %6434 = vmatpush.bf16.msra.mxu0 %v6389
    %6435 = vmatpush.bf16.msra.mxu0 %v6388
    %6436 = vmatpush.bf16.msra.mxu0 %v6387
    %6437 = vmatpush.bf16.msra.mxu0 %v6386
    %6438 = vmatpush.bf16.msra.mxu0 %v6385
    %6439 = vmatpush.bf16.msra.mxu0 %v6384
    %6440 = vmatpush.bf16.msra.mxu0 %v6383
    %6441 = vmatmul.bf16.gmra.mxu0 %v5965
    %v6442 = vpop.f32.mrf.mxu0
    %v6443 = vadd.f32 %v6281, %v6442
    %v6444 = vpop.f32.mrf.mxu0
    %6445 = vdwg.mxu0
    %6446 = vmatpush.bf16.msra.mxu0 %v6398
    %6447 = vmatpush.bf16.msra.mxu0 %v6397
    %6448 = vmatpush.bf16.msra.mxu0 %v6396
    %6449 = vmatpush.bf16.msra.mxu0 %v6395
    %6450 = vmatpush.bf16.msra.mxu0 %v6394
    %6451 = vmatpush.bf16.msra.mxu0 %v6393
    %6452 = vmatpush.bf16.msra.mxu0 %v6392
    %6453 = vmatpush.bf16.msra.mxu0 %v6391
    %6454 = vmatmul.bf16.gmra.mxu0 %v5966
    %v6455 = vpop.f32.mrf.mxu0
    %v6456 = vadd.f32 %v6443, %v6455
    %v6457 = vpop.f32.mrf.mxu0
    %6458 = vdwg.mxu0
    %6459 = vmatpush.bf16.msra.mxu0 %v6406
    %6460 = vmatpush.bf16.msra.mxu0 %v6405
    %6461 = vmatpush.bf16.msra.mxu0 %v6404
    %6462 = vmatpush.bf16.msra.mxu0 %v6403
    %6463 = vmatpush.bf16.msra.mxu0 %v6402
    %6464 = vmatpush.bf16.msra.mxu0 %v6401
    %6465 = vmatpush.bf16.msra.mxu0 %v6400
    %6466 = vmatpush.bf16.msra.mxu0 %v6399
    %6467 = vmatmul.bf16.gmra.mxu0 %v5967
    %v6468 = vpop.f32.mrf.mxu0
    %v6469 = vadd.f32 %v6456, %v6468
    %v6470 = vpop.f32.mrf.mxu0
    %6471 = vdwg.mxu0
    %6472 = vmatpush.bf16.msra.mxu0 0
    %6473 = vmatpush.bf16.msra.mxu0 0
    %6474 = vmatpush.bf16.msra.mxu0 0
    %6475 = vmatpush.bf16.msra.mxu0 0
    %6476 = vmatpush.bf16.msra.mxu0 0
    %6477 = vmatpush.bf16.msra.mxu0 0
    %6478 = vmatpush.bf16.msra.mxu0 0
    %6479 = vmatpush.bf16.msra.mxu0 %v6407
    %6480 = vmatmul.bf16.gmra.mxu0 %v6175
    %v6481 = vpop.f32.mrf.mxu0
    %v6482 = vadd.f32 %v6469, %v6481
    %v6483 = vpop.f32.mrf.mxu0
    %6484 = vdwg.mxu0
    %v6485 = vmul.f32 %v6482, 0.5
    %v6486 = vmul.f32 %v6485, 1.442695
    %v6487 = vpow.pop %v6486
    %v6488 = vld [vmem:[%s1] sm:$0xff]
    %v6489 = vmul.f32 %v6488, %v6487
    %v6490 = vadd.f32 %v6489, %v6226
    %v6491 = vpack.c.bf16 %v6490, %v6490
    %v6492 = vld [vmem:[%s8] sm:$0xff]
    %v6493 = vld [vmem:[%s8 + $0x8] sm:$0xff]
    %v6494 = vld [vmem:[%s8 + $0x10] sm:$0xff]
    %v6495 = vld [vmem:[%s8 + $0x18] sm:$0xff]
    %v6496 = vld [vmem:[%s8 + $0x20] sm:$0xff]
    %v6497 = vld [vmem:[%s8 + $0x28] sm:$0xff]
    %v6498 = vld [vmem:[%s8 + $0x30] sm:$0xff]
    %v6499 = vld [vmem:[%s8 + $0x38] sm:$0xff]
    %v6500 = vld [vmem:[%s8 + $0x40] sm:$0xff]
    %v6501 = vld [vmem:[%s8 + $0x48] sm:$0xff]
    %v6502 = vld [vmem:[%s8 + $0x50] sm:$0xff]
    %v6503 = vld [vmem:[%s8 + $0x58] sm:$0xff]
    %v6504 = vld [vmem:[%s8 + $0x60] sm:$0xff]
    %v6505 = vld [vmem:[%s8 + $0x68] sm:$0xff]
    %v6506 = vld [vmem:[%s8 + $0x70] sm:$0xff]
    %v6507 = vld [vmem:[%s8 + $0x78] sm:$0xff]
    %v6508 = vld [vmem:[%s8 + $0x80] sm:$0xff]
    %v6509 = vld [vmem:[%s8 + $0x88] sm:$0xff]
    %v6510 = vld [vmem:[%s8 + $0x90] sm:$0xff]
    %v6511 = vld [vmem:[%s8 + $0x98] sm:$0xff]
    %v6512 = vld [vmem:[%s8 + $0xa0] sm:$0xff]
    %v6513 = vld [vmem:[%s8 + $0xa8] sm:$0xff]
    %v6514 = vld [vmem:[%s8 + $0xb0] sm:$0xff]
    %v6515 = vld [vmem:[%s8 + $0xb8] sm:$0xff]
    %v6516 = vld [vmem:[%s8 + $0xc0] sm:$0xff]
    %v6517 = vld [vmem:[%s8 + $0xc8] sm:$0xff]
    %v6518 = vld [vmem:[%s8 + $0xd0] sm:$0xff]
    %v6519 = vld [vmem:[%s8 + $0xd8] sm:$0xff]
    %v6520 = vld [vmem:[%s8 + $0xe0] sm:$0xff]
    %v6521 = vld [vmem:[%s8 + $0xe8] sm:$0xff]
    %v6522 = vld [vmem:[%s8 + $0xf0] sm:$0xff]
    %v6523 = vld [vmem:[%s8 + $0xf8] sm:$0xff]
    %v6524 = vld [vmem:[%s9] sm:$0xf]
    %v6526 = vperm.slane %v6524, 0
    %v6527 = vperm.slane %v6524, 1
    %v6528 = vperm.slane %v6524, 2
    %v6529 = vperm.slane %v6524, 3
    %v6566 = vunpack.c.l.b16 %v6492
    %v6567 = vunpack.c.h.b16 %v6492
    %v6568 = vunpack.c.l.b16 %v6493
    %v6569 = vunpack.c.h.b16 %v6493
    %v6570 = vunpack.c.l.b16 %v6494
    %v6571 = vunpack.c.h.b16 %v6494
    %v6572 = vunpack.c.l.b16 %v6495
    %v6573 = vunpack.c.h.b16 %v6495
    %v6574 = vunpack.c.l.b16 %v6496
    %v6575 = vunpack.c.h.b16 %v6496
    %v6576 = vunpack.c.l.b16 %v6497
    %v6577 = vunpack.c.h.b16 %v6497
    %v6578 = vunpack.c.l.b16 %v6498
    %v6579 = vunpack.c.h.b16 %v6498
    %v6580 = vunpack.c.l.b16 %v6499
    %v6581 = vunpack.c.h.b16 %v6499
    %v6582 = vunpack.c.l.b16 %v6500
    %v6583 = vunpack.c.h.b16 %v6500
    %v6584 = vunpack.c.l.b16 %v6501
    %v6585 = vunpack.c.h.b16 %v6501
    %v6586 = vunpack.c.l.b16 %v6502
    %v6587 = vunpack.c.h.b16 %v6502
    %v6588 = vunpack.c.l.b16 %v6503
    %v6589 = vunpack.c.h.b16 %v6503
    %v6590 = vunpack.c.l.b16 %v6504
    %v6591 = vunpack.c.h.b16 %v6504
    %v6592 = vunpack.c.l.b16 %v6505
    %v6593 = vunpack.c.h.b16 %v6505
    %v6594 = vunpack.c.l.b16 %v6506
    %v6595 = vunpack.c.h.b16 %v6506
    %v6596 = vunpack.c.l.b16 %v6507
    %v6597 = vunpack.c.h.b16 %v6507
    %v6598 = vunpack.c.l.b16 %v6508
    %v6599 = vunpack.c.h.b16 %v6508
    %v6600 = vunpack.c.l.b16 %v6509
    %v6601 = vunpack.c.h.b16 %v6509
    %v6602 = vunpack.c.l.b16 %v6510
    %v6603 = vunpack.c.h.b16 %v6510
    %v6604 = vunpack.c.l.b16 %v6511
    %v6605 = vunpack.c.h.b16 %v6511
    %v6606 = vunpack.c.l.b16 %v6512
    %v6607 = vunpack.c.h.b16 %v6512
    %v6608 = vunpack.c.l.b16 %v6513
    %v6609 = vunpack.c.h.b16 %v6513
    %v6610 = vunpack.c.l.b16 %v6514
    %v6611 = vunpack.c.h.b16 %v6514
    %v6612 = vunpack.c.l.b16 %v6515
    %v6613 = vunpack.c.h.b16 %v6515
    %v6614 = vunpack.c.l.b16 %v6516
    %v6615 = vunpack.c.h.b16 %v6516
    %v6616 = vunpack.c.l.b16 %v6517
    %v6617 = vunpack.c.h.b16 %v6517
    %v6618 = vunpack.c.l.b16 %v6518
    %v6619 = vunpack.c.h.b16 %v6518
    %v6620 = vunpack.c.l.b16 %v6519
    %v6621 = vunpack.c.h.b16 %v6519
    %v6622 = vunpack.c.l.b16 %v6520
    %v6623 = vunpack.c.h.b16 %v6520
    %v6624 = vunpack.c.l.b16 %v6521
    %v6625 = vunpack.c.h.b16 %v6521
    %v6626 = vunpack.c.l.b16 %v6522
    %v6627 = vunpack.c.h.b16 %v6522
    %v6628 = vunpack.c.l.b16 %v6523
    %v6629 = vunpack.c.h.b16 %v6523
    %v6630 = vpack.c.b16 %v6570, %v6566
    %v6631 = vpack.c.b16 %v6571, %v6567
    %v6632 = vpack.c.b16 %v6572, %v6568
    %v6633 = vpack.c.b16 %v6573, %v6569
    %v6634 = vpack.c.b16 %v6578, %v6574
    %v6635 = vpack.c.b16 %v6579, %v6575
    %v6636 = vpack.c.b16 %v6580, %v6576
    %v6637 = vpack.c.b16 %v6581, %v6577
    %v6638 = vpack.c.b16 %v6586, %v6582
    %v6639 = vpack.c.b16 %v6587, %v6583
    %v6640 = vpack.c.b16 %v6588, %v6584
    %v6641 = vpack.c.b16 %v6589, %v6585
    %v6642 = vpack.c.b16 %v6594, %v6590
    %v6643 = vpack.c.b16 %v6595, %v6591
    %v6644 = vpack.c.b16 %v6596, %v6592
    %v6645 = vpack.c.b16 %v6597, %v6593
    %v6646 = vpack.c.b16 %v6602, %v6598
    %v6647 = vpack.c.b16 %v6603, %v6599
    %v6648 = vpack.c.b16 %v6604, %v6600
    %v6649 = vpack.c.b16 %v6605, %v6601
    %v6650 = vpack.c.b16 %v6610, %v6606
    %v6651 = vpack.c.b16 %v6611, %v6607
    %v6652 = vpack.c.b16 %v6612, %v6608
    %v6653 = vpack.c.b16 %v6613, %v6609
    %v6654 = vpack.c.b16 %v6618, %v6614
    %v6655 = vpack.c.b16 %v6619, %v6615
    %v6656 = vpack.c.b16 %v6620, %v6616
    %v6657 = vpack.c.b16 %v6621, %v6617
    %v6658 = vpack.c.b16 %v6626, %v6622
    %v6659 = vpack.c.b16 %v6627, %v6623
    %v6660 = vpack.c.b16 %v6628, %v6624
    %v6661 = vpack.c.b16 %v6629, %v6625
    %6694 = vmatpush.bf16.msra.mxu0 %v6658
    %6695 = vmatpush.bf16.msra.mxu0 %v6654
    %6696 = vmatpush.bf16.msra.mxu0 %v6650
    %6697 = vmatpush.bf16.msra.mxu0 %v6646
    %6698 = vmatpush.bf16.msra.mxu0 %v6642
    %6699 = vmatpush.bf16.msra.mxu0 %v6638
    %6700 = vmatpush.bf16.msra.mxu0 %v6634
    %6701 = vmatpush.bf16.msra.mxu0 %v6630
    %6702 = vmatmul.bf16.gmra.mxu0 %v6491
    %v6703 = vpop.f32.mrf.mxu0
    %v6704 = vadd.f32 %v6526, %v6703
    %v6705 = vpop.f32.mrf.mxu0
    %6706 = vdwg.mxu0
    %6707 = vmatpush.bf16.msra.mxu0 %v6659
    %6708 = vmatpush.bf16.msra.mxu0 %v6655
    %6709 = vmatpush.bf16.msra.mxu0 %v6651
    %6710 = vmatpush.bf16.msra.mxu0 %v6647
    %6711 = vmatpush.bf16.msra.mxu0 %v6643
    %6712 = vmatpush.bf16.msra.mxu0 %v6639
    %6713 = vmatpush.bf16.msra.mxu0 %v6635
    %6714 = vmatpush.bf16.msra.mxu0 %v6631
    %6715 = vmatmul.bf16.gmra.mxu0 %v6491
    %v6716 = vpop.f32.mrf.mxu0
    %v6717 = vadd.f32 %v6527, %v6716
    %v6718 = vpop.f32.mrf.mxu0
    %6719 = vdwg.mxu0
    %6720 = vmatpush.bf16.msra.mxu0 %v6660
    %6721 = vmatpush.bf16.msra.mxu0 %v6656
    %6722 = vmatpush.bf16.msra.mxu0 %v6652
    %6723 = vmatpush.bf16.msra.mxu0 %v6648
    %6724 = vmatpush.bf16.msra.mxu0 %v6644
    %6725 = vmatpush.bf16.msra.mxu0 %v6640
    %6726 = vmatpush.bf16.msra.mxu0 %v6636
    %6727 = vmatpush.bf16.msra.mxu0 %v6632
    %6728 = vmatmul.bf16.gmra.mxu0 %v6491
    %v6729 = vpop.f32.mrf.mxu0
    %v6730 = vadd.f32 %v6528, %v6729
    %v6731 = vpop.f32.mrf.mxu0
    %6732 = vdwg.mxu0
    %6733 = vmatpush.bf16.msra.mxu0 %v6661
    %6734 = vmatpush.bf16.msra.mxu0 %v6657
    %6735 = vmatpush.bf16.msra.mxu0 %v6653
    %6736 = vmatpush.bf16.msra.mxu0 %v6649
    %6737 = vmatpush.bf16.msra.mxu0 %v6645
    %6738 = vmatpush.bf16.msra.mxu0 %v6641
    %6739 = vmatpush.bf16.msra.mxu0 %v6637
    %6740 = vmatpush.bf16.msra.mxu0 %v6633
    %6741 = vmatmul.bf16.gmra.mxu0 %v6491
    %v6742 = vpop.f32.mrf.mxu0
    %v6743 = vadd.f32 %v6529, %v6742
    %v6744 = vpop.f32.mrf.mxu0
    %6745 = vdwg.mxu0
    %v6746 = vmax.f32 %v6704, 0.0
    %v6747 = vmax.f32 %v6717, 0.0
    %v6748 = vmax.f32 %v6730, 0.0
    %v6749 = vmax.f32 %v6743, 0.0
    %v6750 = vpack.c.bf16 %v6746, %v6746
    %v6751 = vpack.c.bf16 %v6747, %v6747
    %v6752 = vpack.c.bf16 %v6748, %v6748
    %v6753 = vpack.c.bf16 %v6749, %v6749
    %v6754 = vld [vmem:[%s10] sm:$0xff]
    %v6755 = vld [vmem:[%s10 + $0x8] sm:$0xff]
    %v6756 = vld [vmem:[%s10 + $0x10] sm:$0xff]
    %v6757 = vld [vmem:[%s10 + $0x18] sm:$0xff]
    %v6758 = vld [vmem:[%s10 + $0x20] sm:$0xff]
    %v6759 = vld [vmem:[%s10 + $0x28] sm:$0xff]
    %v6760 = vld [vmem:[%s10 + $0x30] sm:$0xff]
    %v6761 = vld [vmem:[%s10 + $0x38] sm:$0xff]
    %v6762 = vld [vmem:[%s10 + $0x40] sm:$0xff]
    %v6763 = vld [vmem:[%s10 + $0x48] sm:$0xff]
    %v6764 = vld [vmem:[%s10 + $0x50] sm:$0xff]
    %v6765 = vld [vmem:[%s10 + $0x58] sm:$0xff]
    %v6766 = vld [vmem:[%s10 + $0x60] sm:$0xff]
    %v6767 = vld [vmem:[%s10 + $0x68] sm:$0xff]
    %v6768 = vld [vmem:[%s10 + $0x70] sm:$0xff]
    %v6769 = vld [vmem:[%s10 + $0x78] sm:$0xff]
    %v6770 = vld [vmem:[%s10 + $0x80] sm:$0xff]
    %v6771 = vld [vmem:[%s10 + $0x88] sm:$0xff]
    %v6772 = vld [vmem:[%s10 + $0x90] sm:$0xff]
    %v6773 = vld [vmem:[%s10 + $0x98] sm:$0xff]
    %v6774 = vld [vmem:[%s10 + $0xa0] sm:$0xff]
    %v6775 = vld [vmem:[%s10 + $0xa8] sm:$0xff]
    %v6776 = vld [vmem:[%s10 + $0xb0] sm:$0xff]
    %v6777 = vld [vmem:[%s10 + $0xb8] sm:$0xff]
    %v6778 = vld [vmem:[%s10 + $0xc0] sm:$0xff]
    %v6779 = vld [vmem:[%s10 + $0xc8] sm:$0xff]
    %v6780 = vld [vmem:[%s10 + $0xd0] sm:$0xff]
    %v6781 = vld [vmem:[%s10 + $0xd8] sm:$0xff]
    %v6782 = vld [vmem:[%s10 + $0xe0] sm:$0xff]
    %v6783 = vld [vmem:[%s10 + $0xe8] sm:$0xff]
    %v6784 = vld [vmem:[%s10 + $0xf0] sm:$0xff]
    %v6785 = vld [vmem:[%s10 + $0xf8] sm:$0xff]
    %v6786 = vld [vmem:[%s10 + $0x100] sm:$0xff]
    %v6787 = vld [vmem:[%s10 + $0x108] sm:$0xff]
    %v6788 = vld [vmem:[%s10 + $0x110] sm:$0xff]
    %v6789 = vld [vmem:[%s10 + $0x118] sm:$0xff]
    %v6790 = vld [vmem:[%s10 + $0x120] sm:$0xff]
    %v6791 = vld [vmem:[%s10 + $0x128] sm:$0xff]
    %v6792 = vld [vmem:[%s10 + $0x130] sm:$0xff]
    %v6793 = vld [vmem:[%s10 + $0x138] sm:$0xff]
    %v6794 = vld [vmem:[%s10 + $0x140] sm:$0xff]
    %v6795 = vld [vmem:[%s10 + $0x148] sm:$0xff]
    %v6796 = vld [vmem:[%s10 + $0x150] sm:$0xff]
    %v6797 = vld [vmem:[%s10 + $0x158] sm:$0xff]
    %v6798 = vld [vmem:[%s10 + $0x160] sm:$0xff]
    %v6799 = vld [vmem:[%s10 + $0x168] sm:$0xff]
    %v6800 = vld [vmem:[%s10 + $0x170] sm:$0xff]
    %v6801 = vld [vmem:[%s10 + $0x178] sm:$0xff]
    %v6802 = vld [vmem:[%s10 + $0x180] sm:$0xff]
    %v6803 = vld [vmem:[%s10 + $0x188] sm:$0xff]
    %v6804 = vld [vmem:[%s10 + $0x190] sm:$0xff]
    %v6805 = vld [vmem:[%s10 + $0x198] sm:$0xff]
    %v6806 = vld [vmem:[%s10 + $0x1a0] sm:$0xff]
    %v6807 = vld [vmem:[%s10 + $0x1a8] sm:$0xff]
    %v6808 = vld [vmem:[%s10 + $0x1b0] sm:$0xff]
    %v6809 = vld [vmem:[%s10 + $0x1b8] sm:$0xff]
    %v6810 = vld [vmem:[%s10 + $0x1c0] sm:$0xff]
    %v6811 = vld [vmem:[%s10 + $0x1c8] sm:$0xff]
    %v6812 = vld [vmem:[%s10 + $0x1d0] sm:$0xff]
    %v6813 = vld [vmem:[%s10 + $0x1d8] sm:$0xff]
    %v6814 = vld [vmem:[%s10 + $0x1e0] sm:$0xff]
    %v6815 = vld [vmem:[%s10 + $0x1e8] sm:$0xff]
    %v6816 = vld [vmem:[%s10 + $0x1f0] sm:$0xff]
    %v6817 = vld [vmem:[%s10 + $0x1f8] sm:$0xff]
    %v6818 = vld [vmem:[%s10 + $0x200] sm:$0xff]
    %v6819 = vld [vmem:[%s10 + $0x208] sm:$0xff]
    %v6820 = vld [vmem:[%s10 + $0x210] sm:$0xff]
    %v6821 = vld [vmem:[%s10 + $0x218] sm:$0xff]
    %v6822 = vld [vmem:[%s10 + $0x220] sm:$0xff]
    %v6823 = vld [vmem:[%s10 + $0x228] sm:$0xff]
    %v6824 = vld [vmem:[%s10 + $0x230] sm:$0xff]
    %v6825 = vld [vmem:[%s10 + $0x238] sm:$0xff]
    %v6826 = vld [vmem:[%s10 + $0x240] sm:$0xff]
    %v6827 = vld [vmem:[%s10 + $0x248] sm:$0xff]
    %v6828 = vld [vmem:[%s10 + $0x250] sm:$0xff]
    %v6829 = vld [vmem:[%s10 + $0x258] sm:$0xff]
    %v6830 = vld [vmem:[%s10 + $0x260] sm:$0xff]
    %v6831 = vld [vmem:[%s10 + $0x268] sm:$0xff]
    %v6832 = vld [vmem:[%s10 + $0x270] sm:$0xff]
    %v6833 = vld [vmem:[%s10 + $0x278] sm:$0xff]
    %v6834 = vld [vmem:[%s10 + $0x280] sm:$0xff]
    %v6835 = vld [vmem:[%s10 + $0x288] sm:$0xff]
    %v6836 = vld [vmem:[%s10 + $0x290] sm:$0xff]
    %v6837 = vld [vmem:[%s10 + $0x298] sm:$0xff]
    %v6838 = vld [vmem:[%s10 + $0x2a0] sm:$0xff]
    %v6839 = vld [vmem:[%s10 + $0x2a8] sm:$0xff]
    %v6840 = vld [vmem:[%s10 + $0x2b0] sm:$0xff]
    %v6841 = vld [vmem:[%s10 + $0x2b8] sm:$0xff]
    %v6842 = vld [vmem:[%s10 + $0x2c0] sm:$0xff]
    %v6843 = vld [vmem:[%s10 + $0x2c8] sm:$0xff]
    %v6844 = vld [vmem:[%s10 + $0x2d0] sm:$0xff]
    %v6845 = vld [vmem:[%s10 + $0x2d8] sm:$0xff]
    %v6846 = vld [vmem:[%s10 + $0x2e0] sm:$0xff]
    %v6847 = vld [vmem:[%s10 + $0x2e8] sm:$0xff]
    %v6848 = vld [vmem:[%s10 + $0x2f0] sm:$0xff]
    %v6849 = vld [vmem:[%s10 + $0x2f8] sm:$0xff]
    %v6850 = vld [vmem:[%s10 + $0x300] sm:$0xff]
    %v6851 = vld [vmem:[%s10 + $0x308] sm:$0xff]
    %v6852 = vld [vmem:[%s10 + $0x310] sm:$0xff]
    %v6853 = vld [vmem:[%s10 + $0x318] sm:$0xff]
    %v6854 = vld [vmem:[%s10 + $0x320] sm:$0xff]
    %v6855 = vld [vmem:[%s10 + $0x328] sm:$0xff]
    %v6856 = vld [vmem:[%s10 + $0x330] sm:$0xff]
    %v6857 = vld [vmem:[%s10 + $0x338] sm:$0xff]
    %v6858 = vld [vmem:[%s10 + $0x340] sm:$0xff]
    %v6859 = vld [vmem:[%s10 + $0x348] sm:$0xff]
    %v6860 = vld [vmem:[%s10 + $0x350] sm:$0xff]
    %v6861 = vld [vmem:[%s10 + $0x358] sm:$0xff]
    %v6862 = vld [vmem:[%s10 + $0x360] sm:$0xff]
    %v6863 = vld [vmem:[%s10 + $0x368] sm:$0xff]
    %v6864 = vld [vmem:[%s10 + $0x370] sm:$0xff]
    %v6865 = vld [vmem:[%s10 + $0x378] sm:$0xff]
    %v6866 = vld [vmem:[%s10 + $0x380] sm:$0xff]
    %v6867 = vld [vmem:[%s10 + $0x388] sm:$0xff]
    %v6868 = vld [vmem:[%s10 + $0x390] sm:$0xff]
    %v6869 = vld [vmem:[%s10 + $0x398] sm:$0xff]
    %v6870 = vld [vmem:[%s10 + $0x3a0] sm:$0xff]
    %v6871 = vld [vmem:[%s10 + $0x3a8] sm:$0xff]
    %v6872 = vld [vmem:[%s10 + $0x3b0] sm:$0xff]
    %v6873 = vld [vmem:[%s10 + $0x3b8] sm:$0xff]
    %v6874 = vld [vmem:[%s10 + $0x3c0] sm:$0xff]
    %v6875 = vld [vmem:[%s10 + $0x3c8] sm:$0xff]
    %v6876 = vld [vmem:[%s10 + $0x3d0] sm:$0xff]
    %v6877 = vld [vmem:[%s10 + $0x3d8] sm:$0xff]
    %v6878 = vld [vmem:[%s10 + $0x3e0] sm:$0xff]
    %v6879 = vld [vmem:[%s10 + $0x3e8] sm:$0xff]
    %v6880 = vld [vmem:[%s10 + $0x3f0] sm:$0xff]
    %v6881 = vld [vmem:[%s10 + $0x3f8] sm:$0xff]
    %v6882 = vld [vmem:[%s10 + $0x400] sm:$0xff]
    %v6883 = vld [vmem:[%s10 + $0x408] sm:$0xff]
    %v6884 = vld [vmem:[%s10 + $0x410] sm:$0xff]
    %v6885 = vld [vmem:[%s10 + $0x418] sm:$0xff]
    %v6886 = vld [vmem:[%s10 + $0x420] sm:$0xff]
    %v6887 = vld [vmem:[%s10 + $0x428] sm:$0xff]
    %v6888 = vld [vmem:[%s10 + $0x430] sm:$0xff]
    %v6889 = vld [vmem:[%s10 + $0x438] sm:$0xff]
    %v6890 = vld [vmem:[%s10 + $0x440] sm:$0xff]
    %v6891 = vld [vmem:[%s10 + $0x448] sm:$0xff]
    %v6892 = vld [vmem:[%s10 + $0x450] sm:$0xff]
    %v6893 = vld [vmem:[%s10 + $0x458] sm:$0xff]
    %v6894 = vld [vmem:[%s10 + $0x460] sm:$0xff]
    %v6895 = vld [vmem:[%s10 + $0x468] sm:$0xff]
    %v6896 = vld [vmem:[%s10 + $0x470] sm:$0xff]
    %v6897 = vld [vmem:[%s10 + $0x478] sm:$0xff]
    %v6898 = vld [vmem:[%s10 + $0x480] sm:$0xff]
    %v6899 = vld [vmem:[%s10 + $0x488] sm:$0xff]
    %v6900 = vld [vmem:[%s10 + $0x490] sm:$0xff]
    %v6901 = vld [vmem:[%s10 + $0x498] sm:$0xff]
    %v6902 = vld [vmem:[%s10 + $0x4a0] sm:$0xff]
    %v6903 = vld [vmem:[%s10 + $0x4a8] sm:$0xff]
    %v6904 = vld [vmem:[%s10 + $0x4b0] sm:$0xff]
    %v6905 = vld [vmem:[%s10 + $0x4b8] sm:$0xff]
    %v6906 = vld [vmem:[%s10 + $0x4c0] sm:$0xff]
    %v6907 = vld [vmem:[%s10 + $0x4c8] sm:$0xff]
    %v6908 = vld [vmem:[%s10 + $0x4d0] sm:$0xff]
    %v6909 = vld [vmem:[%s10 + $0x4d8] sm:$0xff]
    %v6910 = vld [vmem:[%s10 + $0x4e0] sm:$0xff]
    %v6911 = vld [vmem:[%s10 + $0x4e8] sm:$0xff]
    %v6912 = vld [vmem:[%s10 + $0x4f0] sm:$0xff]
    %v6913 = vld [vmem:[%s10 + $0x4f8] sm:$0xff]
    %v6914 = vld [vmem:[%s10 + $0x500] sm:$0xff]
    %v6915 = vld [vmem:[%s10 + $0x508] sm:$0xff]
    %v6916 = vld [vmem:[%s10 + $0x510] sm:$0xff]
    %v6917 = vld [vmem:[%s10 + $0x518] sm:$0xff]
    %v6918 = vld [vmem:[%s10 + $0x520] sm:$0xff]
    %v6919 = vld [vmem:[%s10 + $0x528] sm:$0xff]
    %v6920 = vld [vmem:[%s10 + $0x530] sm:$0xff]
    %v6921 = vld [vmem:[%s10 + $0x538] sm:$0xff]
    %v6922 = vld [vmem:[%s10 + $0x540] sm:$0xff]
    %v6923 = vld [vmem:[%s10 + $0x548] sm:$0xff]
    %v6924 = vld [vmem:[%s10 + $0x550] sm:$0xff]
    %v6925 = vld [vmem:[%s10 + $0x558] sm:$0xff]
    %v6926 = vld [vmem:[%s10 + $0x560] sm:$0xff]
    %v6927 = vld [vmem:[%s10 + $0x568] sm:$0xff]
    %v6928 = vld [vmem:[%s10 + $0x570] sm:$0xff]
    %v6929 = vld [vmem:[%s10 + $0x578] sm:$0xff]
    %v6930 = vld [vmem:[%s10 + $0x580] sm:$0xff]
    %v6931 = vld [vmem:[%s10 + $0x588] sm:$0xff]
    %v6932 = vld [vmem:[%s10 + $0x590] sm:$0xff]
    %v6933 = vld [vmem:[%s10 + $0x598] sm:$0xff]
    %v6934 = vld [vmem:[%s10 + $0x5a0] sm:$0xff]
    %v6935 = vld [vmem:[%s10 + $0x5a8] sm:$0xff]
    %v6936 = vld [vmem:[%s10 + $0x5b0] sm:$0xff]
    %v6937 = vld [vmem:[%s10 + $0x5b8] sm:$0xff]
    %v6938 = vld [vmem:[%s10 + $0x5c0] sm:$0xff]
    %v6939 = vld [vmem:[%s10 + $0x5c8] sm:$0xff]
    %v6940 = vld [vmem:[%s10 + $0x5d0] sm:$0xff]
    %v6941 = vld [vmem:[%s10 + $0x5d8] sm:$0xff]
    %v6942 = vld [vmem:[%s10 + $0x5e0] sm:$0xff]
    %v6943 = vld [vmem:[%s10 + $0x5e8] sm:$0xff]
    %v6944 = vld [vmem:[%s10 + $0x5f0] sm:$0xff]
    %v6945 = vld [vmem:[%s10 + $0x5f8] sm:$0xff]
    %v6946 = vld [vmem:[%s10 + $0x600] sm:$0xff]
    %v6947 = vld [vmem:[%s10 + $0x608] sm:$0xff]
    %v6948 = vld [vmem:[%s10 + $0x610] sm:$0xff]
    %v6949 = vld [vmem:[%s10 + $0x618] sm:$0xff]
    %v6950 = vld [vmem:[%s10 + $0x620] sm:$0xff]
    %v6951 = vld [vmem:[%s10 + $0x628] sm:$0xff]
    %v6952 = vld [vmem:[%s10 + $0x630] sm:$0xff]
    %v6953 = vld [vmem:[%s10 + $0x638] sm:$0xff]
    %v6954 = vld [vmem:[%s10 + $0x640] sm:$0xff]
    %v6955 = vld [vmem:[%s10 + $0x648] sm:$0xff]
    %v6956 = vld [vmem:[%s10 + $0x650] sm:$0xff]
    %v6957 = vld [vmem:[%s10 + $0x658] sm:$0xff]
    %v6958 = vld [vmem:[%s10 + $0x660] sm:$0xff]
    %v6959 = vld [vmem:[%s10 + $0x668] sm:$0xff]
    %v6960 = vld [vmem:[%s10 + $0x670] sm:$0xff]
    %v6961 = vld [vmem:[%s10 + $0x678] sm:$0xff]
    %v6962 = vld [vmem:[%s10 + $0x680] sm:$0xff]
    %v6963 = vld [vmem:[%s10 + $0x688] sm:$0xff]
    %v6964 = vld [vmem:[%s10 + $0x690] sm:$0xff]
    %v6965 = vld [vmem:[%s10 + $0x698] sm:$0xff]
    %v6966 = vld [vmem:[%s10 + $0x6a0] sm:$0xff]
    %v6967 = vld [vmem:[%s10 + $0x6a8] sm:$0xff]
    %v6968 = vld [vmem:[%s10 + $0x6b0] sm:$0xff]
    %v6969 = vld [vmem:[%s10 + $0x6b8] sm:$0xff]
    %v6970 = vld [vmem:[%s10 + $0x6c0] sm:$0xff]
    %v6971 = vld [vmem:[%s10 + $0x6c8] sm:$0xff]
    %v6972 = vld [vmem:[%s10 + $0x6d0] sm:$0xff]
    %v6973 = vld [vmem:[%s10 + $0x6d8] sm:$0xff]
    %v6974 = vld [vmem:[%s10 + $0x6e0] sm:$0xff]
    %v6975 = vld [vmem:[%s10 + $0x6e8] sm:$0xff]
    %v6976 = vld [vmem:[%s10 + $0x6f0] sm:$0xff]
    %v6977 = vld [vmem:[%s10 + $0x6f8] sm:$0xff]
    %v6978 = vld [vmem:[%s10 + $0x700] sm:$0xff]
    %v6979 = vld [vmem:[%s10 + $0x708] sm:$0xff]
    %v6980 = vld [vmem:[%s10 + $0x710] sm:$0xff]
    %v6981 = vld [vmem:[%s10 + $0x718] sm:$0xff]
    %v6982 = vld [vmem:[%s10 + $0x720] sm:$0xff]
    %v6983 = vld [vmem:[%s10 + $0x728] sm:$0xff]
    %v6984 = vld [vmem:[%s10 + $0x730] sm:$0xff]
    %v6985 = vld [vmem:[%s10 + $0x738] sm:$0xff]
    %v6986 = vld [vmem:[%s10 + $0x740] sm:$0xff]
    %v6987 = vld [vmem:[%s10 + $0x748] sm:$0xff]
    %v6988 = vld [vmem:[%s10 + $0x750] sm:$0xff]
    %v6989 = vld [vmem:[%s10 + $0x758] sm:$0xff]
    %v6990 = vld [vmem:[%s10 + $0x760] sm:$0xff]
    %v6991 = vld [vmem:[%s10 + $0x768] sm:$0xff]
    %v6992 = vld [vmem:[%s10 + $0x770] sm:$0xff]
    %v6993 = vld [vmem:[%s10 + $0x778] sm:$0xff]
    %v6994 = vld [vmem:[%s10 + $0x780] sm:$0xff]
    %v6995 = vld [vmem:[%s10 + $0x788] sm:$0xff]
    %v6996 = vld [vmem:[%s10 + $0x790] sm:$0xff]
    %v6997 = vld [vmem:[%s10 + $0x798] sm:$0xff]
    %v6998 = vld [vmem:[%s10 + $0x7a0] sm:$0xff]
    %v6999 = vld [vmem:[%s10 + $0x7a8] sm:$0xff]
    %v7000 = vld [vmem:[%s10 + $0x7b0] sm:$0xff]
    %v7001 = vld [vmem:[%s10 + $0x7b8] sm:$0xff]
    %v7002 = vld [vmem:[%s10 + $0x7c0] sm:$0xff]
    %v7003 = vld [vmem:[%s10 + $0x7c8] sm:$0xff]
    %v7004 = vld [vmem:[%s10 + $0x7d0] sm:$0xff]
    %v7005 = vld [vmem:[%s10 + $0x7d8] sm:$0xff]
    %v7006 = vld [vmem:[%s10 + $0x7e0] sm:$0xff]
    %v7007 = vld [vmem:[%s10 + $0x7e8] sm:$0xff]
    %v7008 = vld [vmem:[%s10 + $0x7f0] sm:$0xff]
    %v7009 = vld [vmem:[%s10 + $0x7f8] sm:$0xff]
    %v7010 = vld [vmem:[%s10 + $0x800] sm:$0xff]
    %v7011 = vld [vmem:[%s10 + $0x808] sm:$0xff]
    %v7012 = vld [vmem:[%s10 + $0x810] sm:$0xff]
    %v7013 = vld [vmem:[%s10 + $0x818] sm:$0xff]
    %v7014 = vld [vmem:[%s10 + $0x820] sm:$0xff]
    %v7015 = vld [vmem:[%s10 + $0x828] sm:$0xff]
    %v7016 = vld [vmem:[%s10 + $0x830] sm:$0xff]
    %v7017 = vld [vmem:[%s10 + $0x838] sm:$0xff]
    %v7018 = vld [vmem:[%s10 + $0x840] sm:$0xff]
    %v7019 = vld [vmem:[%s10 + $0x848] sm:$0xff]
    %v7020 = vld [vmem:[%s10 + $0x850] sm:$0xff]
    %v7021 = vld [vmem:[%s10 + $0x858] sm:$0xff]
    %v7022 = vld [vmem:[%s10 + $0x860] sm:$0xff]
    %v7023 = vld [vmem:[%s10 + $0x868] sm:$0xff]
    %v7024 = vld [vmem:[%s10 + $0x870] sm:$0xff]
    %v7025 = vld [vmem:[%s10 + $0x878] sm:$0xff]
    %v7026 = vld [vmem:[%s10 + $0x880] sm:$0xff]
    %v7027 = vld [vmem:[%s10 + $0x888] sm:$0xff]
    %v7028 = vld [vmem:[%s10 + $0x890] sm:$0xff]
    %v7029 = vld [vmem:[%s10 + $0x898] sm:$0xff]
    %v7030 = vld [vmem:[%s10 + $0x8a0] sm:$0xff]
    %v7031 = vld [vmem:[%s10 + $0x8a8] sm:$0xff]
    %v7032 = vld [vmem:[%s10 + $0x8b0] sm:$0xff]
    %v7033 = vld [vmem:[%s10 + $0x8b8] sm:$0xff]
    %v7034 = vld [vmem:[%s10 + $0x8c0] sm:$0xff]
    %v7035 = vld [vmem:[%s10 + $0x8c8] sm:$0xff]
    %v7036 = vld [vmem:[%s10 + $0x8d0] sm:$0xff]
    %v7037 = vld [vmem:[%s10 + $0x8d8] sm:$0xff]
    %v7038 = vld [vmem:[%s10 + $0x8e0] sm:$0xff]
    %v7039 = vld [vmem:[%s10 + $0x8e8] sm:$0xff]
    %v7040 = vld [vmem:[%s10 + $0x8f0] sm:$0xff]
    %v7041 = vld [vmem:[%s10 + $0x8f8] sm:$0xff]
    %v7042 = vld [vmem:[%s10 + $0x900] sm:$0xff]
    %v7043 = vld [vmem:[%s10 + $0x908] sm:$0xff]
    %v7044 = vld [vmem:[%s10 + $0x910] sm:$0xff]
    %v7045 = vld [vmem:[%s10 + $0x918] sm:$0xff]
    %v7046 = vld [vmem:[%s10 + $0x920] sm:$0xff]
    %v7047 = vld [vmem:[%s10 + $0x928] sm:$0xff]
    %v7048 = vld [vmem:[%s10 + $0x930] sm:$0xff]
    %v7049 = vld [vmem:[%s10 + $0x938] sm:$0xff]
    %v7050 = vld [vmem:[%s10 + $0x940] sm:$0xff]
    %v7051 = vld [vmem:[%s10 + $0x948] sm:$0xff]
    %v7052 = vld [vmem:[%s10 + $0x950] sm:$0xff]
    %v7053 = vld [vmem:[%s10 + $0x958] sm:$0xff]
    %v7054 = vld [vmem:[%s10 + $0x960] sm:$0xff]
    %v7055 = vld [vmem:[%s10 + $0x968] sm:$0xff]
    %v7056 = vld [vmem:[%s10 + $0x970] sm:$0xff]
    %v7057 = vld [vmem:[%s10 + $0x978] sm:$0xff]
    %v7058 = vld [vmem:[%s10 + $0x980] sm:$0xff]
    %v7059 = vld [vmem:[%s10 + $0x988] sm:$0xff]
    %v7060 = vld [vmem:[%s10 + $0x990] sm:$0xff]
    %v7061 = vld [vmem:[%s10 + $0x998] sm:$0xff]
    %v7062 = vld [vmem:[%s10 + $0x9a0] sm:$0xff]
    %v7063 = vld [vmem:[%s10 + $0x9a8] sm:$0xff]
    %v7064 = vld [vmem:[%s10 + $0x9b0] sm:$0xff]
    %v7065 = vld [vmem:[%s10 + $0x9b8] sm:$0xff]
    %v7066 = vld [vmem:[%s10 + $0x9c0] sm:$0xff]
    %v7067 = vld [vmem:[%s10 + $0x9c8] sm:$0xff]
    %v7068 = vld [vmem:[%s10 + $0x9d0] sm:$0xff]
    %v7069 = vld [vmem:[%s10 + $0x9d8] sm:$0xff]
    %v7070 = vld [vmem:[%s10 + $0x9e0] sm:$0xff]
    %v7071 = vld [vmem:[%s10 + $0x9e8] sm:$0xff]
    %v7072 = vld [vmem:[%s10 + $0x9f0] sm:$0xff]
    %v7073 = vld [vmem:[%s10 + $0x9f8] sm:$0xff]
    %v7074 = vld [vmem:[%s10 + $0xa00] sm:$0xff]
    %v7075 = vld [vmem:[%s10 + $0xa08] sm:$0xff]
    %v7076 = vld [vmem:[%s10 + $0xa10] sm:$0xff]
    %v7077 = vld [vmem:[%s10 + $0xa18] sm:$0xff]
    %v7078 = vld [vmem:[%s10 + $0xa20] sm:$0xff]
    %v7079 = vld [vmem:[%s10 + $0xa28] sm:$0xff]
    %v7080 = vld [vmem:[%s10 + $0xa30] sm:$0xff]
    %v7081 = vld [vmem:[%s10 + $0xa38] sm:$0xff]
    %v7082 = vld [vmem:[%s10 + $0xa40] sm:$0xff]
    %v7083 = vld [vmem:[%s10 + $0xa48] sm:$0xff]
    %v7084 = vld [vmem:[%s10 + $0xa50] sm:$0xff]
    %v7085 = vld [vmem:[%s10 + $0xa58] sm:$0xff]
    %v7086 = vld [vmem:[%s10 + $0xa60] sm:$0xff]
    %v7087 = vld [vmem:[%s10 + $0xa68] sm:$0xff]
    %v7088 = vld [vmem:[%s10 + $0xa70] sm:$0xff]
    %v7089 = vld [vmem:[%s10 + $0xa78] sm:$0xff]
    %v7090 = vld [vmem:[%s10 + $0xa80] sm:$0xff]
    %v7091 = vld [vmem:[%s10 + $0xa88] sm:$0xff]
    %v7092 = vld [vmem:[%s10 + $0xa90] sm:$0xff]
    %v7093 = vld [vmem:[%s10 + $0xa98] sm:$0xff]
    %v7094 = vld [vmem:[%s10 + $0xaa0] sm:$0xff]
    %v7095 = vld [vmem:[%s10 + $0xaa8] sm:$0xff]
    %v7096 = vld [vmem:[%s10 + $0xab0] sm:$0xff]
    %v7097 = vld [vmem:[%s10 + $0xab8] sm:$0xff]
    %v7098 = vld [vmem:[%s10 + $0xac0] sm:$0xff]
    %v7099 = vld [vmem:[%s10 + $0xac8] sm:$0xff]
    %v7100 = vld [vmem:[%s10 + $0xad0] sm:$0xff]
    %v7101 = vld [vmem:[%s10 + $0xad8] sm:$0xff]
    %v7102 = vld [vmem:[%s10 + $0xae0] sm:$0xff]
    %v7103 = vld [vmem:[%s10 + $0xae8] sm:$0xff]
    %v7104 = vld [vmem:[%s10 + $0xaf0] sm:$0xff]
    %v7105 = vld [vmem:[%s10 + $0xaf8] sm:$0xff]
    %v7106 = vld [vmem:[%s10 + $0xb00] sm:$0xff]
    %v7107 = vld [vmem:[%s10 + $0xb08] sm:$0xff]
    %v7108 = vld [vmem:[%s10 + $0xb10] sm:$0xff]
    %v7109 = vld [vmem:[%s10 + $0xb18] sm:$0xff]
    %v7110 = vld [vmem:[%s10 + $0xb20] sm:$0xff]
    %v7111 = vld [vmem:[%s10 + $0xb28] sm:$0xff]
    %v7112 = vld [vmem:[%s10 + $0xb30] sm:$0xff]
    %v7113 = vld [vmem:[%s10 + $0xb38] sm:$0xff]
    %v7114 = vld [vmem:[%s10 + $0xb40] sm:$0xff]
    %v7115 = vld [vmem:[%s10 + $0xb48] sm:$0xff]
    %v7116 = vld [vmem:[%s10 + $0xb50] sm:$0xff]
    %v7117 = vld [vmem:[%s10 + $0xb58] sm:$0xff]
    %v7118 = vld [vmem:[%s10 + $0xb60] sm:$0xff]
    %v7119 = vld [vmem:[%s10 + $0xb68] sm:$0xff]
    %v7120 = vld [vmem:[%s10 + $0xb70] sm:$0xff]
    %v7121 = vld [vmem:[%s10 + $0xb78] sm:$0xff]
    %v7122 = vld [vmem:[%s10 + $0xb80] sm:$0xff]
    %v7123 = vld [vmem:[%s10 + $0xb88] sm:$0xff]
    %v7124 = vld [vmem:[%s10 + $0xb90] sm:$0xff]
    %v7125 = vld [vmem:[%s10 + $0xb98] sm:$0xff]
    %v7126 = vld [vmem:[%s10 + $0xba0] sm:$0xff]
    %v7127 = vld [vmem:[%s10 + $0xba8] sm:$0xff]
    %v7128 = vld [vmem:[%s10 + $0xbb0] sm:$0xff]
    %v7129 = vld [vmem:[%s10 + $0xbb8] sm:$0xff]
    %v7130 = vld [vmem:[%s10 + $0xbc0] sm:$0xff]
    %v7131 = vld [vmem:[%s10 + $0xbc8] sm:$0xff]
    %v7132 = vld [vmem:[%s10 + $0xbd0] sm:$0xff]
    %v7133 = vld [vmem:[%s10 + $0xbd8] sm:$0xff]
    %v7134 = vld [vmem:[%s10 + $0xbe0] sm:$0xff]
    %v7135 = vld [vmem:[%s10 + $0xbe8] sm:$0xff]
    %v7136 = vld [vmem:[%s10 + $0xbf0] sm:$0xff]
    %v7137 = vld [vmem:[%s10 + $0xbf8] sm:$0xff]
    %v7138 = vld [vmem:[%s10 + $0xc00] sm:$0xff]
    %v7139 = vld [vmem:[%s10 + $0xc08] sm:$0xff]
    %v7140 = vld [vmem:[%s10 + $0xc10] sm:$0xff]
    %v7141 = vld [vmem:[%s10 + $0xc18] sm:$0xff]
    %v7142 = vld [vmem:[%s10 + $0xc20] sm:$0xff]
    %v7143 = vld [vmem:[%s10 + $0xc28] sm:$0xff]
    %v7144 = vld [vmem:[%s10 + $0xc30] sm:$0xff]
    %v7145 = vld [vmem:[%s10 + $0xc38] sm:$0xff]
    %v7146 = vld [vmem:[%s10 + $0xc40] sm:$0xff]
    %v7147 = vld [vmem:[%s10 + $0xc48] sm:$0xff]
    %v7148 = vld [vmem:[%s10 + $0xc50] sm:$0xff]
    %v7149 = vld [vmem:[%s10 + $0xc58] sm:$0xff]
    %v7150 = vld [vmem:[%s10 + $0xc60] sm:$0xff]
    %v7151 = vld [vmem:[%s10 + $0xc68] sm:$0xff]
    %v7152 = vld [vmem:[%s10 + $0xc70] sm:$0xff]
    %v7153 = vld [vmem:[%s10 + $0xc78] sm:$0xff]
    %v7154 = vld [vmem:[%s10 + $0xc80] sm:$0xff]
    %v7155 = vld [vmem:[%s10 + $0xc88] sm:$0xff]
    %v7156 = vld [vmem:[%s10 + $0xc90] sm:$0xff]
    %v7157 = vld [vmem:[%s10 + $0xc98] sm:$0xff]
    %v7158 = vld [vmem:[%s10 + $0xca0] sm:$0xff]
    %v7159 = vld [vmem:[%s10 + $0xca8] sm:$0xff]
    %v7160 = vld [vmem:[%s10 + $0xcb0] sm:$0xff]
    %v7161 = vld [vmem:[%s10 + $0xcb8] sm:$0xff]
    %v7162 = vld [vmem:[%s10 + $0xcc0] sm:$0xff]
    %v7163 = vld [vmem:[%s10 + $0xcc8] sm:$0xff]
    %v7164 = vld [vmem:[%s10 + $0xcd0] sm:$0xff]
    %v7165 = vld [vmem:[%s10 + $0xcd8] sm:$0xff]
    %v7166 = vld [vmem:[%s10 + $0xce0] sm:$0xff]
    %v7167 = vld [vmem:[%s10 + $0xce8] sm:$0xff]
    %v7168 = vld [vmem:[%s10 + $0xcf0] sm:$0xff]
    %v7169 = vld [vmem:[%s10 + $0xcf8] sm:$0xff]
    %v7170 = vld [vmem:[%s10 + $0xd00] sm:$0xff]
    %v7171 = vld [vmem:[%s10 + $0xd08] sm:$0xff]
    %v7172 = vld [vmem:[%s10 + $0xd10] sm:$0xff]
    %v7173 = vld [vmem:[%s10 + $0xd18] sm:$0xff]
    %v7174 = vld [vmem:[%s10 + $0xd20] sm:$0xff]
    %v7175 = vld [vmem:[%s10 + $0xd28] sm:$0xff]
    %v7176 = vld [vmem:[%s10 + $0xd30] sm:$0xff]
    %v7177 = vld [vmem:[%s10 + $0xd38] sm:$0xff]
    %v7178 = vld [vmem:[%s10 + $0xd40] sm:$0xff]
    %v7179 = vld [vmem:[%s10 + $0xd48] sm:$0xff]
    %v7180 = vld [vmem:[%s10 + $0xd50] sm:$0xff]
    %v7181 = vld [vmem:[%s10 + $0xd58] sm:$0xff]
    %v7182 = vld [vmem:[%s10 + $0xd60] sm:$0xff]
    %v7183 = vld [vmem:[%s10 + $0xd68] sm:$0xff]
    %v7184 = vld [vmem:[%s10 + $0xd70] sm:$0xff]
    %v7185 = vld [vmem:[%s10 + $0xd78] sm:$0xff]
    %v7186 = vld [vmem:[%s10 + $0xd80] sm:$0xff]
    %v7187 = vld [vmem:[%s10 + $0xd88] sm:$0xff]
    %v7188 = vld [vmem:[%s10 + $0xd90] sm:$0xff]
    %v7189 = vld [vmem:[%s10 + $0xd98] sm:$0xff]
    %v7190 = vld [vmem:[%s10 + $0xda0] sm:$0xff]
    %v7191 = vld [vmem:[%s10 + $0xda8] sm:$0xff]
    %v7192 = vld [vmem:[%s10 + $0xdb0] sm:$0xff]
    %v7193 = vld [vmem:[%s10 + $0xdb8] sm:$0xff]
    %v7194 = vld [vmem:[%s10 + $0xdc0] sm:$0xff]
    %v7195 = vld [vmem:[%s10 + $0xdc8] sm:$0xff]
    %v7196 = vld [vmem:[%s10 + $0xdd0] sm:$0xff]
    %v7197 = vld [vmem:[%s10 + $0xdd8] sm:$0xff]
    %v7198 = vld [vmem:[%s10 + $0xde0] sm:$0xff]
    %v7199 = vld [vmem:[%s10 + $0xde8] sm:$0xff]
    %v7200 = vld [vmem:[%s10 + $0xdf0] sm:$0xff]
    %v7201 = vld [vmem:[%s10 + $0xdf8] sm:$0xff]
    %v7202 = vld [vmem:[%s10 + $0xe00] sm:$0xff]
    %v7203 = vld [vmem:[%s10 + $0xe08] sm:$0xff]
    %v7204 = vld [vmem:[%s10 + $0xe10] sm:$0xff]
    %v7205 = vld [vmem:[%s10 + $0xe18] sm:$0xff]
    %v7206 = vld [vmem:[%s10 + $0xe20] sm:$0xff]
    %v7207 = vld [vmem:[%s10 + $0xe28] sm:$0xff]
    %v7208 = vld [vmem:[%s10 + $0xe30] sm:$0xff]
    %v7209 = vld [vmem:[%s10 + $0xe38] sm:$0xff]
    %v7210 = vld [vmem:[%s10 + $0xe40] sm:$0xff]
    %v7211 = vld [vmem:[%s10 + $0xe48] sm:$0xff]
    %v7212 = vld [vmem:[%s10 + $0xe50] sm:$0xff]
    %v7213 = vld [vmem:[%s10 + $0xe58] sm:$0xff]
    %v7214 = vld [vmem:[%s10 + $0xe60] sm:$0xff]
    %v7215 = vld [vmem:[%s10 + $0xe68] sm:$0xff]
    %v7216 = vld [vmem:[%s10 + $0xe70] sm:$0xff]
    %v7217 = vld [vmem:[%s10 + $0xe78] sm:$0xff]
    %v7218 = vld [vmem:[%s10 + $0xe80] sm:$0xff]
    %v7219 = vld [vmem:[%s10 + $0xe88] sm:$0xff]
    %v7220 = vld [vmem:[%s10 + $0xe90] sm:$0xff]
    %v7221 = vld [vmem:[%s10 + $0xe98] sm:$0xff]
    %v7222 = vld [vmem:[%s10 + $0xea0] sm:$0xff]
    %v7223 = vld [vmem:[%s10 + $0xea8] sm:$0xff]
    %v7224 = vld [vmem:[%s10 + $0xeb0] sm:$0xff]
    %v7225 = vld [vmem:[%s10 + $0xeb8] sm:$0xff]
    %v7226 = vld [vmem:[%s10 + $0xec0] sm:$0xff]
    %v7227 = vld [vmem:[%s10 + $0xec8] sm:$0xff]
    %v7228 = vld [vmem:[%s10 + $0xed0] sm:$0xff]
    %v7229 = vld [vmem:[%s10 + $0xed8] sm:$0xff]
    %v7230 = vld [vmem:[%s10 + $0xee0] sm:$0xff]
    %v7231 = vld [vmem:[%s10 + $0xee8] sm:$0xff]
    %v7232 = vld [vmem:[%s10 + $0xef0] sm:$0xff]
    %v7233 = vld [vmem:[%s10 + $0xef8] sm:$0xff]
    %v7234 = vld [vmem:[%s10 + $0xf00] sm:$0xff]
    %v7235 = vld [vmem:[%s10 + $0xf08] sm:$0xff]
    %v7236 = vld [vmem:[%s10 + $0xf10] sm:$0xff]
    %v7237 = vld [vmem:[%s10 + $0xf18] sm:$0xff]
    %v7238 = vld [vmem:[%s10 + $0xf20] sm:$0xff]
    %v7239 = vld [vmem:[%s10 + $0xf28] sm:$0xff]
    %v7240 = vld [vmem:[%s10 + $0xf30] sm:$0xff]
    %v7241 = vld [vmem:[%s10 + $0xf38] sm:$0xff]
    %v7242 = vld [vmem:[%s10 + $0xf40] sm:$0xff]
    %v7243 = vld [vmem:[%s10 + $0xf48] sm:$0xff]
    %v7244 = vld [vmem:[%s10 + $0xf50] sm:$0xff]
    %v7245 = vld [vmem:[%s10 + $0xf58] sm:$0xff]
    %v7246 = vld [vmem:[%s10 + $0xf60] sm:$0xff]
    %v7247 = vld [vmem:[%s10 + $0xf68] sm:$0xff]
    %v7248 = vld [vmem:[%s10 + $0xf70] sm:$0xff]
    %v7249 = vld [vmem:[%s10 + $0xf78] sm:$0xff]
    %v7250 = vld [vmem:[%s10 + $0xf80] sm:$0xff]
    %v7251 = vld [vmem:[%s10 + $0xf88] sm:$0xff]
    %v7252 = vld [vmem:[%s10 + $0xf90] sm:$0xff]
    %v7253 = vld [vmem:[%s10 + $0xf98] sm:$0xff]
    %v7254 = vld [vmem:[%s10 + $0xfa0] sm:$0xff]
    %v7255 = vld [vmem:[%s10 + $0xfa8] sm:$0xff]
    %v7256 = vld [vmem:[%s10 + $0xfb0] sm:$0xff]
    %v7257 = vld [vmem:[%s10 + $0xfb8] sm:$0xff]
    %v7258 = vld [vmem:[%s10 + $0xfc0] sm:$0xff]
    %v7259 = vld [vmem:[%s10 + $0xfc8] sm:$0xff]
    %v7260 = vld [vmem:[%s10 + $0xfd0] sm:$0xff]
    %v7261 = vld [vmem:[%s10 + $0xfd8] sm:$0xff]
    %v7262 = vld [vmem:[%s10 + $0xfe0] sm:$0xff]
    %v7263 = vld [vmem:[%s10 + $0xfe8] sm:$0xff]
    %v7264 = vld [vmem:[%s10 + $0xff0] sm:$0xff]
    %v7265 = vld [vmem:[%s10 + $0xff8] sm:$0xff]
    %v7266 = vld [vmem:[%s10 + $0x1000] sm:$0xff]
    %v7267 = vld [vmem:[%s10 + $0x1008] sm:$0xff]
    %v7268 = vld [vmem:[%s10 + $0x1010] sm:$0xff]
    %v7269 = vld [vmem:[%s10 + $0x1018] sm:$0xff]
    %v7270 = vld [vmem:[%s10 + $0x1020] sm:$0xff]
    %v7271 = vld [vmem:[%s10 + $0x1028] sm:$0xff]
    %v7272 = vld [vmem:[%s10 + $0x1030] sm:$0xff]
    %v7273 = vld [vmem:[%s10 + $0x1038] sm:$0xff]
    %v7274 = vld [vmem:[%s10 + $0x1040] sm:$0xff]
    %v7275 = vld [vmem:[%s10 + $0x1048] sm:$0xff]
    %v7276 = vld [vmem:[%s10 + $0x1050] sm:$0xff]
    %v7277 = vld [vmem:[%s10 + $0x1058] sm:$0xff]
    %v7278 = vld [vmem:[%s10 + $0x1060] sm:$0xff]
    %v7279 = vld [vmem:[%s10 + $0x1068] sm:$0xff]
    %v7280 = vld [vmem:[%s10 + $0x1070] sm:$0xff]
    %v7281 = vld [vmem:[%s10 + $0x1078] sm:$0xff]
    %v7282 = vld [vmem:[%s10 + $0x1080] sm:$0xff]
    %v7283 = vld [vmem:[%s10 + $0x1088] sm:$0xff]
    %v7284 = vld [vmem:[%s10 + $0x1090] sm:$0xff]
    %v7285 = vld [vmem:[%s10 + $0x1098] sm:$0xff]
    %v7286 = vld [vmem:[%s10 + $0x10a0] sm:$0xff]
    %v7287 = vld [vmem:[%s10 + $0x10a8] sm:$0xff]
    %v7288 = vld [vmem:[%s10 + $0x10b0] sm:$0xff]
    %v7289 = vld [vmem:[%s10 + $0x10b8] sm:$0xff]
    %v7290 = vld [vmem:[%s10 + $0x10c0] sm:$0xff]
    %v7291 = vld [vmem:[%s10 + $0x10c8] sm:$0xff]
    %v7292 = vld [vmem:[%s10 + $0x10d0] sm:$0xff]
    %v7293 = vld [vmem:[%s10 + $0x10d8] sm:$0xff]
    %v7294 = vld [vmem:[%s10 + $0x10e0] sm:$0xff]
    %v7295 = vld [vmem:[%s10 + $0x10e8] sm:$0xff]
    %v7296 = vld [vmem:[%s10 + $0x10f0] sm:$0xff]
    %v7297 = vld [vmem:[%s10 + $0x10f8] sm:$0xff]
    %v7298 = vld [vmem:[%s10 + $0x1100] sm:$0xff]
    %v7299 = vld [vmem:[%s10 + $0x1108] sm:$0xff]
    %v7300 = vld [vmem:[%s10 + $0x1110] sm:$0xff]
    %v7301 = vld [vmem:[%s10 + $0x1118] sm:$0xff]
    %v7302 = vld [vmem:[%s10 + $0x1120] sm:$0xff]
    %v7303 = vld [vmem:[%s10 + $0x1128] sm:$0xff]
    %v7304 = vld [vmem:[%s10 + $0x1130] sm:$0xff]
    %v7305 = vld [vmem:[%s10 + $0x1138] sm:$0xff]
    %v7306 = vld [vmem:[%s10 + $0x1140] sm:$0xff]
    %v7307 = vld [vmem:[%s10 + $0x1148] sm:$0xff]
    %v7308 = vld [vmem:[%s10 + $0x1150] sm:$0xff]
    %v7309 = vld [vmem:[%s10 + $0x1158] sm:$0xff]
    %v7310 = vld [vmem:[%s10 + $0x1160] sm:$0xff]
    %v7311 = vld [vmem:[%s10 + $0x1168] sm:$0xff]
    %v7312 = vld [vmem:[%s10 + $0x1170] sm:$0xff]
    %v7313 = vld [vmem:[%s10 + $0x1178] sm:$0xff]
    %v7314 = vld [vmem:[%s10 + $0x1180] sm:$0xff]
    %v7315 = vld [vmem:[%s10 + $0x1188] sm:$0xff]
    %v7316 = vld [vmem:[%s10 + $0x1190] sm:$0xff]
    %v7317 = vld [vmem:[%s10 + $0x1198] sm:$0xff]
    %v7318 = vld [vmem:[%s10 + $0x11a0] sm:$0xff]
    %v7319 = vld [vmem:[%s10 + $0x11a8] sm:$0xff]
    %v7320 = vld [vmem:[%s10 + $0x11b0] sm:$0xff]
    %v7321 = vld [vmem:[%s10 + $0x11b8] sm:$0xff]
    %v7322 = vld [vmem:[%s10 + $0x11c0] sm:$0xff]
    %v7323 = vld [vmem:[%s10 + $0x11c8] sm:$0xff]
    %v7324 = vld [vmem:[%s10 + $0x11d0] sm:$0xff]
    %v7325 = vld [vmem:[%s10 + $0x11d8] sm:$0xff]
    %v7326 = vld [vmem:[%s10 + $0x11e0] sm:$0xff]
    %v7327 = vld [vmem:[%s10 + $0x11e8] sm:$0xff]
    %v7328 = vld [vmem:[%s10 + $0x11f0] sm:$0xff]
    %v7329 = vld [vmem:[%s10 + $0x11f8] sm:$0xff]
    %v7330 = vld [vmem:[%s10 + $0x1200] sm:$0xff]
    %v7331 = vld [vmem:[%s10 + $0x1208] sm:$0xff]
    %v7332 = vld [vmem:[%s10 + $0x1210] sm:$0xff]
    %v7333 = vld [vmem:[%s10 + $0x1218] sm:$0xff]
    %v7334 = vld [vmem:[%s10 + $0x1220] sm:$0xff]
    %v7335 = vld [vmem:[%s10 + $0x1228] sm:$0xff]
    %v7336 = vld [vmem:[%s10 + $0x1230] sm:$0xff]
    %v7337 = vld [vmem:[%s10 + $0x1238] sm:$0xff]
    %v7338 = vld [vmem:[%s10 + $0x1240] sm:$0xff]
    %v7339 = vld [vmem:[%s10 + $0x1248] sm:$0xff]
    %v7340 = vld [vmem:[%s10 + $0x1250] sm:$0xff]
    %v7341 = vld [vmem:[%s10 + $0x1258] sm:$0xff]
    %v7342 = vld [vmem:[%s10 + $0x1260] sm:$0xff]
    %v7343 = vld [vmem:[%s10 + $0x1268] sm:$0xff]
    %v7344 = vld [vmem:[%s10 + $0x1270] sm:$0xff]
    %v7345 = vld [vmem:[%s10 + $0x1278] sm:$0xff]
    %v7346 = vld [vmem:[%s10 + $0x1280] sm:$0xff]
    %v7347 = vld [vmem:[%s10 + $0x1288] sm:$0xff]
    %v7348 = vld [vmem:[%s10 + $0x1290] sm:$0xff]
    %v7349 = vld [vmem:[%s10 + $0x1298] sm:$0xff]
    %v7350 = vld [vmem:[%s10 + $0x12a0] sm:$0xff]
    %v7351 = vld [vmem:[%s10 + $0x12a8] sm:$0xff]
    %v7352 = vld [vmem:[%s10 + $0x12b0] sm:$0xff]
    %v7353 = vld [vmem:[%s10 + $0x12b8] sm:$0xff]
    %v7354 = vld [vmem:[%s11] sm:$0xff]
    %v7355 = vld [vmem:[%s11 + $0x8] sm:$0xff]
    %v7356 = vld [vmem:[%s11 + $0x10] sm:$0xff]
    %v7360 = vperm.slane %v7354, 0
    %v7361 = vperm.slane %v7354, 1
    %v7362 = vperm.slane %v7354, 2
    %v7363 = vperm.slane %v7354, 3
    %v7364 = vperm.slane %v7354, 4
    %v7365 = vperm.slane %v7354, 5
    %v7366 = vperm.slane %v7354, 6
    %v7367 = vperm.slane %v7354, 7
    %v7368 = vperm.slane %v7355, 0
    %v7369 = vperm.slane %v7355, 1
    %v7370 = vperm.slane %v7355, 2
    %v7371 = vperm.slane %v7355, 3
    %v7372 = vperm.slane %v7355, 4
    %v7373 = vperm.slane %v7355, 5
    %v7374 = vperm.slane %v7355, 6
    %v7375 = vperm.slane %v7355, 7
    %v7376 = vperm.slane %v7356, 0
    %v7377 = vperm.slane %v7356, 1
    %v7378 = vperm.slane %v7356, 2
    %v7379 = vperm.slane %v7356, 3
    %v7380 = vperm.slane %v7356, 4
    %v7381 = vperm.slane %v7356, 5
    %v7382 = vperm.slane %v7356, 6
    %v7383 = vperm.slane %v7356, 7
    %v8008 = vunpack.c.l.b16 %v6754
    %v8009 = vunpack.c.h.b16 %v6754
    %v8010 = vunpack.c.l.b16 %v6755
    %v8011 = vunpack.c.h.b16 %v6755
    %v8012 = vunpack.c.l.b16 %v6756
    %v8013 = vunpack.c.h.b16 %v6756
    %v8014 = vunpack.c.l.b16 %v6757
    %v8015 = vunpack.c.h.b16 %v6757
    %v8016 = vunpack.c.l.b16 %v6758
    %v8017 = vunpack.c.h.b16 %v6758
    %v8018 = vunpack.c.l.b16 %v6759
    %v8019 = vunpack.c.h.b16 %v6759
    %v8020 = vunpack.c.l.b16 %v6760
    %v8021 = vunpack.c.h.b16 %v6760
    %v8022 = vunpack.c.l.b16 %v6761
    %v8023 = vunpack.c.h.b16 %v6761
    %v8024 = vunpack.c.l.b16 %v6762
    %v8025 = vunpack.c.h.b16 %v6762
    %v8026 = vunpack.c.l.b16 %v6763
    %v8027 = vunpack.c.h.b16 %v6763
    %v8028 = vunpack.c.l.b16 %v6764
    %v8029 = vunpack.c.h.b16 %v6764
    %v8030 = vunpack.c.l.b16 %v6765
    %v8031 = vunpack.c.h.b16 %v6765
    %v8032 = vunpack.c.l.b16 %v6766
    %v8033 = vunpack.c.h.b16 %v6766
    %v8034 = vunpack.c.l.b16 %v6767
    %v8035 = vunpack.c.h.b16 %v6767
    %v8036 = vunpack.c.l.b16 %v6768
    %v8037 = vunpack.c.h.b16 %v6768
    %v8038 = vunpack.c.l.b16 %v6769
    %v8039 = vunpack.c.h.b16 %v6769
    %v8040 = vunpack.c.l.b16 %v6770
    %v8041 = vunpack.c.h.b16 %v6770
    %v8042 = vunpack.c.l.b16 %v6771
    %v8043 = vunpack.c.h.b16 %v6771
    %v8044 = vunpack.c.l.b16 %v6772
    %v8045 = vunpack.c.h.b16 %v6772
    %v8046 = vunpack.c.l.b16 %v6773
    %v8047 = vunpack.c.h.b16 %v6773
    %v8048 = vunpack.c.l.b16 %v6774
    %v8049 = vunpack.c.h.b16 %v6774
    %v8050 = vunpack.c.l.b16 %v6775
    %v8051 = vunpack.c.h.b16 %v6775
    %v8052 = vunpack.c.l.b16 %v6776
    %v8053 = vunpack.c.h.b16 %v6776
    %v8054 = vunpack.c.l.b16 %v6777
    %v8055 = vunpack.c.h.b16 %v6777
    %v8056 = vunpack.c.l.b16 %v6778
    %v8057 = vunpack.c.h.b16 %v6778
    %v8058 = vunpack.c.l.b16 %v6779
    %v8059 = vunpack.c.h.b16 %v6779
    %v8060 = vunpack.c.l.b16 %v6780
    %v8061 = vunpack.c.h.b16 %v6780
    %v8062 = vunpack.c.l.b16 %v6781
    %v8063 = vunpack.c.h.b16 %v6781
    %v8064 = vunpack.c.l.b16 %v6782
    %v8065 = vunpack.c.h.b16 %v6782
    %v8066 = vunpack.c.l.b16 %v6783
    %v8067 = vunpack.c.h.b16 %v6783
    %v8068 = vunpack.c.l.b16 %v6784
    %v8069 = vunpack.c.h.b16 %v6784
    %v8070 = vunpack.c.l.b16 %v6785
    %v8071 = vunpack.c.h.b16 %v6785
    %v8072 = vunpack.c.l.b16 %v6786
    %v8073 = vunpack.c.h.b16 %v6786
    %v8074 = vunpack.c.l.b16 %v6787
    %v8075 = vunpack.c.h.b16 %v6787
    %v8076 = vunpack.c.l.b16 %v6788
    %v8077 = vunpack.c.h.b16 %v6788
    %v8078 = vunpack.c.l.b16 %v6789
    %v8079 = vunpack.c.h.b16 %v6789
    %v8080 = vunpack.c.l.b16 %v6790
    %v8081 = vunpack.c.h.b16 %v6790
    %v8082 = vunpack.c.l.b16 %v6791
    %v8083 = vunpack.c.h.b16 %v6791
    %v8084 = vunpack.c.l.b16 %v6792
    %v8085 = vunpack.c.h.b16 %v6792
    %v8086 = vunpack.c.l.b16 %v6793
    %v8087 = vunpack.c.h.b16 %v6793
    %v8088 = vunpack.c.l.b16 %v6794
    %v8089 = vunpack.c.h.b16 %v6794
    %v8090 = vunpack.c.l.b16 %v6795
    %v8091 = vunpack.c.h.b16 %v6795
    %v8092 = vunpack.c.l.b16 %v6796
    %v8093 = vunpack.c.h.b16 %v6796
    %v8094 = vunpack.c.l.b16 %v6797
    %v8095 = vunpack.c.h.b16 %v6797
    %v8096 = vunpack.c.l.b16 %v6798
    %v8097 = vunpack.c.h.b16 %v6798
    %v8098 = vunpack.c.l.b16 %v6799
    %v8099 = vunpack.c.h.b16 %v6799
    %v8100 = vunpack.c.l.b16 %v6800
    %v8101 = vunpack.c.h.b16 %v6800
    %v8102 = vunpack.c.l.b16 %v6801
    %v8103 = vunpack.c.h.b16 %v6801
    %v8104 = vunpack.c.l.b16 %v6802
    %v8105 = vunpack.c.h.b16 %v6802
    %v8106 = vunpack.c.l.b16 %v6803
    %v8107 = vunpack.c.h.b16 %v6803
    %v8108 = vunpack.c.l.b16 %v6804
    %v8109 = vunpack.c.h.b16 %v6804
    %v8110 = vunpack.c.l.b16 %v6805
    %v8111 = vunpack.c.h.b16 %v6805
    %v8112 = vunpack.c.l.b16 %v6806
    %v8113 = vunpack.c.h.b16 %v6806
    %v8114 = vunpack.c.l.b16 %v6807
    %v8115 = vunpack.c.h.b16 %v6807
    %v8116 = vunpack.c.l.b16 %v6808
    %v8117 = vunpack.c.h.b16 %v6808
    %v8118 = vunpack.c.l.b16 %v6809
    %v8119 = vunpack.c.h.b16 %v6809
    %v8120 = vunpack.c.l.b16 %v6810
    %v8121 = vunpack.c.h.b16 %v6810
    %v8122 = vunpack.c.l.b16 %v6811
    %v8123 = vunpack.c.h.b16 %v6811
    %v8124 = vunpack.c.l.b16 %v6812
    %v8125 = vunpack.c.h.b16 %v6812
    %v8126 = vunpack.c.l.b16 %v6813
    %v8127 = vunpack.c.h.b16 %v6813
    %v8128 = vunpack.c.l.b16 %v6814
    %v8129 = vunpack.c.h.b16 %v6814
    %v8130 = vunpack.c.l.b16 %v6815
    %v8131 = vunpack.c.h.b16 %v6815
    %v8132 = vunpack.c.l.b16 %v6816
    %v8133 = vunpack.c.h.b16 %v6816
    %v8134 = vunpack.c.l.b16 %v6817
    %v8135 = vunpack.c.h.b16 %v6817
    %v8136 = vunpack.c.l.b16 %v6818
    %v8137 = vunpack.c.h.b16 %v6818
    %v8138 = vunpack.c.l.b16 %v6819
    %v8139 = vunpack.c.h.b16 %v6819
    %v8140 = vunpack.c.l.b16 %v6820
    %v8141 = vunpack.c.h.b16 %v6820
    %v8142 = vunpack.c.l.b16 %v6821
    %v8143 = vunpack.c.h.b16 %v6821
    %v8144 = vunpack.c.l.b16 %v6822
    %v8145 = vunpack.c.h.b16 %v6822
    %v8146 = vunpack.c.l.b16 %v6823
    %v8147 = vunpack.c.h.b16 %v6823
    %v8148 = vunpack.c.l.b16 %v6824
    %v8149 = vunpack.c.h.b16 %v6824
    %v8150 = vunpack.c.l.b16 %v6825
    %v8151 = vunpack.c.h.b16 %v6825
    %v8152 = vunpack.c.l.b16 %v6826
    %v8153 = vunpack.c.h.b16 %v6826
    %v8154 = vunpack.c.l.b16 %v6827
    %v8155 = vunpack.c.h.b16 %v6827
    %v8156 = vunpack.c.l.b16 %v6828
    %v8157 = vunpack.c.h.b16 %v6828
    %v8158 = vunpack.c.l.b16 %v6829
    %v8159 = vunpack.c.h.b16 %v6829
    %v8160 = vunpack.c.l.b16 %v6830
    %v8161 = vunpack.c.h.b16 %v6830
    %v8162 = vunpack.c.l.b16 %v6831
    %v8163 = vunpack.c.h.b16 %v6831
    %v8164 = vunpack.c.l.b16 %v6832
    %v8165 = vunpack.c.h.b16 %v6832
    %v8166 = vunpack.c.l.b16 %v6833
    %v8167 = vunpack.c.h.b16 %v6833
    %v8168 = vunpack.c.l.b16 %v6834
    %v8169 = vunpack.c.h.b16 %v6834
    %v8170 = vunpack.c.l.b16 %v6835
    %v8171 = vunpack.c.h.b16 %v6835
    %v8172 = vunpack.c.l.b16 %v6836
    %v8173 = vunpack.c.h.b16 %v6836
    %v8174 = vunpack.c.l.b16 %v6837
    %v8175 = vunpack.c.h.b16 %v6837
    %v8176 = vunpack.c.l.b16 %v6838
    %v8177 = vunpack.c.h.b16 %v6838
    %v8178 = vunpack.c.l.b16 %v6839
    %v8179 = vunpack.c.h.b16 %v6839
    %v8180 = vunpack.c.l.b16 %v6840
    %v8181 = vunpack.c.h.b16 %v6840
    %v8182 = vunpack.c.l.b16 %v6841
    %v8183 = vunpack.c.h.b16 %v6841
    %v8184 = vunpack.c.l.b16 %v6842
    %v8185 = vunpack.c.h.b16 %v6842
    %v8186 = vunpack.c.l.b16 %v6843
    %v8187 = vunpack.c.h.b16 %v6843
    %v8188 = vunpack.c.l.b16 %v6844
    %v8189 = vunpack.c.h.b16 %v6844
    %v8190 = vunpack.c.l.b16 %v6845
    %v8191 = vunpack.c.h.b16 %v6845
    %v8192 = vunpack.c.l.b16 %v6846
    %v8193 = vunpack.c.h.b16 %v6846
    %v8194 = vunpack.c.l.b16 %v6847
    %v8195 = vunpack.c.h.b16 %v6847
    %v8196 = vunpack.c.l.b16 %v6848
    %v8197 = vunpack.c.h.b16 %v6848
    %v8198 = vunpack.c.l.b16 %v6849
    %v8199 = vunpack.c.h.b16 %v6849
    %v8200 = vunpack.c.l.b16 %v6850
    %v8201 = vunpack.c.h.b16 %v6850
    %v8202 = vunpack.c.l.b16 %v6851
    %v8203 = vunpack.c.h.b16 %v6851
    %v8204 = vunpack.c.l.b16 %v6852
    %v8205 = vunpack.c.h.b16 %v6852
    %v8206 = vunpack.c.l.b16 %v6853
    %v8207 = vunpack.c.h.b16 %v6853
    %v8208 = vunpack.c.l.b16 %v6854
    %v8209 = vunpack.c.h.b16 %v6854
    %v8210 = vunpack.c.l.b16 %v6855
    %v8211 = vunpack.c.h.b16 %v6855
    %v8212 = vunpack.c.l.b16 %v6856
    %v8213 = vunpack.c.h.b16 %v6856
    %v8214 = vunpack.c.l.b16 %v6857
    %v8215 = vunpack.c.h.b16 %v6857
    %v8216 = vunpack.c.l.b16 %v6858
    %v8217 = vunpack.c.h.b16 %v6858
    %v8218 = vunpack.c.l.b16 %v6859
    %v8219 = vunpack.c.h.b16 %v6859
    %v8220 = vunpack.c.l.b16 %v6860
    %v8221 = vunpack.c.h.b16 %v6860
    %v8222 = vunpack.c.l.b16 %v6861
    %v8223 = vunpack.c.h.b16 %v6861
    %v8224 = vunpack.c.l.b16 %v6862
    %v8225 = vunpack.c.h.b16 %v6862
    %v8226 = vunpack.c.l.b16 %v6863
    %v8227 = vunpack.c.h.b16 %v6863
    %v8228 = vunpack.c.l.b16 %v6864
    %v8229 = vunpack.c.h.b16 %v6864
    %v8230 = vunpack.c.l.b16 %v6865
    %v8231 = vunpack.c.h.b16 %v6865
    %v8232 = vunpack.c.l.b16 %v6866
    %v8233 = vunpack.c.h.b16 %v6866
    %v8234 = vunpack.c.l.b16 %v6867
    %v8235 = vunpack.c.h.b16 %v6867
    %v8236 = vunpack.c.l.b16 %v6868
    %v8237 = vunpack.c.h.b16 %v6868
    %v8238 = vunpack.c.l.b16 %v6869
    %v8239 = vunpack.c.h.b16 %v6869
    %v8240 = vunpack.c.l.b16 %v6870
    %v8241 = vunpack.c.h.b16 %v6870
    %v8242 = vunpack.c.l.b16 %v6871
    %v8243 = vunpack.c.h.b16 %v6871
    %v8244 = vunpack.c.l.b16 %v6872
    %v8245 = vunpack.c.h.b16 %v6872
    %v8246 = vunpack.c.l.b16 %v6873
    %v8247 = vunpack.c.h.b16 %v6873
    %v8248 = vunpack.c.l.b16 %v6874
    %v8249 = vunpack.c.h.b16 %v6874
    %v8250 = vunpack.c.l.b16 %v6875
    %v8251 = vunpack.c.h.b16 %v6875
    %v8252 = vunpack.c.l.b16 %v6876
    %v8253 = vunpack.c.h.b16 %v6876
    %v8254 = vunpack.c.l.b16 %v6877
    %v8255 = vunpack.c.h.b16 %v6877
    %v8256 = vunpack.c.l.b16 %v6878
    %v8257 = vunpack.c.h.b16 %v6878
    %v8258 = vunpack.c.l.b16 %v6879
    %v8259 = vunpack.c.h.b16 %v6879
    %v8260 = vunpack.c.l.b16 %v6880
    %v8261 = vunpack.c.h.b16 %v6880
    %v8262 = vunpack.c.l.b16 %v6881
    %v8263 = vunpack.c.h.b16 %v6881
    %v8264 = vunpack.c.l.b16 %v6882
    %v8265 = vunpack.c.h.b16 %v6882
    %v8266 = vunpack.c.l.b16 %v6883
    %v8267 = vunpack.c.h.b16 %v6883
    %v8268 = vunpack.c.l.b16 %v6884
    %v8269 = vunpack.c.h.b16 %v6884
    %v8270 = vunpack.c.l.b16 %v6885
    %v8271 = vunpack.c.h.b16 %v6885
    %v8272 = vunpack.c.l.b16 %v6886
    %v8273 = vunpack.c.h.b16 %v6886
    %v8274 = vunpack.c.l.b16 %v6887
    %v8275 = vunpack.c.h.b16 %v6887
    %v8276 = vunpack.c.l.b16 %v6888
    %v8277 = vunpack.c.h.b16 %v6888
    %v8278 = vunpack.c.l.b16 %v6889
    %v8279 = vunpack.c.h.b16 %v6889
    %v8280 = vunpack.c.l.b16 %v6890
    %v8281 = vunpack.c.h.b16 %v6890
    %v8282 = vunpack.c.l.b16 %v6891
    %v8283 = vunpack.c.h.b16 %v6891
    %v8284 = vunpack.c.l.b16 %v6892
    %v8285 = vunpack.c.h.b16 %v6892
    %v8286 = vunpack.c.l.b16 %v6893
    %v8287 = vunpack.c.h.b16 %v6893
    %v8288 = vunpack.c.l.b16 %v6894
    %v8289 = vunpack.c.h.b16 %v6894
    %v8290 = vunpack.c.l.b16 %v6895
    %v8291 = vunpack.c.h.b16 %v6895
    %v8292 = vunpack.c.l.b16 %v6896
    %v8293 = vunpack.c.h.b16 %v6896
    %v8294 = vunpack.c.l.b16 %v6897
    %v8295 = vunpack.c.h.b16 %v6897
    %v8296 = vunpack.c.l.b16 %v6898
    %v8297 = vunpack.c.h.b16 %v6898
    %v8298 = vunpack.c.l.b16 %v6899
    %v8299 = vunpack.c.h.b16 %v6899
    %v8300 = vunpack.c.l.b16 %v6900
    %v8301 = vunpack.c.h.b16 %v6900
    %v8302 = vunpack.c.l.b16 %v6901
    %v8303 = vunpack.c.h.b16 %v6901
    %v8304 = vunpack.c.l.b16 %v6902
    %v8305 = vunpack.c.h.b16 %v6902
    %v8306 = vunpack.c.l.b16 %v6903
    %v8307 = vunpack.c.h.b16 %v6903
    %v8308 = vunpack.c.l.b16 %v6904
    %v8309 = vunpack.c.h.b16 %v6904
    %v8310 = vunpack.c.l.b16 %v6905
    %v8311 = vunpack.c.h.b16 %v6905
    %v8312 = vunpack.c.l.b16 %v6906
    %v8313 = vunpack.c.h.b16 %v6906
    %v8314 = vunpack.c.l.b16 %v6907
    %v8315 = vunpack.c.h.b16 %v6907
    %v8316 = vunpack.c.l.b16 %v6908
    %v8317 = vunpack.c.h.b16 %v6908
    %v8318 = vunpack.c.l.b16 %v6909
    %v8319 = vunpack.c.h.b16 %v6909
    %v8320 = vunpack.c.l.b16 %v6910
    %v8321 = vunpack.c.h.b16 %v6910
    %v8322 = vunpack.c.l.b16 %v6911
    %v8323 = vunpack.c.h.b16 %v6911
    %v8324 = vunpack.c.l.b16 %v6912
    %v8325 = vunpack.c.h.b16 %v6912
    %v8326 = vunpack.c.l.b16 %v6913
    %v8327 = vunpack.c.h.b16 %v6913
    %v8328 = vunpack.c.l.b16 %v6914
    %v8329 = vunpack.c.h.b16 %v6914
    %v8330 = vunpack.c.l.b16 %v6915
    %v8331 = vunpack.c.h.b16 %v6915
    %v8332 = vunpack.c.l.b16 %v6916
    %v8333 = vunpack.c.h.b16 %v6916
    %v8334 = vunpack.c.l.b16 %v6917
    %v8335 = vunpack.c.h.b16 %v6917
    %v8336 = vunpack.c.l.b16 %v6918
    %v8337 = vunpack.c.h.b16 %v6918
    %v8338 = vunpack.c.l.b16 %v6919
    %v8339 = vunpack.c.h.b16 %v6919
    %v8340 = vunpack.c.l.b16 %v6920
    %v8341 = vunpack.c.h.b16 %v6920
    %v8342 = vunpack.c.l.b16 %v6921
    %v8343 = vunpack.c.h.b16 %v6921
    %v8344 = vunpack.c.l.b16 %v6922
    %v8345 = vunpack.c.h.b16 %v6922
    %v8346 = vunpack.c.l.b16 %v6923
    %v8347 = vunpack.c.h.b16 %v6923
    %v8348 = vunpack.c.l.b16 %v6924
    %v8349 = vunpack.c.h.b16 %v6924
    %v8350 = vunpack.c.l.b16 %v6925
    %v8351 = vunpack.c.h.b16 %v6925
    %v8352 = vunpack.c.l.b16 %v6926
    %v8353 = vunpack.c.h.b16 %v6926
    %v8354 = vunpack.c.l.b16 %v6927
    %v8355 = vunpack.c.h.b16 %v6927
    %v8356 = vunpack.c.l.b16 %v6928
    %v8357 = vunpack.c.h.b16 %v6928
    %v8358 = vunpack.c.l.b16 %v6929
    %v8359 = vunpack.c.h.b16 %v6929
    %v8360 = vunpack.c.l.b16 %v6930
    %v8361 = vunpack.c.h.b16 %v6930
    %v8362 = vunpack.c.l.b16 %v6931
    %v8363 = vunpack.c.h.b16 %v6931
    %v8364 = vunpack.c.l.b16 %v6932
    %v8365 = vunpack.c.h.b16 %v6932
    %v8366 = vunpack.c.l.b16 %v6933
    %v8367 = vunpack.c.h.b16 %v6933
    %v8368 = vunpack.c.l.b16 %v6934
    %v8369 = vunpack.c.h.b16 %v6934
    %v8370 = vunpack.c.l.b16 %v6935
    %v8371 = vunpack.c.h.b16 %v6935
    %v8372 = vunpack.c.l.b16 %v6936
    %v8373 = vunpack.c.h.b16 %v6936
    %v8374 = vunpack.c.l.b16 %v6937
    %v8375 = vunpack.c.h.b16 %v6937
    %v8376 = vunpack.c.l.b16 %v6938
    %v8377 = vunpack.c.h.b16 %v6938
    %v8378 = vunpack.c.l.b16 %v6939
    %v8379 = vunpack.c.h.b16 %v6939
    %v8380 = vunpack.c.l.b16 %v6940
    %v8381 = vunpack.c.h.b16 %v6940
    %v8382 = vunpack.c.l.b16 %v6941
    %v8383 = vunpack.c.h.b16 %v6941
    %v8384 = vunpack.c.l.b16 %v6942
    %v8385 = vunpack.c.h.b16 %v6942
    %v8386 = vunpack.c.l.b16 %v6943
    %v8387 = vunpack.c.h.b16 %v6943
    %v8388 = vunpack.c.l.b16 %v6944
    %v8389 = vunpack.c.h.b16 %v6944
    %v8390 = vunpack.c.l.b16 %v6945
    %v8391 = vunpack.c.h.b16 %v6945
    %v8392 = vunpack.c.l.b16 %v6946
    %v8393 = vunpack.c.h.b16 %v6946
    %v8394 = vunpack.c.l.b16 %v6947
    %v8395 = vunpack.c.h.b16 %v6947
    %v8396 = vunpack.c.l.b16 %v6948
    %v8397 = vunpack.c.h.b16 %v6948
    %v8398 = vunpack.c.l.b16 %v6949
    %v8399 = vunpack.c.h.b16 %v6949
    %v8400 = vunpack.c.l.b16 %v6950
    %v8401 = vunpack.c.h.b16 %v6950
    %v8402 = vunpack.c.l.b16 %v6951
    %v8403 = vunpack.c.h.b16 %v6951
    %v8404 = vunpack.c.l.b16 %v6952
    %v8405 = vunpack.c.h.b16 %v6952
    %v8406 = vunpack.c.l.b16 %v6953
    %v8407 = vunpack.c.h.b16 %v6953
    %v8408 = vunpack.c.l.b16 %v6954
    %v8409 = vunpack.c.h.b16 %v6954
    %v8410 = vunpack.c.l.b16 %v6955
    %v8411 = vunpack.c.h.b16 %v6955
    %v8412 = vunpack.c.l.b16 %v6956
    %v8413 = vunpack.c.h.b16 %v6956
    %v8414 = vunpack.c.l.b16 %v6957
    %v8415 = vunpack.c.h.b16 %v6957
    %v8416 = vunpack.c.l.b16 %v6958
    %v8417 = vunpack.c.h.b16 %v6958
    %v8418 = vunpack.c.l.b16 %v6959
    %v8419 = vunpack.c.h.b16 %v6959
    %v8420 = vunpack.c.l.b16 %v6960
    %v8421 = vunpack.c.h.b16 %v6960
    %v8422 = vunpack.c.l.b16 %v6961
    %v8423 = vunpack.c.h.b16 %v6961
    %v8424 = vunpack.c.l.b16 %v6962
    %v8425 = vunpack.c.h.b16 %v6962
    %v8426 = vunpack.c.l.b16 %v6963
    %v8427 = vunpack.c.h.b16 %v6963
    %v8428 = vunpack.c.l.b16 %v6964
    %v8429 = vunpack.c.h.b16 %v6964
    %v8430 = vunpack.c.l.b16 %v6965
    %v8431 = vunpack.c.h.b16 %v6965
    %v8432 = vunpack.c.l.b16 %v6966
    %v8433 = vunpack.c.h.b16 %v6966
    %v8434 = vunpack.c.l.b16 %v6967
    %v8435 = vunpack.c.h.b16 %v6967
    %v8436 = vunpack.c.l.b16 %v6968
    %v8437 = vunpack.c.h.b16 %v6968
    %v8438 = vunpack.c.l.b16 %v6969
    %v8439 = vunpack.c.h.b16 %v6969
    %v8440 = vunpack.c.l.b16 %v6970
    %v8441 = vunpack.c.h.b16 %v6970
    %v8442 = vunpack.c.l.b16 %v6971
    %v8443 = vunpack.c.h.b16 %v6971
    %v8444 = vunpack.c.l.b16 %v6972
    %v8445 = vunpack.c.h.b16 %v6972
    %v8446 = vunpack.c.l.b16 %v6973
    %v8447 = vunpack.c.h.b16 %v6973
    %v8448 = vunpack.c.l.b16 %v6974
    %v8449 = vunpack.c.h.b16 %v6974
    %v8450 = vunpack.c.l.b16 %v6975
    %v8451 = vunpack.c.h.b16 %v6975
    %v8452 = vunpack.c.l.b16 %v6976
    %v8453 = vunpack.c.h.b16 %v6976
    %v8454 = vunpack.c.l.b16 %v6977
    %v8455 = vunpack.c.h.b16 %v6977
    %v8456 = vunpack.c.l.b16 %v6978
    %v8457 = vunpack.c.h.b16 %v6978
    %v8458 = vunpack.c.l.b16 %v6979
    %v8459 = vunpack.c.h.b16 %v6979
    %v8460 = vunpack.c.l.b16 %v6980
    %v8461 = vunpack.c.h.b16 %v6980
    %v8462 = vunpack.c.l.b16 %v6981
    %v8463 = vunpack.c.h.b16 %v6981
    %v8464 = vunpack.c.l.b16 %v6982
    %v8465 = vunpack.c.h.b16 %v6982
    %v8466 = vunpack.c.l.b16 %v6983
    %v8467 = vunpack.c.h.b16 %v6983
    %v8468 = vunpack.c.l.b16 %v6984
    %v8469 = vunpack.c.h.b16 %v6984
    %v8470 = vunpack.c.l.b16 %v6985
    %v8471 = vunpack.c.h.b16 %v6985
    %v8472 = vunpack.c.l.b16 %v6986
    %v8473 = vunpack.c.h.b16 %v6986
    %v8474 = vunpack.c.l.b16 %v6987
    %v8475 = vunpack.c.h.b16 %v6987
    %v8476 = vunpack.c.l.b16 %v6988
    %v8477 = vunpack.c.h.b16 %v6988
    %v8478 = vunpack.c.l.b16 %v6989
    %v8479 = vunpack.c.h.b16 %v6989
    %v8480 = vunpack.c.l.b16 %v6990
    %v8481 = vunpack.c.h.b16 %v6990
    %v8482 = vunpack.c.l.b16 %v6991
    %v8483 = vunpack.c.h.b16 %v6991
    %v8484 = vunpack.c.l.b16 %v6992
    %v8485 = vunpack.c.h.b16 %v6992
    %v8486 = vunpack.c.l.b16 %v6993
    %v8487 = vunpack.c.h.b16 %v6993
    %v8488 = vunpack.c.l.b16 %v6994
    %v8489 = vunpack.c.h.b16 %v6994
    %v8490 = vunpack.c.l.b16 %v6995
    %v8491 = vunpack.c.h.b16 %v6995
    %v8492 = vunpack.c.l.b16 %v6996
    %v8493 = vunpack.c.h.b16 %v6996
    %v8494 = vunpack.c.l.b16 %v6997
    %v8495 = vunpack.c.h.b16 %v6997
    %v8496 = vunpack.c.l.b16 %v6998
    %v8497 = vunpack.c.h.b16 %v6998
    %v8498 = vunpack.c.l.b16 %v6999
    %v8499 = vunpack.c.h.b16 %v6999
    %v8500 = vunpack.c.l.b16 %v7000
    %v8501 = vunpack.c.h.b16 %v7000
    %v8502 = vunpack.c.l.b16 %v7001
    %v8503 = vunpack.c.h.b16 %v7001
    %v8504 = vunpack.c.l.b16 %v7002
    %v8505 = vunpack.c.h.b16 %v7002
    %v8506 = vunpack.c.l.b16 %v7003
    %v8507 = vunpack.c.h.b16 %v7003
    %v8508 = vunpack.c.l.b16 %v7004
    %v8509 = vunpack.c.h.b16 %v7004
    %v8510 = vunpack.c.l.b16 %v7005
    %v8511 = vunpack.c.h.b16 %v7005
    %v8512 = vunpack.c.l.b16 %v7006
    %v8513 = vunpack.c.h.b16 %v7006
    %v8514 = vunpack.c.l.b16 %v7007
    %v8515 = vunpack.c.h.b16 %v7007
    %v8516 = vunpack.c.l.b16 %v7008
    %v8517 = vunpack.c.h.b16 %v7008
    %v8518 = vunpack.c.l.b16 %v7009
    %v8519 = vunpack.c.h.b16 %v7009
    %v8520 = vunpack.c.l.b16 %v7010
    %v8521 = vunpack.c.h.b16 %v7010
    %v8522 = vunpack.c.l.b16 %v7011
    %v8523 = vunpack.c.h.b16 %v7011
    %v8524 = vunpack.c.l.b16 %v7012
    %v8525 = vunpack.c.h.b16 %v7012
    %v8526 = vunpack.c.l.b16 %v7013
    %v8527 = vunpack.c.h.b16 %v7013
    %v8528 = vunpack.c.l.b16 %v7014
    %v8529 = vunpack.c.h.b16 %v7014
    %v8530 = vunpack.c.l.b16 %v7015
    %v8531 = vunpack.c.h.b16 %v7015
    %v8532 = vunpack.c.l.b16 %v7016
    %v8533 = vunpack.c.h.b16 %v7016
    %v8534 = vunpack.c.l.b16 %v7017
    %v8535 = vunpack.c.h.b16 %v7017
    %v8536 = vunpack.c.l.b16 %v7018
    %v8537 = vunpack.c.h.b16 %v7018
    %v8538 = vunpack.c.l.b16 %v7019
    %v8539 = vunpack.c.h.b16 %v7019
    %v8540 = vunpack.c.l.b16 %v7020
    %v8541 = vunpack.c.h.b16 %v7020
    %v8542 = vunpack.c.l.b16 %v7021
    %v8543 = vunpack.c.h.b16 %v7021
    %v8544 = vunpack.c.l.b16 %v7022
    %v8545 = vunpack.c.h.b16 %v7022
    %v8546 = vunpack.c.l.b16 %v7023
    %v8547 = vunpack.c.h.b16 %v7023
    %v8548 = vunpack.c.l.b16 %v7024
    %v8549 = vunpack.c.h.b16 %v7024
    %v8550 = vunpack.c.l.b16 %v7025
    %v8551 = vunpack.c.h.b16 %v7025
    %v8552 = vunpack.c.l.b16 %v7026
    %v8553 = vunpack.c.h.b16 %v7026
    %v8554 = vunpack.c.l.b16 %v7027
    %v8555 = vunpack.c.h.b16 %v7027
    %v8556 = vunpack.c.l.b16 %v7028
    %v8557 = vunpack.c.h.b16 %v7028
    %v8558 = vunpack.c.l.b16 %v7029
    %v8559 = vunpack.c.h.b16 %v7029
    %v8560 = vunpack.c.l.b16 %v7030
    %v8561 = vunpack.c.h.b16 %v7030
    %v8562 = vunpack.c.l.b16 %v7031
    %v8563 = vunpack.c.h.b16 %v7031
    %v8564 = vunpack.c.l.b16 %v7032
    %v8565 = vunpack.c.h.b16 %v7032
    %v8566 = vunpack.c.l.b16 %v7033
    %v8567 = vunpack.c.h.b16 %v7033
    %v8568 = vunpack.c.l.b16 %v7034
    %v8569 = vunpack.c.h.b16 %v7034
    %v8570 = vunpack.c.l.b16 %v7035
    %v8571 = vunpack.c.h.b16 %v7035
    %v8572 = vunpack.c.l.b16 %v7036
    %v8573 = vunpack.c.h.b16 %v7036
    %v8574 = vunpack.c.l.b16 %v7037
    %v8575 = vunpack.c.h.b16 %v7037
    %v8576 = vunpack.c.l.b16 %v7038
    %v8577 = vunpack.c.h.b16 %v7038
    %v8578 = vunpack.c.l.b16 %v7039
    %v8579 = vunpack.c.h.b16 %v7039
    %v8580 = vunpack.c.l.b16 %v7040
    %v8581 = vunpack.c.h.b16 %v7040
    %v8582 = vunpack.c.l.b16 %v7041
    %v8583 = vunpack.c.h.b16 %v7041
    %v8584 = vunpack.c.l.b16 %v7042
    %v8585 = vunpack.c.h.b16 %v7042
    %v8586 = vunpack.c.l.b16 %v7043
    %v8587 = vunpack.c.h.b16 %v7043
    %v8588 = vunpack.c.l.b16 %v7044
    %v8589 = vunpack.c.h.b16 %v7044
    %v8590 = vunpack.c.l.b16 %v7045
    %v8591 = vunpack.c.h.b16 %v7045
    %v8592 = vunpack.c.l.b16 %v7046
    %v8593 = vunpack.c.h.b16 %v7046
    %v8594 = vunpack.c.l.b16 %v7047
    %v8595 = vunpack.c.h.b16 %v7047
    %v8596 = vunpack.c.l.b16 %v7048
    %v8597 = vunpack.c.h.b16 %v7048
    %v8598 = vunpack.c.l.b16 %v7049
    %v8599 = vunpack.c.h.b16 %v7049
    %v8600 = vunpack.c.l.b16 %v7050
    %v8601 = vunpack.c.h.b16 %v7050
    %v8602 = vunpack.c.l.b16 %v7051
    %v8603 = vunpack.c.h.b16 %v7051
    %v8604 = vunpack.c.l.b16 %v7052
    %v8605 = vunpack.c.h.b16 %v7052
    %v8606 = vunpack.c.l.b16 %v7053
    %v8607 = vunpack.c.h.b16 %v7053
    %v8608 = vunpack.c.l.b16 %v7054
    %v8609 = vunpack.c.h.b16 %v7054
    %v8610 = vunpack.c.l.b16 %v7055
    %v8611 = vunpack.c.h.b16 %v7055
    %v8612 = vunpack.c.l.b16 %v7056
    %v8613 = vunpack.c.h.b16 %v7056
    %v8614 = vunpack.c.l.b16 %v7057
    %v8615 = vunpack.c.h.b16 %v7057
    %v8616 = vunpack.c.l.b16 %v7058
    %v8617 = vunpack.c.h.b16 %v7058
    %v8618 = vunpack.c.l.b16 %v7059
    %v8619 = vunpack.c.h.b16 %v7059
    %v8620 = vunpack.c.l.b16 %v7060
    %v8621 = vunpack.c.h.b16 %v7060
    %v8622 = vunpack.c.l.b16 %v7061
    %v8623 = vunpack.c.h.b16 %v7061
    %v8624 = vunpack.c.l.b16 %v7062
    %v8625 = vunpack.c.h.b16 %v7062
    %v8626 = vunpack.c.l.b16 %v7063
    %v8627 = vunpack.c.h.b16 %v7063
    %v8628 = vunpack.c.l.b16 %v7064
    %v8629 = vunpack.c.h.b16 %v7064
    %v8630 = vunpack.c.l.b16 %v7065
    %v8631 = vunpack.c.h.b16 %v7065
    %v8632 = vunpack.c.l.b16 %v7066
    %v8633 = vunpack.c.h.b16 %v7066
    %v8634 = vunpack.c.l.b16 %v7067
    %v8635 = vunpack.c.h.b16 %v7067
    %v8636 = vunpack.c.l.b16 %v7068
    %v8637 = vunpack.c.h.b16 %v7068
    %v8638 = vunpack.c.l.b16 %v7069
    %v8639 = vunpack.c.h.b16 %v7069
    %v8640 = vunpack.c.l.b16 %v7070
    %v8641 = vunpack.c.h.b16 %v7070
    %v8642 = vunpack.c.l.b16 %v7071
    %v8643 = vunpack.c.h.b16 %v7071
    %v8644 = vunpack.c.l.b16 %v7072
    %v8645 = vunpack.c.h.b16 %v7072
    %v8646 = vunpack.c.l.b16 %v7073
    %v8647 = vunpack.c.h.b16 %v7073
    %v8648 = vunpack.c.l.b16 %v7074
    %v8649 = vunpack.c.h.b16 %v7074
    %v8650 = vunpack.c.l.b16 %v7075
    %v8651 = vunpack.c.h.b16 %v7075
    %v8652 = vunpack.c.l.b16 %v7076
    %v8653 = vunpack.c.h.b16 %v7076
    %v8654 = vunpack.c.l.b16 %v7077
    %v8655 = vunpack.c.h.b16 %v7077
    %v8656 = vunpack.c.l.b16 %v7078
    %v8657 = vunpack.c.h.b16 %v7078
    %v8658 = vunpack.c.l.b16 %v7079
    %v8659 = vunpack.c.h.b16 %v7079
    %v8660 = vunpack.c.l.b16 %v7080
    %v8661 = vunpack.c.h.b16 %v7080
    %v8662 = vunpack.c.l.b16 %v7081
    %v8663 = vunpack.c.h.b16 %v7081
    %v8664 = vunpack.c.l.b16 %v7082
    %v8665 = vunpack.c.h.b16 %v7082
    %v8666 = vunpack.c.l.b16 %v7083
    %v8667 = vunpack.c.h.b16 %v7083
    %v8668 = vunpack.c.l.b16 %v7084
    %v8669 = vunpack.c.h.b16 %v7084
    %v8670 = vunpack.c.l.b16 %v7085
    %v8671 = vunpack.c.h.b16 %v7085
    %v8672 = vunpack.c.l.b16 %v7086
    %v8673 = vunpack.c.h.b16 %v7086
    %v8674 = vunpack.c.l.b16 %v7087
    %v8675 = vunpack.c.h.b16 %v7087
    %v8676 = vunpack.c.l.b16 %v7088
    %v8677 = vunpack.c.h.b16 %v7088
    %v8678 = vunpack.c.l.b16 %v7089
    %v8679 = vunpack.c.h.b16 %v7089
    %v8680 = vunpack.c.l.b16 %v7090
    %v8681 = vunpack.c.h.b16 %v7090
    %v8682 = vunpack.c.l.b16 %v7091
    %v8683 = vunpack.c.h.b16 %v7091
    %v8684 = vunpack.c.l.b16 %v7092
    %v8685 = vunpack.c.h.b16 %v7092
    %v8686 = vunpack.c.l.b16 %v7093
    %v8687 = vunpack.c.h.b16 %v7093
    %v8688 = vunpack.c.l.b16 %v7094
    %v8689 = vunpack.c.h.b16 %v7094
    %v8690 = vunpack.c.l.b16 %v7095
    %v8691 = vunpack.c.h.b16 %v7095
    %v8692 = vunpack.c.l.b16 %v7096
    %v8693 = vunpack.c.h.b16 %v7096
    %v8694 = vunpack.c.l.b16 %v7097
    %v8695 = vunpack.c.h.b16 %v7097
    %v8696 = vunpack.c.l.b16 %v7098
    %v8697 = vunpack.c.h.b16 %v7098
    %v8698 = vunpack.c.l.b16 %v7099
    %v8699 = vunpack.c.h.b16 %v7099
    %v8700 = vunpack.c.l.b16 %v7100
    %v8701 = vunpack.c.h.b16 %v7100
    %v8702 = vunpack.c.l.b16 %v7101
    %v8703 = vunpack.c.h.b16 %v7101
    %v8704 = vunpack.c.l.b16 %v7102
    %v8705 = vunpack.c.h.b16 %v7102
    %v8706 = vunpack.c.l.b16 %v7103
    %v8707 = vunpack.c.h.b16 %v7103
    %v8708 = vunpack.c.l.b16 %v7104
    %v8709 = vunpack.c.h.b16 %v7104
    %v8710 = vunpack.c.l.b16 %v7105
    %v8711 = vunpack.c.h.b16 %v7105
    %v8712 = vunpack.c.l.b16 %v7106
    %v8713 = vunpack.c.h.b16 %v7106
    %v8714 = vunpack.c.l.b16 %v7107
    %v8715 = vunpack.c.h.b16 %v7107
    %v8716 = vunpack.c.l.b16 %v7108
    %v8717 = vunpack.c.h.b16 %v7108
    %v8718 = vunpack.c.l.b16 %v7109
    %v8719 = vunpack.c.h.b16 %v7109
    %v8720 = vunpack.c.l.b16 %v7110
    %v8721 = vunpack.c.h.b16 %v7110
    %v8722 = vunpack.c.l.b16 %v7111
    %v8723 = vunpack.c.h.b16 %v7111
    %v8724 = vunpack.c.l.b16 %v7112
    %v8725 = vunpack.c.h.b16 %v7112
    %v8726 = vunpack.c.l.b16 %v7113
    %v8727 = vunpack.c.h.b16 %v7113
    %v8728 = vunpack.c.l.b16 %v7114
    %v8729 = vunpack.c.h.b16 %v7114
    %v8730 = vunpack.c.l.b16 %v7115
    %v8731 = vunpack.c.h.b16 %v7115
    %v8732 = vunpack.c.l.b16 %v7116
    %v8733 = vunpack.c.h.b16 %v7116
    %v8734 = vunpack.c.l.b16 %v7117
    %v8735 = vunpack.c.h.b16 %v7117
    %v8736 = vunpack.c.l.b16 %v7118
    %v8737 = vunpack.c.h.b16 %v7118
    %v8738 = vunpack.c.l.b16 %v7119
    %v8739 = vunpack.c.h.b16 %v7119
    %v8740 = vunpack.c.l.b16 %v7120
    %v8741 = vunpack.c.h.b16 %v7120
    %v8742 = vunpack.c.l.b16 %v7121
    %v8743 = vunpack.c.h.b16 %v7121
    %v8744 = vunpack.c.l.b16 %v7122
    %v8745 = vunpack.c.h.b16 %v7122
    %v8746 = vunpack.c.l.b16 %v7123
    %v8747 = vunpack.c.h.b16 %v7123
    %v8748 = vunpack.c.l.b16 %v7124
    %v8749 = vunpack.c.h.b16 %v7124
    %v8750 = vunpack.c.l.b16 %v7125
    %v8751 = vunpack.c.h.b16 %v7125
    %v8752 = vunpack.c.l.b16 %v7126
    %v8753 = vunpack.c.h.b16 %v7126
    %v8754 = vunpack.c.l.b16 %v7127
    %v8755 = vunpack.c.h.b16 %v7127
    %v8756 = vunpack.c.l.b16 %v7128
    %v8757 = vunpack.c.h.b16 %v7128
    %v8758 = vunpack.c.l.b16 %v7129
    %v8759 = vunpack.c.h.b16 %v7129
    %v8760 = vunpack.c.l.b16 %v7130
    %v8761 = vunpack.c.h.b16 %v7130
    %v8762 = vunpack.c.l.b16 %v7131
    %v8763 = vunpack.c.h.b16 %v7131
    %v8764 = vunpack.c.l.b16 %v7132
    %v8765 = vunpack.c.h.b16 %v7132
    %v8766 = vunpack.c.l.b16 %v7133
    %v8767 = vunpack.c.h.b16 %v7133
    %v8768 = vunpack.c.l.b16 %v7134
    %v8769 = vunpack.c.h.b16 %v7134
    %v8770 = vunpack.c.l.b16 %v7135
    %v8771 = vunpack.c.h.b16 %v7135
    %v8772 = vunpack.c.l.b16 %v7136
    %v8773 = vunpack.c.h.b16 %v7136
    %v8774 = vunpack.c.l.b16 %v7137
    %v8775 = vunpack.c.h.b16 %v7137
    %v8776 = vunpack.c.l.b16 %v7138
    %v8777 = vunpack.c.h.b16 %v7138
    %v8778 = vunpack.c.l.b16 %v7139
    %v8779 = vunpack.c.h.b16 %v7139
    %v8780 = vunpack.c.l.b16 %v7140
    %v8781 = vunpack.c.h.b16 %v7140
    %v8782 = vunpack.c.l.b16 %v7141
    %v8783 = vunpack.c.h.b16 %v7141
    %v8784 = vunpack.c.l.b16 %v7142
    %v8785 = vunpack.c.h.b16 %v7142
    %v8786 = vunpack.c.l.b16 %v7143
    %v8787 = vunpack.c.h.b16 %v7143
    %v8788 = vunpack.c.l.b16 %v7144
    %v8789 = vunpack.c.h.b16 %v7144
    %v8790 = vunpack.c.l.b16 %v7145
    %v8791 = vunpack.c.h.b16 %v7145
    %v8792 = vunpack.c.l.b16 %v7146
    %v8793 = vunpack.c.h.b16 %v7146
    %v8794 = vunpack.c.l.b16 %v7147
    %v8795 = vunpack.c.h.b16 %v7147
    %v8796 = vunpack.c.l.b16 %v7148
    %v8797 = vunpack.c.h.b16 %v7148
    %v8798 = vunpack.c.l.b16 %v7149
    %v8799 = vunpack.c.h.b16 %v7149
    %v8800 = vunpack.c.l.b16 %v7150
    %v8801 = vunpack.c.h.b16 %v7150
    %v8802 = vunpack.c.l.b16 %v7151
    %v8803 = vunpack.c.h.b16 %v7151
    %v8804 = vunpack.c.l.b16 %v7152
    %v8805 = vunpack.c.h.b16 %v7152
    %v8806 = vunpack.c.l.b16 %v7153
    %v8807 = vunpack.c.h.b16 %v7153
    %v8808 = vunpack.c.l.b16 %v7154
    %v8809 = vunpack.c.h.b16 %v7154
    %v8810 = vunpack.c.l.b16 %v7155
    %v8811 = vunpack.c.h.b16 %v7155
    %v8812 = vunpack.c.l.b16 %v7156
    %v8813 = vunpack.c.h.b16 %v7156
    %v8814 = vunpack.c.l.b16 %v7157
    %v8815 = vunpack.c.h.b16 %v7157
    %v8816 = vunpack.c.l.b16 %v7158
    %v8817 = vunpack.c.h.b16 %v7158
    %v8818 = vunpack.c.l.b16 %v7159
    %v8819 = vunpack.c.h.b16 %v7159
    %v8820 = vunpack.c.l.b16 %v7160
    %v8821 = vunpack.c.h.b16 %v7160
    %v8822 = vunpack.c.l.b16 %v7161
    %v8823 = vunpack.c.h.b16 %v7161
    %v8824 = vunpack.c.l.b16 %v7162
    %v8825 = vunpack.c.h.b16 %v7162
    %v8826 = vunpack.c.l.b16 %v7163
    %v8827 = vunpack.c.h.b16 %v7163
    %v8828 = vunpack.c.l.b16 %v7164
    %v8829 = vunpack.c.h.b16 %v7164
    %v8830 = vunpack.c.l.b16 %v7165
    %v8831 = vunpack.c.h.b16 %v7165
    %v8832 = vunpack.c.l.b16 %v7166
    %v8833 = vunpack.c.h.b16 %v7166
    %v8834 = vunpack.c.l.b16 %v7167
    %v8835 = vunpack.c.h.b16 %v7167
    %v8836 = vunpack.c.l.b16 %v7168
    %v8837 = vunpack.c.h.b16 %v7168
    %v8838 = vunpack.c.l.b16 %v7169
    %v8839 = vunpack.c.h.b16 %v7169
    %v8840 = vunpack.c.l.b16 %v7170
    %v8841 = vunpack.c.h.b16 %v7170
    %v8842 = vunpack.c.l.b16 %v7171
    %v8843 = vunpack.c.h.b16 %v7171
    %v8844 = vunpack.c.l.b16 %v7172
    %v8845 = vunpack.c.h.b16 %v7172
    %v8846 = vunpack.c.l.b16 %v7173
    %v8847 = vunpack.c.h.b16 %v7173
    %v8848 = vunpack.c.l.b16 %v7174
    %v8849 = vunpack.c.h.b16 %v7174
    %v8850 = vunpack.c.l.b16 %v7175
    %v8851 = vunpack.c.h.b16 %v7175
    %v8852 = vunpack.c.l.b16 %v7176
    %v8853 = vunpack.c.h.b16 %v7176
    %v8854 = vunpack.c.l.b16 %v7177
    %v8855 = vunpack.c.h.b16 %v7177
    %v8856 = vunpack.c.l.b16 %v7178
    %v8857 = vunpack.c.h.b16 %v7178
    %v8858 = vunpack.c.l.b16 %v7179
    %v8859 = vunpack.c.h.b16 %v7179
    %v8860 = vunpack.c.l.b16 %v7180
    %v8861 = vunpack.c.h.b16 %v7180
    %v8862 = vunpack.c.l.b16 %v7181
    %v8863 = vunpack.c.h.b16 %v7181
    %v8864 = vunpack.c.l.b16 %v7182
    %v8865 = vunpack.c.h.b16 %v7182
    %v8866 = vunpack.c.l.b16 %v7183
    %v8867 = vunpack.c.h.b16 %v7183
    %v8868 = vunpack.c.l.b16 %v7184
    %v8869 = vunpack.c.h.b16 %v7184
    %v8870 = vunpack.c.l.b16 %v7185
    %v8871 = vunpack.c.h.b16 %v7185
    %v8872 = vunpack.c.l.b16 %v7186
    %v8873 = vunpack.c.h.b16 %v7186
    %v8874 = vunpack.c.l.b16 %v7187
    %v8875 = vunpack.c.h.b16 %v7187
    %v8876 = vunpack.c.l.b16 %v7188
    %v8877 = vunpack.c.h.b16 %v7188
    %v8878 = vunpack.c.l.b16 %v7189
    %v8879 = vunpack.c.h.b16 %v7189
    %v8880 = vunpack.c.l.b16 %v7190
    %v8881 = vunpack.c.h.b16 %v7190
    %v8882 = vunpack.c.l.b16 %v7191
    %v8883 = vunpack.c.h.b16 %v7191
    %v8884 = vunpack.c.l.b16 %v7192
    %v8885 = vunpack.c.h.b16 %v7192
    %v8886 = vunpack.c.l.b16 %v7193
    %v8887 = vunpack.c.h.b16 %v7193
    %v8888 = vunpack.c.l.b16 %v7194
    %v8889 = vunpack.c.h.b16 %v7194
    %v8890 = vunpack.c.l.b16 %v7195
    %v8891 = vunpack.c.h.b16 %v7195
    %v8892 = vunpack.c.l.b16 %v7196
    %v8893 = vunpack.c.h.b16 %v7196
    %v8894 = vunpack.c.l.b16 %v7197
    %v8895 = vunpack.c.h.b16 %v7197
    %v8896 = vunpack.c.l.b16 %v7198
    %v8897 = vunpack.c.h.b16 %v7198
    %v8898 = vunpack.c.l.b16 %v7199
    %v8899 = vunpack.c.h.b16 %v7199
    %v8900 = vunpack.c.l.b16 %v7200
    %v8901 = vunpack.c.h.b16 %v7200
    %v8902 = vunpack.c.l.b16 %v7201
    %v8903 = vunpack.c.h.b16 %v7201
    %v8904 = vunpack.c.l.b16 %v7202
    %v8905 = vunpack.c.h.b16 %v7202
    %v8906 = vunpack.c.l.b16 %v7203
    %v8907 = vunpack.c.h.b16 %v7203
    %v8908 = vunpack.c.l.b16 %v7204
    %v8909 = vunpack.c.h.b16 %v7204
    %v8910 = vunpack.c.l.b16 %v7205
    %v8911 = vunpack.c.h.b16 %v7205
    %v8912 = vunpack.c.l.b16 %v7206
    %v8913 = vunpack.c.h.b16 %v7206
    %v8914 = vunpack.c.l.b16 %v7207
    %v8915 = vunpack.c.h.b16 %v7207
    %v8916 = vunpack.c.l.b16 %v7208
    %v8917 = vunpack.c.h.b16 %v7208
    %v8918 = vunpack.c.l.b16 %v7209
    %v8919 = vunpack.c.h.b16 %v7209
    %v8920 = vunpack.c.l.b16 %v7210
    %v8921 = vunpack.c.h.b16 %v7210
    %v8922 = vunpack.c.l.b16 %v7211
    %v8923 = vunpack.c.h.b16 %v7211
    %v8924 = vunpack.c.l.b16 %v7212
    %v8925 = vunpack.c.h.b16 %v7212
    %v8926 = vunpack.c.l.b16 %v7213
    %v8927 = vunpack.c.h.b16 %v7213
    %v8928 = vunpack.c.l.b16 %v7214
    %v8929 = vunpack.c.h.b16 %v7214
    %v8930 = vunpack.c.l.b16 %v7215
    %v8931 = vunpack.c.h.b16 %v7215
    %v8932 = vunpack.c.l.b16 %v7216
    %v8933 = vunpack.c.h.b16 %v7216
    %v8934 = vunpack.c.l.b16 %v7217
    %v8935 = vunpack.c.h.b16 %v7217
    %v8936 = vunpack.c.l.b16 %v7218
    %v8937 = vunpack.c.h.b16 %v7218
    %v8938 = vunpack.c.l.b16 %v7219
    %v8939 = vunpack.c.h.b16 %v7219
    %v8940 = vunpack.c.l.b16 %v7220
    %v8941 = vunpack.c.h.b16 %v7220
    %v8942 = vunpack.c.l.b16 %v7221
    %v8943 = vunpack.c.h.b16 %v7221
    %v8944 = vunpack.c.l.b16 %v7222
    %v8945 = vunpack.c.h.b16 %v7222
    %v8946 = vunpack.c.l.b16 %v7223
    %v8947 = vunpack.c.h.b16 %v7223
    %v8948 = vunpack.c.l.b16 %v7224
    %v8949 = vunpack.c.h.b16 %v7224
    %v8950 = vunpack.c.l.b16 %v7225
    %v8951 = vunpack.c.h.b16 %v7225
    %v8952 = vunpack.c.l.b16 %v7226
    %v8953 = vunpack.c.h.b16 %v7226
    %v8954 = vunpack.c.l.b16 %v7227
    %v8955 = vunpack.c.h.b16 %v7227
    %v8956 = vunpack.c.l.b16 %v7228
    %v8957 = vunpack.c.h.b16 %v7228
    %v8958 = vunpack.c.l.b16 %v7229
    %v8959 = vunpack.c.h.b16 %v7229
    %v8960 = vunpack.c.l.b16 %v7230
    %v8961 = vunpack.c.h.b16 %v7230
    %v8962 = vunpack.c.l.b16 %v7231
    %v8963 = vunpack.c.h.b16 %v7231
    %v8964 = vunpack.c.l.b16 %v7232
    %v8965 = vunpack.c.h.b16 %v7232
    %v8966 = vunpack.c.l.b16 %v7233
    %v8967 = vunpack.c.h.b16 %v7233
    %v8968 = vunpack.c.l.b16 %v7234
    %v8969 = vunpack.c.h.b16 %v7234
    %v8970 = vunpack.c.l.b16 %v7235
    %v8971 = vunpack.c.h.b16 %v7235
    %v8972 = vunpack.c.l.b16 %v7236
    %v8973 = vunpack.c.h.b16 %v7236
    %v8974 = vunpack.c.l.b16 %v7237
    %v8975 = vunpack.c.h.b16 %v7237
    %v8976 = vunpack.c.l.b16 %v7238
    %v8977 = vunpack.c.h.b16 %v7238
    %v8978 = vunpack.c.l.b16 %v7239
    %v8979 = vunpack.c.h.b16 %v7239
    %v8980 = vunpack.c.l.b16 %v7240
    %v8981 = vunpack.c.h.b16 %v7240
    %v8982 = vunpack.c.l.b16 %v7241
    %v8983 = vunpack.c.h.b16 %v7241
    %v8984 = vunpack.c.l.b16 %v7242
    %v8985 = vunpack.c.h.b16 %v7242
    %v8986 = vunpack.c.l.b16 %v7243
    %v8987 = vunpack.c.h.b16 %v7243
    %v8988 = vunpack.c.l.b16 %v7244
    %v8989 = vunpack.c.h.b16 %v7244
    %v8990 = vunpack.c.l.b16 %v7245
    %v8991 = vunpack.c.h.b16 %v7245
    %v8992 = vunpack.c.l.b16 %v7246
    %v8993 = vunpack.c.h.b16 %v7246
    %v8994 = vunpack.c.l.b16 %v7247
    %v8995 = vunpack.c.h.b16 %v7247
    %v8996 = vunpack.c.l.b16 %v7248
    %v8997 = vunpack.c.h.b16 %v7248
    %v8998 = vunpack.c.l.b16 %v7249
    %v8999 = vunpack.c.h.b16 %v7249
    %v9000 = vunpack.c.l.b16 %v7250
    %v9001 = vunpack.c.h.b16 %v7250
    %v9002 = vunpack.c.l.b16 %v7251
    %v9003 = vunpack.c.h.b16 %v7251
    %v9004 = vunpack.c.l.b16 %v7252
    %v9005 = vunpack.c.h.b16 %v7252
    %v9006 = vunpack.c.l.b16 %v7253
    %v9007 = vunpack.c.h.b16 %v7253
    %v9008 = vunpack.c.l.b16 %v7254
    %v9009 = vunpack.c.h.b16 %v7254
    %v9010 = vunpack.c.l.b16 %v7255
    %v9011 = vunpack.c.h.b16 %v7255
    %v9012 = vunpack.c.l.b16 %v7256
    %v9013 = vunpack.c.h.b16 %v7256
    %v9014 = vunpack.c.l.b16 %v7257
    %v9015 = vunpack.c.h.b16 %v7257
    %v9016 = vunpack.c.l.b16 %v7258
    %v9017 = vunpack.c.h.b16 %v7258
    %v9018 = vunpack.c.l.b16 %v7259
    %v9019 = vunpack.c.h.b16 %v7259
    %v9020 = vunpack.c.l.b16 %v7260
    %v9021 = vunpack.c.h.b16 %v7260
    %v9022 = vunpack.c.l.b16 %v7261
    %v9023 = vunpack.c.h.b16 %v7261
    %v9024 = vunpack.c.l.b16 %v7262
    %v9025 = vunpack.c.h.b16 %v7262
    %v9026 = vunpack.c.l.b16 %v7263
    %v9027 = vunpack.c.h.b16 %v7263
    %v9028 = vunpack.c.l.b16 %v7264
    %v9029 = vunpack.c.h.b16 %v7264
    %v9030 = vunpack.c.l.b16 %v7265
    %v9031 = vunpack.c.h.b16 %v7265
    %v9032 = vunpack.c.l.b16 %v7266
    %v9033 = vunpack.c.h.b16 %v7266
    %v9034 = vunpack.c.l.b16 %v7267
    %v9035 = vunpack.c.h.b16 %v7267
    %v9036 = vunpack.c.l.b16 %v7268
    %v9037 = vunpack.c.h.b16 %v7268
    %v9038 = vunpack.c.l.b16 %v7269
    %v9039 = vunpack.c.h.b16 %v7269
    %v9040 = vunpack.c.l.b16 %v7270
    %v9041 = vunpack.c.h.b16 %v7270
    %v9042 = vunpack.c.l.b16 %v7271
    %v9043 = vunpack.c.h.b16 %v7271
    %v9044 = vunpack.c.l.b16 %v7272
    %v9045 = vunpack.c.h.b16 %v7272
    %v9046 = vunpack.c.l.b16 %v7273
    %v9047 = vunpack.c.h.b16 %v7273
    %v9048 = vunpack.c.l.b16 %v7274
    %v9049 = vunpack.c.h.b16 %v7274
    %v9050 = vunpack.c.l.b16 %v7275
    %v9051 = vunpack.c.h.b16 %v7275
    %v9052 = vunpack.c.l.b16 %v7276
    %v9053 = vunpack.c.h.b16 %v7276
    %v9054 = vunpack.c.l.b16 %v7277
    %v9055 = vunpack.c.h.b16 %v7277
    %v9056 = vunpack.c.l.b16 %v7278
    %v9057 = vunpack.c.h.b16 %v7278
    %v9058 = vunpack.c.l.b16 %v7279
    %v9059 = vunpack.c.h.b16 %v7279
    %v9060 = vunpack.c.l.b16 %v7280
    %v9061 = vunpack.c.h.b16 %v7280
    %v9062 = vunpack.c.l.b16 %v7281
    %v9063 = vunpack.c.h.b16 %v7281
    %v9064 = vunpack.c.l.b16 %v7282
    %v9065 = vunpack.c.h.b16 %v7282
    %v9066 = vunpack.c.l.b16 %v7283
    %v9067 = vunpack.c.h.b16 %v7283
    %v9068 = vunpack.c.l.b16 %v7284
    %v9069 = vunpack.c.h.b16 %v7284
    %v9070 = vunpack.c.l.b16 %v7285
    %v9071 = vunpack.c.h.b16 %v7285
    %v9072 = vunpack.c.l.b16 %v7286
    %v9073 = vunpack.c.h.b16 %v7286
    %v9074 = vunpack.c.l.b16 %v7287
    %v9075 = vunpack.c.h.b16 %v7287
    %v9076 = vunpack.c.l.b16 %v7288
    %v9077 = vunpack.c.h.b16 %v7288
    %v9078 = vunpack.c.l.b16 %v7289
    %v9079 = vunpack.c.h.b16 %v7289
    %v9080 = vunpack.c.l.b16 %v7290
    %v9081 = vunpack.c.h.b16 %v7290
    %v9082 = vunpack.c.l.b16 %v7291
    %v9083 = vunpack.c.h.b16 %v7291
    %v9084 = vunpack.c.l.b16 %v7292
    %v9085 = vunpack.c.h.b16 %v7292
    %v9086 = vunpack.c.l.b16 %v7293
    %v9087 = vunpack.c.h.b16 %v7293
    %v9088 = vunpack.c.l.b16 %v7294
    %v9089 = vunpack.c.h.b16 %v7294
    %v9090 = vunpack.c.l.b16 %v7295
    %v9091 = vunpack.c.h.b16 %v7295
    %v9092 = vunpack.c.l.b16 %v7296
    %v9093 = vunpack.c.h.b16 %v7296
    %v9094 = vunpack.c.l.b16 %v7297
    %v9095 = vunpack.c.h.b16 %v7297
    %v9096 = vunpack.c.l.b16 %v7298
    %v9097 = vunpack.c.h.b16 %v7298
    %v9098 = vunpack.c.l.b16 %v7299
    %v9099 = vunpack.c.h.b16 %v7299
    %v9100 = vunpack.c.l.b16 %v7300
    %v9101 = vunpack.c.h.b16 %v7300
    %v9102 = vunpack.c.l.b16 %v7301
    %v9103 = vunpack.c.h.b16 %v7301
    %v9104 = vunpack.c.l.b16 %v7302
    %v9105 = vunpack.c.h.b16 %v7302
    %v9106 = vunpack.c.l.b16 %v7303
    %v9107 = vunpack.c.h.b16 %v7303
    %v9108 = vunpack.c.l.b16 %v7304
    %v9109 = vunpack.c.h.b16 %v7304
    %v9110 = vunpack.c.l.b16 %v7305
    %v9111 = vunpack.c.h.b16 %v7305
    %v9112 = vunpack.c.l.b16 %v7306
    %v9113 = vunpack.c.h.b16 %v7306
    %v9114 = vunpack.c.l.b16 %v7307
    %v9115 = vunpack.c.h.b16 %v7307
    %v9116 = vunpack.c.l.b16 %v7308
    %v9117 = vunpack.c.h.b16 %v7308
    %v9118 = vunpack.c.l.b16 %v7309
    %v9119 = vunpack.c.h.b16 %v7309
    %v9120 = vunpack.c.l.b16 %v7310
    %v9121 = vunpack.c.h.b16 %v7310
    %v9122 = vunpack.c.l.b16 %v7311
    %v9123 = vunpack.c.h.b16 %v7311
    %v9124 = vunpack.c.l.b16 %v7312
    %v9125 = vunpack.c.h.b16 %v7312
    %v9126 = vunpack.c.l.b16 %v7313
    %v9127 = vunpack.c.h.b16 %v7313
    %v9128 = vunpack.c.l.b16 %v7314
    %v9129 = vunpack.c.h.b16 %v7314
    %v9130 = vunpack.c.l.b16 %v7315
    %v9131 = vunpack.c.h.b16 %v7315
    %v9132 = vunpack.c.l.b16 %v7316
    %v9133 = vunpack.c.h.b16 %v7316
    %v9134 = vunpack.c.l.b16 %v7317
    %v9135 = vunpack.c.h.b16 %v7317
    %v9136 = vunpack.c.l.b16 %v7318
    %v9137 = vunpack.c.h.b16 %v7318
    %v9138 = vunpack.c.l.b16 %v7319
    %v9139 = vunpack.c.h.b16 %v7319
    %v9140 = vunpack.c.l.b16 %v7320
    %v9141 = vunpack.c.h.b16 %v7320
    %v9142 = vunpack.c.l.b16 %v7321
    %v9143 = vunpack.c.h.b16 %v7321
    %v9144 = vunpack.c.l.b16 %v7322
    %v9145 = vunpack.c.h.b16 %v7322
    %v9146 = vunpack.c.l.b16 %v7323
    %v9147 = vunpack.c.h.b16 %v7323
    %v9148 = vunpack.c.l.b16 %v7324
    %v9149 = vunpack.c.h.b16 %v7324
    %v9150 = vunpack.c.l.b16 %v7325
    %v9151 = vunpack.c.h.b16 %v7325
    %v9152 = vunpack.c.l.b16 %v7326
    %v9153 = vunpack.c.h.b16 %v7326
    %v9154 = vunpack.c.l.b16 %v7327
    %v9155 = vunpack.c.h.b16 %v7327
    %v9156 = vunpack.c.l.b16 %v7328
    %v9157 = vunpack.c.h.b16 %v7328
    %v9158 = vunpack.c.l.b16 %v7329
    %v9159 = vunpack.c.h.b16 %v7329
    %v9160 = vunpack.c.l.b16 %v7330
    %v9161 = vunpack.c.h.b16 %v7330
    %v9162 = vunpack.c.l.b16 %v7331
    %v9163 = vunpack.c.h.b16 %v7331
    %v9164 = vunpack.c.l.b16 %v7332
    %v9165 = vunpack.c.h.b16 %v7332
    %v9166 = vunpack.c.l.b16 %v7333
    %v9167 = vunpack.c.h.b16 %v7333
    %v9168 = vunpack.c.l.b16 %v7334
    %v9169 = vunpack.c.h.b16 %v7334
    %v9170 = vunpack.c.l.b16 %v7335
    %v9171 = vunpack.c.h.b16 %v7335
    %v9172 = vunpack.c.l.b16 %v7336
    %v9173 = vunpack.c.h.b16 %v7336
    %v9174 = vunpack.c.l.b16 %v7337
    %v9175 = vunpack.c.h.b16 %v7337
    %v9176 = vunpack.c.l.b16 %v7338
    %v9177 = vunpack.c.h.b16 %v7338
    %v9178 = vunpack.c.l.b16 %v7339
    %v9179 = vunpack.c.h.b16 %v7339
    %v9180 = vunpack.c.l.b16 %v7340
    %v9181 = vunpack.c.h.b16 %v7340
    %v9182 = vunpack.c.l.b16 %v7341
    %v9183 = vunpack.c.h.b16 %v7341
    %v9184 = vunpack.c.l.b16 %v7342
    %v9185 = vunpack.c.h.b16 %v7342
    %v9186 = vunpack.c.l.b16 %v7343
    %v9187 = vunpack.c.h.b16 %v7343
    %v9188 = vunpack.c.l.b16 %v7344
    %v9189 = vunpack.c.h.b16 %v7344
    %v9190 = vunpack.c.l.b16 %v7345
    %v9191 = vunpack.c.h.b16 %v7345
    %v9192 = vunpack.c.l.b16 %v7346
    %v9193 = vunpack.c.h.b16 %v7346
    %v9194 = vunpack.c.l.b16 %v7347
    %v9195 = vunpack.c.h.b16 %v7347
    %v9196 = vunpack.c.l.b16 %v7348
    %v9197 = vunpack.c.h.b16 %v7348
    %v9198 = vunpack.c.l.b16 %v7349
    %v9199 = vunpack.c.h.b16 %v7349
    %v9200 = vunpack.c.l.b16 %v7350
    %v9201 = vunpack.c.h.b16 %v7350
    %v9202 = vunpack.c.l.b16 %v7351
    %v9203 = vunpack.c.h.b16 %v7351
    %v9204 = vunpack.c.l.b16 %v7352
    %v9205 = vunpack.c.h.b16 %v7352
    %v9206 = vunpack.c.l.b16 %v7353
    %v9207 = vunpack.c.h.b16 %v7353
    %v9208 = vpack.c.b16 %v8032, %v8008
    %v9209 = vpack.c.b16 %v8033, %v8009
    %v9210 = vpack.c.b16 %v8034, %v8010
    %v9211 = vpack.c.b16 %v8035, %v8011
    %v9212 = vpack.c.b16 %v8036, %v8012
    %v9213 = vpack.c.b16 %v8037, %v8013
    %v9214 = vpack.c.b16 %v8038, %v8014
    %v9215 = vpack.c.b16 %v8039, %v8015
    %v9216 = vpack.c.b16 %v8040, %v8016
    %v9217 = vpack.c.b16 %v8041, %v8017
    %v9218 = vpack.c.b16 %v8042, %v8018
    %v9219 = vpack.c.b16 %v8043, %v8019
    %v9220 = vpack.c.b16 %v8044, %v8020
    %v9221 = vpack.c.b16 %v8045, %v8021
    %v9222 = vpack.c.b16 %v8046, %v8022
    %v9223 = vpack.c.b16 %v8047, %v8023
    %v9224 = vpack.c.b16 %v8048, %v8024
    %v9225 = vpack.c.b16 %v8049, %v8025
    %v9226 = vpack.c.b16 %v8050, %v8026
    %v9227 = vpack.c.b16 %v8051, %v8027
    %v9228 = vpack.c.b16 %v8052, %v8028
    %v9229 = vpack.c.b16 %v8053, %v8029
    %v9230 = vpack.c.b16 %v8054, %v8030
    %v9231 = vpack.c.b16 %v8055, %v8031
    %v9232 = vpack.c.b16 %v8080, %v8056
    %v9233 = vpack.c.b16 %v8081, %v8057
    %v9234 = vpack.c.b16 %v8082, %v8058
    %v9235 = vpack.c.b16 %v8083, %v8059
    %v9236 = vpack.c.b16 %v8084, %v8060
    %v9237 = vpack.c.b16 %v8085, %v8061
    %v9238 = vpack.c.b16 %v8086, %v8062
    %v9239 = vpack.c.b16 %v8087, %v8063
    %v9240 = vpack.c.b16 %v8088, %v8064
    %v9241 = vpack.c.b16 %v8089, %v8065
    %v9242 = vpack.c.b16 %v8090, %v8066
    %v9243 = vpack.c.b16 %v8091, %v8067
    %v9244 = vpack.c.b16 %v8092, %v8068
    %v9245 = vpack.c.b16 %v8093, %v8069
    %v9246 = vpack.c.b16 %v8094, %v8070
    %v9247 = vpack.c.b16 %v8095, %v8071
    %v9248 = vpack.c.b16 %v8096, %v8072
    %v9249 = vpack.c.b16 %v8097, %v8073
    %v9250 = vpack.c.b16 %v8098, %v8074
    %v9251 = vpack.c.b16 %v8099, %v8075
    %v9252 = vpack.c.b16 %v8100, %v8076
    %v9253 = vpack.c.b16 %v8101, %v8077
    %v9254 = vpack.c.b16 %v8102, %v8078
    %v9255 = vpack.c.b16 %v8103, %v8079
    %v9256 = vpack.c.b16 %v8128, %v8104
    %v9257 = vpack.c.b16 %v8129, %v8105
    %v9258 = vpack.c.b16 %v8130, %v8106
    %v9259 = vpack.c.b16 %v8131, %v8107
    %v9260 = vpack.c.b16 %v8132, %v8108
    %v9261 = vpack.c.b16 %v8133, %v8109
    %v9262 = vpack.c.b16 %v8134, %v8110
    %v9263 = vpack.c.b16 %v8135, %v8111
    %v9264 = vpack.c.b16 %v8136, %v8112
    %v9265 = vpack.c.b16 %v8137, %v8113
    %v9266 = vpack.c.b16 %v8138, %v8114
    %v9267 = vpack.c.b16 %v8139, %v8115
    %v9268 = vpack.c.b16 %v8140, %v8116
    %v9269 = vpack.c.b16 %v8141, %v8117
    %v9270 = vpack.c.b16 %v8142, %v8118
    %v9271 = vpack.c.b16 %v8143, %v8119
    %v9272 = vpack.c.b16 %v8144, %v8120
    %v9273 = vpack.c.b16 %v8145, %v8121
    %v9274 = vpack.c.b16 %v8146, %v8122
    %v9275 = vpack.c.b16 %v8147, %v8123
    %v9276 = vpack.c.b16 %v8148, %v8124
    %v9277 = vpack.c.b16 %v8149, %v8125
    %v9278 = vpack.c.b16 %v8150, %v8126
    %v9279 = vpack.c.b16 %v8151, %v8127
    %v9280 = vpack.c.b16 %v8176, %v8152
    %v9281 = vpack.c.b16 %v8177, %v8153
    %v9282 = vpack.c.b16 %v8178, %v8154
    %v9283 = vpack.c.b16 %v8179, %v8155
    %v9284 = vpack.c.b16 %v8180, %v8156
    %v9285 = vpack.c.b16 %v8181, %v8157
    %v9286 = vpack.c.b16 %v8182, %v8158
    %v9287 = vpack.c.b16 %v8183, %v8159
    %v9288 = vpack.c.b16 %v8184, %v8160
    %v9289 = vpack.c.b16 %v8185, %v8161
    %v9290 = vpack.c.b16 %v8186, %v8162
    %v9291 = vpack.c.b16 %v8187, %v8163
    %v9292 = vpack.c.b16 %v8188, %v8164
    %v9293 = vpack.c.b16 %v8189, %v8165
    %v9294 = vpack.c.b16 %v8190, %v8166
    %v9295 = vpack.c.b16 %v8191, %v8167
    %v9296 = vpack.c.b16 %v8192, %v8168
    %v9297 = vpack.c.b16 %v8193, %v8169
    %v9298 = vpack.c.b16 %v8194, %v8170
    %v9299 = vpack.c.b16 %v8195, %v8171
    %v9300 = vpack.c.b16 %v8196, %v8172
    %v9301 = vpack.c.b16 %v8197, %v8173
    %v9302 = vpack.c.b16 %v8198, %v8174
    %v9303 = vpack.c.b16 %v8199, %v8175
    %v9304 = vpack.c.b16 %v8224, %v8200
    %v9305 = vpack.c.b16 %v8225, %v8201
    %v9306 = vpack.c.b16 %v8226, %v8202
    %v9307 = vpack.c.b16 %v8227, %v8203
    %v9308 = vpack.c.b16 %v8228, %v8204
    %v9309 = vpack.c.b16 %v8229, %v8205
    %v9310 = vpack.c.b16 %v8230, %v8206
    %v9311 = vpack.c.b16 %v8231, %v8207
    %v9312 = vpack.c.b16 %v8232, %v8208
    %v9313 = vpack.c.b16 %v8233, %v8209
    %v9314 = vpack.c.b16 %v8234, %v8210
    %v9315 = vpack.c.b16 %v8235, %v8211
    %v9316 = vpack.c.b16 %v8236, %v8212
    %v9317 = vpack.c.b16 %v8237, %v8213
    %v9318 = vpack.c.b16 %v8238, %v8214
    %v9319 = vpack.c.b16 %v8239, %v8215
    %v9320 = vpack.c.b16 %v8240, %v8216
    %v9321 = vpack.c.b16 %v8241, %v8217
    %v9322 = vpack.c.b16 %v8242, %v8218
    %v9323 = vpack.c.b16 %v8243, %v8219
    %v9324 = vpack.c.b16 %v8244, %v8220
    %v9325 = vpack.c.b16 %v8245, %v8221
    %v9326 = vpack.c.b16 %v8246, %v8222
    %v9327 = vpack.c.b16 %v8247, %v8223
    %v9328 = vpack.c.b16 %v8272, %v8248
    %v9329 = vpack.c.b16 %v8273, %v8249
    %v9330 = vpack.c.b16 %v8274, %v8250
    %v9331 = vpack.c.b16 %v8275, %v8251
    %v9332 = vpack.c.b16 %v8276, %v8252
    %v9333 = vpack.c.b16 %v8277, %v8253
    %v9334 = vpack.c.b16 %v8278, %v8254
    %v9335 = vpack.c.b16 %v8279, %v8255
    %v9336 = vpack.c.b16 %v8280, %v8256
    %v9337 = vpack.c.b16 %v8281, %v8257
    %v9338 = vpack.c.b16 %v8282, %v8258
    %v9339 = vpack.c.b16 %v8283, %v8259
    %v9340 = vpack.c.b16 %v8284, %v8260
    %v9341 = vpack.c.b16 %v8285, %v8261
    %v9342 = vpack.c.b16 %v8286, %v8262
    %v9343 = vpack.c.b16 %v8287, %v8263
    %v9344 = vpack.c.b16 %v8288, %v8264
    %v9345 = vpack.c.b16 %v8289, %v8265
    %v9346 = vpack.c.b16 %v8290, %v8266
    %v9347 = vpack.c.b16 %v8291, %v8267
    %v9348 = vpack.c.b16 %v8292, %v8268
    %v9349 = vpack.c.b16 %v8293, %v8269
    %v9350 = vpack.c.b16 %v8294, %v8270
    %v9351 = vpack.c.b16 %v8295, %v8271
    %v9352 = vpack.c.b16 %v8320, %v8296
    %v9353 = vpack.c.b16 %v8321, %v8297
    %v9354 = vpack.c.b16 %v8322, %v8298
    %v9355 = vpack.c.b16 %v8323, %v8299
    %v9356 = vpack.c.b16 %v8324, %v8300
    %v9357 = vpack.c.b16 %v8325, %v8301
    %v9358 = vpack.c.b16 %v8326, %v8302
    %v9359 = vpack.c.b16 %v8327, %v8303
    %v9360 = vpack.c.b16 %v8328, %v8304
    %v9361 = vpack.c.b16 %v8329, %v8305
    %v9362 = vpack.c.b16 %v8330, %v8306
    %v9363 = vpack.c.b16 %v8331, %v8307
    %v9364 = vpack.c.b16 %v8332, %v8308
    %v9365 = vpack.c.b16 %v8333, %v8309
    %v9366 = vpack.c.b16 %v8334, %v8310
    %v9367 = vpack.c.b16 %v8335, %v8311
    %v9368 = vpack.c.b16 %v8336, %v8312
    %v9369 = vpack.c.b16 %v8337, %v8313
    %v9370 = vpack.c.b16 %v8338, %v8314
    %v9371 = vpack.c.b16 %v8339, %v8315
    %v9372 = vpack.c.b16 %v8340, %v8316
    %v9373 = vpack.c.b16 %v8341, %v8317
    %v9374 = vpack.c.b16 %v8342, %v8318
    %v9375 = vpack.c.b16 %v8343, %v8319
    %v9376 = vpack.c.b16 %v8368, %v8344
    %v9377 = vpack.c.b16 %v8369, %v8345
    %v9378 = vpack.c.b16 %v8370, %v8346
    %v9379 = vpack.c.b16 %v8371, %v8347
    %v9380 = vpack.c.b16 %v8372, %v8348
    %v9381 = vpack.c.b16 %v8373, %v8349
    %v9382 = vpack.c.b16 %v8374, %v8350
    %v9383 = vpack.c.b16 %v8375, %v8351
    %v9384 = vpack.c.b16 %v8376, %v8352
    %v9385 = vpack.c.b16 %v8377, %v8353
    %v9386 = vpack.c.b16 %v8378, %v8354
    %v9387 = vpack.c.b16 %v8379, %v8355
    %v9388 = vpack.c.b16 %v8380, %v8356
    %v9389 = vpack.c.b16 %v8381, %v8357
    %v9390 = vpack.c.b16 %v8382, %v8358
    %v9391 = vpack.c.b16 %v8383, %v8359
    %v9392 = vpack.c.b16 %v8384, %v8360
    %v9393 = vpack.c.b16 %v8385, %v8361
    %v9394 = vpack.c.b16 %v8386, %v8362
    %v9395 = vpack.c.b16 %v8387, %v8363
    %v9396 = vpack.c.b16 %v8388, %v8364
    %v9397 = vpack.c.b16 %v8389, %v8365
    %v9398 = vpack.c.b16 %v8390, %v8366
    %v9399 = vpack.c.b16 %v8391, %v8367
    %v9400 = vpack.c.b16 %v8416, %v8392
    %v9401 = vpack.c.b16 %v8417, %v8393
    %v9402 = vpack.c.b16 %v8418, %v8394
    %v9403 = vpack.c.b16 %v8419, %v8395
    %v9404 = vpack.c.b16 %v8420, %v8396
    %v9405 = vpack.c.b16 %v8421, %v8397
    %v9406 = vpack.c.b16 %v8422, %v8398
    %v9407 = vpack.c.b16 %v8423, %v8399
    %v9408 = vpack.c.b16 %v8424, %v8400
    %v9409 = vpack.c.b16 %v8425, %v8401
    %v9410 = vpack.c.b16 %v8426, %v8402
    %v9411 = vpack.c.b16 %v8427, %v8403
    %v9412 = vpack.c.b16 %v8428, %v8404
    %v9413 = vpack.c.b16 %v8429, %v8405
    %v9414 = vpack.c.b16 %v8430, %v8406
    %v9415 = vpack.c.b16 %v8431, %v8407
    %v9416 = vpack.c.b16 %v8432, %v8408
    %v9417 = vpack.c.b16 %v8433, %v8409
    %v9418 = vpack.c.b16 %v8434, %v8410
    %v9419 = vpack.c.b16 %v8435, %v8411
    %v9420 = vpack.c.b16 %v8436, %v8412
    %v9421 = vpack.c.b16 %v8437, %v8413
    %v9422 = vpack.c.b16 %v8438, %v8414
    %v9423 = vpack.c.b16 %v8439, %v8415
    %v9424 = vpack.c.b16 %v8464, %v8440
    %v9425 = vpack.c.b16 %v8465, %v8441
    %v9426 = vpack.c.b16 %v8466, %v8442
    %v9427 = vpack.c.b16 %v8467, %v8443
    %v9428 = vpack.c.b16 %v8468, %v8444
    %v9429 = vpack.c.b16 %v8469, %v8445
    %v9430 = vpack.c.b16 %v8470, %v8446
    %v9431 = vpack.c.b16 %v8471, %v8447
    %v9432 = vpack.c.b16 %v8472, %v8448
    %v9433 = vpack.c.b16 %v8473, %v8449
    %v9434 = vpack.c.b16 %v8474, %v8450
    %v9435 = vpack.c.b16 %v8475, %v8451
    %v9436 = vpack.c.b16 %v8476, %v8452
    %v9437 = vpack.c.b16 %v8477, %v8453
    %v9438 = vpack.c.b16 %v8478, %v8454
    %v9439 = vpack.c.b16 %v8479, %v8455
    %v9440 = vpack.c.b16 %v8480, %v8456
    %v9441 = vpack.c.b16 %v8481, %v8457
    %v9442 = vpack.c.b16 %v8482, %v8458
    %v9443 = vpack.c.b16 %v8483, %v8459
    %v9444 = vpack.c.b16 %v8484, %v8460
    %v9445 = vpack.c.b16 %v8485, %v8461
    %v9446 = vpack.c.b16 %v8486, %v8462
    %v9447 = vpack.c.b16 %v8487, %v8463
    %v9448 = vpack.c.b16 %v8512, %v8488
    %v9449 = vpack.c.b16 %v8513, %v8489
    %v9450 = vpack.c.b16 %v8514, %v8490
    %v9451 = vpack.c.b16 %v8515, %v8491
    %v9452 = vpack.c.b16 %v8516, %v8492
    %v9453 = vpack.c.b16 %v8517, %v8493
    %v9454 = vpack.c.b16 %v8518, %v8494
    %v9455 = vpack.c.b16 %v8519, %v8495
    %v9456 = vpack.c.b16 %v8520, %v8496
    %v9457 = vpack.c.b16 %v8521, %v8497
    %v9458 = vpack.c.b16 %v8522, %v8498
    %v9459 = vpack.c.b16 %v8523, %v8499
    %v9460 = vpack.c.b16 %v8524, %v8500
    %v9461 = vpack.c.b16 %v8525, %v8501
    %v9462 = vpack.c.b16 %v8526, %v8502
    %v9463 = vpack.c.b16 %v8527, %v8503
    %v9464 = vpack.c.b16 %v8528, %v8504
    %v9465 = vpack.c.b16 %v8529, %v8505
    %v9466 = vpack.c.b16 %v8530, %v8506
    %v9467 = vpack.c.b16 %v8531, %v8507
    %v9468 = vpack.c.b16 %v8532, %v8508
    %v9469 = vpack.c.b16 %v8533, %v8509
    %v9470 = vpack.c.b16 %v8534, %v8510
    %v9471 = vpack.c.b16 %v8535, %v8511
    %v9472 = vpack.c.b16 %v8560, %v8536
    %v9473 = vpack.c.b16 %v8561, %v8537
    %v9474 = vpack.c.b16 %v8562, %v8538
    %v9475 = vpack.c.b16 %v8563, %v8539
    %v9476 = vpack.c.b16 %v8564, %v8540
    %v9477 = vpack.c.b16 %v8565, %v8541
    %v9478 = vpack.c.b16 %v8566, %v8542
    %v9479 = vpack.c.b16 %v8567, %v8543
    %v9480 = vpack.c.b16 %v8568, %v8544
    %v9481 = vpack.c.b16 %v8569, %v8545
    %v9482 = vpack.c.b16 %v8570, %v8546
    %v9483 = vpack.c.b16 %v8571, %v8547
    %v9484 = vpack.c.b16 %v8572, %v8548
    %v9485 = vpack.c.b16 %v8573, %v8549
    %v9486 = vpack.c.b16 %v8574, %v8550
    %v9487 = vpack.c.b16 %v8575, %v8551
    %v9488 = vpack.c.b16 %v8576, %v8552
    %v9489 = vpack.c.b16 %v8577, %v8553
    %v9490 = vpack.c.b16 %v8578, %v8554
    %v9491 = vpack.c.b16 %v8579, %v8555
    %v9492 = vpack.c.b16 %v8580, %v8556
    %v9493 = vpack.c.b16 %v8581, %v8557
    %v9494 = vpack.c.b16 %v8582, %v8558
    %v9495 = vpack.c.b16 %v8583, %v8559
    %v9496 = vpack.c.b16 %v8608, %v8584
    %v9497 = vpack.c.b16 %v8609, %v8585
    %v9498 = vpack.c.b16 %v8610, %v8586
    %v9499 = vpack.c.b16 %v8611, %v8587
    %v9500 = vpack.c.b16 %v8612, %v8588
    %v9501 = vpack.c.b16 %v8613, %v8589
    %v9502 = vpack.c.b16 %v8614, %v8590
    %v9503 = vpack.c.b16 %v8615, %v8591
    %v9504 = vpack.c.b16 %v8616, %v8592
    %v9505 = vpack.c.b16 %v8617, %v8593
    %v9506 = vpack.c.b16 %v8618, %v8594
    %v9507 = vpack.c.b16 %v8619, %v8595
    %v9508 = vpack.c.b16 %v8620, %v8596
    %v9509 = vpack.c.b16 %v8621, %v8597
    %v9510 = vpack.c.b16 %v8622, %v8598
    %v9511 = vpack.c.b16 %v8623, %v8599
    %v9512 = vpack.c.b16 %v8624, %v8600
    %v9513 = vpack.c.b16 %v8625, %v8601
    %v9514 = vpack.c.b16 %v8626, %v8602
    %v9515 = vpack.c.b16 %v8627, %v8603
    %v9516 = vpack.c.b16 %v8628, %v8604
    %v9517 = vpack.c.b16 %v8629, %v8605
    %v9518 = vpack.c.b16 %v8630, %v8606
    %v9519 = vpack.c.b16 %v8631, %v8607
    %v9520 = vpack.c.b16 %v8656, %v8632
    %v9521 = vpack.c.b16 %v8657, %v8633
    %v9522 = vpack.c.b16 %v8658, %v8634
    %v9523 = vpack.c.b16 %v8659, %v8635
    %v9524 = vpack.c.b16 %v8660, %v8636
    %v9525 = vpack.c.b16 %v8661, %v8637
    %v9526 = vpack.c.b16 %v8662, %v8638
    %v9527 = vpack.c.b16 %v8663, %v8639
    %v9528 = vpack.c.b16 %v8664, %v8640
    %v9529 = vpack.c.b16 %v8665, %v8641
    %v9530 = vpack.c.b16 %v8666, %v8642
    %v9531 = vpack.c.b16 %v8667, %v8643
    %v9532 = vpack.c.b16 %v8668, %v8644
    %v9533 = vpack.c.b16 %v8669, %v8645
    %v9534 = vpack.c.b16 %v8670, %v8646
    %v9535 = vpack.c.b16 %v8671, %v8647
    %v9536 = vpack.c.b16 %v8672, %v8648
    %v9537 = vpack.c.b16 %v8673, %v8649
    %v9538 = vpack.c.b16 %v8674, %v8650
    %v9539 = vpack.c.b16 %v8675, %v8651
    %v9540 = vpack.c.b16 %v8676, %v8652
    %v9541 = vpack.c.b16 %v8677, %v8653
    %v9542 = vpack.c.b16 %v8678, %v8654
    %v9543 = vpack.c.b16 %v8679, %v8655
    %v9544 = vpack.c.b16 %v8704, %v8680
    %v9545 = vpack.c.b16 %v8705, %v8681
    %v9546 = vpack.c.b16 %v8706, %v8682
    %v9547 = vpack.c.b16 %v8707, %v8683
    %v9548 = vpack.c.b16 %v8708, %v8684
    %v9549 = vpack.c.b16 %v8709, %v8685
    %v9550 = vpack.c.b16 %v8710, %v8686
    %v9551 = vpack.c.b16 %v8711, %v8687
    %v9552 = vpack.c.b16 %v8712, %v8688
    %v9553 = vpack.c.b16 %v8713, %v8689
    %v9554 = vpack.c.b16 %v8714, %v8690
    %v9555 = vpack.c.b16 %v8715, %v8691
    %v9556 = vpack.c.b16 %v8716, %v8692
    %v9557 = vpack.c.b16 %v8717, %v8693
    %v9558 = vpack.c.b16 %v8718, %v8694
    %v9559 = vpack.c.b16 %v8719, %v8695
    %v9560 = vpack.c.b16 %v8720, %v8696
    %v9561 = vpack.c.b16 %v8721, %v8697
    %v9562 = vpack.c.b16 %v8722, %v8698
    %v9563 = vpack.c.b16 %v8723, %v8699
    %v9564 = vpack.c.b16 %v8724, %v8700
    %v9565 = vpack.c.b16 %v8725, %v8701
    %v9566 = vpack.c.b16 %v8726, %v8702
    %v9567 = vpack.c.b16 %v8727, %v8703
    %v9568 = vpack.c.b16 %v8752, %v8728
    %v9569 = vpack.c.b16 %v8753, %v8729
    %v9570 = vpack.c.b16 %v8754, %v8730
    %v9571 = vpack.c.b16 %v8755, %v8731
    %v9572 = vpack.c.b16 %v8756, %v8732
    %v9573 = vpack.c.b16 %v8757, %v8733
    %v9574 = vpack.c.b16 %v8758, %v8734
    %v9575 = vpack.c.b16 %v8759, %v8735
    %v9576 = vpack.c.b16 %v8760, %v8736
    %v9577 = vpack.c.b16 %v8761, %v8737
    %v9578 = vpack.c.b16 %v8762, %v8738
    %v9579 = vpack.c.b16 %v8763, %v8739
    %v9580 = vpack.c.b16 %v8764, %v8740
    %v9581 = vpack.c.b16 %v8765, %v8741
    %v9582 = vpack.c.b16 %v8766, %v8742
    %v9583 = vpack.c.b16 %v8767, %v8743
    %v9584 = vpack.c.b16 %v8768, %v8744
    %v9585 = vpack.c.b16 %v8769, %v8745
    %v9586 = vpack.c.b16 %v8770, %v8746
    %v9587 = vpack.c.b16 %v8771, %v8747
    %v9588 = vpack.c.b16 %v8772, %v8748
    %v9589 = vpack.c.b16 %v8773, %v8749
    %v9590 = vpack.c.b16 %v8774, %v8750
    %v9591 = vpack.c.b16 %v8775, %v8751
    %v9592 = vpack.c.b16 %v8800, %v8776
    %v9593 = vpack.c.b16 %v8801, %v8777
    %v9594 = vpack.c.b16 %v8802, %v8778
    %v9595 = vpack.c.b16 %v8803, %v8779
    %v9596 = vpack.c.b16 %v8804, %v8780
    %v9597 = vpack.c.b16 %v8805, %v8781
    %v9598 = vpack.c.b16 %v8806, %v8782
    %v9599 = vpack.c.b16 %v8807, %v8783
    %v9600 = vpack.c.b16 %v8808, %v8784
    %v9601 = vpack.c.b16 %v8809, %v8785
    %v9602 = vpack.c.b16 %v8810, %v8786
    %v9603 = vpack.c.b16 %v8811, %v8787
    %v9604 = vpack.c.b16 %v8812, %v8788
    %v9605 = vpack.c.b16 %v8813, %v8789
    %v9606 = vpack.c.b16 %v8814, %v8790
    %v9607 = vpack.c.b16 %v8815, %v8791
    %v9608 = vpack.c.b16 %v8816, %v8792
    %v9609 = vpack.c.b16 %v8817, %v8793
    %v9610 = vpack.c.b16 %v8818, %v8794
    %v9611 = vpack.c.b16 %v8819, %v8795
    %v9612 = vpack.c.b16 %v8820, %v8796
    %v9613 = vpack.c.b16 %v8821, %v8797
    %v9614 = vpack.c.b16 %v8822, %v8798
    %v9615 = vpack.c.b16 %v8823, %v8799
    %v9616 = vpack.c.b16 %v8848, %v8824
    %v9617 = vpack.c.b16 %v8849, %v8825
    %v9618 = vpack.c.b16 %v8850, %v8826
    %v9619 = vpack.c.b16 %v8851, %v8827
    %v9620 = vpack.c.b16 %v8852, %v8828
    %v9621 = vpack.c.b16 %v8853, %v8829
    %v9622 = vpack.c.b16 %v8854, %v8830
    %v9623 = vpack.c.b16 %v8855, %v8831
    %v9624 = vpack.c.b16 %v8856, %v8832
    %v9625 = vpack.c.b16 %v8857, %v8833
    %v9626 = vpack.c.b16 %v8858, %v8834
    %v9627 = vpack.c.b16 %v8859, %v8835
    %v9628 = vpack.c.b16 %v8860, %v8836
    %v9629 = vpack.c.b16 %v8861, %v8837
    %v9630 = vpack.c.b16 %v8862, %v8838
    %v9631 = vpack.c.b16 %v8863, %v8839
    %v9632 = vpack.c.b16 %v8864, %v8840
    %v9633 = vpack.c.b16 %v8865, %v8841
    %v9634 = vpack.c.b16 %v8866, %v8842
    %v9635 = vpack.c.b16 %v8867, %v8843
    %v9636 = vpack.c.b16 %v8868, %v8844
    %v9637 = vpack.c.b16 %v8869, %v8845
    %v9638 = vpack.c.b16 %v8870, %v8846
    %v9639 = vpack.c.b16 %v8871, %v8847
    %v9640 = vpack.c.b16 %v8896, %v8872
    %v9641 = vpack.c.b16 %v8897, %v8873
    %v9642 = vpack.c.b16 %v8898, %v8874
    %v9643 = vpack.c.b16 %v8899, %v8875
    %v9644 = vpack.c.b16 %v8900, %v8876
    %v9645 = vpack.c.b16 %v8901, %v8877
    %v9646 = vpack.c.b16 %v8902, %v8878
    %v9647 = vpack.c.b16 %v8903, %v8879
    %v9648 = vpack.c.b16 %v8904, %v8880
    %v9649 = vpack.c.b16 %v8905, %v8881
    %v9650 = vpack.c.b16 %v8906, %v8882
    %v9651 = vpack.c.b16 %v8907, %v8883
    %v9652 = vpack.c.b16 %v8908, %v8884
    %v9653 = vpack.c.b16 %v8909, %v8885
    %v9654 = vpack.c.b16 %v8910, %v8886
    %v9655 = vpack.c.b16 %v8911, %v8887
    %v9656 = vpack.c.b16 %v8912, %v8888
    %v9657 = vpack.c.b16 %v8913, %v8889
    %v9658 = vpack.c.b16 %v8914, %v8890
    %v9659 = vpack.c.b16 %v8915, %v8891
    %v9660 = vpack.c.b16 %v8916, %v8892
    %v9661 = vpack.c.b16 %v8917, %v8893
    %v9662 = vpack.c.b16 %v8918, %v8894
    %v9663 = vpack.c.b16 %v8919, %v8895
    %v9664 = vpack.c.b16 %v8944, %v8920
    %v9665 = vpack.c.b16 %v8945, %v8921
    %v9666 = vpack.c.b16 %v8946, %v8922
    %v9667 = vpack.c.b16 %v8947, %v8923
    %v9668 = vpack.c.b16 %v8948, %v8924
    %v9669 = vpack.c.b16 %v8949, %v8925
    %v9670 = vpack.c.b16 %v8950, %v8926
    %v9671 = vpack.c.b16 %v8951, %v8927
    %v9672 = vpack.c.b16 %v8952, %v8928
    %v9673 = vpack.c.b16 %v8953, %v8929
    %v9674 = vpack.c.b16 %v8954, %v8930
    %v9675 = vpack.c.b16 %v8955, %v8931
    %v9676 = vpack.c.b16 %v8956, %v8932
    %v9677 = vpack.c.b16 %v8957, %v8933
    %v9678 = vpack.c.b16 %v8958, %v8934
    %v9679 = vpack.c.b16 %v8959, %v8935
    %v9680 = vpack.c.b16 %v8960, %v8936
    %v9681 = vpack.c.b16 %v8961, %v8937
    %v9682 = vpack.c.b16 %v8962, %v8938
    %v9683 = vpack.c.b16 %v8963, %v8939
    %v9684 = vpack.c.b16 %v8964, %v8940
    %v9685 = vpack.c.b16 %v8965, %v8941
    %v9686 = vpack.c.b16 %v8966, %v8942
    %v9687 = vpack.c.b16 %v8967, %v8943
    %v9688 = vpack.c.b16 %v8992, %v8968
    %v9689 = vpack.c.b16 %v8993, %v8969
    %v9690 = vpack.c.b16 %v8994, %v8970
    %v9691 = vpack.c.b16 %v8995, %v8971
    %v9692 = vpack.c.b16 %v8996, %v8972
    %v9693 = vpack.c.b16 %v8997, %v8973
    %v9694 = vpack.c.b16 %v8998, %v8974
    %v9695 = vpack.c.b16 %v8999, %v8975
    %v9696 = vpack.c.b16 %v9000, %v8976
    %v9697 = vpack.c.b16 %v9001, %v8977
    %v9698 = vpack.c.b16 %v9002, %v8978
    %v9699 = vpack.c.b16 %v9003, %v8979
    %v9700 = vpack.c.b16 %v9004, %v8980
    %v9701 = vpack.c.b16 %v9005, %v8981
    %v9702 = vpack.c.b16 %v9006, %v8982
    %v9703 = vpack.c.b16 %v9007, %v8983
    %v9704 = vpack.c.b16 %v9008, %v8984
    %v9705 = vpack.c.b16 %v9009, %v8985
    %v9706 = vpack.c.b16 %v9010, %v8986
    %v9707 = vpack.c.b16 %v9011, %v8987
    %v9708 = vpack.c.b16 %v9012, %v8988
    %v9709 = vpack.c.b16 %v9013, %v8989
    %v9710 = vpack.c.b16 %v9014, %v8990
    %v9711 = vpack.c.b16 %v9015, %v8991
    %v9712 = vpack.c.b16 %v9040, %v9016
    %v9713 = vpack.c.b16 %v9041, %v9017
    %v9714 = vpack.c.b16 %v9042, %v9018
    %v9715 = vpack.c.b16 %v9043, %v9019
    %v9716 = vpack.c.b16 %v9044, %v9020
    %v9717 = vpack.c.b16 %v9045, %v9021
    %v9718 = vpack.c.b16 %v9046, %v9022
    %v9719 = vpack.c.b16 %v9047, %v9023
    %v9720 = vpack.c.b16 %v9048, %v9024
    %v9721 = vpack.c.b16 %v9049, %v9025
    %v9722 = vpack.c.b16 %v9050, %v9026
    %v9723 = vpack.c.b16 %v9051, %v9027
    %v9724 = vpack.c.b16 %v9052, %v9028
    %v9725 = vpack.c.b16 %v9053, %v9029
    %v9726 = vpack.c.b16 %v9054, %v9030
    %v9727 = vpack.c.b16 %v9055, %v9031
    %v9728 = vpack.c.b16 %v9056, %v9032
    %v9729 = vpack.c.b16 %v9057, %v9033
    %v9730 = vpack.c.b16 %v9058, %v9034
    %v9731 = vpack.c.b16 %v9059, %v9035
    %v9732 = vpack.c.b16 %v9060, %v9036
    %v9733 = vpack.c.b16 %v9061, %v9037
    %v9734 = vpack.c.b16 %v9062, %v9038
    %v9735 = vpack.c.b16 %v9063, %v9039
    %v9736 = vpack.c.b16 %v9088, %v9064
    %v9737 = vpack.c.b16 %v9089, %v9065
    %v9738 = vpack.c.b16 %v9090, %v9066
    %v9739 = vpack.c.b16 %v9091, %v9067
    %v9740 = vpack.c.b16 %v9092, %v9068
    %v9741 = vpack.c.b16 %v9093, %v9069
    %v9742 = vpack.c.b16 %v9094, %v9070
    %v9743 = vpack.c.b16 %v9095, %v9071
    %v9744 = vpack.c.b16 %v9096, %v9072
    %v9745 = vpack.c.b16 %v9097, %v9073
    %v9746 = vpack.c.b16 %v9098, %v9074
    %v9747 = vpack.c.b16 %v9099, %v9075
    %v9748 = vpack.c.b16 %v9100, %v9076
    %v9749 = vpack.c.b16 %v9101, %v9077
    %v9750 = vpack.c.b16 %v9102, %v9078
    %v9751 = vpack.c.b16 %v9103, %v9079
    %v9752 = vpack.c.b16 %v9104, %v9080
    %v9753 = vpack.c.b16 %v9105, %v9081
    %v9754 = vpack.c.b16 %v9106, %v9082
    %v9755 = vpack.c.b16 %v9107, %v9083
    %v9756 = vpack.c.b16 %v9108, %v9084
    %v9757 = vpack.c.b16 %v9109, %v9085
    %v9758 = vpack.c.b16 %v9110, %v9086
    %v9759 = vpack.c.b16 %v9111, %v9087
    %v9760 = vpack.c.b16 %v9136, %v9112
    %v9761 = vpack.c.b16 %v9137, %v9113
    %v9762 = vpack.c.b16 %v9138, %v9114
    %v9763 = vpack.c.b16 %v9139, %v9115
    %v9764 = vpack.c.b16 %v9140, %v9116
    %v9765 = vpack.c.b16 %v9141, %v9117
    %v9766 = vpack.c.b16 %v9142, %v9118
    %v9767 = vpack.c.b16 %v9143, %v9119
    %v9768 = vpack.c.b16 %v9144, %v9120
    %v9769 = vpack.c.b16 %v9145, %v9121
    %v9770 = vpack.c.b16 %v9146, %v9122
    %v9771 = vpack.c.b16 %v9147, %v9123
    %v9772 = vpack.c.b16 %v9148, %v9124
    %v9773 = vpack.c.b16 %v9149, %v9125
    %v9774 = vpack.c.b16 %v9150, %v9126
    %v9775 = vpack.c.b16 %v9151, %v9127
    %v9776 = vpack.c.b16 %v9152, %v9128
    %v9777 = vpack.c.b16 %v9153, %v9129
    %v9778 = vpack.c.b16 %v9154, %v9130
    %v9779 = vpack.c.b16 %v9155, %v9131
    %v9780 = vpack.c.b16 %v9156, %v9132
    %v9781 = vpack.c.b16 %v9157, %v9133
    %v9782 = vpack.c.b16 %v9158, %v9134
    %v9783 = vpack.c.b16 %v9159, %v9135
    %v9784 = vpack.c.b16 %v9184, %v9160
    %v9785 = vpack.c.b16 %v9185, %v9161
    %v9786 = vpack.c.b16 %v9186, %v9162
    %v9787 = vpack.c.b16 %v9187, %v9163
    %v9788 = vpack.c.b16 %v9188, %v9164
    %v9789 = vpack.c.b16 %v9189, %v9165
    %v9790 = vpack.c.b16 %v9190, %v9166
    %v9791 = vpack.c.b16 %v9191, %v9167
    %v9792 = vpack.c.b16 %v9192, %v9168
    %v9793 = vpack.c.b16 %v9193, %v9169
    %v9794 = vpack.c.b16 %v9194, %v9170
    %v9795 = vpack.c.b16 %v9195, %v9171
    %v9796 = vpack.c.b16 %v9196, %v9172
    %v9797 = vpack.c.b16 %v9197, %v9173
    %v9798 = vpack.c.b16 %v9198, %v9174
    %v9799 = vpack.c.b16 %v9199, %v9175
    %v9800 = vpack.c.b16 %v9200, %v9176
    %v9801 = vpack.c.b16 %v9201, %v9177
    %v9802 = vpack.c.b16 %v9202, %v9178
    %v9803 = vpack.c.b16 %v9203, %v9179
    %v9804 = vpack.c.b16 %v9204, %v9180
    %v9805 = vpack.c.b16 %v9205, %v9181
    %v9806 = vpack.c.b16 %v9206, %v9182
    %v9807 = vpack.c.b16 %v9207, %v9183
    %v10409 = vsel %vm6173, %v6753, 0
    %10411 = vmatpush.bf16.msra.mxu0 %v9376
    %10412 = vmatpush.bf16.msra.mxu0 %v9352
    %10413 = vmatpush.bf16.msra.mxu0 %v9328
    %10414 = vmatpush.bf16.msra.mxu0 %v9304
    %10415 = vmatpush.bf16.msra.mxu0 %v9280
    %10416 = vmatpush.bf16.msra.mxu0 %v9256
    %10417 = vmatpush.bf16.msra.mxu0 %v9232
    %10418 = vmatpush.bf16.msra.mxu0 %v9208
    %10419 = vmatmul.bf16.gmra.mxu0 %v6750
    %v10420 = vpop.f32.mrf.mxu0
    %v10421 = vadd.f32 %v7360, %v10420
    %v10422 = vpop.f32.mrf.mxu0
    %10423 = vdwg.mxu0
    %10424 = vmatpush.bf16.msra.mxu0 %v9568
    %10425 = vmatpush.bf16.msra.mxu0 %v9544
    %10426 = vmatpush.bf16.msra.mxu0 %v9520
    %10427 = vmatpush.bf16.msra.mxu0 %v9496
    %10428 = vmatpush.bf16.msra.mxu0 %v9472
    %10429 = vmatpush.bf16.msra.mxu0 %v9448
    %10430 = vmatpush.bf16.msra.mxu0 %v9424
    %10431 = vmatpush.bf16.msra.mxu0 %v9400
    %10432 = vmatmul.bf16.gmra.mxu0 %v6751
    %v10433 = vpop.f32.mrf.mxu0
    %v10434 = vadd.f32 %v10421, %v10433
    %v10435 = vpop.f32.mrf.mxu0
    %10436 = vdwg.mxu0
    %10437 = vmatpush.bf16.msra.mxu0 %v9760
    %10438 = vmatpush.bf16.msra.mxu0 %v9736
    %10439 = vmatpush.bf16.msra.mxu0 %v9712
    %10440 = vmatpush.bf16.msra.mxu0 %v9688
    %10441 = vmatpush.bf16.msra.mxu0 %v9664
    %10442 = vmatpush.bf16.msra.mxu0 %v9640
    %10443 = vmatpush.bf16.msra.mxu0 %v9616
    %10444 = vmatpush.bf16.msra.mxu0 %v9592
    %10445 = vmatmul.bf16.gmra.mxu0 %v6752
    %v10446 = vpop.f32.mrf.mxu0
    %v10447 = vadd.f32 %v10434, %v10446
    %v10448 = vpop.f32.mrf.mxu0
    %10449 = vdwg.mxu0
    %10450 = vmatpush.bf16.msra.mxu0 0
    %10451 = vmatpush.bf16.msra.mxu0 0
    %10452 = vmatpush.bf16.msra.mxu0 0
    %10453 = vmatpush.bf16.msra.mxu0 0
    %10454 = vmatpush.bf16.msra.mxu0 0
    %10455 = vmatpush.bf16.msra.mxu0 0
    %10456 = vmatpush.bf16.msra.mxu0 0
    %10457 = vmatpush.bf16.msra.mxu0 %v9784
    %10458 = vmatmul.bf16.gmra.mxu0 %v10409
    %v10459 = vpop.f32.mrf.mxu0
    %v10460 = vadd.f32 %v10447, %v10459
    %v10461 = vpop.f32.mrf.mxu0
    %10462 = vdwg.mxu0
    %10463 = vmatpush.bf16.msra.mxu0 %v9377
    %10464 = vmatpush.bf16.msra.mxu0 %v9353
    %10465 = vmatpush.bf16.msra.mxu0 %v9329
    %10466 = vmatpush.bf16.msra.mxu0 %v9305
    %10467 = vmatpush.bf16.msra.mxu0 %v9281
    %10468 = vmatpush.bf16.msra.mxu0 %v9257
    %10469 = vmatpush.bf16.msra.mxu0 %v9233
    %10470 = vmatpush.bf16.msra.mxu0 %v9209
    %10471 = vmatmul.bf16.gmra.mxu0 %v6750
    %v10472 = vpop.f32.mrf.mxu0
    %v10473 = vadd.f32 %v7361, %v10472
    %v10474 = vpop.f32.mrf.mxu0
    %10475 = vdwg.mxu0
    %10476 = vmatpush.bf16.msra.mxu0 %v9569
    %10477 = vmatpush.bf16.msra.mxu0 %v9545
    %10478 = vmatpush.bf16.msra.mxu0 %v9521
    %10479 = vmatpush.bf16.msra.mxu0 %v9497
    %10480 = vmatpush.bf16.msra.mxu0 %v9473
    %10481 = vmatpush.bf16.msra.mxu0 %v9449
    %10482 = vmatpush.bf16.msra.mxu0 %v9425
    %10483 = vmatpush.bf16.msra.mxu0 %v9401
    %10484 = vmatmul.bf16.gmra.mxu0 %v6751
    %v10485 = vpop.f32.mrf.mxu0
    %v10486 = vadd.f32 %v10473, %v10485
    %v10487 = vpop.f32.mrf.mxu0
    %10488 = vdwg.mxu0
    %10489 = vmatpush.bf16.msra.mxu0 %v9761
    %10490 = vmatpush.bf16.msra.mxu0 %v9737
    %10491 = vmatpush.bf16.msra.mxu0 %v9713
    %10492 = vmatpush.bf16.msra.mxu0 %v9689
    %10493 = vmatpush.bf16.msra.mxu0 %v9665
    %10494 = vmatpush.bf16.msra.mxu0 %v9641
    %10495 = vmatpush.bf16.msra.mxu0 %v9617
    %10496 = vmatpush.bf16.msra.mxu0 %v9593
    %10497 = vmatmul.bf16.gmra.mxu0 %v6752
    %v10498 = vpop.f32.mrf.mxu0
    %v10499 = vadd.f32 %v10486, %v10498
    %v10500 = vpop.f32.mrf.mxu0
    %10501 = vdwg.mxu0
    %10502 = vmatpush.bf16.msra.mxu0 0
    %10503 = vmatpush.bf16.msra.mxu0 0
    %10504 = vmatpush.bf16.msra.mxu0 0
    %10505 = vmatpush.bf16.msra.mxu0 0
    %10506 = vmatpush.bf16.msra.mxu0 0
    %10507 = vmatpush.bf16.msra.mxu0 0
    %10508 = vmatpush.bf16.msra.mxu0 0
    %10509 = vmatpush.bf16.msra.mxu0 %v9785
    %10510 = vmatmul.bf16.gmra.mxu0 %v10409
    %v10511 = vpop.f32.mrf.mxu0
    %v10512 = vadd.f32 %v10499, %v10511
    %v10513 = vpop.f32.mrf.mxu0
    %10514 = vdwg.mxu0
    %10515 = vmatpush.bf16.msra.mxu0 %v9378
    %10516 = vmatpush.bf16.msra.mxu0 %v9354
    %10517 = vmatpush.bf16.msra.mxu0 %v9330
    %10518 = vmatpush.bf16.msra.mxu0 %v9306
    %10519 = vmatpush.bf16.msra.mxu0 %v9282
    %10520 = vmatpush.bf16.msra.mxu0 %v9258
    %10521 = vmatpush.bf16.msra.mxu0 %v9234
    %10522 = vmatpush.bf16.msra.mxu0 %v9210
    %10523 = vmatmul.bf16.gmra.mxu0 %v6750
    %v10524 = vpop.f32.mrf.mxu0
    %v10525 = vadd.f32 %v7362, %v10524
    %v10526 = vpop.f32.mrf.mxu0
    %10527 = vdwg.mxu0
    %10528 = vmatpush.bf16.msra.mxu0 %v9570
    %10529 = vmatpush.bf16.msra.mxu0 %v9546
    %10530 = vmatpush.bf16.msra.mxu0 %v9522
    %10531 = vmatpush.bf16.msra.mxu0 %v9498
    %10532 = vmatpush.bf16.msra.mxu0 %v9474
    %10533 = vmatpush.bf16.msra.mxu0 %v9450
    %10534 = vmatpush.bf16.msra.mxu0 %v9426
    %10535 = vmatpush.bf16.msra.mxu0 %v9402
    %10536 = vmatmul.bf16.gmra.mxu0 %v6751
    %v10537 = vpop.f32.mrf.mxu0
    %v10538 = vadd.f32 %v10525, %v10537
    %v10539 = vpop.f32.mrf.mxu0
    %10540 = vdwg.mxu0
    %10541 = vmatpush.bf16.msra.mxu0 %v9762
    %10542 = vmatpush.bf16.msra.mxu0 %v9738
    %10543 = vmatpush.bf16.msra.mxu0 %v9714
    %10544 = vmatpush.bf16.msra.mxu0 %v9690
    %10545 = vmatpush.bf16.msra.mxu0 %v9666
    %10546 = vmatpush.bf16.msra.mxu0 %v9642
    %10547 = vmatpush.bf16.msra.mxu0 %v9618
    %10548 = vmatpush.bf16.msra.mxu0 %v9594
    %10549 = vmatmul.bf16.gmra.mxu0 %v6752
    %v10550 = vpop.f32.mrf.mxu0
    %v10551 = vadd.f32 %v10538, %v10550
    %v10552 = vpop.f32.mrf.mxu0
    %10553 = vdwg.mxu0
    %10554 = vmatpush.bf16.msra.mxu0 0
    %10555 = vmatpush.bf16.msra.mxu0 0
    %10556 = vmatpush.bf16.msra.mxu0 0
    %10557 = vmatpush.bf16.msra.mxu0 0
    %10558 = vmatpush.bf16.msra.mxu0 0
    %10559 = vmatpush.bf16.msra.mxu0 0
    %10560 = vmatpush.bf16.msra.mxu0 0
    %10561 = vmatpush.bf16.msra.mxu0 %v9786
    %10562 = vmatmul.bf16.gmra.mxu0 %v10409
    %v10563 = vpop.f32.mrf.mxu0
    %v10564 = vadd.f32 %v10551, %v10563
    %v10565 = vpop.f32.mrf.mxu0
    %10566 = vdwg.mxu0
    %10567 = vmatpush.bf16.msra.mxu0 %v9379
    %10568 = vmatpush.bf16.msra.mxu0 %v9355
    %10569 = vmatpush.bf16.msra.mxu0 %v9331
    %10570 = vmatpush.bf16.msra.mxu0 %v9307
    %10571 = vmatpush.bf16.msra.mxu0 %v9283
    %10572 = vmatpush.bf16.msra.mxu0 %v9259
    %10573 = vmatpush.bf16.msra.mxu0 %v9235
    %10574 = vmatpush.bf16.msra.mxu0 %v9211
    %10575 = vmatmul.bf16.gmra.mxu0 %v6750
    %v10576 = vpop.f32.mrf.mxu0
    %v10577 = vadd.f32 %v7363, %v10576
    %v10578 = vpop.f32.mrf.mxu0
    %10579 = vdwg.mxu0
    %10580 = vmatpush.bf16.msra.mxu0 %v9571
    %10581 = vmatpush.bf16.msra.mxu0 %v9547
    %10582 = vmatpush.bf16.msra.mxu0 %v9523
    %10583 = vmatpush.bf16.msra.mxu0 %v9499
    %10584 = vmatpush.bf16.msra.mxu0 %v9475
    %10585 = vmatpush.bf16.msra.mxu0 %v9451
    %10586 = vmatpush.bf16.msra.mxu0 %v9427
    %10587 = vmatpush.bf16.msra.mxu0 %v9403
    %10588 = vmatmul.bf16.gmra.mxu0 %v6751
    %v10589 = vpop.f32.mrf.mxu0
    %v10590 = vadd.f32 %v10577, %v10589
    %v10591 = vpop.f32.mrf.mxu0
    %10592 = vdwg.mxu0
    %10593 = vmatpush.bf16.msra.mxu0 %v9763
    %10594 = vmatpush.bf16.msra.mxu0 %v9739
    %10595 = vmatpush.bf16.msra.mxu0 %v9715
    %10596 = vmatpush.bf16.msra.mxu0 %v9691
    %10597 = vmatpush.bf16.msra.mxu0 %v9667
    %10598 = vmatpush.bf16.msra.mxu0 %v9643
    %10599 = vmatpush.bf16.msra.mxu0 %v9619
    %10600 = vmatpush.bf16.msra.mxu0 %v9595
    %10601 = vmatmul.bf16.gmra.mxu0 %v6752
    %v10602 = vpop.f32.mrf.mxu0
    %v10603 = vadd.f32 %v10590, %v10602
    %v10604 = vpop.f32.mrf.mxu0
    %10605 = vdwg.mxu0
    %10606 = vmatpush.bf16.msra.mxu0 0
    %10607 = vmatpush.bf16.msra.mxu0 0
    %10608 = vmatpush.bf16.msra.mxu0 0
    %10609 = vmatpush.bf16.msra.mxu0 0
    %10610 = vmatpush.bf16.msra.mxu0 0
    %10611 = vmatpush.bf16.msra.mxu0 0
    %10612 = vmatpush.bf16.msra.mxu0 0
    %10613 = vmatpush.bf16.msra.mxu0 %v9787
    %10614 = vmatmul.bf16.gmra.mxu0 %v10409
    %v10615 = vpop.f32.mrf.mxu0
    %v10616 = vadd.f32 %v10603, %v10615
    %v10617 = vpop.f32.mrf.mxu0
    %10618 = vdwg.mxu0
    %10619 = vmatpush.bf16.msra.mxu0 %v9380
    %10620 = vmatpush.bf16.msra.mxu0 %v9356
    %10621 = vmatpush.bf16.msra.mxu0 %v9332
    %10622 = vmatpush.bf16.msra.mxu0 %v9308
    %10623 = vmatpush.bf16.msra.mxu0 %v9284
    %10624 = vmatpush.bf16.msra.mxu0 %v9260
    %10625 = vmatpush.bf16.msra.mxu0 %v9236
    %10626 = vmatpush.bf16.msra.mxu0 %v9212
    %10627 = vmatmul.bf16.gmra.mxu0 %v6750
    %v10628 = vpop.f32.mrf.mxu0
    %v10629 = vadd.f32 %v7364, %v10628
    %v10630 = vpop.f32.mrf.mxu0
    %10631 = vdwg.mxu0
    %10632 = vmatpush.bf16.msra.mxu0 %v9572
    %10633 = vmatpush.bf16.msra.mxu0 %v9548
    %10634 = vmatpush.bf16.msra.mxu0 %v9524
    %10635 = vmatpush.bf16.msra.mxu0 %v9500
    %10636 = vmatpush.bf16.msra.mxu0 %v9476
    %10637 = vmatpush.bf16.msra.mxu0 %v9452
    %10638 = vmatpush.bf16.msra.mxu0 %v9428
    %10639 = vmatpush.bf16.msra.mxu0 %v9404
    %10640 = vmatmul.bf16.gmra.mxu0 %v6751
    %v10641 = vpop.f32.mrf.mxu0
    %v10642 = vadd.f32 %v10629, %v10641
    %v10643 = vpop.f32.mrf.mxu0
    %10644 = vdwg.mxu0
    %10645 = vmatpush.bf16.msra.mxu0 %v9764
    %10646 = vmatpush.bf16.msra.mxu0 %v9740
    %10647 = vmatpush.bf16.msra.mxu0 %v9716
    %10648 = vmatpush.bf16.msra.mxu0 %v9692
    %10649 = vmatpush.bf16.msra.mxu0 %v9668
    %10650 = vmatpush.bf16.msra.mxu0 %v9644
    %10651 = vmatpush.bf16.msra.mxu0 %v9620
    %10652 = vmatpush.bf16.msra.mxu0 %v9596
    %10653 = vmatmul.bf16.gmra.mxu0 %v6752
    %v10654 = vpop.f32.mrf.mxu0
    %v10655 = vadd.f32 %v10642, %v10654
    %v10656 = vpop.f32.mrf.mxu0
    %10657 = vdwg.mxu0
    %10658 = vmatpush.bf16.msra.mxu0 0
    %10659 = vmatpush.bf16.msra.mxu0 0
    %10660 = vmatpush.bf16.msra.mxu0 0
    %10661 = vmatpush.bf16.msra.mxu0 0
    %10662 = vmatpush.bf16.msra.mxu0 0
    %10663 = vmatpush.bf16.msra.mxu0 0
    %10664 = vmatpush.bf16.msra.mxu0 0
    %10665 = vmatpush.bf16.msra.mxu0 %v9788
    %10666 = vmatmul.bf16.gmra.mxu0 %v10409
    %v10667 = vpop.f32.mrf.mxu0
    %v10668 = vadd.f32 %v10655, %v10667
    %v10669 = vpop.f32.mrf.mxu0
    %10670 = vdwg.mxu0
    %10671 = vmatpush.bf16.msra.mxu0 %v9381
    %10672 = vmatpush.bf16.msra.mxu0 %v9357
    %10673 = vmatpush.bf16.msra.mxu0 %v9333
    %10674 = vmatpush.bf16.msra.mxu0 %v9309
    %10675 = vmatpush.bf16.msra.mxu0 %v9285
    %10676 = vmatpush.bf16.msra.mxu0 %v9261
    %10677 = vmatpush.bf16.msra.mxu0 %v9237
    %10678 = vmatpush.bf16.msra.mxu0 %v9213
    %10679 = vmatmul.bf16.gmra.mxu0 %v6750
    %v10680 = vpop.f32.mrf.mxu0
    %v10681 = vadd.f32 %v7365, %v10680
    %v10682 = vpop.f32.mrf.mxu0
    %10683 = vdwg.mxu0
    %10684 = vmatpush.bf16.msra.mxu0 %v9573
    %10685 = vmatpush.bf16.msra.mxu0 %v9549
    %10686 = vmatpush.bf16.msra.mxu0 %v9525
    %10687 = vmatpush.bf16.msra.mxu0 %v9501
    %10688 = vmatpush.bf16.msra.mxu0 %v9477
    %10689 = vmatpush.bf16.msra.mxu0 %v9453
    %10690 = vmatpush.bf16.msra.mxu0 %v9429
    %10691 = vmatpush.bf16.msra.mxu0 %v9405
    %10692 = vmatmul.bf16.gmra.mxu0 %v6751
    %v10693 = vpop.f32.mrf.mxu0
    %v10694 = vadd.f32 %v10681, %v10693
    %v10695 = vpop.f32.mrf.mxu0
    %10696 = vdwg.mxu0
    %10697 = vmatpush.bf16.msra.mxu0 %v9765
    %10698 = vmatpush.bf16.msra.mxu0 %v9741
    %10699 = vmatpush.bf16.msra.mxu0 %v9717
    %10700 = vmatpush.bf16.msra.mxu0 %v9693
    %10701 = vmatpush.bf16.msra.mxu0 %v9669
    %10702 = vmatpush.bf16.msra.mxu0 %v9645
    %10703 = vmatpush.bf16.msra.mxu0 %v9621
    %10704 = vmatpush.bf16.msra.mxu0 %v9597
    %10705 = vmatmul.bf16.gmra.mxu0 %v6752
    %v10706 = vpop.f32.mrf.mxu0
    %v10707 = vadd.f32 %v10694, %v10706
    %v10708 = vpop.f32.mrf.mxu0
    %10709 = vdwg.mxu0
    %10710 = vmatpush.bf16.msra.mxu0 0
    %10711 = vmatpush.bf16.msra.mxu0 0
    %10712 = vmatpush.bf16.msra.mxu0 0
    %10713 = vmatpush.bf16.msra.mxu0 0
    %10714 = vmatpush.bf16.msra.mxu0 0
    %10715 = vmatpush.bf16.msra.mxu0 0
    %10716 = vmatpush.bf16.msra.mxu0 0
    %10717 = vmatpush.bf16.msra.mxu0 %v9789
    %10718 = vmatmul.bf16.gmra.mxu0 %v10409
    %v10719 = vpop.f32.mrf.mxu0
    %v10720 = vadd.f32 %v10707, %v10719
    %v10721 = vpop.f32.mrf.mxu0
    %10722 = vdwg.mxu0
    %10723 = vmatpush.bf16.msra.mxu0 %v9382
    %10724 = vmatpush.bf16.msra.mxu0 %v9358
    %10725 = vmatpush.bf16.msra.mxu0 %v9334
    %10726 = vmatpush.bf16.msra.mxu0 %v9310
    %10727 = vmatpush.bf16.msra.mxu0 %v9286
    %10728 = vmatpush.bf16.msra.mxu0 %v9262
    %10729 = vmatpush.bf16.msra.mxu0 %v9238
    %10730 = vmatpush.bf16.msra.mxu0 %v9214
    %10731 = vmatmul.bf16.gmra.mxu0 %v6750
    %v10732 = vpop.f32.mrf.mxu0
    %v10733 = vadd.f32 %v7366, %v10732
    %v10734 = vpop.f32.mrf.mxu0
    %10735 = vdwg.mxu0
    %10736 = vmatpush.bf16.msra.mxu0 %v9574
    %10737 = vmatpush.bf16.msra.mxu0 %v9550
    %10738 = vmatpush.bf16.msra.mxu0 %v9526
    %10739 = vmatpush.bf16.msra.mxu0 %v9502
    %10740 = vmatpush.bf16.msra.mxu0 %v9478
    %10741 = vmatpush.bf16.msra.mxu0 %v9454
    %10742 = vmatpush.bf16.msra.mxu0 %v9430
    %10743 = vmatpush.bf16.msra.mxu0 %v9406
    %10744 = vmatmul.bf16.gmra.mxu0 %v6751
    %v10745 = vpop.f32.mrf.mxu0
    %v10746 = vadd.f32 %v10733, %v10745
    %v10747 = vpop.f32.mrf.mxu0
    %10748 = vdwg.mxu0
    %10749 = vmatpush.bf16.msra.mxu0 %v9766
    %10750 = vmatpush.bf16.msra.mxu0 %v9742
    %10751 = vmatpush.bf16.msra.mxu0 %v9718
    %10752 = vmatpush.bf16.msra.mxu0 %v9694
    %10753 = vmatpush.bf16.msra.mxu0 %v9670
    %10754 = vmatpush.bf16.msra.mxu0 %v9646
    %10755 = vmatpush.bf16.msra.mxu0 %v9622
    %10756 = vmatpush.bf16.msra.mxu0 %v9598
    %10757 = vmatmul.bf16.gmra.mxu0 %v6752
    %v10758 = vpop.f32.mrf.mxu0
    %v10759 = vadd.f32 %v10746, %v10758
    %v10760 = vpop.f32.mrf.mxu0
    %10761 = vdwg.mxu0
    %10762 = vmatpush.bf16.msra.mxu0 0
    %10763 = vmatpush.bf16.msra.mxu0 0
    %10764 = vmatpush.bf16.msra.mxu0 0
    %10765 = vmatpush.bf16.msra.mxu0 0
    %10766 = vmatpush.bf16.msra.mxu0 0
    %10767 = vmatpush.bf16.msra.mxu0 0
    %10768 = vmatpush.bf16.msra.mxu0 0
    %10769 = vmatpush.bf16.msra.mxu0 %v9790
    %10770 = vmatmul.bf16.gmra.mxu0 %v10409
    %v10771 = vpop.f32.mrf.mxu0
    %v10772 = vadd.f32 %v10759, %v10771
    %v10773 = vpop.f32.mrf.mxu0
    %10774 = vdwg.mxu0
    %10775 = vmatpush.bf16.msra.mxu0 %v9383
    %10776 = vmatpush.bf16.msra.mxu0 %v9359
    %10777 = vmatpush.bf16.msra.mxu0 %v9335
    %10778 = vmatpush.bf16.msra.mxu0 %v9311
    %10779 = vmatpush.bf16.msra.mxu0 %v9287
    %10780 = vmatpush.bf16.msra.mxu0 %v9263
    %10781 = vmatpush.bf16.msra.mxu0 %v9239
    %10782 = vmatpush.bf16.msra.mxu0 %v9215
    %10783 = vmatmul.bf16.gmra.mxu0 %v6750
    %v10784 = vpop.f32.mrf.mxu0
    %v10785 = vadd.f32 %v7367, %v10784
    %v10786 = vpop.f32.mrf.mxu0
    %10787 = vdwg.mxu0
    %10788 = vmatpush.bf16.msra.mxu0 %v9575
    %10789 = vmatpush.bf16.msra.mxu0 %v9551
    %10790 = vmatpush.bf16.msra.mxu0 %v9527
    %10791 = vmatpush.bf16.msra.mxu0 %v9503
    %10792 = vmatpush.bf16.msra.mxu0 %v9479
    %10793 = vmatpush.bf16.msra.mxu0 %v9455
    %10794 = vmatpush.bf16.msra.mxu0 %v9431
    %10795 = vmatpush.bf16.msra.mxu0 %v9407
    %10796 = vmatmul.bf16.gmra.mxu0 %v6751
    %v10797 = vpop.f32.mrf.mxu0
    %v10798 = vadd.f32 %v10785, %v10797
    %v10799 = vpop.f32.mrf.mxu0
    %10800 = vdwg.mxu0
    %10801 = vmatpush.bf16.msra.mxu0 %v9767
    %10802 = vmatpush.bf16.msra.mxu0 %v9743
    %10803 = vmatpush.bf16.msra.mxu0 %v9719
    %10804 = vmatpush.bf16.msra.mxu0 %v9695
    %10805 = vmatpush.bf16.msra.mxu0 %v9671
    %10806 = vmatpush.bf16.msra.mxu0 %v9647
    %10807 = vmatpush.bf16.msra.mxu0 %v9623
    %10808 = vmatpush.bf16.msra.mxu0 %v9599
    %10809 = vmatmul.bf16.gmra.mxu0 %v6752
    %v10810 = vpop.f32.mrf.mxu0
    %v10811 = vadd.f32 %v10798, %v10810
    %v10812 = vpop.f32.mrf.mxu0
    %10813 = vdwg.mxu0
    %10814 = vmatpush.bf16.msra.mxu0 0
    %10815 = vmatpush.bf16.msra.mxu0 0
    %10816 = vmatpush.bf16.msra.mxu0 0
    %10817 = vmatpush.bf16.msra.mxu0 0
    %10818 = vmatpush.bf16.msra.mxu0 0
    %10819 = vmatpush.bf16.msra.mxu0 0
    %10820 = vmatpush.bf16.msra.mxu0 0
    %10821 = vmatpush.bf16.msra.mxu0 %v9791
    %10822 = vmatmul.bf16.gmra.mxu0 %v10409
    %v10823 = vpop.f32.mrf.mxu0
    %v10824 = vadd.f32 %v10811, %v10823
    %v10825 = vpop.f32.mrf.mxu0
    %10826 = vdwg.mxu0
    %10827 = vmatpush.bf16.msra.mxu0 %v9384
    %10828 = vmatpush.bf16.msra.mxu0 %v9360
    %10829 = vmatpush.bf16.msra.mxu0 %v9336
    %10830 = vmatpush.bf16.msra.mxu0 %v9312
    %10831 = vmatpush.bf16.msra.mxu0 %v9288
    %10832 = vmatpush.bf16.msra.mxu0 %v9264
    %10833 = vmatpush.bf16.msra.mxu0 %v9240
    %10834 = vmatpush.bf16.msra.mxu0 %v9216
    %10835 = vmatmul.bf16.gmra.mxu0 %v6750
    %v10836 = vpop.f32.mrf.mxu0
    %v10837 = vadd.f32 %v7368, %v10836
    %v10838 = vpop.f32.mrf.mxu0
    %10839 = vdwg.mxu0
    %10840 = vmatpush.bf16.msra.mxu0 %v9576
    %10841 = vmatpush.bf16.msra.mxu0 %v9552
    %10842 = vmatpush.bf16.msra.mxu0 %v9528
    %10843 = vmatpush.bf16.msra.mxu0 %v9504
    %10844 = vmatpush.bf16.msra.mxu0 %v9480
    %10845 = vmatpush.bf16.msra.mxu0 %v9456
    %10846 = vmatpush.bf16.msra.mxu0 %v9432
    %10847 = vmatpush.bf16.msra.mxu0 %v9408
    %10848 = vmatmul.bf16.gmra.mxu0 %v6751
    %v10849 = vpop.f32.mrf.mxu0
    %v10850 = vadd.f32 %v10837, %v10849
    %v10851 = vpop.f32.mrf.mxu0
    %10852 = vdwg.mxu0
    %10853 = vmatpush.bf16.msra.mxu0 %v9768
    %10854 = vmatpush.bf16.msra.mxu0 %v9744
    %10855 = vmatpush.bf16.msra.mxu0 %v9720
    %10856 = vmatpush.bf16.msra.mxu0 %v9696
    %10857 = vmatpush.bf16.msra.mxu0 %v9672
    %10858 = vmatpush.bf16.msra.mxu0 %v9648
    %10859 = vmatpush.bf16.msra.mxu0 %v9624
    %10860 = vmatpush.bf16.msra.mxu0 %v9600
    %10861 = vmatmul.bf16.gmra.mxu0 %v6752
    %v10862 = vpop.f32.mrf.mxu0
    %v10863 = vadd.f32 %v10850, %v10862
    %v10864 = vpop.f32.mrf.mxu0
    %10865 = vdwg.mxu0
    %10866 = vmatpush.bf16.msra.mxu0 0
    %10867 = vmatpush.bf16.msra.mxu0 0
    %10868 = vmatpush.bf16.msra.mxu0 0
    %10869 = vmatpush.bf16.msra.mxu0 0
    %10870 = vmatpush.bf16.msra.mxu0 0
    %10871 = vmatpush.bf16.msra.mxu0 0
    %10872 = vmatpush.bf16.msra.mxu0 0
    %10873 = vmatpush.bf16.msra.mxu0 %v9792
    %10874 = vmatmul.bf16.gmra.mxu0 %v10409
    %v10875 = vpop.f32.mrf.mxu0
    %v10876 = vadd.f32 %v10863, %v10875
    %v10877 = vpop.f32.mrf.mxu0
    %10878 = vdwg.mxu0
    %10879 = vmatpush.bf16.msra.mxu0 %v9385
    %10880 = vmatpush.bf16.msra.mxu0 %v9361
    %10881 = vmatpush.bf16.msra.mxu0 %v9337
    %10882 = vmatpush.bf16.msra.mxu0 %v9313
    %10883 = vmatpush.bf16.msra.mxu0 %v9289
    %10884 = vmatpush.bf16.msra.mxu0 %v9265
    %10885 = vmatpush.bf16.msra.mxu0 %v9241
    %10886 = vmatpush.bf16.msra.mxu0 %v9217
    %10887 = vmatmul.bf16.gmra.mxu0 %v6750
    %v10888 = vpop.f32.mrf.mxu0
    %v10889 = vadd.f32 %v7369, %v10888
    %v10890 = vpop.f32.mrf.mxu0
    %10891 = vdwg.mxu0
    %10892 = vmatpush.bf16.msra.mxu0 %v9577
    %10893 = vmatpush.bf16.msra.mxu0 %v9553
    %10894 = vmatpush.bf16.msra.mxu0 %v9529
    %10895 = vmatpush.bf16.msra.mxu0 %v9505
    %10896 = vmatpush.bf16.msra.mxu0 %v9481
    %10897 = vmatpush.bf16.msra.mxu0 %v9457
    %10898 = vmatpush.bf16.msra.mxu0 %v9433
    %10899 = vmatpush.bf16.msra.mxu0 %v9409
    %10900 = vmatmul.bf16.gmra.mxu0 %v6751
    %v10901 = vpop.f32.mrf.mxu0
    %v10902 = vadd.f32 %v10889, %v10901
    %v10903 = vpop.f32.mrf.mxu0
    %10904 = vdwg.mxu0
    %10905 = vmatpush.bf16.msra.mxu0 %v9769
    %10906 = vmatpush.bf16.msra.mxu0 %v9745
    %10907 = vmatpush.bf16.msra.mxu0 %v9721
    %10908 = vmatpush.bf16.msra.mxu0 %v9697
    %10909 = vmatpush.bf16.msra.mxu0 %v9673
    %10910 = vmatpush.bf16.msra.mxu0 %v9649
    %10911 = vmatpush.bf16.msra.mxu0 %v9625
    %10912 = vmatpush.bf16.msra.mxu0 %v9601
    %10913 = vmatmul.bf16.gmra.mxu0 %v6752
    %v10914 = vpop.f32.mrf.mxu0
    %v10915 = vadd.f32 %v10902, %v10914
    %v10916 = vpop.f32.mrf.mxu0
    %10917 = vdwg.mxu0
    %10918 = vmatpush.bf16.msra.mxu0 0
    %10919 = vmatpush.bf16.msra.mxu0 0
    %10920 = vmatpush.bf16.msra.mxu0 0
    %10921 = vmatpush.bf16.msra.mxu0 0
    %10922 = vmatpush.bf16.msra.mxu0 0
    %10923 = vmatpush.bf16.msra.mxu0 0
    %10924 = vmatpush.bf16.msra.mxu0 0
    %10925 = vmatpush.bf16.msra.mxu0 %v9793
    %10926 = vmatmul.bf16.gmra.mxu0 %v10409
    %v10927 = vpop.f32.mrf.mxu0
    %v10928 = vadd.f32 %v10915, %v10927
    %v10929 = vpop.f32.mrf.mxu0
    %10930 = vdwg.mxu0
    %10931 = vmatpush.bf16.msra.mxu0 %v9386
    %10932 = vmatpush.bf16.msra.mxu0 %v9362
    %10933 = vmatpush.bf16.msra.mxu0 %v9338
    %10934 = vmatpush.bf16.msra.mxu0 %v9314
    %10935 = vmatpush.bf16.msra.mxu0 %v9290
    %10936 = vmatpush.bf16.msra.mxu0 %v9266
    %10937 = vmatpush.bf16.msra.mxu0 %v9242
    %10938 = vmatpush.bf16.msra.mxu0 %v9218
    %10939 = vmatmul.bf16.gmra.mxu0 %v6750
    %v10940 = vpop.f32.mrf.mxu0
    %v10941 = vadd.f32 %v7370, %v10940
    %v10942 = vpop.f32.mrf.mxu0
    %10943 = vdwg.mxu0
    %10944 = vmatpush.bf16.msra.mxu0 %v9578
    %10945 = vmatpush.bf16.msra.mxu0 %v9554
    %10946 = vmatpush.bf16.msra.mxu0 %v9530
    %10947 = vmatpush.bf16.msra.mxu0 %v9506
    %10948 = vmatpush.bf16.msra.mxu0 %v9482
    %10949 = vmatpush.bf16.msra.mxu0 %v9458
    %10950 = vmatpush.bf16.msra.mxu0 %v9434
    %10951 = vmatpush.bf16.msra.mxu0 %v9410
    %10952 = vmatmul.bf16.gmra.mxu0 %v6751
    %v10953 = vpop.f32.mrf.mxu0
    %v10954 = vadd.f32 %v10941, %v10953
    %v10955 = vpop.f32.mrf.mxu0
    %10956 = vdwg.mxu0
    %10957 = vmatpush.bf16.msra.mxu0 %v9770
    %10958 = vmatpush.bf16.msra.mxu0 %v9746
    %10959 = vmatpush.bf16.msra.mxu0 %v9722
    %10960 = vmatpush.bf16.msra.mxu0 %v9698
    %10961 = vmatpush.bf16.msra.mxu0 %v9674
    %10962 = vmatpush.bf16.msra.mxu0 %v9650
    %10963 = vmatpush.bf16.msra.mxu0 %v9626
    %10964 = vmatpush.bf16.msra.mxu0 %v9602
    %10965 = vmatmul.bf16.gmra.mxu0 %v6752
    %v10966 = vpop.f32.mrf.mxu0
    %v10967 = vadd.f32 %v10954, %v10966
    %v10968 = vpop.f32.mrf.mxu0
    %10969 = vdwg.mxu0
    %10970 = vmatpush.bf16.msra.mxu0 0
    %10971 = vmatpush.bf16.msra.mxu0 0
    %10972 = vmatpush.bf16.msra.mxu0 0
    %10973 = vmatpush.bf16.msra.mxu0 0
    %10974 = vmatpush.bf16.msra.mxu0 0
    %10975 = vmatpush.bf16.msra.mxu0 0
    %10976 = vmatpush.bf16.msra.mxu0 0
    %10977 = vmatpush.bf16.msra.mxu0 %v9794
    %10978 = vmatmul.bf16.gmra.mxu0 %v10409
    %v10979 = vpop.f32.mrf.mxu0
    %v10980 = vadd.f32 %v10967, %v10979
    %v10981 = vpop.f32.mrf.mxu0
    %10982 = vdwg.mxu0
    %10983 = vmatpush.bf16.msra.mxu0 %v9387
    %10984 = vmatpush.bf16.msra.mxu0 %v9363
    %10985 = vmatpush.bf16.msra.mxu0 %v9339
    %10986 = vmatpush.bf16.msra.mxu0 %v9315
    %10987 = vmatpush.bf16.msra.mxu0 %v9291
    %10988 = vmatpush.bf16.msra.mxu0 %v9267
    %10989 = vmatpush.bf16.msra.mxu0 %v9243
    %10990 = vmatpush.bf16.msra.mxu0 %v9219
    %10991 = vmatmul.bf16.gmra.mxu0 %v6750
    %v10992 = vpop.f32.mrf.mxu0
    %v10993 = vadd.f32 %v7371, %v10992
    %v10994 = vpop.f32.mrf.mxu0
    %10995 = vdwg.mxu0
    %10996 = vmatpush.bf16.msra.mxu0 %v9579
    %10997 = vmatpush.bf16.msra.mxu0 %v9555
    %10998 = vmatpush.bf16.msra.mxu0 %v9531
    %10999 = vmatpush.bf16.msra.mxu0 %v9507
    %11000 = vmatpush.bf16.msra.mxu0 %v9483
    %11001 = vmatpush.bf16.msra.mxu0 %v9459
    %11002 = vmatpush.bf16.msra.mxu0 %v9435
    %11003 = vmatpush.bf16.msra.mxu0 %v9411
    %11004 = vmatmul.bf16.gmra.mxu0 %v6751
    %v11005 = vpop.f32.mrf.mxu0
    %v11006 = vadd.f32 %v10993, %v11005
    %v11007 = vpop.f32.mrf.mxu0
    %11008 = vdwg.mxu0
    %11009 = vmatpush.bf16.msra.mxu0 %v9771
    %11010 = vmatpush.bf16.msra.mxu0 %v9747
    %11011 = vmatpush.bf16.msra.mxu0 %v9723
    %11012 = vmatpush.bf16.msra.mxu0 %v9699
    %11013 = vmatpush.bf16.msra.mxu0 %v9675
    %11014 = vmatpush.bf16.msra.mxu0 %v9651
    %11015 = vmatpush.bf16.msra.mxu0 %v9627
    %11016 = vmatpush.bf16.msra.mxu0 %v9603
    %11017 = vmatmul.bf16.gmra.mxu0 %v6752
    %v11018 = vpop.f32.mrf.mxu0
    %v11019 = vadd.f32 %v11006, %v11018
    %v11020 = vpop.f32.mrf.mxu0
    %11021 = vdwg.mxu0
    %11022 = vmatpush.bf16.msra.mxu0 0
    %11023 = vmatpush.bf16.msra.mxu0 0
    %11024 = vmatpush.bf16.msra.mxu0 0
    %11025 = vmatpush.bf16.msra.mxu0 0
    %11026 = vmatpush.bf16.msra.mxu0 0
    %11027 = vmatpush.bf16.msra.mxu0 0
    %11028 = vmatpush.bf16.msra.mxu0 0
    %11029 = vmatpush.bf16.msra.mxu0 %v9795
    %11030 = vmatmul.bf16.gmra.mxu0 %v10409
    %v11031 = vpop.f32.mrf.mxu0
    %v11032 = vadd.f32 %v11019, %v11031
    %v11033 = vpop.f32.mrf.mxu0
    %11034 = vdwg.mxu0
    %11035 = vmatpush.bf16.msra.mxu0 %v9388
    %11036 = vmatpush.bf16.msra.mxu0 %v9364
    %11037 = vmatpush.bf16.msra.mxu0 %v9340
    %11038 = vmatpush.bf16.msra.mxu0 %v9316
    %11039 = vmatpush.bf16.msra.mxu0 %v9292
    %11040 = vmatpush.bf16.msra.mxu0 %v9268
    %11041 = vmatpush.bf16.msra.mxu0 %v9244
    %11042 = vmatpush.bf16.msra.mxu0 %v9220
    %11043 = vmatmul.bf16.gmra.mxu0 %v6750
    %v11044 = vpop.f32.mrf.mxu0
    %v11045 = vadd.f32 %v7372, %v11044
    %v11046 = vpop.f32.mrf.mxu0
    %11047 = vdwg.mxu0
    %11048 = vmatpush.bf16.msra.mxu0 %v9580
    %11049 = vmatpush.bf16.msra.mxu0 %v9556
    %11050 = vmatpush.bf16.msra.mxu0 %v9532
    %11051 = vmatpush.bf16.msra.mxu0 %v9508
    %11052 = vmatpush.bf16.msra.mxu0 %v9484
    %11053 = vmatpush.bf16.msra.mxu0 %v9460
    %11054 = vmatpush.bf16.msra.mxu0 %v9436
    %11055 = vmatpush.bf16.msra.mxu0 %v9412
    %11056 = vmatmul.bf16.gmra.mxu0 %v6751
    %v11057 = vpop.f32.mrf.mxu0
    %v11058 = vadd.f32 %v11045, %v11057
    %v11059 = vpop.f32.mrf.mxu0
    %11060 = vdwg.mxu0
    %11061 = vmatpush.bf16.msra.mxu0 %v9772
    %11062 = vmatpush.bf16.msra.mxu0 %v9748
    %11063 = vmatpush.bf16.msra.mxu0 %v9724
    %11064 = vmatpush.bf16.msra.mxu0 %v9700
    %11065 = vmatpush.bf16.msra.mxu0 %v9676
    %11066 = vmatpush.bf16.msra.mxu0 %v9652
    %11067 = vmatpush.bf16.msra.mxu0 %v9628
    %11068 = vmatpush.bf16.msra.mxu0 %v9604
    %11069 = vmatmul.bf16.gmra.mxu0 %v6752
    %v11070 = vpop.f32.mrf.mxu0
    %v11071 = vadd.f32 %v11058, %v11070
    %v11072 = vpop.f32.mrf.mxu0
    %11073 = vdwg.mxu0
    %11074 = vmatpush.bf16.msra.mxu0 0
    %11075 = vmatpush.bf16.msra.mxu0 0
    %11076 = vmatpush.bf16.msra.mxu0 0
    %11077 = vmatpush.bf16.msra.mxu0 0
    %11078 = vmatpush.bf16.msra.mxu0 0
    %11079 = vmatpush.bf16.msra.mxu0 0
    %11080 = vmatpush.bf16.msra.mxu0 0
    %11081 = vmatpush.bf16.msra.mxu0 %v9796
    %11082 = vmatmul.bf16.gmra.mxu0 %v10409
    %v11083 = vpop.f32.mrf.mxu0
    %v11084 = vadd.f32 %v11071, %v11083
    %v11085 = vpop.f32.mrf.mxu0
    %11086 = vdwg.mxu0
    %11087 = vmatpush.bf16.msra.mxu0 %v9389
    %11088 = vmatpush.bf16.msra.mxu0 %v9365
    %11089 = vmatpush.bf16.msra.mxu0 %v9341
    %11090 = vmatpush.bf16.msra.mxu0 %v9317
    %11091 = vmatpush.bf16.msra.mxu0 %v9293
    %11092 = vmatpush.bf16.msra.mxu0 %v9269
    %11093 = vmatpush.bf16.msra.mxu0 %v9245
    %11094 = vmatpush.bf16.msra.mxu0 %v9221
    %11095 = vmatmul.bf16.gmra.mxu0 %v6750
    %v11096 = vpop.f32.mrf.mxu0
    %v11097 = vadd.f32 %v7373, %v11096
    %v11098 = vpop.f32.mrf.mxu0
    %11099 = vdwg.mxu0
    %11100 = vmatpush.bf16.msra.mxu0 %v9581
    %11101 = vmatpush.bf16.msra.mxu0 %v9557
    %11102 = vmatpush.bf16.msra.mxu0 %v9533
    %11103 = vmatpush.bf16.msra.mxu0 %v9509
    %11104 = vmatpush.bf16.msra.mxu0 %v9485
    %11105 = vmatpush.bf16.msra.mxu0 %v9461
    %11106 = vmatpush.bf16.msra.mxu0 %v9437
    %11107 = vmatpush.bf16.msra.mxu0 %v9413
    %11108 = vmatmul.bf16.gmra.mxu0 %v6751
    %v11109 = vpop.f32.mrf.mxu0
    %v11110 = vadd.f32 %v11097, %v11109
    %v11111 = vpop.f32.mrf.mxu0
    %11112 = vdwg.mxu0
    %11113 = vmatpush.bf16.msra.mxu0 %v9773
    %11114 = vmatpush.bf16.msra.mxu0 %v9749
    %11115 = vmatpush.bf16.msra.mxu0 %v9725
    %11116 = vmatpush.bf16.msra.mxu0 %v9701
    %11117 = vmatpush.bf16.msra.mxu0 %v9677
    %11118 = vmatpush.bf16.msra.mxu0 %v9653
    %11119 = vmatpush.bf16.msra.mxu0 %v9629
    %11120 = vmatpush.bf16.msra.mxu0 %v9605
    %11121 = vmatmul.bf16.gmra.mxu0 %v6752
    %v11122 = vpop.f32.mrf.mxu0
    %v11123 = vadd.f32 %v11110, %v11122
    %v11124 = vpop.f32.mrf.mxu0
    %11125 = vdwg.mxu0
    %11126 = vmatpush.bf16.msra.mxu0 0
    %11127 = vmatpush.bf16.msra.mxu0 0
    %11128 = vmatpush.bf16.msra.mxu0 0
    %11129 = vmatpush.bf16.msra.mxu0 0
    %11130 = vmatpush.bf16.msra.mxu0 0
    %11131 = vmatpush.bf16.msra.mxu0 0
    %11132 = vmatpush.bf16.msra.mxu0 0
    %11133 = vmatpush.bf16.msra.mxu0 %v9797
    %11134 = vmatmul.bf16.gmra.mxu0 %v10409
    %v11135 = vpop.f32.mrf.mxu0
    %v11136 = vadd.f32 %v11123, %v11135
    %v11137 = vpop.f32.mrf.mxu0
    %11138 = vdwg.mxu0
    %11139 = vmatpush.bf16.msra.mxu0 %v9390
    %11140 = vmatpush.bf16.msra.mxu0 %v9366
    %11141 = vmatpush.bf16.msra.mxu0 %v9342
    %11142 = vmatpush.bf16.msra.mxu0 %v9318
    %11143 = vmatpush.bf16.msra.mxu0 %v9294
    %11144 = vmatpush.bf16.msra.mxu0 %v9270
    %11145 = vmatpush.bf16.msra.mxu0 %v9246
    %11146 = vmatpush.bf16.msra.mxu0 %v9222
    %11147 = vmatmul.bf16.gmra.mxu0 %v6750
    %v11148 = vpop.f32.mrf.mxu0
    %v11149 = vadd.f32 %v7374, %v11148
    %v11150 = vpop.f32.mrf.mxu0
    %11151 = vdwg.mxu0
    %11152 = vmatpush.bf16.msra.mxu0 %v9582
    %11153 = vmatpush.bf16.msra.mxu0 %v9558
    %11154 = vmatpush.bf16.msra.mxu0 %v9534
    %11155 = vmatpush.bf16.msra.mxu0 %v9510
    %11156 = vmatpush.bf16.msra.mxu0 %v9486
    %11157 = vmatpush.bf16.msra.mxu0 %v9462
    %11158 = vmatpush.bf16.msra.mxu0 %v9438
    %11159 = vmatpush.bf16.msra.mxu0 %v9414
    %11160 = vmatmul.bf16.gmra.mxu0 %v6751
    %v11161 = vpop.f32.mrf.mxu0
    %v11162 = vadd.f32 %v11149, %v11161
    %v11163 = vpop.f32.mrf.mxu0
    %11164 = vdwg.mxu0
    %11165 = vmatpush.bf16.msra.mxu0 %v9774
    %11166 = vmatpush.bf16.msra.mxu0 %v9750
    %11167 = vmatpush.bf16.msra.mxu0 %v9726
    %11168 = vmatpush.bf16.msra.mxu0 %v9702
    %11169 = vmatpush.bf16.msra.mxu0 %v9678
    %11170 = vmatpush.bf16.msra.mxu0 %v9654
    %11171 = vmatpush.bf16.msra.mxu0 %v9630
    %11172 = vmatpush.bf16.msra.mxu0 %v9606
    %11173 = vmatmul.bf16.gmra.mxu0 %v6752
    %v11174 = vpop.f32.mrf.mxu0
    %v11175 = vadd.f32 %v11162, %v11174
    %v11176 = vpop.f32.mrf.mxu0
    %11177 = vdwg.mxu0
    %11178 = vmatpush.bf16.msra.mxu0 0
    %11179 = vmatpush.bf16.msra.mxu0 0
    %11180 = vmatpush.bf16.msra.mxu0 0
    %11181 = vmatpush.bf16.msra.mxu0 0
    %11182 = vmatpush.bf16.msra.mxu0 0
    %11183 = vmatpush.bf16.msra.mxu0 0
    %11184 = vmatpush.bf16.msra.mxu0 0
    %11185 = vmatpush.bf16.msra.mxu0 %v9798
    %11186 = vmatmul.bf16.gmra.mxu0 %v10409
    %v11187 = vpop.f32.mrf.mxu0
    %v11188 = vadd.f32 %v11175, %v11187
    %v11189 = vpop.f32.mrf.mxu0
    %11190 = vdwg.mxu0
    %11191 = vmatpush.bf16.msra.mxu0 %v9391
    %11192 = vmatpush.bf16.msra.mxu0 %v9367
    %11193 = vmatpush.bf16.msra.mxu0 %v9343
    %11194 = vmatpush.bf16.msra.mxu0 %v9319
    %11195 = vmatpush.bf16.msra.mxu0 %v9295
    %11196 = vmatpush.bf16.msra.mxu0 %v9271
    %11197 = vmatpush.bf16.msra.mxu0 %v9247
    %11198 = vmatpush.bf16.msra.mxu0 %v9223
    %11199 = vmatmul.bf16.gmra.mxu0 %v6750
    %v11200 = vpop.f32.mrf.mxu0
    %v11201 = vadd.f32 %v7375, %v11200
    %v11202 = vpop.f32.mrf.mxu0
    %11203 = vdwg.mxu0
    %11204 = vmatpush.bf16.msra.mxu0 %v9583
    %11205 = vmatpush.bf16.msra.mxu0 %v9559
    %11206 = vmatpush.bf16.msra.mxu0 %v9535
    %11207 = vmatpush.bf16.msra.mxu0 %v9511
    %11208 = vmatpush.bf16.msra.mxu0 %v9487
    %11209 = vmatpush.bf16.msra.mxu0 %v9463
    %11210 = vmatpush.bf16.msra.mxu0 %v9439
    %11211 = vmatpush.bf16.msra.mxu0 %v9415
    %11212 = vmatmul.bf16.gmra.mxu0 %v6751
    %v11213 = vpop.f32.mrf.mxu0
    %v11214 = vadd.f32 %v11201, %v11213
    %v11215 = vpop.f32.mrf.mxu0
    %11216 = vdwg.mxu0
    %11217 = vmatpush.bf16.msra.mxu0 %v9775
    %11218 = vmatpush.bf16.msra.mxu0 %v9751
    %11219 = vmatpush.bf16.msra.mxu0 %v9727
    %11220 = vmatpush.bf16.msra.mxu0 %v9703
    %11221 = vmatpush.bf16.msra.mxu0 %v9679
    %11222 = vmatpush.bf16.msra.mxu0 %v9655
    %11223 = vmatpush.bf16.msra.mxu0 %v9631
    %11224 = vmatpush.bf16.msra.mxu0 %v9607
    %11225 = vmatmul.bf16.gmra.mxu0 %v6752
    %v11226 = vpop.f32.mrf.mxu0
    %v11227 = vadd.f32 %v11214, %v11226
    %v11228 = vpop.f32.mrf.mxu0
    %11229 = vdwg.mxu0
    %11230 = vmatpush.bf16.msra.mxu0 0
    %11231 = vmatpush.bf16.msra.mxu0 0
    %11232 = vmatpush.bf16.msra.mxu0 0
    %11233 = vmatpush.bf16.msra.mxu0 0
    %11234 = vmatpush.bf16.msra.mxu0 0
    %11235 = vmatpush.bf16.msra.mxu0 0
    %11236 = vmatpush.bf16.msra.mxu0 0
    %11237 = vmatpush.bf16.msra.mxu0 %v9799
    %11238 = vmatmul.bf16.gmra.mxu0 %v10409
    %v11239 = vpop.f32.mrf.mxu0
    %v11240 = vadd.f32 %v11227, %v11239
    %v11241 = vpop.f32.mrf.mxu0
    %11242 = vdwg.mxu0
    %11243 = vmatpush.bf16.msra.mxu0 %v9392
    %11244 = vmatpush.bf16.msra.mxu0 %v9368
    %11245 = vmatpush.bf16.msra.mxu0 %v9344
    %11246 = vmatpush.bf16.msra.mxu0 %v9320
    %11247 = vmatpush.bf16.msra.mxu0 %v9296
    %11248 = vmatpush.bf16.msra.mxu0 %v9272
    %11249 = vmatpush.bf16.msra.mxu0 %v9248
    %11250 = vmatpush.bf16.msra.mxu0 %v9224
    %11251 = vmatmul.bf16.gmra.mxu0 %v6750
    %v11252 = vpop.f32.mrf.mxu0
    %v11253 = vadd.f32 %v7376, %v11252
    %v11254 = vpop.f32.mrf.mxu0
    %11255 = vdwg.mxu0
    %11256 = vmatpush.bf16.msra.mxu0 %v9584
    %11257 = vmatpush.bf16.msra.mxu0 %v9560
    %11258 = vmatpush.bf16.msra.mxu0 %v9536
    %11259 = vmatpush.bf16.msra.mxu0 %v9512
    %11260 = vmatpush.bf16.msra.mxu0 %v9488
    %11261 = vmatpush.bf16.msra.mxu0 %v9464
    %11262 = vmatpush.bf16.msra.mxu0 %v9440
    %11263 = vmatpush.bf16.msra.mxu0 %v9416
    %11264 = vmatmul.bf16.gmra.mxu0 %v6751
    %v11265 = vpop.f32.mrf.mxu0
    %v11266 = vadd.f32 %v11253, %v11265
    %v11267 = vpop.f32.mrf.mxu0
    %11268 = vdwg.mxu0
    %11269 = vmatpush.bf16.msra.mxu0 %v9776
    %11270 = vmatpush.bf16.msra.mxu0 %v9752
    %11271 = vmatpush.bf16.msra.mxu0 %v9728
    %11272 = vmatpush.bf16.msra.mxu0 %v9704
    %11273 = vmatpush.bf16.msra.mxu0 %v9680
    %11274 = vmatpush.bf16.msra.mxu0 %v9656
    %11275 = vmatpush.bf16.msra.mxu0 %v9632
    %11276 = vmatpush.bf16.msra.mxu0 %v9608
    %11277 = vmatmul.bf16.gmra.mxu0 %v6752
    %v11278 = vpop.f32.mrf.mxu0
    %v11279 = vadd.f32 %v11266, %v11278
    %v11280 = vpop.f32.mrf.mxu0
    %11281 = vdwg.mxu0
    %11282 = vmatpush.bf16.msra.mxu0 0
    %11283 = vmatpush.bf16.msra.mxu0 0
    %11284 = vmatpush.bf16.msra.mxu0 0
    %11285 = vmatpush.bf16.msra.mxu0 0
    %11286 = vmatpush.bf16.msra.mxu0 0
    %11287 = vmatpush.bf16.msra.mxu0 0
    %11288 = vmatpush.bf16.msra.mxu0 0
    %11289 = vmatpush.bf16.msra.mxu0 %v9800
    %11290 = vmatmul.bf16.gmra.mxu0 %v10409
    %v11291 = vpop.f32.mrf.mxu0
    %v11292 = vadd.f32 %v11279, %v11291
    %v11293 = vpop.f32.mrf.mxu0
    %11294 = vdwg.mxu0
    %11295 = vmatpush.bf16.msra.mxu0 %v9393
    %11296 = vmatpush.bf16.msra.mxu0 %v9369
    %11297 = vmatpush.bf16.msra.mxu0 %v9345
    %11298 = vmatpush.bf16.msra.mxu0 %v9321
    %11299 = vmatpush.bf16.msra.mxu0 %v9297
    %11300 = vmatpush.bf16.msra.mxu0 %v9273
    %11301 = vmatpush.bf16.msra.mxu0 %v9249
    %11302 = vmatpush.bf16.msra.mxu0 %v9225
    %11303 = vmatmul.bf16.gmra.mxu0 %v6750
    %v11304 = vpop.f32.mrf.mxu0
    %v11305 = vadd.f32 %v7377, %v11304
    %v11306 = vpop.f32.mrf.mxu0
    %11307 = vdwg.mxu0
    %11308 = vmatpush.bf16.msra.mxu0 %v9585
    %11309 = vmatpush.bf16.msra.mxu0 %v9561
    %11310 = vmatpush.bf16.msra.mxu0 %v9537
    %11311 = vmatpush.bf16.msra.mxu0 %v9513
    %11312 = vmatpush.bf16.msra.mxu0 %v9489
    %11313 = vmatpush.bf16.msra.mxu0 %v9465
    %11314 = vmatpush.bf16.msra.mxu0 %v9441
    %11315 = vmatpush.bf16.msra.mxu0 %v9417
    %11316 = vmatmul.bf16.gmra.mxu0 %v6751
    %v11317 = vpop.f32.mrf.mxu0
    %v11318 = vadd.f32 %v11305, %v11317
    %v11319 = vpop.f32.mrf.mxu0
    %11320 = vdwg.mxu0
    %11321 = vmatpush.bf16.msra.mxu0 %v9777
    %11322 = vmatpush.bf16.msra.mxu0 %v9753
    %11323 = vmatpush.bf16.msra.mxu0 %v9729
    %11324 = vmatpush.bf16.msra.mxu0 %v9705
    %11325 = vmatpush.bf16.msra.mxu0 %v9681
    %11326 = vmatpush.bf16.msra.mxu0 %v9657
    %11327 = vmatpush.bf16.msra.mxu0 %v9633
    %11328 = vmatpush.bf16.msra.mxu0 %v9609
    %11329 = vmatmul.bf16.gmra.mxu0 %v6752
    %v11330 = vpop.f32.mrf.mxu0
    %v11331 = vadd.f32 %v11318, %v11330
    %v11332 = vpop.f32.mrf.mxu0
    %11333 = vdwg.mxu0
    %11334 = vmatpush.bf16.msra.mxu0 0
    %11335 = vmatpush.bf16.msra.mxu0 0
    %11336 = vmatpush.bf16.msra.mxu0 0
    %11337 = vmatpush.bf16.msra.mxu0 0
    %11338 = vmatpush.bf16.msra.mxu0 0
    %11339 = vmatpush.bf16.msra.mxu0 0
    %11340 = vmatpush.bf16.msra.mxu0 0
    %11341 = vmatpush.bf16.msra.mxu0 %v9801
    %11342 = vmatmul.bf16.gmra.mxu0 %v10409
    %v11343 = vpop.f32.mrf.mxu0
    %v11344 = vadd.f32 %v11331, %v11343
    %v11345 = vpop.f32.mrf.mxu0
    %11346 = vdwg.mxu0
    %11347 = vmatpush.bf16.msra.mxu0 %v9394
    %11348 = vmatpush.bf16.msra.mxu0 %v9370
    %11349 = vmatpush.bf16.msra.mxu0 %v9346
    %11350 = vmatpush.bf16.msra.mxu0 %v9322
    %11351 = vmatpush.bf16.msra.mxu0 %v9298
    %11352 = vmatpush.bf16.msra.mxu0 %v9274
    %11353 = vmatpush.bf16.msra.mxu0 %v9250
    %11354 = vmatpush.bf16.msra.mxu0 %v9226
    %11355 = vmatmul.bf16.gmra.mxu0 %v6750
    %v11356 = vpop.f32.mrf.mxu0
    %v11357 = vadd.f32 %v7378, %v11356
    %v11358 = vpop.f32.mrf.mxu0
    %11359 = vdwg.mxu0
    %11360 = vmatpush.bf16.msra.mxu0 %v9586
    %11361 = vmatpush.bf16.msra.mxu0 %v9562
    %11362 = vmatpush.bf16.msra.mxu0 %v9538
    %11363 = vmatpush.bf16.msra.mxu0 %v9514
    %11364 = vmatpush.bf16.msra.mxu0 %v9490
    %11365 = vmatpush.bf16.msra.mxu0 %v9466
    %11366 = vmatpush.bf16.msra.mxu0 %v9442
    %11367 = vmatpush.bf16.msra.mxu0 %v9418
    %11368 = vmatmul.bf16.gmra.mxu0 %v6751
    %v11369 = vpop.f32.mrf.mxu0
    %v11370 = vadd.f32 %v11357, %v11369
    %v11371 = vpop.f32.mrf.mxu0
    %11372 = vdwg.mxu0
    %11373 = vmatpush.bf16.msra.mxu0 %v9778
    %11374 = vmatpush.bf16.msra.mxu0 %v9754
    %11375 = vmatpush.bf16.msra.mxu0 %v9730
    %11376 = vmatpush.bf16.msra.mxu0 %v9706
    %11377 = vmatpush.bf16.msra.mxu0 %v9682
    %11378 = vmatpush.bf16.msra.mxu0 %v9658
    %11379 = vmatpush.bf16.msra.mxu0 %v9634
    %11380 = vmatpush.bf16.msra.mxu0 %v9610
    %11381 = vmatmul.bf16.gmra.mxu0 %v6752
    %v11382 = vpop.f32.mrf.mxu0
    %v11383 = vadd.f32 %v11370, %v11382
    %v11384 = vpop.f32.mrf.mxu0
    %11385 = vdwg.mxu0
    %11386 = vmatpush.bf16.msra.mxu0 0
    %11387 = vmatpush.bf16.msra.mxu0 0
    %11388 = vmatpush.bf16.msra.mxu0 0
    %11389 = vmatpush.bf16.msra.mxu0 0
    %11390 = vmatpush.bf16.msra.mxu0 0
    %11391 = vmatpush.bf16.msra.mxu0 0
    %11392 = vmatpush.bf16.msra.mxu0 0
    %11393 = vmatpush.bf16.msra.mxu0 %v9802
    %11394 = vmatmul.bf16.gmra.mxu0 %v10409
    %v11395 = vpop.f32.mrf.mxu0
    %v11396 = vadd.f32 %v11383, %v11395
    %v11397 = vpop.f32.mrf.mxu0
    %11398 = vdwg.mxu0
    %11399 = vmatpush.bf16.msra.mxu0 %v9395
    %11400 = vmatpush.bf16.msra.mxu0 %v9371
    %11401 = vmatpush.bf16.msra.mxu0 %v9347
    %11402 = vmatpush.bf16.msra.mxu0 %v9323
    %11403 = vmatpush.bf16.msra.mxu0 %v9299
    %11404 = vmatpush.bf16.msra.mxu0 %v9275
    %11405 = vmatpush.bf16.msra.mxu0 %v9251
    %11406 = vmatpush.bf16.msra.mxu0 %v9227
    %11407 = vmatmul.bf16.gmra.mxu0 %v6750
    %v11408 = vpop.f32.mrf.mxu0
    %v11409 = vadd.f32 %v7379, %v11408
    %v11410 = vpop.f32.mrf.mxu0
    %11411 = vdwg.mxu0
    %11412 = vmatpush.bf16.msra.mxu0 %v9587
    %11413 = vmatpush.bf16.msra.mxu0 %v9563
    %11414 = vmatpush.bf16.msra.mxu0 %v9539
    %11415 = vmatpush.bf16.msra.mxu0 %v9515
    %11416 = vmatpush.bf16.msra.mxu0 %v9491
    %11417 = vmatpush.bf16.msra.mxu0 %v9467
    %11418 = vmatpush.bf16.msra.mxu0 %v9443
    %11419 = vmatpush.bf16.msra.mxu0 %v9419
    %11420 = vmatmul.bf16.gmra.mxu0 %v6751
    %v11421 = vpop.f32.mrf.mxu0
    %v11422 = vadd.f32 %v11409, %v11421
    %v11423 = vpop.f32.mrf.mxu0
    %11424 = vdwg.mxu0
    %11425 = vmatpush.bf16.msra.mxu0 %v9779
    %11426 = vmatpush.bf16.msra.mxu0 %v9755
    %11427 = vmatpush.bf16.msra.mxu0 %v9731
    %11428 = vmatpush.bf16.msra.mxu0 %v9707
    %11429 = vmatpush.bf16.msra.mxu0 %v9683
    %11430 = vmatpush.bf16.msra.mxu0 %v9659
    %11431 = vmatpush.bf16.msra.mxu0 %v9635
    %11432 = vmatpush.bf16.msra.mxu0 %v9611
    %11433 = vmatmul.bf16.gmra.mxu0 %v6752
    %v11434 = vpop.f32.mrf.mxu0
    %v11435 = vadd.f32 %v11422, %v11434
    %v11436 = vpop.f32.mrf.mxu0
    %11437 = vdwg.mxu0
    %11438 = vmatpush.bf16.msra.mxu0 0
    %11439 = vmatpush.bf16.msra.mxu0 0
    %11440 = vmatpush.bf16.msra.mxu0 0
    %11441 = vmatpush.bf16.msra.mxu0 0
    %11442 = vmatpush.bf16.msra.mxu0 0
    %11443 = vmatpush.bf16.msra.mxu0 0
    %11444 = vmatpush.bf16.msra.mxu0 0
    %11445 = vmatpush.bf16.msra.mxu0 %v9803
    %11446 = vmatmul.bf16.gmra.mxu0 %v10409
    %v11447 = vpop.f32.mrf.mxu0
    %v11448 = vadd.f32 %v11435, %v11447
    %v11449 = vpop.f32.mrf.mxu0
    %11450 = vdwg.mxu0
    %11451 = vmatpush.bf16.msra.mxu0 %v9396
    %11452 = vmatpush.bf16.msra.mxu0 %v9372
    %11453 = vmatpush.bf16.msra.mxu0 %v9348
    %11454 = vmatpush.bf16.msra.mxu0 %v9324
    %11455 = vmatpush.bf16.msra.mxu0 %v9300
    %11456 = vmatpush.bf16.msra.mxu0 %v9276
    %11457 = vmatpush.bf16.msra.mxu0 %v9252
    %11458 = vmatpush.bf16.msra.mxu0 %v9228
    %11459 = vmatmul.bf16.gmra.mxu0 %v6750
    %v11460 = vpop.f32.mrf.mxu0
    %v11461 = vadd.f32 %v7380, %v11460
    %v11462 = vpop.f32.mrf.mxu0
    %11463 = vdwg.mxu0
    %11464 = vmatpush.bf16.msra.mxu0 %v9588
    %11465 = vmatpush.bf16.msra.mxu0 %v9564
    %11466 = vmatpush.bf16.msra.mxu0 %v9540
    %11467 = vmatpush.bf16.msra.mxu0 %v9516
    %11468 = vmatpush.bf16.msra.mxu0 %v9492
    %11469 = vmatpush.bf16.msra.mxu0 %v9468
    %11470 = vmatpush.bf16.msra.mxu0 %v9444
    %11471 = vmatpush.bf16.msra.mxu0 %v9420
    %11472 = vmatmul.bf16.gmra.mxu0 %v6751
    %v11473 = vpop.f32.mrf.mxu0
    %v11474 = vadd.f32 %v11461, %v11473
    %v11475 = vpop.f32.mrf.mxu0
    %11476 = vdwg.mxu0
    %11477 = vmatpush.bf16.msra.mxu0 %v9780
    %11478 = vmatpush.bf16.msra.mxu0 %v9756
    %11479 = vmatpush.bf16.msra.mxu0 %v9732
    %11480 = vmatpush.bf16.msra.mxu0 %v9708
    %11481 = vmatpush.bf16.msra.mxu0 %v9684
    %11482 = vmatpush.bf16.msra.mxu0 %v9660
    %11483 = vmatpush.bf16.msra.mxu0 %v9636
    %11484 = vmatpush.bf16.msra.mxu0 %v9612
    %11485 = vmatmul.bf16.gmra.mxu0 %v6752
    %v11486 = vpop.f32.mrf.mxu0
    %v11487 = vadd.f32 %v11474, %v11486
    %v11488 = vpop.f32.mrf.mxu0
    %11489 = vdwg.mxu0
    %11490 = vmatpush.bf16.msra.mxu0 0
    %11491 = vmatpush.bf16.msra.mxu0 0
    %11492 = vmatpush.bf16.msra.mxu0 0
    %11493 = vmatpush.bf16.msra.mxu0 0
    %11494 = vmatpush.bf16.msra.mxu0 0
    %11495 = vmatpush.bf16.msra.mxu0 0
    %11496 = vmatpush.bf16.msra.mxu0 0
    %11497 = vmatpush.bf16.msra.mxu0 %v9804
    %11498 = vmatmul.bf16.gmra.mxu0 %v10409
    %v11499 = vpop.f32.mrf.mxu0
    %v11500 = vadd.f32 %v11487, %v11499
    %v11501 = vpop.f32.mrf.mxu0
    %11502 = vdwg.mxu0
    %11503 = vmatpush.bf16.msra.mxu0 %v9397
    %11504 = vmatpush.bf16.msra.mxu0 %v9373
    %11505 = vmatpush.bf16.msra.mxu0 %v9349
    %11506 = vmatpush.bf16.msra.mxu0 %v9325
    %11507 = vmatpush.bf16.msra.mxu0 %v9301
    %11508 = vmatpush.bf16.msra.mxu0 %v9277
    %11509 = vmatpush.bf16.msra.mxu0 %v9253
    %11510 = vmatpush.bf16.msra.mxu0 %v9229
    %11511 = vmatmul.bf16.gmra.mxu0 %v6750
    %v11512 = vpop.f32.mrf.mxu0
    %v11513 = vadd.f32 %v7381, %v11512
    %v11514 = vpop.f32.mrf.mxu0
    %11515 = vdwg.mxu0
    %11516 = vmatpush.bf16.msra.mxu0 %v9589
    %11517 = vmatpush.bf16.msra.mxu0 %v9565
    %11518 = vmatpush.bf16.msra.mxu0 %v9541
    %11519 = vmatpush.bf16.msra.mxu0 %v9517
    %11520 = vmatpush.bf16.msra.mxu0 %v9493
    %11521 = vmatpush.bf16.msra.mxu0 %v9469
    %11522 = vmatpush.bf16.msra.mxu0 %v9445
    %11523 = vmatpush.bf16.msra.mxu0 %v9421
    %11524 = vmatmul.bf16.gmra.mxu0 %v6751
    %v11525 = vpop.f32.mrf.mxu0
    %v11526 = vadd.f32 %v11513, %v11525
    %v11527 = vpop.f32.mrf.mxu0
    %11528 = vdwg.mxu0
    %11529 = vmatpush.bf16.msra.mxu0 %v9781
    %11530 = vmatpush.bf16.msra.mxu0 %v9757
    %11531 = vmatpush.bf16.msra.mxu0 %v9733
    %11532 = vmatpush.bf16.msra.mxu0 %v9709
    %11533 = vmatpush.bf16.msra.mxu0 %v9685
    %11534 = vmatpush.bf16.msra.mxu0 %v9661
    %11535 = vmatpush.bf16.msra.mxu0 %v9637
    %11536 = vmatpush.bf16.msra.mxu0 %v9613
    %11537 = vmatmul.bf16.gmra.mxu0 %v6752
    %v11538 = vpop.f32.mrf.mxu0
    %v11539 = vadd.f32 %v11526, %v11538
    %v11540 = vpop.f32.mrf.mxu0
    %11541 = vdwg.mxu0
    %11542 = vmatpush.bf16.msra.mxu0 0
    %11543 = vmatpush.bf16.msra.mxu0 0
    %11544 = vmatpush.bf16.msra.mxu0 0
    %11545 = vmatpush.bf16.msra.mxu0 0
    %11546 = vmatpush.bf16.msra.mxu0 0
    %11547 = vmatpush.bf16.msra.mxu0 0
    %11548 = vmatpush.bf16.msra.mxu0 0
    %11549 = vmatpush.bf16.msra.mxu0 %v9805
    %11550 = vmatmul.bf16.gmra.mxu0 %v10409
    %v11551 = vpop.f32.mrf.mxu0
    %v11552 = vadd.f32 %v11539, %v11551
    %v11553 = vpop.f32.mrf.mxu0
    %11554 = vdwg.mxu0
    %11555 = vmatpush.bf16.msra.mxu0 %v9398
    %11556 = vmatpush.bf16.msra.mxu0 %v9374
    %11557 = vmatpush.bf16.msra.mxu0 %v9350
    %11558 = vmatpush.bf16.msra.mxu0 %v9326
    %11559 = vmatpush.bf16.msra.mxu0 %v9302
    %11560 = vmatpush.bf16.msra.mxu0 %v9278
    %11561 = vmatpush.bf16.msra.mxu0 %v9254
    %11562 = vmatpush.bf16.msra.mxu0 %v9230
    %11563 = vmatmul.bf16.gmra.mxu0 %v6750
    %v11564 = vpop.f32.mrf.mxu0
    %v11565 = vadd.f32 %v7382, %v11564
    %v11566 = vpop.f32.mrf.mxu0
    %11567 = vdwg.mxu0
    %11568 = vmatpush.bf16.msra.mxu0 %v9590
    %11569 = vmatpush.bf16.msra.mxu0 %v9566
    %11570 = vmatpush.bf16.msra.mxu0 %v9542
    %11571 = vmatpush.bf16.msra.mxu0 %v9518
    %11572 = vmatpush.bf16.msra.mxu0 %v9494
    %11573 = vmatpush.bf16.msra.mxu0 %v9470
    %11574 = vmatpush.bf16.msra.mxu0 %v9446
    %11575 = vmatpush.bf16.msra.mxu0 %v9422
    %11576 = vmatmul.bf16.gmra.mxu0 %v6751
    %v11577 = vpop.f32.mrf.mxu0
    %v11578 = vadd.f32 %v11565, %v11577
    %v11579 = vpop.f32.mrf.mxu0
    %11580 = vdwg.mxu0
    %11581 = vmatpush.bf16.msra.mxu0 %v9782
    %11582 = vmatpush.bf16.msra.mxu0 %v9758
    %11583 = vmatpush.bf16.msra.mxu0 %v9734
    %11584 = vmatpush.bf16.msra.mxu0 %v9710
    %11585 = vmatpush.bf16.msra.mxu0 %v9686
    %11586 = vmatpush.bf16.msra.mxu0 %v9662
    %11587 = vmatpush.bf16.msra.mxu0 %v9638
    %11588 = vmatpush.bf16.msra.mxu0 %v9614
    %11589 = vmatmul.bf16.gmra.mxu0 %v6752
    %v11590 = vpop.f32.mrf.mxu0
    %v11591 = vadd.f32 %v11578, %v11590
    %v11592 = vpop.f32.mrf.mxu0
    %11593 = vdwg.mxu0
    %11594 = vmatpush.bf16.msra.mxu0 0
    %11595 = vmatpush.bf16.msra.mxu0 0
    %11596 = vmatpush.bf16.msra.mxu0 0
    %11597 = vmatpush.bf16.msra.mxu0 0
    %11598 = vmatpush.bf16.msra.mxu0 0
    %11599 = vmatpush.bf16.msra.mxu0 0
    %11600 = vmatpush.bf16.msra.mxu0 0
    %11601 = vmatpush.bf16.msra.mxu0 %v9806
    %11602 = vmatmul.bf16.gmra.mxu0 %v10409
    %v11603 = vpop.f32.mrf.mxu0
    %v11604 = vadd.f32 %v11591, %v11603
    %v11605 = vpop.f32.mrf.mxu0
    %11606 = vdwg.mxu0
    %11607 = vmatpush.bf16.msra.mxu0 %v9399
    %11608 = vmatpush.bf16.msra.mxu0 %v9375
    %11609 = vmatpush.bf16.msra.mxu0 %v9351
    %11610 = vmatpush.bf16.msra.mxu0 %v9327
    %11611 = vmatpush.bf16.msra.mxu0 %v9303
    %11612 = vmatpush.bf16.msra.mxu0 %v9279
    %11613 = vmatpush.bf16.msra.mxu0 %v9255
    %11614 = vmatpush.bf16.msra.mxu0 %v9231
    %11615 = vmatmul.bf16.gmra.mxu0 %v6750
    %v11616 = vpop.f32.mrf.mxu0
    %v11617 = vadd.f32 %v7383, %v11616
    %v11618 = vpop.f32.mrf.mxu0
    %11619 = vdwg.mxu0
    %11620 = vmatpush.bf16.msra.mxu0 %v9591
    %11621 = vmatpush.bf16.msra.mxu0 %v9567
    %11622 = vmatpush.bf16.msra.mxu0 %v9543
    %11623 = vmatpush.bf16.msra.mxu0 %v9519
    %11624 = vmatpush.bf16.msra.mxu0 %v9495
    %11625 = vmatpush.bf16.msra.mxu0 %v9471
    %11626 = vmatpush.bf16.msra.mxu0 %v9447
    %11627 = vmatpush.bf16.msra.mxu0 %v9423
    %11628 = vmatmul.bf16.gmra.mxu0 %v6751
    %v11629 = vpop.f32.mrf.mxu0
    %v11630 = vadd.f32 %v11617, %v11629
    %v11631 = vpop.f32.mrf.mxu0
    %11632 = vdwg.mxu0
    %11633 = vmatpush.bf16.msra.mxu0 %v9783
    %11634 = vmatpush.bf16.msra.mxu0 %v9759
    %11635 = vmatpush.bf16.msra.mxu0 %v9735
    %11636 = vmatpush.bf16.msra.mxu0 %v9711
    %11637 = vmatpush.bf16.msra.mxu0 %v9687
    %11638 = vmatpush.bf16.msra.mxu0 %v9663
    %11639 = vmatpush.bf16.msra.mxu0 %v9639
    %11640 = vmatpush.bf16.msra.mxu0 %v9615
    %11641 = vmatmul.bf16.gmra.mxu0 %v6752
    %v11642 = vpop.f32.mrf.mxu0
    %v11643 = vadd.f32 %v11630, %v11642
    %v11644 = vpop.f32.mrf.mxu0
    %11645 = vdwg.mxu0
    %11646 = vmatpush.bf16.msra.mxu0 0
    %11647 = vmatpush.bf16.msra.mxu0 0
    %11648 = vmatpush.bf16.msra.mxu0 0
    %11649 = vmatpush.bf16.msra.mxu0 0
    %11650 = vmatpush.bf16.msra.mxu0 0
    %11651 = vmatpush.bf16.msra.mxu0 0
    %11652 = vmatpush.bf16.msra.mxu0 0
    %11653 = vmatpush.bf16.msra.mxu0 %v9807
    %11654 = vmatmul.bf16.gmra.mxu0 %v10409
    %v11655 = vpop.f32.mrf.mxu0
    %v11656 = vadd.f32 %v11643, %v11655
    %v11657 = vpop.f32.mrf.mxu0
    %11658 = vdwg.mxu0
    %v11659 = vtanh.pop %v10460
    %v11660 = vtanh.pop %v10512
    %v11661 = vtanh.pop %v10564
    %v11662 = vtanh.pop %v10616
    %v11663 = vtanh.pop %v10668
    %v11664 = vtanh.pop %v10720
    %v11665 = vtanh.pop %v10772
    %v11666 = vtanh.pop %v10824
    %v11667 = vtanh.pop %v10876
    %v11668 = vtanh.pop %v10928
    %v11669 = vtanh.pop %v10980
    %v11670 = vtanh.pop %v11032
    %v11671 = vtanh.pop %v11084
    %v11672 = vtanh.pop %v11136
    %v11673 = vtanh.pop %v11188
    %v11674 = vtanh.pop %v11240
    %v11675 = vtanh.pop %v11292
    %v11676 = vtanh.pop %v11344
    %v11677 = vtanh.pop %v11396
    %v11678 = vtanh.pop %v11448
    %v11679 = vtanh.pop %v11500
    %v11680 = vtanh.pop %v11552
    %v11681 = vtanh.pop %v11604
    %v11682 = vtanh.pop %v11656
    %11683 = vst [vmem:[#allocation2] sm:$0xff] %v11659
    %11684 = vst [vmem:[#allocation2 + $0x8] sm:$0xff] %v11660
    %11685 = vst [vmem:[#allocation2 + $0x10] sm:$0xff] %v11661
    %11686 = vst [vmem:[#allocation2 + $0x18] sm:$0xff] %v11662
    %11687 = vst [vmem:[#allocation2 + $0x20] sm:$0xff] %v11663
    %11688 = vst [vmem:[#allocation2 + $0x28] sm:$0xff] %v11664
    %11689 = vst [vmem:[#allocation2 + $0x30] sm:$0xff] %v11665
    %11690 = vst [vmem:[#allocation2 + $0x38] sm:$0xff] %v11666
    %11691 = vst [vmem:[#allocation2 + $0x40] sm:$0xff] %v11667
    %11692 = vst [vmem:[#allocation2 + $0x48] sm:$0xff] %v11668
    %11693 = vst [vmem:[#allocation2 + $0x50] sm:$0xff] %v11669
    %11694 = vst [vmem:[#allocation2 + $0x58] sm:$0xff] %v11670
    %11695 = vst [vmem:[#allocation2 + $0x60] sm:$0xff] %v11671
    %11696 = vst [vmem:[#allocation2 + $0x68] sm:$0xff] %v11672
    %11697 = vst [vmem:[#allocation2 + $0x70] sm:$0xff] %v11673
    %11698 = vst [vmem:[#allocation2 + $0x78] sm:$0xff] %v11674
    %11699 = vst [vmem:[#allocation2 + $0x80] sm:$0xff] %v11675
    %11700 = vst [vmem:[#allocation2 + $0x88] sm:$0xff] %v11676
    %11701 = vst [vmem:[#allocation2 + $0x90] sm:$0xff] %v11677
    %11702 = vst [vmem:[#allocation2 + $0x98] sm:$0xff] %v11678
    %11703 = vst [vmem:[#allocation2 + $0xa0] sm:$0xff] %v11679
    %11704 = vst [vmem:[#allocation2 + $0xa8] sm:$0xff] %v11680
    %11705 = vst [vmem:[#allocation2 + $0xb0] sm:$0xff] %v11681
    %11706 = vst [vmem:[#allocation2 + $0xb8] sm:$0xff] %v11682
    %11707 = vst [vmem:[#allocation4] sm:$0xff] %v6226
    %11708 = vst [vmem:[#allocation6] sm:$0xff] %v6482
    // Predicated region
    $region50: #{tpu_custom_call.1} parent=1 // pred_check
      _
    $region51: #{tpu_custom_call.1} parent=1 // pred_check_branch
      %11710 = sbr.rel (0) target = $region53
    $region52: #{tpu_custom_call.1} parent=1 // pred_region
      %11712 = vsyncadd [#allocation3], 0
      %s11714 = sshll.u32 [#allocation2], 4
      %s11715 = int_to_ptr.vmem [resolvable:$true] %s11714
      %s11716 = sshll.u32 %s12, 4
      %s11717 = int_to_ptr.hbm [resolvable:$true] %s11716
      %11719 = dma.vmem_to_hbm [thread:$0]  %s11715, 3072, %s11717, [#allocation3]
    $region53: #{tpu_custom_call.1} parent=1 // pred_fallthru
      _
    // Predicated region
    $region54: #{tpu_custom_call.1} parent=1 // pred_check
      _
    $region55: #{tpu_custom_call.1} parent=1 // pred_check_branch
      %11721 = sbr.rel (0) target = $region57
    $region56: #{tpu_custom_call.1} parent=1 // pred_region
      %11723 = vsyncadd [#allocation5], 0
      %s11725 = sshll.u32 [#allocation4], 4
      %s11726 = int_to_ptr.vmem [resolvable:$true] %s11725
      %s11727 = sshll.u32 %s13, 4
      %s11728 = int_to_ptr.hbm [resolvable:$true] %s11727
      %11730 = dma.vmem_to_hbm [thread:$0]  %s11726, 128, %s11728, [#allocation5]
    $region57: #{tpu_custom_call.1} parent=1 // pred_fallthru
      _
    // Predicated region
    $region58: #{tpu_custom_call.1} parent=1 // pred_check
      _
    $region59: #{tpu_custom_call.1} parent=1 // pred_check_branch
      %11732 = sbr.rel (0) target = $region61
    $region60: #{tpu_custom_call.1} parent=1 // pred_region
      %11734 = vsyncadd [#allocation5], 0
      %s11736 = sshll.u32 [#allocation6], 4
      %s11737 = int_to_ptr.vmem [resolvable:$true] %s11736
      %s11738 = sshll.u32 %s14, 4
      %s11739 = int_to_ptr.hbm [resolvable:$true] %s11738
      %11741 = dma.vmem_to_hbm [thread:$0]  %s11737, 128, %s11739, [#allocation5]
    $region61: #{tpu_custom_call.1} parent=1 // pred_fallthru
      _
    // Predicated region
    $region62: #{tpu_custom_call.1} parent=1 // pred_check
      _
    $region63: #{tpu_custom_call.1} parent=1 // pred_check_branch
      %11743 = sbr.rel (0) target = $region65
    $region64: #{tpu_custom_call.1} parent=1 // pred_region
      %11745 = dma.done [#allocation3], 3072
    $region65: #{tpu_custom_call.1} parent=1 // pred_fallthru
      _
    // Predicated region
    $region66: #{tpu_custom_call.1} parent=1 // pred_check
      _
    $region67: #{tpu_custom_call.1} parent=1 // pred_check_branch
      %11747 = sbr.rel (0) target = $region69
    $region68: #{tpu_custom_call.1} parent=1 // pred_region
      %11749 = dma.done [#allocation5], 128
    $region69: #{tpu_custom_call.1} parent=1 // pred_fallthru
      _
    // Predicated region
    $region70: #{tpu_custom_call.1} parent=1 // pred_check
      _
    $region71: #{tpu_custom_call.1} parent=1 // pred_check_branch
      %11751 = sbr.rel (0) target = $region73
    $region72: #{tpu_custom_call.1} parent=1 // pred_region
      %11753 = dma.done [#allocation5], 128
    $region73: #{tpu_custom_call.1} parent=1 // pred_fallthru
      _
    %11754 = vsyncpa [#allocation3], 1
    %11755 = vsyncpa [#allocation5], 1

</llo_original>
